<compile_context>
chip_gen: v5e
topology: v5e:2x2
jax: 0.10.0
libtpu: 0.0.40
codegen_flags: <defaults>
</compile_context>

<pallas_src>
import functools

import numpy as np
import jax
import jax.numpy as jnp
from jax.experimental import pallas as pl
from jax.experimental.pallas import tpu as pltpu


# ----------------------------------------------------------------------------
# Host-side (numpy) constant builders — computed once per (shape, win) config
# and fed to the kernel as VMEM-resident inputs with constant index_maps.
# ----------------------------------------------------------------------------
def _fspecial_gauss_1d(size, sigma):
    coords = np.arange(size, dtype=np.float64) - size // 2
    g = np.exp(-(coords ** 2) / (2.0 * sigma * sigma))
    g = g / g.sum()
    return g.astype(np.float32)


def _blur_right_mat(w, taps):
    """(W, W-ws+1): (img @ M) == valid 1-D correlation along the last (lane) dim."""
    ws = len(taps)
    wo = w - ws + 1
    m = np.zeros((w, wo), np.float32)
    for i in range(wo):
        m[i:i + ws, i] = taps
    return m


def _blur_left_mat(h, taps):
    """(H-ws+1, H): (M @ img) == valid 1-D correlation along the first (sublane) dim."""
    return np.ascontiguousarray(_blur_right_mat(h, taps).T)


def _pool_right_mat(w, pad):
    """(W, Wn): img @ M == 1-D avg-pool (k=2, s=2, zero pad, count_include_pad=True)."""
    wn = (w + 2 * pad) // 2
    m = np.zeros((w, wn), np.float32)
    for i in range(wn):
        for j in (2 * i - pad, 2 * i + 1 - pad):
            if 0 <= j < w:
                m[j, i] = 0.5
    return m


def _pool_left_mat(h, pad):
    return np.ascontiguousarray(_pool_right_mat(h, pad).T)


def _level_plan(h, w, win_size, levels):
    """Static per-level geometry: (H, W, has_gw, has_gh, Hp, Wp, has_pool, Hn, Wn)."""
    plan = []
    H, W = h, w
    for lvl in range(levels):
        has_gw = W >= win_size          # torch's gaussian_filter skips dims < win
        has_gh = H >= win_size
        Hp = H - win_size + 1 if has_gh else H
        Wp = W - win_size + 1 if has_gw else W
        has_pool = lvl < levels - 1
        if has_pool:
            Hn = (H + 2 * (H % 2)) // 2
            Wn = (W + 2 * (W % 2)) // 2
        else:
            Hn = Wn = 0
        plan.append((H, W, has_gw, has_gh, Hp, Wp, has_pool, Hn, Wn))
        if has_pool:
            H, W = Hn, Wn
    return tuple(plan)


def _build_matrices(plan, taps):
    """Flat list of constant matrices, per level in order: [GW?, GH?, PB?, PA?]."""
    mats = []
    for (H, W, has_gw, has_gh, _Hp, _Wp, has_pool, _Hn, _Wn) in plan:
        if has_gw:
            mats.append(_blur_right_mat(W, taps))
        if has_gh:
            mats.append(_blur_left_mat(H, taps))
        if has_pool:
            mats.append(_pool_right_mat(W, W % 2))
            mats.append(_pool_left_mat(H, H % 2))
    return mats


def _pick_batch(nc, h, w, itemsize):
    """Largest divisor of nc that fits the VMEM budget; prefer >= 2 grid steps."""
    per_pair = (4 * itemsize + 26 * 4) * h * w   # dbl-buffered inputs + f32 working set
    budget = 20 * 1024 * 1024
    max_b = int(min(max(budget // max(per_pair, 1), 1), 64))
    best = 1
    for d in range(1, nc + 1):
        if nc % d == 0 and d <= max_b:
            best = d
    if nc // best < 2:                           # keep both v7x TensorCores busy
        for d in range(best - 1, 0, -1):
            if nc % d == 0 and nc // d >= 2:
                best = d
                break
    return best


# ----------------------------------------------------------------------------
# In-kernel helpers
# ----------------------------------------------------------------------------
def _sep_apply(ops, gw, gh):
    """Apply a separable (right, left) constant-matrix pair to a stack of maps.

    ops: (M, H, W) f32.  gw: (W, Wp) or None.  gh: (Hp, H) or None.
    Returns (M, Hp, Wp).  Lane-direction pass is one big 2-D MXU call when the
    sublane count allows a free reshape; sublane-direction pass is a batched einsum.
    """
    f32 = jnp.float32
    M, H, W = ops.shape
    t = ops
    if gw is not None:
        Wp = gw.shape[1]
        if H % 8 == 0:
            # One MXU call for all M maps: weights (W, Wp) pushed once, rows = M*H.
            t = jnp.dot(t.reshape(M * H, W), gw,
                        preferred_element_type=f32).reshape(M, H, Wp)
        else:
            gw_b = jnp.broadcast_to(gw[None], (M, W, Wp))
            t = jnp.einsum('mhw,mwk->mhk', t, gw_b, preferred_element_type=f32)
    if gh is not None:
        Hp = gh.shape[0]
        gh_b = jnp.broadcast_to(gh[None], (M, Hp, H))
        t = jnp.einsum('mrh,mhw->mrw', gh_b, t, preferred_element_type=f32)
    return t


def _ms_ssim_kernel(x_ref, y_ref, *rest, B, level_meta, weights, c1, c2):
    """One grid step == B (n, c) image pairs; full MS-SSIM pyramid stays in VMEM."""
    mat_refs = rest[:-1]
    o_ref = rest[-1]
    f32 = jnp.float32

    x = x_ref[...].astype(f32)     # (B, H0, W0)
    y = y_ref[...].astype(f32)

    levels = len(level_meta)
    msprod = None
    mi = 0
    # NOTE: everything stays f32 — sigma = blur(x*x) - mu^2 is cancellation-prone.
    for lvl in range(levels):
        H, W, has_gw, has_gh, Hp, Wp, has_pool, Hn, Wn = level_meta[lvl]
        gw = gh = pb = pa = None
        if has_gw:
            gw = mat_refs[mi][...]; mi += 1
        if has_gh:
            gh = mat_refs[mi][...]; mi += 1
        if has_pool:
            pb = mat_refs[mi][...]; mi += 1
            pa = mat_refs[mi][...]; mi += 1

        # Five blur operands of all B pairs share one separable-blur pass.
        ops = jnp.concatenate([x, y, x * x, y * y, x * y], axis=0)   # (5B, H, W)
        blur = _sep_apply(ops, gw, gh)                               # (5B, Hp, Wp)
        mu1, mu2 = blur[0:B], blur[B:2 * B]
        ex2, ey2, exy = blur[2 * B:3 * B], blur[3 * B:4 * B], blur[4 * B:5 * B]

        mu1_sq = mu1 * mu1
        mu2_sq = mu2 * mu2
        mu1_mu2 = mu1 * mu2
        sigma1_sq = ex2 - mu1_sq
        sigma2_sq = ey2 - mu2_sq
        sigma12 = exy - mu1_mu2

        cs_map = (2.0 * sigma12 + c2) / (sigma1_sq + sigma2_sq + c2)
        if lvl == levels - 1:
            # ssim_map is only needed on the final level.
            val_map = ((2.0 * mu1_mu2 + c1) / (mu1_sq + mu2_sq + c1)) * cs_map
        else:
            val_map = cs_map

        # Per-pair spatial mean, relu, then fold in (** weight) via exp/log (EUP).
        v = jnp.sum(jnp.sum(val_map, axis=2, keepdims=True), axis=1, keepdims=True)
        v = jnp.maximum(v * (1.0 / float(Hp * Wp)), 0.0)             # (B, 1, 1)
        w_l = float(weights[lvl])
        term = jnp.where(v > 0.0,
                         jnp.exp(w_l * jnp.log(jnp.maximum(v, 1e-30))),
                         jnp.zeros_like(v))                           # 0 ** w == 0
        msprod = term if msprod is None else msprod * term

        if has_pool:
            pooled = _sep_apply(jnp.concatenate([x, y], axis=0), pb, pa)  # (2B, Hn, Wn)
            x = pooled[0:B]
            y = pooled[B:2 * B]

    # One small lane-dense tile per grid step: row b holds pair b's MS-SSIM value.
    rows = [jnp.broadcast_to(msprod[b], (1, 128)) for b in range(B)]
    o_ref[0] = jnp.concatenate(rows, axis=0)                          # (B, 128)


# ----------------------------------------------------------------------------
# Public functional interface (mirrors pytorch ms_ssim forward)
# ----------------------------------------------------------------------------
def ms_ssim(X, Y, data_range=255, size_average=True, win_size=11, win_sigma=1.5,
            win=None, weights=None, K=(0.01, 0.03)):
    if X.shape != Y.shape:
        raise ValueError('Input images should have the same dimensions.')

    # squeeze trailing singleton dims (>= dim 2), as in the reference code
    for d in range(X.ndim - 1, 1, -1):
        if X.shape[d] == 1:
            X = jnp.squeeze(X, axis=d)
            Y = jnp.squeeze(Y, axis=d)

    if X.dtype != Y.dtype:
        raise ValueError('Input images should have the same dtype.')
    if X.ndim == 5:
        # TODO(synk): 3-D (video) MS-SSIM / conv3d path not implemented.
        raise NotImplementedError('5-d inputs are not supported by the Pallas port.')
    if X.ndim != 4:
        raise ValueError(f'Input images should be 4-d tensors, but got {X.shape}')

    if win is not None:
        win_size = len(win)
        taps = np.asarray(win, np.float32).reshape(-1)
    else:
        taps = _fspecial_gauss_1d(win_size, win_sigma)
    if win_size % 2 != 1:
        raise ValueError('Window size should be odd.')

    smaller_side = min(X.shape[-2:])
    assert smaller_side > (win_size - 1) * 2 ** 4, (
        'Image size should be larger than %d due to the 4 downsamplings in ms-ssim'
        % ((win_size - 1) * 2 ** 4))

    if weights is None:
        weights = [0.0448, 0.2856, 0.3001, 0.2363, 0.1333]
    weights = [float(v) for v in weights]
    levels = len(weights)
    c1 = float((K[0] * data_range) ** 2)
    c2 = float((K[1] * data_range) ** 2)

    n, c, h, w = X.shape
    nc = n * c
    itemsize = int(np.dtype(X.dtype).itemsize)

    plan = _level_plan(h, w, win_size, levels)
    mats_np = _build_matrices(plan, taps)
    B = _pick_batch(nc, h, w, itemsize)
    G = nc // B

    x2 = X.reshape(nc, h, w)      # no host-side cast: kernel casts once in VMEM
    y2 = Y.reshape(nc, h, w)
    mats = [jnp.asarray(m) for m in mats_np]

    kern = functools.partial(_ms_ssim_kernel, B=B, level_meta=plan,
                             weights=tuple(weights), c1=c1, c2=c2)

    in_specs = [pl.BlockSpec((B, h, w), lambda i: (i, 0, 0)),
                pl.BlockSpec((B, h, w), lambda i: (i, 0, 0))]
    # Constant index_map: blur/pool matrices are DMA'd once and stay VMEM-resident.
    in_specs += [pl.BlockSpec(m.shape, lambda i: (0, 0)) for m in mats_np]

    # VMEM budget: double-buffered inputs + f32 working set + resident matrices.
    mats_bytes = sum(int(m.size) * 4 for m in mats_np)
    est = (mats_bytes + 4 * B * h * w * itemsize + 26 * B * h * w * 4
           + 2 * B * 128 * 4)
    vmem_limit = int(min(max(2 * est, 32 * 1024 * 1024), 56 * 1024 * 1024))

    flops = 0
    for (H, W, has_gw, has_gh, Hp, Wp, has_pool, Hn, Wn) in plan:
        if has_gw:
            flops += 2 * 5 * B * H * W * Wp
        if has_gh:
            flops += 2 * 5 * B * Hp * H * Wp
        flops += 20 * 5 * B * Hp * Wp
        if has_pool:
            flops += 2 * 2 * B * (H * W * Wn + Hn * H * Wn)
    flops *= G
    cost = pl.CostEstimate(
        flops=int(flops),
        transcendentals=int(2 * nc * levels),
        bytes_accessed=int(2 * nc * h * w * itemsize + mats_bytes + G * B * 128 * 4))

    out = pl.pallas_call(
        kern,
        out_shape=jax.ShapeDtypeStruct((G, B, 128), jnp.float32),
        grid=(G,),
        in_specs=in_specs,
        out_specs=pl.BlockSpec((1, B, 128), lambda i: (i, 0, 0)),
        compiler_params=pltpu.CompilerParams(
            dimension_semantics=("parallel",),
            vmem_limit_bytes=vmem_limit),
        cost_estimate=cost,
    )(x2, y2, *mats)

    # Tiny epilogue: (G, B) scalars -> (n, c) -> mean.
    ms_vals = out[:, :, 0].reshape(n, c)
    if size_average:
        return ms_vals.mean()
    return ms_vals.mean(axis=1)


# ----------------------------------------------------------------------------
# MS_SSIMLoss module equivalent (forward only; TODO(synk): custom_vjp for grad)
# ----------------------------------------------------------------------------
class MS_SSIMLossPallas:
    def __init__(self, data_range=255, size_average=True, win_size=11, win_sigma=1.5,
                 channel=3, spatial_dims=2, weights=None, K=(0.01, 0.03)):
        if spatial_dims != 2:
            # TODO(synk): only 2-D spatial inputs are supported.
            raise NotImplementedError('Only spatial_dims=2 is supported.')
        self.win_size = win_size
        # The per-channel repeat in the reference is redundant (same taps per channel).
        self.win = tuple(float(v) for v in _fspecial_gauss_1d(win_size, win_sigma))
        self.size_average = size_average
        self.data_range = data_range
        self.weights = weights
        self.K = K

    def __call__(self, X, Y):
        return ms_ssim(X, Y, data_range=self.data_range, size_average=self.size_average,
                       win=self.win, weights=self.weights, K=self.K)


# ----------------------------------------------------------------------------
if __name__ == "__main__":
    key = jax.random.PRNGKey(0)
    kx, ky = jax.random.split(key)
    # MS-SSIM requires min(H, W) > (win_size - 1) * 16.  With win_size=3 a 64x64
    # image is the smallest clean size exercising all 5 scales (64->32->16->8->4).
    x = jax.random.uniform(kx, (2, 3, 64, 64), jnp.float32)
    y = jax.random.uniform(ky, (2, 3, 64, 64), jnp.float32)

    loss_mod = MS_SSIMLossPallas(data_range=1.0, size_average=True,
                                 win_size=3, win_sigma=1.5, channel=3)
    loss = loss_mod(x, y)
    jax.block_until_ready(loss)
    assert bool(jnp.isfinite(loss)), "non-finite MS-SSIM value"
    print("KERNEL_OK")
</pallas_src>

<mosaic_0001>
module attributes {stable_mosaic.version = 11 : i64} {
  func.func @_ms_ssim_kernel(%arg0: i32, %arg1: memref<3x64x64xf32, #tpu.memory_space<vmem>>, %arg2: memref<3x64x64xf32, #tpu.memory_space<vmem>>, %arg3: memref<64x62xf32, #tpu.memory_space<vmem>>, %arg4: memref<62x64xf32, #tpu.memory_space<vmem>>, %arg5: memref<64x32xf32, #tpu.memory_space<vmem>>, %arg6: memref<32x64xf32, #tpu.memory_space<vmem>>, %arg7: memref<32x30xf32, #tpu.memory_space<vmem>>, %arg8: memref<30x32xf32, #tpu.memory_space<vmem>>, %arg9: memref<32x16xf32, #tpu.memory_space<vmem>>, %arg10: memref<16x32xf32, #tpu.memory_space<vmem>>, %arg11: memref<16x14xf32, #tpu.memory_space<vmem>>, %arg12: memref<14x16xf32, #tpu.memory_space<vmem>>, %arg13: memref<16x8xf32, #tpu.memory_space<vmem>>, %arg14: memref<8x16xf32, #tpu.memory_space<vmem>>, %arg15: memref<8x6xf32, #tpu.memory_space<vmem>>, %arg16: memref<6x8xf32, #tpu.memory_space<vmem>>, %arg17: memref<8x4xf32, #tpu.memory_space<vmem>>, %arg18: memref<4x8xf32, #tpu.memory_space<vmem>>, %arg19: memref<4x2xf32, #tpu.memory_space<vmem>>, %arg20: memref<2x4xf32, #tpu.memory_space<vmem>>, %arg21: memref<1x3x128xf32, #tpu.memory_space<vmem>>) attributes {dimension_semantics = [#tpu.dimension_semantics<parallel>], iteration_bounds = array<i64: 2>, scalar_prefetch = 0 : i64, scratch_operands = 0 : i64, tpu.core_type = #tpu.core_type<tc>, window_params = [{transform_indices = @transform_0, window_bounds = array<i64: 3, 64, 64>}, {transform_indices = @transform_1, window_bounds = array<i64: 3, 64, 64>}, {pipeline_mode = #tpu.pipeline_mode<synchronous>, transform_indices = @transform_2, window_bounds = array<i64: 64, 62>}, {pipeline_mode = #tpu.pipeline_mode<synchronous>, transform_indices = @transform_3, window_bounds = array<i64: 62, 64>}, {pipeline_mode = #tpu.pipeline_mode<synchronous>, transform_indices = @transform_4, window_bounds = array<i64: 64, 32>}, {pipeline_mode = #tpu.pipeline_mode<synchronous>, transform_indices = @transform_5, window_bounds = array<i64: 32, 64>}, {pipeline_mode = #tpu.pipeline_mode<synchronous>, transform_indices = @transform_6, window_bounds = array<i64: 32, 30>}, {pipeline_mode = #tpu.pipeline_mode<synchronous>, transform_indices = @transform_7, window_bounds = array<i64: 30, 32>}, {pipeline_mode = #tpu.pipeline_mode<synchronous>, transform_indices = @transform_8, window_bounds = array<i64: 32, 16>}, {pipeline_mode = #tpu.pipeline_mode<synchronous>, transform_indices = @transform_9, window_bounds = array<i64: 16, 32>}, {pipeline_mode = #tpu.pipeline_mode<synchronous>, transform_indices = @transform_10, window_bounds = array<i64: 16, 14>}, {pipeline_mode = #tpu.pipeline_mode<synchronous>, transform_indices = @transform_11, window_bounds = array<i64: 14, 16>}, {pipeline_mode = #tpu.pipeline_mode<synchronous>, transform_indices = @transform_12, window_bounds = array<i64: 16, 8>}, {pipeline_mode = #tpu.pipeline_mode<synchronous>, transform_indices = @transform_13, window_bounds = array<i64: 8, 16>}, {pipeline_mode = #tpu.pipeline_mode<synchronous>, transform_indices = @transform_14, window_bounds = array<i64: 8, 6>}, {pipeline_mode = #tpu.pipeline_mode<synchronous>, transform_indices = @transform_15, window_bounds = array<i64: 6, 8>}, {pipeline_mode = #tpu.pipeline_mode<synchronous>, transform_indices = @transform_16, window_bounds = array<i64: 8, 4>}, {pipeline_mode = #tpu.pipeline_mode<synchronous>, transform_indices = @transform_17, window_bounds = array<i64: 4, 8>}, {pipeline_mode = #tpu.pipeline_mode<synchronous>, transform_indices = @transform_18, window_bounds = array<i64: 4, 2>}, {pipeline_mode = #tpu.pipeline_mode<synchronous>, transform_indices = @transform_19, window_bounds = array<i64: 2, 4>}, {transform_indices = @transform_20, window_bounds = array<i64: 1, 3, 128>}]} {
    %c0 = arith.constant 0 : index
    %c0_0 = arith.constant 0 : index
    %c0_1 = arith.constant 0 : index
    %0 = vector.load %arg1[%c0, %c0_0, %c0_1] : memref<3x64x64xf32, #tpu.memory_space<vmem>>, vector<3x64x64xf32>
    %c0_2 = arith.constant 0 : index
    %c0_3 = arith.constant 0 : index
    %c0_4 = arith.constant 0 : index
    %1 = vector.load %arg2[%c0_2, %c0_3, %c0_4] : memref<3x64x64xf32, #tpu.memory_space<vmem>>, vector<3x64x64xf32>
    %c0_5 = arith.constant 0 : index
    %c0_6 = arith.constant 0 : index
    %2 = vector.load %arg3[%c0_5, %c0_6] : memref<64x62xf32, #tpu.memory_space<vmem>>, vector<64x62xf32>
    %c0_7 = arith.constant 0 : index
    %c0_8 = arith.constant 0 : index
    %3 = vector.load %arg4[%c0_7, %c0_8] : memref<62x64xf32, #tpu.memory_space<vmem>>, vector<62x64xf32>
    %c0_9 = arith.constant 0 : index
    %c0_10 = arith.constant 0 : index
    %4 = vector.load %arg5[%c0_9, %c0_10] : memref<64x32xf32, #tpu.memory_space<vmem>>, vector<64x32xf32>
    %c0_11 = arith.constant 0 : index
    %c0_12 = arith.constant 0 : index
    %5 = vector.load %arg6[%c0_11, %c0_12] : memref<32x64xf32, #tpu.memory_space<vmem>>, vector<32x64xf32>
    %6 = arith.mulf %0, %0 : vector<3x64x64xf32>
    %7 = arith.mulf %1, %1 : vector<3x64x64xf32>
    %8 = arith.mulf %0, %1 : vector<3x64x64xf32>
    %9 = tpu.concatenate %0, %1, %6, %7, %8 in 0 : vector<3x64x64xf32>, vector<3x64x64xf32>, vector<3x64x64xf32>, vector<3x64x64xf32>, vector<3x64x64xf32> -> vector<15x64x64xf32>
    %10 = vector.shape_cast %9 : vector<15x64x64xf32> to vector<960x64xf32>
    %cst = arith.constant dense<0.000000e+00> : vector<960x62xf32>
    %11 = tpu.matmul %10, %2, %cst {dimension_numbers = #tpu.dot_dimension_numbers<[1], [0], [0], [1], [0, 0, 1, 1], [], []>} : vector<960x64xf32>, vector<64x62xf32>, vector<960x62xf32> -> vector<960x62xf32>
    %12 = vector.shape_cast %11 : vector<960x62xf32> to vector<15x64x62xf32>
    %13 = vector.shape_cast %3 : vector<62x64xf32> to vector<1x62x64xf32>
    %14 = vector.shape_cast %13 : vector<1x62x64xf32> to vector<1x62x64xf32>
    %15 = vector.broadcast %14 : vector<1x62x64xf32> to vector<15x62x64xf32>
    "tpu.trace_start"() <{level = 10 : i32, message = "mrh,mhw->mrw"}> : () -> ()
    %cst_13 = arith.constant dense<0.000000e+00> : vector<15x62x62xf32>
    %16 = tpu.matmul %15, %12, %cst_13 {dimension_numbers = #tpu.dot_dimension_numbers<[2], [1], [1], [2], [0, 0, 0, 1, 1, 2], [0], [0]>} : vector<15x62x64xf32>, vector<15x64x62xf32>, vector<15x62x62xf32> -> vector<15x62x62xf32>
    "tpu.trace_stop"() : () -> ()
    %17 = vector.extract_strided_slice %16 {offsets = [0, 0, 0], sizes = [3, 62, 62], strides = [1, 1, 1]} : vector<15x62x62xf32> to vector<3x62x62xf32>
    %18 = vector.extract_strided_slice %16 {offsets = [3, 0, 0], sizes = [3, 62, 62], strides = [1, 1, 1]} : vector<15x62x62xf32> to vector<3x62x62xf32>
    %19 = vector.extract_strided_slice %16 {offsets = [6, 0, 0], sizes = [3, 62, 62], strides = [1, 1, 1]} : vector<15x62x62xf32> to vector<3x62x62xf32>
    %20 = vector.extract_strided_slice %16 {offsets = [9, 0, 0], sizes = [3, 62, 62], strides = [1, 1, 1]} : vector<15x62x62xf32> to vector<3x62x62xf32>
    %21 = vector.extract_strided_slice %16 {offsets = [12, 0, 0], sizes = [3, 62, 62], strides = [1, 1, 1]} : vector<15x62x62xf32> to vector<3x62x62xf32>
    %22 = arith.mulf %17, %17 : vector<3x62x62xf32>
    %23 = arith.mulf %18, %18 : vector<3x62x62xf32>
    %24 = arith.mulf %17, %18 : vector<3x62x62xf32>
    %25 = arith.subf %19, %22 : vector<3x62x62xf32>
    %26 = arith.subf %20, %23 : vector<3x62x62xf32>
    %27 = arith.subf %21, %24 : vector<3x62x62xf32>
    %cst_14 = arith.constant 2.000000e+00 : f32
    %28 = vector.broadcast %cst_14 : f32 to vector<3x62x62xf32>
    %29 = arith.mulf %28, %27 : vector<3x62x62xf32>
    %cst_15 = arith.constant 8.99999984E-4 : f32
    %30 = vector.broadcast %cst_15 : f32 to vector<3x62x62xf32>
    %31 = arith.addf %29, %30 : vector<3x62x62xf32>
    %32 = arith.addf %25, %26 : vector<3x62x62xf32>
    %cst_16 = arith.constant 8.99999984E-4 : f32
    %33 = vector.broadcast %cst_16 : f32 to vector<3x62x62xf32>
    %34 = arith.addf %32, %33 : vector<3x62x62xf32>
    %35 = arith.divf %31, %34 : vector<3x62x62xf32>
    %cst_17 = arith.constant dense<0.000000e+00> : vector<3x62xf32>
    %36 = vector.multi_reduction <add>, %35, %cst_17 [2] : vector<3x62x62xf32> to vector<3x62xf32>
    %37 = vector.shape_cast %36 : vector<3x62xf32> to vector<3x62x1xf32>
    %cst_18 = arith.constant dense<0.000000e+00> : vector<3x1xf32>
    %38 = vector.multi_reduction <add>, %37, %cst_18 [1] : vector<3x62x1xf32> to vector<3x1xf32>
    %39 = vector.shape_cast %38 : vector<3x1xf32> to vector<3x1x1xf32>
    %cst_19 = arith.constant 2.60145694E-4 : f32
    %40 = vector.broadcast %cst_19 : f32 to vector<3x1x1xf32>
    %41 = arith.mulf %39, %40 : vector<3x1x1xf32>
    %cst_20 = arith.constant 0.000000e+00 : f32
    %42 = vector.broadcast %cst_20 : f32 to vector<3x1x1xf32>
    %43 = arith.maximumf %41, %42 : vector<3x1x1xf32>
    %cst_21 = arith.constant 0.000000e+00 : f32
    %44 = vector.broadcast %cst_21 : f32 to vector<3x1x1xf32>
    %45 = arith.cmpf ogt, %43, %44 : vector<3x1x1xf32>
    %cst_22 = arith.constant 1.000000e-30 : f32
    %46 = vector.broadcast %cst_22 : f32 to vector<3x1x1xf32>
    %47 = arith.maximumf %43, %46 : vector<3x1x1xf32>
    %48 = math.log %47 : vector<3x1x1xf32>
    %cst_23 = arith.constant 4.480000e-02 : f32
    %49 = vector.broadcast %cst_23 : f32 to vector<3x1x1xf32>
    %50 = arith.mulf %49, %48 : vector<3x1x1xf32>
    %51 = math.exp %50 : vector<3x1x1xf32>
    %cst_24 = arith.constant 0.000000e+00 : f32
    %52 = vector.broadcast %cst_24 : f32 to vector<3x1x1xf32>
    %53 = arith.select %45, %51, %52 : vector<3x1x1xi1>, vector<3x1x1xf32>
    %54 = tpu.concatenate %0, %1 in 0 : vector<3x64x64xf32>, vector<3x64x64xf32> -> vector<6x64x64xf32>
    %55 = vector.shape_cast %54 : vector<6x64x64xf32> to vector<384x64xf32>
    %cst_25 = arith.constant dense<0.000000e+00> : vector<384x32xf32>
    %56 = tpu.matmul %55, %4, %cst_25 {dimension_numbers = #tpu.dot_dimension_numbers<[1], [0], [0], [1], [0, 0, 1, 1], [], []>} : vector<384x64xf32>, vector<64x32xf32>, vector<384x32xf32> -> vector<384x32xf32>
    %57 = vector.shape_cast %56 : vector<384x32xf32> to vector<6x64x32xf32>
    %58 = vector.shape_cast %5 : vector<32x64xf32> to vector<1x32x64xf32>
    %59 = vector.shape_cast %58 : vector<1x32x64xf32> to vector<1x32x64xf32>
    %60 = vector.broadcast %59 : vector<1x32x64xf32> to vector<6x32x64xf32>
    "tpu.trace_start"() <{level = 10 : i32, message = "mrh,mhw->mrw"}> : () -> ()
    %cst_26 = arith.constant dense<0.000000e+00> : vector<6x32x32xf32>
    %61 = tpu.matmul %60, %57, %cst_26 {dimension_numbers = #tpu.dot_dimension_numbers<[2], [1], [1], [2], [0, 0, 0, 1, 1, 2], [0], [0]>} : vector<6x32x64xf32>, vector<6x64x32xf32>, vector<6x32x32xf32> -> vector<6x32x32xf32>
    "tpu.trace_stop"() : () -> ()
    %62 = vector.extract_strided_slice %61 {offsets = [0, 0, 0], sizes = [3, 32, 32], strides = [1, 1, 1]} : vector<6x32x32xf32> to vector<3x32x32xf32>
    %63 = vector.extract_strided_slice %61 {offsets = [3, 0, 0], sizes = [3, 32, 32], strides = [1, 1, 1]} : vector<6x32x32xf32> to vector<3x32x32xf32>
    %c0_27 = arith.constant 0 : index
    %c0_28 = arith.constant 0 : index
    %64 = vector.load %arg7[%c0_27, %c0_28] : memref<32x30xf32, #tpu.memory_space<vmem>>, vector<32x30xf32>
    %c0_29 = arith.constant 0 : index
    %c0_30 = arith.constant 0 : index
    %65 = vector.load %arg8[%c0_29, %c0_30] : memref<30x32xf32, #tpu.memory_space<vmem>>, vector<30x32xf32>
    %c0_31 = arith.constant 0 : index
    %c0_32 = arith.constant 0 : index
    %66 = vector.load %arg9[%c0_31, %c0_32] : memref<32x16xf32, #tpu.memory_space<vmem>>, vector<32x16xf32>
    %c0_33 = arith.constant 0 : index
    %c0_34 = arith.constant 0 : index
    %67 = vector.load %arg10[%c0_33, %c0_34] : memref<16x32xf32, #tpu.memory_space<vmem>>, vector<16x32xf32>
    %68 = arith.mulf %62, %62 : vector<3x32x32xf32>
    %69 = arith.mulf %63, %63 : vector<3x32x32xf32>
    %70 = arith.mulf %62, %63 : vector<3x32x32xf32>
    %71 = tpu.concatenate %62, %63, %68, %69, %70 in 0 : vector<3x32x32xf32>, vector<3x32x32xf32>, vector<3x32x32xf32>, vector<3x32x32xf32>, vector<3x32x32xf32> -> vector<15x32x32xf32>
    %72 = vector.shape_cast %71 : vector<15x32x32xf32> to vector<480x32xf32>
    %cst_35 = arith.constant dense<0.000000e+00> : vector<480x30xf32>
    %73 = tpu.matmul %72, %64, %cst_35 {dimension_numbers = #tpu.dot_dimension_numbers<[1], [0], [0], [1], [0, 0, 1, 1], [], []>} : vector<480x32xf32>, vector<32x30xf32>, vector<480x30xf32> -> vector<480x30xf32>
    %74 = vector.shape_cast %73 : vector<480x30xf32> to vector<15x32x30xf32>
    %75 = vector.shape_cast %65 : vector<30x32xf32> to vector<1x30x32xf32>
    %76 = vector.shape_cast %75 : vector<1x30x32xf32> to vector<1x30x32xf32>
    %77 = vector.broadcast %76 : vector<1x30x32xf32> to vector<15x30x32xf32>
    "tpu.trace_start"() <{level = 10 : i32, message = "mrh,mhw->mrw"}> : () -> ()
    %cst_36 = arith.constant dense<0.000000e+00> : vector<15x30x30xf32>
    %78 = tpu.matmul %77, %74, %cst_36 {dimension_numbers = #tpu.dot_dimension_numbers<[2], [1], [1], [2], [0, 0, 0, 1, 1, 2], [0], [0]>} : vector<15x30x32xf32>, vector<15x32x30xf32>, vector<15x30x30xf32> -> vector<15x30x30xf32>
    "tpu.trace_stop"() : () -> ()
    %79 = vector.extract_strided_slice %78 {offsets = [0, 0, 0], sizes = [3, 30, 30], strides = [1, 1, 1]} : vector<15x30x30xf32> to vector<3x30x30xf32>
    %80 = vector.extract_strided_slice %78 {offsets = [3, 0, 0], sizes = [3, 30, 30], strides = [1, 1, 1]} : vector<15x30x30xf32> to vector<3x30x30xf32>
    %81 = vector.extract_strided_slice %78 {offsets = [6, 0, 0], sizes = [3, 30, 30], strides = [1, 1, 1]} : vector<15x30x30xf32> to vector<3x30x30xf32>
    %82 = vector.extract_strided_slice %78 {offsets = [9, 0, 0], sizes = [3, 30, 30], strides = [1, 1, 1]} : vector<15x30x30xf32> to vector<3x30x30xf32>
    %83 = vector.extract_strided_slice %78 {offsets = [12, 0, 0], sizes = [3, 30, 30], strides = [1, 1, 1]} : vector<15x30x30xf32> to vector<3x30x30xf32>
    %84 = arith.mulf %79, %79 : vector<3x30x30xf32>
    %85 = arith.mulf %80, %80 : vector<3x30x30xf32>
    %86 = arith.mulf %79, %80 : vector<3x30x30xf32>
    %87 = arith.subf %81, %84 : vector<3x30x30xf32>
    %88 = arith.subf %82, %85 : vector<3x30x30xf32>
    %89 = arith.subf %83, %86 : vector<3x30x30xf32>
    %cst_37 = arith.constant 2.000000e+00 : f32
    %90 = vector.broadcast %cst_37 : f32 to vector<3x30x30xf32>
    %91 = arith.mulf %90, %89 : vector<3x30x30xf32>
    %cst_38 = arith.constant 8.99999984E-4 : f32
    %92 = vector.broadcast %cst_38 : f32 to vector<3x30x30xf32>
    %93 = arith.addf %91, %92 : vector<3x30x30xf32>
    %94 = arith.addf %87, %88 : vector<3x30x30xf32>
    %cst_39 = arith.constant 8.99999984E-4 : f32
    %95 = vector.broadcast %cst_39 : f32 to vector<3x30x30xf32>
    %96 = arith.addf %94, %95 : vector<3x30x30xf32>
    %97 = arith.divf %93, %96 : vector<3x30x30xf32>
    %cst_40 = arith.constant dense<0.000000e+00> : vector<3x30xf32>
    %98 = vector.multi_reduction <add>, %97, %cst_40 [2] : vector<3x30x30xf32> to vector<3x30xf32>
    %99 = vector.shape_cast %98 : vector<3x30xf32> to vector<3x30x1xf32>
    %cst_41 = arith.constant dense<0.000000e+00> : vector<3x1xf32>
    %100 = vector.multi_reduction <add>, %99, %cst_41 [1] : vector<3x30x1xf32> to vector<3x1xf32>
    %101 = vector.shape_cast %100 : vector<3x1xf32> to vector<3x1x1xf32>
    %cst_42 = arith.constant 0.00111111114 : f32
    %102 = vector.broadcast %cst_42 : f32 to vector<3x1x1xf32>
    %103 = arith.mulf %101, %102 : vector<3x1x1xf32>
    %cst_43 = arith.constant 0.000000e+00 : f32
    %104 = vector.broadcast %cst_43 : f32 to vector<3x1x1xf32>
    %105 = arith.maximumf %103, %104 : vector<3x1x1xf32>
    %cst_44 = arith.constant 0.000000e+00 : f32
    %106 = vector.broadcast %cst_44 : f32 to vector<3x1x1xf32>
    %107 = arith.cmpf ogt, %105, %106 : vector<3x1x1xf32>
    %cst_45 = arith.constant 1.000000e-30 : f32
    %108 = vector.broadcast %cst_45 : f32 to vector<3x1x1xf32>
    %109 = arith.maximumf %105, %108 : vector<3x1x1xf32>
    %110 = math.log %109 : vector<3x1x1xf32>
    %cst_46 = arith.constant 2.856000e-01 : f32
    %111 = vector.broadcast %cst_46 : f32 to vector<3x1x1xf32>
    %112 = arith.mulf %111, %110 : vector<3x1x1xf32>
    %113 = math.exp %112 : vector<3x1x1xf32>
    %cst_47 = arith.constant 0.000000e+00 : f32
    %114 = vector.broadcast %cst_47 : f32 to vector<3x1x1xf32>
    %115 = arith.select %107, %113, %114 : vector<3x1x1xi1>, vector<3x1x1xf32>
    %116 = arith.mulf %53, %115 : vector<3x1x1xf32>
    %117 = tpu.concatenate %62, %63 in 0 : vector<3x32x32xf32>, vector<3x32x32xf32> -> vector<6x32x32xf32>
    %118 = vector.shape_cast %117 : vector<6x32x32xf32> to vector<192x32xf32>
    %cst_48 = arith.constant dense<0.000000e+00> : vector<192x16xf32>
    %119 = tpu.matmul %118, %66, %cst_48 {dimension_numbers = #tpu.dot_dimension_numbers<[1], [0], [0], [1], [0, 0, 1, 1], [], []>} : vector<192x32xf32>, vector<32x16xf32>, vector<192x16xf32> -> vector<192x16xf32>
    %120 = vector.shape_cast %119 : vector<192x16xf32> to vector<6x32x16xf32>
    %121 = vector.shape_cast %67 : vector<16x32xf32> to vector<1x16x32xf32>
    %122 = vector.shape_cast %121 : vector<1x16x32xf32> to vector<1x16x32xf32>
    %123 = vector.broadcast %122 : vector<1x16x32xf32> to vector<6x16x32xf32>
    "tpu.trace_start"() <{level = 10 : i32, message = "mrh,mhw->mrw"}> : () -> ()
    %cst_49 = arith.constant dense<0.000000e+00> : vector<6x16x16xf32>
    %124 = tpu.matmul %123, %120, %cst_49 {dimension_numbers = #tpu.dot_dimension_numbers<[2], [1], [1], [2], [0, 0, 0, 1, 1, 2], [0], [0]>} : vector<6x16x32xf32>, vector<6x32x16xf32>, vector<6x16x16xf32> -> vector<6x16x16xf32>
    "tpu.trace_stop"() : () -> ()
    %125 = vector.extract_strided_slice %124 {offsets = [0, 0, 0], sizes = [3, 16, 16], strides = [1, 1, 1]} : vector<6x16x16xf32> to vector<3x16x16xf32>
    %126 = vector.extract_strided_slice %124 {offsets = [3, 0, 0], sizes = [3, 16, 16], strides = [1, 1, 1]} : vector<6x16x16xf32> to vector<3x16x16xf32>
    %c0_50 = arith.constant 0 : index
    %c0_51 = arith.constant 0 : index
    %127 = vector.load %arg11[%c0_50, %c0_51] : memref<16x14xf32, #tpu.memory_space<vmem>>, vector<16x14xf32>
    %c0_52 = arith.constant 0 : index
    %c0_53 = arith.constant 0 : index
    %128 = vector.load %arg12[%c0_52, %c0_53] : memref<14x16xf32, #tpu.memory_space<vmem>>, vector<14x16xf32>
    %c0_54 = arith.constant 0 : index
    %c0_55 = arith.constant 0 : index
    %129 = vector.load %arg13[%c0_54, %c0_55] : memref<16x8xf32, #tpu.memory_space<vmem>>, vector<16x8xf32>
    %c0_56 = arith.constant 0 : index
    %c0_57 = arith.constant 0 : index
    %130 = vector.load %arg14[%c0_56, %c0_57] : memref<8x16xf32, #tpu.memory_space<vmem>>, vector<8x16xf32>
    %131 = arith.mulf %125, %125 : vector<3x16x16xf32>
    %132 = arith.mulf %126, %126 : vector<3x16x16xf32>
    %133 = arith.mulf %125, %126 : vector<3x16x16xf32>
    %134 = tpu.concatenate %125, %126, %131, %132, %133 in 0 : vector<3x16x16xf32>, vector<3x16x16xf32>, vector<3x16x16xf32>, vector<3x16x16xf32>, vector<3x16x16xf32> -> vector<15x16x16xf32>
    %135 = vector.shape_cast %134 : vector<15x16x16xf32> to vector<240x16xf32>
    %cst_58 = arith.constant dense<0.000000e+00> : vector<240x14xf32>
    %136 = tpu.matmul %135, %127, %cst_58 {dimension_numbers = #tpu.dot_dimension_numbers<[1], [0], [0], [1], [0, 0, 1, 1], [], []>} : vector<240x16xf32>, vector<16x14xf32>, vector<240x14xf32> -> vector<240x14xf32>
    %137 = vector.shape_cast %136 : vector<240x14xf32> to vector<15x16x14xf32>
    %138 = vector.shape_cast %128 : vector<14x16xf32> to vector<1x14x16xf32>
    %139 = vector.shape_cast %138 : vector<1x14x16xf32> to vector<1x14x16xf32>
    %140 = vector.broadcast %139 : vector<1x14x16xf32> to vector<15x14x16xf32>
    "tpu.trace_start"() <{level = 10 : i32, message = "mrh,mhw->mrw"}> : () -> ()
    %cst_59 = arith.constant dense<0.000000e+00> : vector<15x14x14xf32>
    %141 = tpu.matmul %140, %137, %cst_59 {dimension_numbers = #tpu.dot_dimension_numbers<[2], [1], [1], [2], [0, 0, 0, 1, 1, 2], [0], [0]>} : vector<15x14x16xf32>, vector<15x16x14xf32>, vector<15x14x14xf32> -> vector<15x14x14xf32>
    "tpu.trace_stop"() : () -> ()
    %142 = vector.extract_strided_slice %141 {offsets = [0, 0, 0], sizes = [3, 14, 14], strides = [1, 1, 1]} : vector<15x14x14xf32> to vector<3x14x14xf32>
    %143 = vector.extract_strided_slice %141 {offsets = [3, 0, 0], sizes = [3, 14, 14], strides = [1, 1, 1]} : vector<15x14x14xf32> to vector<3x14x14xf32>
    %144 = vector.extract_strided_slice %141 {offsets = [6, 0, 0], sizes = [3, 14, 14], strides = [1, 1, 1]} : vector<15x14x14xf32> to vector<3x14x14xf32>
    %145 = vector.extract_strided_slice %141 {offsets = [9, 0, 0], sizes = [3, 14, 14], strides = [1, 1, 1]} : vector<15x14x14xf32> to vector<3x14x14xf32>
    %146 = vector.extract_strided_slice %141 {offsets = [12, 0, 0], sizes = [3, 14, 14], strides = [1, 1, 1]} : vector<15x14x14xf32> to vector<3x14x14xf32>
    %147 = arith.mulf %142, %142 : vector<3x14x14xf32>
    %148 = arith.mulf %143, %143 : vector<3x14x14xf32>
    %149 = arith.mulf %142, %143 : vector<3x14x14xf32>
    %150 = arith.subf %144, %147 : vector<3x14x14xf32>
    %151 = arith.subf %145, %148 : vector<3x14x14xf32>
    %152 = arith.subf %146, %149 : vector<3x14x14xf32>
    %cst_60 = arith.constant 2.000000e+00 : f32
    %153 = vector.broadcast %cst_60 : f32 to vector<3x14x14xf32>
    %154 = arith.mulf %153, %152 : vector<3x14x14xf32>
    %cst_61 = arith.constant 8.99999984E-4 : f32
    %155 = vector.broadcast %cst_61 : f32 to vector<3x14x14xf32>
    %156 = arith.addf %154, %155 : vector<3x14x14xf32>
    %157 = arith.addf %150, %151 : vector<3x14x14xf32>
    %cst_62 = arith.constant 8.99999984E-4 : f32
    %158 = vector.broadcast %cst_62 : f32 to vector<3x14x14xf32>
    %159 = arith.addf %157, %158 : vector<3x14x14xf32>
    %160 = arith.divf %156, %159 : vector<3x14x14xf32>
    %cst_63 = arith.constant dense<0.000000e+00> : vector<3x14xf32>
    %161 = vector.multi_reduction <add>, %160, %cst_63 [2] : vector<3x14x14xf32> to vector<3x14xf32>
    %162 = vector.shape_cast %161 : vector<3x14xf32> to vector<3x14x1xf32>
    %cst_64 = arith.constant dense<0.000000e+00> : vector<3x1xf32>
    %163 = vector.multi_reduction <add>, %162, %cst_64 [1] : vector<3x14x1xf32> to vector<3x1xf32>
    %164 = vector.shape_cast %163 : vector<3x1xf32> to vector<3x1x1xf32>
    %cst_65 = arith.constant 0.00510204071 : f32
    %165 = vector.broadcast %cst_65 : f32 to vector<3x1x1xf32>
    %166 = arith.mulf %164, %165 : vector<3x1x1xf32>
    %cst_66 = arith.constant 0.000000e+00 : f32
    %167 = vector.broadcast %cst_66 : f32 to vector<3x1x1xf32>
    %168 = arith.maximumf %166, %167 : vector<3x1x1xf32>
    %cst_67 = arith.constant 0.000000e+00 : f32
    %169 = vector.broadcast %cst_67 : f32 to vector<3x1x1xf32>
    %170 = arith.cmpf ogt, %168, %169 : vector<3x1x1xf32>
    %cst_68 = arith.constant 1.000000e-30 : f32
    %171 = vector.broadcast %cst_68 : f32 to vector<3x1x1xf32>
    %172 = arith.maximumf %168, %171 : vector<3x1x1xf32>
    %173 = math.log %172 : vector<3x1x1xf32>
    %cst_69 = arith.constant 3.001000e-01 : f32
    %174 = vector.broadcast %cst_69 : f32 to vector<3x1x1xf32>
    %175 = arith.mulf %174, %173 : vector<3x1x1xf32>
    %176 = math.exp %175 : vector<3x1x1xf32>
    %cst_70 = arith.constant 0.000000e+00 : f32
    %177 = vector.broadcast %cst_70 : f32 to vector<3x1x1xf32>
    %178 = arith.select %170, %176, %177 : vector<3x1x1xi1>, vector<3x1x1xf32>
    %179 = arith.mulf %116, %178 : vector<3x1x1xf32>
    %180 = tpu.concatenate %125, %126 in 0 : vector<3x16x16xf32>, vector<3x16x16xf32> -> vector<6x16x16xf32>
    %181 = vector.shape_cast %180 : vector<6x16x16xf32> to vector<96x16xf32>
    %cst_71 = arith.constant dense<0.000000e+00> : vector<96x8xf32>
    %182 = tpu.matmul %181, %129, %cst_71 {dimension_numbers = #tpu.dot_dimension_numbers<[1], [0], [0], [1], [0, 0, 1, 1], [], []>} : vector<96x16xf32>, vector<16x8xf32>, vector<96x8xf32> -> vector<96x8xf32>
    %183 = vector.shape_cast %182 : vector<96x8xf32> to vector<6x16x8xf32>
    %184 = vector.shape_cast %130 : vector<8x16xf32> to vector<1x8x16xf32>
    %185 = vector.shape_cast %184 : vector<1x8x16xf32> to vector<1x8x16xf32>
    %186 = vector.broadcast %185 : vector<1x8x16xf32> to vector<6x8x16xf32>
    "tpu.trace_start"() <{level = 10 : i32, message = "mrh,mhw->mrw"}> : () -> ()
    %cst_72 = arith.constant dense<0.000000e+00> : vector<6x8x8xf32>
    %187 = tpu.matmul %186, %183, %cst_72 {dimension_numbers = #tpu.dot_dimension_numbers<[2], [1], [1], [2], [0, 0, 0, 1, 1, 2], [0], [0]>} : vector<6x8x16xf32>, vector<6x16x8xf32>, vector<6x8x8xf32> -> vector<6x8x8xf32>
    "tpu.trace_stop"() : () -> ()
    %188 = vector.extract_strided_slice %187 {offsets = [0, 0, 0], sizes = [3, 8, 8], strides = [1, 1, 1]} : vector<6x8x8xf32> to vector<3x8x8xf32>
    %189 = vector.extract_strided_slice %187 {offsets = [3, 0, 0], sizes = [3, 8, 8], strides = [1, 1, 1]} : vector<6x8x8xf32> to vector<3x8x8xf32>
    %c0_73 = arith.constant 0 : index
    %c0_74 = arith.constant 0 : index
    %190 = vector.load %arg15[%c0_73, %c0_74] : memref<8x6xf32, #tpu.memory_space<vmem>>, vector<8x6xf32>
    %c0_75 = arith.constant 0 : index
    %c0_76 = arith.constant 0 : index
    %191 = vector.load %arg16[%c0_75, %c0_76] : memref<6x8xf32, #tpu.memory_space<vmem>>, vector<6x8xf32>
    %c0_77 = arith.constant 0 : index
    %c0_78 = arith.constant 0 : index
    %192 = vector.load %arg17[%c0_77, %c0_78] : memref<8x4xf32, #tpu.memory_space<vmem>>, vector<8x4xf32>
    %c0_79 = arith.constant 0 : index
    %c0_80 = arith.constant 0 : index
    %193 = vector.load %arg18[%c0_79, %c0_80] : memref<4x8xf32, #tpu.memory_space<vmem>>, vector<4x8xf32>
    %194 = arith.mulf %188, %188 : vector<3x8x8xf32>
    %195 = arith.mulf %189, %189 : vector<3x8x8xf32>
    %196 = arith.mulf %188, %189 : vector<3x8x8xf32>
    %197 = tpu.concatenate %188, %189, %194, %195, %196 in 0 : vector<3x8x8xf32>, vector<3x8x8xf32>, vector<3x8x8xf32>, vector<3x8x8xf32>, vector<3x8x8xf32> -> vector<15x8x8xf32>
    %198 = vector.shape_cast %197 : vector<15x8x8xf32> to vector<120x8xf32>
    %cst_81 = arith.constant dense<0.000000e+00> : vector<120x6xf32>
    %199 = tpu.matmul %198, %190, %cst_81 {dimension_numbers = #tpu.dot_dimension_numbers<[1], [0], [0], [1], [0, 0, 1, 1], [], []>} : vector<120x8xf32>, vector<8x6xf32>, vector<120x6xf32> -> vector<120x6xf32>
    %200 = vector.shape_cast %199 : vector<120x6xf32> to vector<15x8x6xf32>
    %201 = vector.shape_cast %191 : vector<6x8xf32> to vector<1x6x8xf32>
    %202 = vector.shape_cast %201 : vector<1x6x8xf32> to vector<1x6x8xf32>
    %203 = vector.broadcast %202 : vector<1x6x8xf32> to vector<15x6x8xf32>
    "tpu.trace_start"() <{level = 10 : i32, message = "mrh,mhw->mrw"}> : () -> ()
    %cst_82 = arith.constant dense<0.000000e+00> : vector<15x6x6xf32>
    %204 = tpu.matmul %203, %200, %cst_82 {dimension_numbers = #tpu.dot_dimension_numbers<[2], [1], [1], [2], [0, 0, 0, 1, 1, 2], [0], [0]>} : vector<15x6x8xf32>, vector<15x8x6xf32>, vector<15x6x6xf32> -> vector<15x6x6xf32>
    "tpu.trace_stop"() : () -> ()
    %205 = vector.extract_strided_slice %204 {offsets = [0, 0, 0], sizes = [3, 6, 6], strides = [1, 1, 1]} : vector<15x6x6xf32> to vector<3x6x6xf32>
    %206 = vector.extract_strided_slice %204 {offsets = [3, 0, 0], sizes = [3, 6, 6], strides = [1, 1, 1]} : vector<15x6x6xf32> to vector<3x6x6xf32>
    %207 = vector.extract_strided_slice %204 {offsets = [6, 0, 0], sizes = [3, 6, 6], strides = [1, 1, 1]} : vector<15x6x6xf32> to vector<3x6x6xf32>
    %208 = vector.extract_strided_slice %204 {offsets = [9, 0, 0], sizes = [3, 6, 6], strides = [1, 1, 1]} : vector<15x6x6xf32> to vector<3x6x6xf32>
    %209 = vector.extract_strided_slice %204 {offsets = [12, 0, 0], sizes = [3, 6, 6], strides = [1, 1, 1]} : vector<15x6x6xf32> to vector<3x6x6xf32>
    %210 = arith.mulf %205, %205 : vector<3x6x6xf32>
    %211 = arith.mulf %206, %206 : vector<3x6x6xf32>
    %212 = arith.mulf %205, %206 : vector<3x6x6xf32>
    %213 = arith.subf %207, %210 : vector<3x6x6xf32>
    %214 = arith.subf %208, %211 : vector<3x6x6xf32>
    %215 = arith.subf %209, %212 : vector<3x6x6xf32>
    %cst_83 = arith.constant 2.000000e+00 : f32
    %216 = vector.broadcast %cst_83 : f32 to vector<3x6x6xf32>
    %217 = arith.mulf %216, %215 : vector<3x6x6xf32>
    %cst_84 = arith.constant 8.99999984E-4 : f32
    %218 = vector.broadcast %cst_84 : f32 to vector<3x6x6xf32>
    %219 = arith.addf %217, %218 : vector<3x6x6xf32>
    %220 = arith.addf %213, %214 : vector<3x6x6xf32>
    %cst_85 = arith.constant 8.99999984E-4 : f32
    %221 = vector.broadcast %cst_85 : f32 to vector<3x6x6xf32>
    %222 = arith.addf %220, %221 : vector<3x6x6xf32>
    %223 = arith.divf %219, %222 : vector<3x6x6xf32>
    %cst_86 = arith.constant dense<0.000000e+00> : vector<3x6xf32>
    %224 = vector.multi_reduction <add>, %223, %cst_86 [2] : vector<3x6x6xf32> to vector<3x6xf32>
    %225 = vector.shape_cast %224 : vector<3x6xf32> to vector<3x6x1xf32>
    %cst_87 = arith.constant dense<0.000000e+00> : vector<3x1xf32>
    %226 = vector.multi_reduction <add>, %225, %cst_87 [1] : vector<3x6x1xf32> to vector<3x1xf32>
    %227 = vector.shape_cast %226 : vector<3x1xf32> to vector<3x1x1xf32>
    %cst_88 = arith.constant 0.027777778 : f32
    %228 = vector.broadcast %cst_88 : f32 to vector<3x1x1xf32>
    %229 = arith.mulf %227, %228 : vector<3x1x1xf32>
    %cst_89 = arith.constant 0.000000e+00 : f32
    %230 = vector.broadcast %cst_89 : f32 to vector<3x1x1xf32>
    %231 = arith.maximumf %229, %230 : vector<3x1x1xf32>
    %cst_90 = arith.constant 0.000000e+00 : f32
    %232 = vector.broadcast %cst_90 : f32 to vector<3x1x1xf32>
    %233 = arith.cmpf ogt, %231, %232 : vector<3x1x1xf32>
    %cst_91 = arith.constant 1.000000e-30 : f32
    %234 = vector.broadcast %cst_91 : f32 to vector<3x1x1xf32>
    %235 = arith.maximumf %231, %234 : vector<3x1x1xf32>
    %236 = math.log %235 : vector<3x1x1xf32>
    %cst_92 = arith.constant 2.363000e-01 : f32
    %237 = vector.broadcast %cst_92 : f32 to vector<3x1x1xf32>
    %238 = arith.mulf %237, %236 : vector<3x1x1xf32>
    %239 = math.exp %238 : vector<3x1x1xf32>
    %cst_93 = arith.constant 0.000000e+00 : f32
    %240 = vector.broadcast %cst_93 : f32 to vector<3x1x1xf32>
    %241 = arith.select %233, %239, %240 : vector<3x1x1xi1>, vector<3x1x1xf32>
    %242 = arith.mulf %179, %241 : vector<3x1x1xf32>
    %243 = tpu.concatenate %188, %189 in 0 : vector<3x8x8xf32>, vector<3x8x8xf32> -> vector<6x8x8xf32>
    %244 = vector.shape_cast %243 : vector<6x8x8xf32> to vector<48x8xf32>
    %cst_94 = arith.constant dense<0.000000e+00> : vector<48x4xf32>
    %245 = tpu.matmul %244, %192, %cst_94 {dimension_numbers = #tpu.dot_dimension_numbers<[1], [0], [0], [1], [0, 0, 1, 1], [], []>} : vector<48x8xf32>, vector<8x4xf32>, vector<48x4xf32> -> vector<48x4xf32>
    %246 = vector.shape_cast %245 : vector<48x4xf32> to vector<6x8x4xf32>
    %247 = vector.shape_cast %193 : vector<4x8xf32> to vector<1x4x8xf32>
    %248 = vector.shape_cast %247 : vector<1x4x8xf32> to vector<1x4x8xf32>
    %249 = vector.broadcast %248 : vector<1x4x8xf32> to vector<6x4x8xf32>
    "tpu.trace_start"() <{level = 10 : i32, message = "mrh,mhw->mrw"}> : () -> ()
    %cst_95 = arith.constant dense<0.000000e+00> : vector<6x4x4xf32>
    %250 = tpu.matmul %249, %246, %cst_95 {dimension_numbers = #tpu.dot_dimension_numbers<[2], [1], [1], [2], [0, 0, 0, 1, 1, 2], [0], [0]>} : vector<6x4x8xf32>, vector<6x8x4xf32>, vector<6x4x4xf32> -> vector<6x4x4xf32>
    "tpu.trace_stop"() : () -> ()
    %251 = vector.extract_strided_slice %250 {offsets = [0, 0, 0], sizes = [3, 4, 4], strides = [1, 1, 1]} : vector<6x4x4xf32> to vector<3x4x4xf32>
    %252 = vector.extract_strided_slice %250 {offsets = [3, 0, 0], sizes = [3, 4, 4], strides = [1, 1, 1]} : vector<6x4x4xf32> to vector<3x4x4xf32>
    %c0_96 = arith.constant 0 : index
    %c0_97 = arith.constant 0 : index
    %253 = vector.load %arg19[%c0_96, %c0_97] : memref<4x2xf32, #tpu.memory_space<vmem>>, vector<4x2xf32>
    %c0_98 = arith.constant 0 : index
    %c0_99 = arith.constant 0 : index
    %254 = vector.load %arg20[%c0_98, %c0_99] : memref<2x4xf32, #tpu.memory_space<vmem>>, vector<2x4xf32>
    %255 = arith.mulf %251, %251 : vector<3x4x4xf32>
    %256 = arith.mulf %252, %252 : vector<3x4x4xf32>
    %257 = arith.mulf %251, %252 : vector<3x4x4xf32>
    %258 = tpu.concatenate %251, %252, %255, %256, %257 in 0 : vector<3x4x4xf32>, vector<3x4x4xf32>, vector<3x4x4xf32>, vector<3x4x4xf32>, vector<3x4x4xf32> -> vector<15x4x4xf32>
    %259 = vector.shape_cast %253 : vector<4x2xf32> to vector<1x4x2xf32>
    %260 = vector.shape_cast %259 : vector<1x4x2xf32> to vector<1x4x2xf32>
    %261 = vector.broadcast %260 : vector<1x4x2xf32> to vector<15x4x2xf32>
    "tpu.trace_start"() <{level = 10 : i32, message = "mhw,mwk->mhk"}> : () -> ()
    %cst_100 = arith.constant dense<0.000000e+00> : vector<15x4x2xf32>
    %262 = tpu.matmul %258, %261, %cst_100 {dimension_numbers = #tpu.dot_dimension_numbers<[2], [1], [1], [2], [0, 0, 0, 1, 1, 2], [0], [0]>} : vector<15x4x4xf32>, vector<15x4x2xf32>, vector<15x4x2xf32> -> vector<15x4x2xf32>
    "tpu.trace_stop"() : () -> ()
    %263 = vector.shape_cast %254 : vector<2x4xf32> to vector<1x2x4xf32>
    %264 = vector.shape_cast %263 : vector<1x2x4xf32> to vector<1x2x4xf32>
    %265 = vector.broadcast %264 : vector<1x2x4xf32> to vector<15x2x4xf32>
    "tpu.trace_start"() <{level = 10 : i32, message = "mrh,mhw->mrw"}> : () -> ()
    %cst_101 = arith.constant dense<0.000000e+00> : vector<15x2x2xf32>
    %266 = tpu.matmul %265, %262, %cst_101 {dimension_numbers = #tpu.dot_dimension_numbers<[2], [1], [1], [2], [0, 0, 0, 1, 1, 2], [0], [0]>} : vector<15x2x4xf32>, vector<15x4x2xf32>, vector<15x2x2xf32> -> vector<15x2x2xf32>
    "tpu.trace_stop"() : () -> ()
    %267 = vector.extract_strided_slice %266 {offsets = [0, 0, 0], sizes = [3, 2, 2], strides = [1, 1, 1]} : vector<15x2x2xf32> to vector<3x2x2xf32>
    %268 = vector.extract_strided_slice %266 {offsets = [3, 0, 0], sizes = [3, 2, 2], strides = [1, 1, 1]} : vector<15x2x2xf32> to vector<3x2x2xf32>
    %269 = vector.extract_strided_slice %266 {offsets = [6, 0, 0], sizes = [3, 2, 2], strides = [1, 1, 1]} : vector<15x2x2xf32> to vector<3x2x2xf32>
    %270 = vector.extract_strided_slice %266 {offsets = [9, 0, 0], sizes = [3, 2, 2], strides = [1, 1, 1]} : vector<15x2x2xf32> to vector<3x2x2xf32>
    %271 = vector.extract_strided_slice %266 {offsets = [12, 0, 0], sizes = [3, 2, 2], strides = [1, 1, 1]} : vector<15x2x2xf32> to vector<3x2x2xf32>
    %272 = arith.mulf %267, %267 : vector<3x2x2xf32>
    %273 = arith.mulf %268, %268 : vector<3x2x2xf32>
    %274 = arith.mulf %267, %268 : vector<3x2x2xf32>
    %275 = arith.subf %269, %272 : vector<3x2x2xf32>
    %276 = arith.subf %270, %273 : vector<3x2x2xf32>
    %277 = arith.subf %271, %274 : vector<3x2x2xf32>
    %cst_102 = arith.constant 2.000000e+00 : f32
    %278 = vector.broadcast %cst_102 : f32 to vector<3x2x2xf32>
    %279 = arith.mulf %278, %277 : vector<3x2x2xf32>
    %cst_103 = arith.constant 8.99999984E-4 : f32
    %280 = vector.broadcast %cst_103 : f32 to vector<3x2x2xf32>
    %281 = arith.addf %279, %280 : vector<3x2x2xf32>
    %282 = arith.addf %275, %276 : vector<3x2x2xf32>
    %cst_104 = arith.constant 8.99999984E-4 : f32
    %283 = vector.broadcast %cst_104 : f32 to vector<3x2x2xf32>
    %284 = arith.addf %282, %283 : vector<3x2x2xf32>
    %285 = arith.divf %281, %284 : vector<3x2x2xf32>
    %cst_105 = arith.constant 2.000000e+00 : f32
    %286 = vector.broadcast %cst_105 : f32 to vector<3x2x2xf32>
    %287 = arith.mulf %286, %274 : vector<3x2x2xf32>
    %cst_106 = arith.constant 9.99999974E-5 : f32
    %288 = vector.broadcast %cst_106 : f32 to vector<3x2x2xf32>
    %289 = arith.addf %287, %288 : vector<3x2x2xf32>
    %290 = arith.addf %272, %273 : vector<3x2x2xf32>
    %cst_107 = arith.constant 9.99999974E-5 : f32
    %291 = vector.broadcast %cst_107 : f32 to vector<3x2x2xf32>
    %292 = arith.addf %290, %291 : vector<3x2x2xf32>
    %293 = arith.divf %289, %292 : vector<3x2x2xf32>
    %294 = arith.mulf %293, %285 : vector<3x2x2xf32>
    %cst_108 = arith.constant dense<0.000000e+00> : vector<3x2xf32>
    %295 = vector.multi_reduction <add>, %294, %cst_108 [2] : vector<3x2x2xf32> to vector<3x2xf32>
    %296 = vector.shape_cast %295 : vector<3x2xf32> to vector<3x2x1xf32>
    %cst_109 = arith.constant dense<0.000000e+00> : vector<3x1xf32>
    %297 = vector.multi_reduction <add>, %296, %cst_109 [1] : vector<3x2x1xf32> to vector<3x1xf32>
    %298 = vector.shape_cast %297 : vector<3x1xf32> to vector<3x1x1xf32>
    %cst_110 = arith.constant 2.500000e-01 : f32
    %299 = vector.broadcast %cst_110 : f32 to vector<3x1x1xf32>
    %300 = arith.mulf %298, %299 : vector<3x1x1xf32>
    %cst_111 = arith.constant 0.000000e+00 : f32
    %301 = vector.broadcast %cst_111 : f32 to vector<3x1x1xf32>
    %302 = arith.maximumf %300, %301 : vector<3x1x1xf32>
    %cst_112 = arith.constant 0.000000e+00 : f32
    %303 = vector.broadcast %cst_112 : f32 to vector<3x1x1xf32>
    %304 = arith.cmpf ogt, %302, %303 : vector<3x1x1xf32>
    %cst_113 = arith.constant 1.000000e-30 : f32
    %305 = vector.broadcast %cst_113 : f32 to vector<3x1x1xf32>
    %306 = arith.maximumf %302, %305 : vector<3x1x1xf32>
    %307 = math.log %306 : vector<3x1x1xf32>
    %cst_114 = arith.constant 1.333000e-01 : f32
    %308 = vector.broadcast %cst_114 : f32 to vector<3x1x1xf32>
    %309 = arith.mulf %308, %307 : vector<3x1x1xf32>
    %310 = math.exp %309 : vector<3x1x1xf32>
    %cst_115 = arith.constant 0.000000e+00 : f32
    %311 = vector.broadcast %cst_115 : f32 to vector<3x1x1xf32>
    %312 = arith.select %304, %310, %311 : vector<3x1x1xi1>, vector<3x1x1xf32>
    %313 = arith.mulf %242, %312 : vector<3x1x1xf32>
    %314 = vector.extract_strided_slice %313 {offsets = [0, 0, 0], sizes = [1, 1, 1], strides = [1, 1, 1]} : vector<3x1x1xf32> to vector<1x1x1xf32>
    %315 = vector.shape_cast %314 : vector<1x1x1xf32> to vector<1x1xf32>
    %316 = vector.shape_cast %315 : vector<1x1xf32> to vector<1x1xf32>
    %317 = vector.broadcast %316 : vector<1x1xf32> to vector<1x128xf32>
    %318 = vector.extract_strided_slice %313 {offsets = [1, 0, 0], sizes = [1, 1, 1], strides = [1, 1, 1]} : vector<3x1x1xf32> to vector<1x1x1xf32>
    %319 = vector.shape_cast %318 : vector<1x1x1xf32> to vector<1x1xf32>
    %320 = vector.shape_cast %319 : vector<1x1xf32> to vector<1x1xf32>
    %321 = vector.broadcast %320 : vector<1x1xf32> to vector<1x128xf32>
    %322 = vector.extract_strided_slice %313 {offsets = [2, 0, 0], sizes = [1, 1, 1], strides = [1, 1, 1]} : vector<3x1x1xf32> to vector<1x1x1xf32>
    %323 = vector.shape_cast %322 : vector<1x1x1xf32> to vector<1x1xf32>
    %324 = vector.shape_cast %323 : vector<1x1xf32> to vector<1x1xf32>
    %325 = vector.broadcast %324 : vector<1x1xf32> to vector<1x128xf32>
    %326 = tpu.concatenate %317, %321, %325 in 0 : vector<1x128xf32>, vector<1x128xf32>, vector<1x128xf32> -> vector<3x128xf32>
    %c0_116 = arith.constant 0 : index
    %c0_117 = arith.constant 0 : index
    %c0_118 = arith.constant 0 : index
    %327 = vector.load %arg21[%c0_116, %c0_117, %c0_118] : memref<1x3x128xf32, #tpu.memory_space<vmem>>, vector<1x3x128xf32>
    %328 = vector.shape_cast %327 : vector<1x3x128xf32> to vector<3x128xf32>
    %329 = vector.shape_cast %326 : vector<3x128xf32> to vector<1x3x128xf32>
    tpu.vector_store %arg21[%c0_116, %c0_117, %c0_118], %329 {strides = array<i32>} : memref<1x3x128xf32, #tpu.memory_space<vmem>>, vector<1x3x128xf32>,
    return
  }
  func.func @transform_0(%arg0: i32) -> (i32, i32, i32) {
    %c0_i32 = arith.constant 0 : i32
    %c0_i32_0 = arith.constant 0 : i32
    %c0_i32_1 = arith.constant 0 : i32
    return %arg0, %c0_i32, %c0_i32_0 : i32, i32, i32
  }
  func.func @transform_1(%arg0: i32) -> (i32, i32, i32) {
    %c0_i32 = arith.constant 0 : i32
    %c0_i32_0 = arith.constant 0 : i32
    %c0_i32_1 = arith.constant 0 : i32
    return %arg0, %c0_i32, %c0_i32_0 : i32, i32, i32
  }
  func.func @transform_2(%arg0: i32) -> (i32, i32) {
    %c0_i32 = arith.constant 0 : i32
    %c0_i32_0 = arith.constant 0 : i32
    %c0_i32_1 = arith.constant 0 : i32
    return %c0_i32, %c0_i32_0 : i32, i32
  }
  func.func @transform_3(%arg0: i32) -> (i32, i32) {
    %c0_i32 = arith.constant 0 : i32
    %c0_i32_0 = arith.constant 0 : i32
    %c0_i32_1 = arith.constant 0 : i32
    return %c0_i32, %c0_i32_0 : i32, i32
  }
  func.func @transform_4(%arg0: i32) -> (i32, i32) {
    %c0_i32 = arith.constant 0 : i32
    %c0_i32_0 = arith.constant 0 : i32
    %c0_i32_1 = arith.constant 0 : i32
    return %c0_i32, %c0_i32_0 : i32, i32
  }
  func.func @transform_5(%arg0: i32) -> (i32, i32) {
    %c0_i32 = arith.constant 0 : i32
    %c0_i32_0 = arith.constant 0 : i32
    %c0_i32_1 = arith.constant 0 : i32
    return %c0_i32, %c0_i32_0 : i32, i32
  }
  func.func @transform_6(%arg0: i32) -> (i32, i32) {
    %c0_i32 = arith.constant 0 : i32
    %c0_i32_0 = arith.constant 0 : i32
    %c0_i32_1 = arith.constant 0 : i32
    return %c0_i32, %c0_i32_0 : i32, i32
  }
  func.func @transform_7(%arg0: i32) -> (i32, i32) {
    %c0_i32 = arith.constant 0 : i32
    %c0_i32_0 = arith.constant 0 : i32
    %c0_i32_1 = arith.constant 0 : i32
    return %c0_i32, %c0_i32_0 : i32, i32
  }
  func.func @transform_8(%arg0: i32) -> (i32, i32) {
    %c0_i32 = arith.constant 0 : i32
    %c0_i32_0 = arith.constant 0 : i32
    %c0_i32_1 = arith.constant 0 : i32
    return %c0_i32, %c0_i32_0 : i32, i32
  }
  func.func @transform_9(%arg0: i32) -> (i32, i32) {
    %c0_i32 = arith.constant 0 : i32
    %c0_i32_0 = arith.constant 0 : i32
    %c0_i32_1 = arith.constant 0 : i32
    return %c0_i32, %c0_i32_0 : i32, i32
  }
  func.func @transform_10(%arg0: i32) -> (i32, i32) {
    %c0_i32 = arith.constant 0 : i32
    %c0_i32_0 = arith.constant 0 : i32
    %c0_i32_1 = arith.constant 0 : i32
    return %c0_i32, %c0_i32_0 : i32, i32
  }
  func.func @transform_11(%arg0: i32) -> (i32, i32) {
    %c0_i32 = arith.constant 0 : i32
    %c0_i32_0 = arith.constant 0 : i32
    %c0_i32_1 = arith.constant 0 : i32
    return %c0_i32, %c0_i32_0 : i32, i32
  }
  func.func @transform_12(%arg0: i32) -> (i32, i32) {
    %c0_i32 = arith.constant 0 : i32
    %c0_i32_0 = arith.constant 0 : i32
    %c0_i32_1 = arith.constant 0 : i32
    return %c0_i32, %c0_i32_0 : i32, i32
  }
  func.func @transform_13(%arg0: i32) -> (i32, i32) {
    %c0_i32 = arith.constant 0 : i32
    %c0_i32_0 = arith.constant 0 : i32
    %c0_i32_1 = arith.constant 0 : i32
    return %c0_i32, %c0_i32_0 : i32, i32
  }
  func.func @transform_14(%arg0: i32) -> (i32, i32) {
    %c0_i32 = arith.constant 0 : i32
    %c0_i32_0 = arith.constant 0 : i32
    %c0_i32_1 = arith.constant 0 : i32
    return %c0_i32, %c0_i32_0 : i32, i32
  }
  func.func @transform_15(%arg0: i32) -> (i32, i32) {
    %c0_i32 = arith.constant 0 : i32
    %c0_i32_0 = arith.constant 0 : i32
    %c0_i32_1 = arith.constant 0 : i32
    return %c0_i32, %c0_i32_0 : i32, i32
  }
  func.func @transform_16(%arg0: i32) -> (i32, i32) {
    %c0_i32 = arith.constant 0 : i32
    %c0_i32_0 = arith.constant 0 : i32
    %c0_i32_1 = arith.constant 0 : i32
    return %c0_i32, %c0_i32_0 : i32, i32
  }
  func.func @transform_17(%arg0: i32) -> (i32, i32) {
    %c0_i32 = arith.constant 0 : i32
    %c0_i32_0 = arith.constant 0 : i32
    %c0_i32_1 = arith.constant 0 : i32
    return %c0_i32, %c0_i32_0 : i32, i32
  }
  func.func @transform_18(%arg0: i32) -> (i32, i32) {
    %c0_i32 = arith.constant 0 : i32
    %c0_i32_0 = arith.constant 0 : i32
    %c0_i32_1 = arith.constant 0 : i32
    return %c0_i32, %c0_i32_0 : i32, i32
  }
  func.func @transform_19(%arg0: i32) -> (i32, i32) {
    %c0_i32 = arith.constant 0 : i32
    %c0_i32_0 = arith.constant 0 : i32
    %c0_i32_1 = arith.constant 0 : i32
    return %c0_i32, %c0_i32_0 : i32, i32
  }
  func.func @transform_20(%arg0: i32) -> (i32, i32, i32) {
    %c0_i32 = arith.constant 0 : i32
    %c0_i32_0 = arith.constant 0 : i32
    %c0_i32_1 = arith.constant 0 : i32
    return %arg0, %c0_i32, %c0_i32_0 : i32, i32, i32
  }
}

</mosaic_0001>

<llo_original>
// kernel: tpu_custom_call.1
$region0: #{tpu_custom_call.1}
  #allocation0 [shape = 'u32[]', space=smem, size = 0x4, offset = 0x4, fixed_abs, tag = 'smem constant byte address 0x4 - core index']
  #allocation1 [shape = 'u32[72,128]{1,0:T(1,128)}', space=vmem, size = 0x9000, scoped, tag = 'internal scratch']
  %s0 = inlined_call_operand.hbm [shape: f32[6,64,64], index: 0, kind: input, shape index: {}]
  %s1 = inlined_call_operand.hbm [shape: f32[6,64,64], index: 1, kind: input, shape index: {}]
  %s2 = inlined_call_operand.vmem [shape: f32[64,62], index: 2, kind: input, shape index: {}]
  %s3 = inlined_call_operand.vmem [shape: f32[62,64], index: 3, kind: input, shape index: {}]
  %s4 = inlined_call_operand.vmem [shape: f32[64,32], index: 4, kind: input, shape index: {}]
  %s5 = inlined_call_operand.hbm [shape: f32[32,64], index: 5, kind: input, shape index: {}]
  %s6 = inlined_call_operand.hbm [shape: f32[32,30], index: 6, kind: input, shape index: {}]
  %s7 = inlined_call_operand.hbm [shape: f32[30,32], index: 7, kind: input, shape index: {}]
  %s8 = inlined_call_operand.vmem [shape: f32[32,16], index: 8, kind: input, shape index: {}]
  %s9 = inlined_call_operand.vmem [shape: f32[16,32], index: 9, kind: input, shape index: {}]
  %s10 = inlined_call_operand.vmem [shape: f32[16,14], index: 10, kind: input, shape index: {}]
  %s11 = inlined_call_operand.hbm [shape: f32[14,16], index: 11, kind: input, shape index: {}]
  %s12 = inlined_call_operand.vmem [shape: f32[16,8], index: 12, kind: input, shape index: {}]
  %s13 = inlined_call_operand.hbm [shape: f32[8,16], index: 13, kind: input, shape index: {}]
  %s14 = inlined_call_operand.hbm [shape: f32[8,6], index: 14, kind: input, shape index: {}]
  %s15 = inlined_call_operand.vmem [shape: f32[6,8], index: 15, kind: input, shape index: {}]
  %s16 = inlined_call_operand.vmem [shape: f32[8,4], index: 16, kind: input, shape index: {}]
  %s17 = inlined_call_operand.hbm [shape: f32[4,8], index: 17, kind: input, shape index: {}]
  %s18 = inlined_call_operand.vmem [shape: f32[4,2], index: 18, kind: input, shape index: {}]
  %s19 = inlined_call_operand.hbm [shape: f32[2,4], index: 19, kind: input, shape index: {}]
  %s20 = inlined_call_operand.vmem [shape: f32[2,3,128], index: 20, kind: output, shape index: {}]
  %s21 = sld [smem:[#allocation0]]
  $region153: #{tpu_custom_call.1} parent=0
    _
  %s23 = ssub.s32 1, %s21
  %s24 = scalar_select 0, %s23, %s21
  $region1: #{tpu_custom_call.1} parent=0
    #allocation2 [shape = 'u8[196608]{0}', space=vmem, size = 0x30000, scoped, tag = 'input window, operand 0']
    #allocation3 [shape = 's32[2]{0}', space=sflag, size = 0x8, scoped, tag = 'scoped memory for tpu_custom_call.1']
    #allocation4 [shape = 'u8[196608]{0}', space=vmem, size = 0x30000, scoped, tag = 'input window, operand 1']
    #allocation5 [shape = 's32[2]{0}', space=sflag, size = 0x8, scoped, tag = 'scoped memory for tpu_custom_call.1']
    #allocation6 [shape = 'u8[16384]{0}', space=vmem, size = 0x4000, scoped, tag = 'input window, operand 5, single buffered']
    #allocation7 [shape = 'u8[16384]{0}', space=vmem, size = 0x4000, scoped, tag = 'input window, operand 6, single buffered']
    #allocation8 [shape = 's32[1]{0}', space=sflag, size = 0x4, scoped, tag = 'scoped memory for tpu_custom_call.1']
    #allocation9 [shape = 'u8[16384]{0}', space=vmem, size = 0x4000, scoped, tag = 'input window, operand 7, single buffered']
    #allocation10 [shape = 'u8[8192]{0}', space=vmem, size = 0x2000, scoped, tag = 'input window, operand 11, single buffered']
    #allocation11 [shape = 's32[1]{0}', space=sflag, size = 0x4, scoped, tag = 'scoped memory for tpu_custom_call.1']
    #allocation12 [shape = 'u8[4096]{0}', space=vmem, size = 0x1000, scoped, tag = 'input window, operand 13, single buffered']
    #allocation13 [shape = 'u8[4096]{0}', space=vmem, size = 0x1000, scoped, tag = 'input window, operand 14, single buffered']
    #allocation14 [shape = 's32[1]{0}', space=sflag, size = 0x4, scoped, tag = 'scoped memory for tpu_custom_call.1']
    #allocation15 [shape = 'u8[2048]{0}', space=vmem, size = 0x800, scoped, tag = 'input window, operand 17, single buffered']
    #allocation16 [shape = 'u8[1024]{0}', space=vmem, size = 0x400, scoped, tag = 'input window, operand 19, single buffered']
    #allocation17 [shape = 's32[1]{0}', space=sflag, size = 0x4, scoped, tag = 'scoped memory for tpu_custom_call.1']
    %25 = vsyncpa [#allocation3], 0
    %s26 = scalar_lea.sflag [#allocation3], 1
    %27 = vsyncpa %s26, 0
    %28 = vsyncpa [#allocation5], 0
    %s29 = scalar_lea.sflag [#allocation5], 1
    %30 = vsyncpa %s29, 0
    %31 = vsyncpa [#allocation8], 0
    %32 = vsyncpa [#allocation11], 0
    %33 = vsyncpa [#allocation14], 0
    %34 = vsyncpa [#allocation17], 0
    loop: start=0, step=1, limit=4
    $region2: #{tpu_custom_call.1} parent=1 // loop_pre_header
      _
    $region3: #{tpu_custom_call.1} parent=1 // loop_header
      %s36 = sphi 0, %s40
      %p37 = scmp.ge.s32.totalorder %s36, 4
      %s46 = sphi 0, %s48
      %s49 = sphi 0, %s46
      %s50 = sphi 0, %s49
      %s66 = sphi 0, %s50
      %s72 = sphi 0, %s74
      %s75 = sphi 0, %s72
      %s76 = sphi 0, %s75
      %s92 = sphi 0, %s76
      %s96 = sphi 0, %s96
      %s98 = sphi 0, %s96
      %s99 = sphi 0, %s98
      %s113 = sphi 0, %s99
      %s117 = sphi 0, %s117
      %s119 = sphi 0, %s117
      %s120 = sphi 0, %s119
      %s134 = sphi 0, %s120
      %s138 = sphi 0, %s138
      %s140 = sphi 0, %s138
      %s141 = sphi 0, %s140
      %s155 = sphi 0, %s141
      %s159 = sphi 0, %s159
      %s161 = sphi 0, %s159
      %s162 = sphi 0, %s161
      %s176 = sphi 0, %s162
      %s180 = sphi 0, %s180
      %s182 = sphi 0, %s180
      %s183 = sphi 0, %s182
      %s197 = sphi 0, %s183
      %s201 = sphi 0, %s201
      %s203 = sphi 0, %s201
      %s204 = sphi 0, %s203
      %s218 = sphi 0, %s204
      %s222 = sphi 0, %s222
      %s224 = sphi 0, %s222
      %s225 = sphi 0, %s224
      %s239 = sphi 0, %s225
      %s243 = sphi 0, %s243
      %s245 = sphi 0, %s243
      %s246 = sphi 0, %s245
      %s260 = sphi 0, %s246
      %s264 = sphi 0, %s264
      %s266 = sphi 0, %s264
      %s267 = sphi 0, %s266
      %s281 = sphi 0, %s267
      %s285 = sphi 0, %s285
      %s287 = sphi 0, %s285
      %s288 = sphi 0, %s287
      %s302 = sphi 0, %s288
      %s306 = sphi 0, %s306
      %s308 = sphi 0, %s306
      %s309 = sphi 0, %s308
      %s323 = sphi 0, %s309
      %s327 = sphi 0, %s327
      %s329 = sphi 0, %s327
      %s330 = sphi 0, %s329
      %s344 = sphi 0, %s330
      %s348 = sphi 0, %s348
      %s350 = sphi 0, %s348
      %s351 = sphi 0, %s350
      %s365 = sphi 0, %s351
      %s369 = sphi 0, %s369
      %s371 = sphi 0, %s369
      %s372 = sphi 0, %s371
      %s386 = sphi 0, %s372
      %s390 = sphi 0, %s390
      %s392 = sphi 0, %s390
      %s393 = sphi 0, %s392
      %s407 = sphi 0, %s393
      %s411 = sphi 0, %s411
      %s413 = sphi 0, %s411
      %s414 = sphi 0, %s413
      %s428 = sphi 0, %s414
      %s432 = sphi 0, %s432
      %s434 = sphi 0, %s432
      %s435 = sphi 0, %s434
      %s449 = sphi 0, %s435
      %s453 = sphi 0, %s453
      %s455 = sphi 0, %s453
      %s456 = sphi 0, %s455
      %s470 = sphi 0, %s456
      %s476 = sphi 0, %s478
      %s479 = sphi 0, %s476
      %s480 = sphi 0, %s479
      %s496 = sphi 0, %s480
    $region4: #{tpu_custom_call.1} parent=1 // loop_header_branch
      %39 = sbr.rel (%p37) target = $region8
    $region5: #{tpu_custom_call.1} parent=1 // loop_body
      %s41 = ssub.s32 %s36, 1
      %s42 = ssub.s32 %s36, 2
      %s43 = sadd.s32 %s36, 1
      %s44 = ssub.s32 %s36, %s43
      %p45 = scmp.eq.s32.totalorder %s44, 0
      %s47 = sadd.s32 %s46, 1
      %s48 = scalar_select %p45, %s46, %s47
      %p51 = pneg %p45
      %p52 = scmp.eq.s32.totalorder %s36, 1
      %p53 = por %p51, %p52
      %p54 = scmp.ne.s32.totalorder %s46, %s49
      %p55 = scmp.eq.s32.totalorder %s36, 0
      %p56 = por %p54, %p55
      %p57 = scmp.ne.s32.totalorder %s46, %s49
      %p58 = scmp.eq.s32.totalorder %s41, 1
      %p59 = por %p57, %p58
      %p60 = scmp.ne.s32.totalorder %s49, %s50
      %p61 = scmp.eq.s32.totalorder %s41, 0
      %p62 = por %p60, %p61
      %p63 = scmp.ne.s32.totalorder %s49, %s50
      %p64 = scmp.eq.s32.totalorder %s42, 1
      %p65 = por %p63, %p64
      %p67 = scmp.ne.s32.totalorder %s50, %s66
      %p68 = scmp.eq.s32.totalorder %s42, 0
      %p69 = por %p67, %p68
      %s70 = ssub.s32 %s36, %s43
      %p71 = scmp.eq.s32.totalorder %s70, 0
      %s73 = sadd.s32 %s72, 1
      %s74 = scalar_select %p71, %s72, %s73
      %p77 = pneg %p71
      %p78 = scmp.eq.s32.totalorder %s36, 1
      %p79 = por %p77, %p78
      %p80 = scmp.ne.s32.totalorder %s72, %s75
      %p81 = scmp.eq.s32.totalorder %s36, 0
      %p82 = por %p80, %p81
      %p83 = scmp.ne.s32.totalorder %s72, %s75
      %p84 = scmp.eq.s32.totalorder %s41, 1
      %p85 = por %p83, %p84
      %p86 = scmp.ne.s32.totalorder %s75, %s76
      %p87 = scmp.eq.s32.totalorder %s41, 0
      %p88 = por %p86, %p87
      %p89 = scmp.ne.s32.totalorder %s75, %s76
      %p90 = scmp.eq.s32.totalorder %s42, 1
      %p91 = por %p89, %p90
      %p93 = scmp.ne.s32.totalorder %s76, %s92
      %p94 = scmp.eq.s32.totalorder %s42, 0
      %p95 = por %p93, %p94
      %s97 = sadd.s32 %s96, 1
      %p100 = scmp.eq.s32.totalorder %s36, 1
      %p101 = scmp.ne.s32.totalorder %s96, %s98
      %p102 = scmp.eq.s32.totalorder %s36, 0
      %p103 = por %p101, %p102
      %p104 = scmp.ne.s32.totalorder %s96, %s98
      %p105 = scmp.eq.s32.totalorder %s41, 1
      %p106 = por %p104, %p105
      %p107 = scmp.ne.s32.totalorder %s98, %s99
      %p108 = scmp.eq.s32.totalorder %s41, 0
      %p109 = por %p107, %p108
      %p110 = scmp.ne.s32.totalorder %s98, %s99
      %p111 = scmp.eq.s32.totalorder %s42, 1
      %p112 = por %p110, %p111
      %p114 = scmp.ne.s32.totalorder %s99, %s113
      %p115 = scmp.eq.s32.totalorder %s42, 0
      %p116 = por %p114, %p115
      %s118 = sadd.s32 %s117, 1
      %p121 = scmp.eq.s32.totalorder %s36, 1
      %p122 = scmp.ne.s32.totalorder %s117, %s119
      %p123 = scmp.eq.s32.totalorder %s36, 0
      %p124 = por %p122, %p123
      %p125 = scmp.ne.s32.totalorder %s117, %s119
      %p126 = scmp.eq.s32.totalorder %s41, 1
      %p127 = por %p125, %p126
      %p128 = scmp.ne.s32.totalorder %s119, %s120
      %p129 = scmp.eq.s32.totalorder %s41, 0
      %p130 = por %p128, %p129
      %p131 = scmp.ne.s32.totalorder %s119, %s120
      %p132 = scmp.eq.s32.totalorder %s42, 1
      %p133 = por %p131, %p132
      %p135 = scmp.ne.s32.totalorder %s120, %s134
      %p136 = scmp.eq.s32.totalorder %s42, 0
      %p137 = por %p135, %p136
      %s139 = sadd.s32 %s138, 1
      %p142 = scmp.eq.s32.totalorder %s36, 1
      %p143 = scmp.ne.s32.totalorder %s138, %s140
      %p144 = scmp.eq.s32.totalorder %s36, 0
      %p145 = por %p143, %p144
      %p146 = scmp.ne.s32.totalorder %s138, %s140
      %p147 = scmp.eq.s32.totalorder %s41, 1
      %p148 = por %p146, %p147
      %p149 = scmp.ne.s32.totalorder %s140, %s141
      %p150 = scmp.eq.s32.totalorder %s41, 0
      %p151 = por %p149, %p150
      %p152 = scmp.ne.s32.totalorder %s140, %s141
      %p153 = scmp.eq.s32.totalorder %s42, 1
      %p154 = por %p152, %p153
      %p156 = scmp.ne.s32.totalorder %s141, %s155
      %p157 = scmp.eq.s32.totalorder %s42, 0
      %p158 = por %p156, %p157
      %s160 = sadd.s32 %s159, 1
      %p163 = scmp.eq.s32.totalorder %s36, 1
      %p164 = scmp.ne.s32.totalorder %s159, %s161
      %p165 = scmp.eq.s32.totalorder %s36, 0
      %p166 = por %p164, %p165
      %p167 = scmp.ne.s32.totalorder %s159, %s161
      %p168 = scmp.eq.s32.totalorder %s41, 1
      %p169 = por %p167, %p168
      %p170 = scmp.ne.s32.totalorder %s161, %s162
      %p171 = scmp.eq.s32.totalorder %s41, 0
      %p172 = por %p170, %p171
      %p173 = scmp.ne.s32.totalorder %s161, %s162
      %p174 = scmp.eq.s32.totalorder %s42, 1
      %p175 = por %p173, %p174
      %p177 = scmp.ne.s32.totalorder %s162, %s176
      %p178 = scmp.eq.s32.totalorder %s42, 0
      %p179 = por %p177, %p178
      %s181 = sadd.s32 %s180, 1
      %p184 = scmp.eq.s32.totalorder %s36, 1
      %p185 = scmp.ne.s32.totalorder %s180, %s182
      %p186 = scmp.eq.s32.totalorder %s36, 0
      %p187 = por %p185, %p186
      %p188 = scmp.ne.s32.totalorder %s180, %s182
      %p189 = scmp.eq.s32.totalorder %s41, 1
      %p190 = por %p188, %p189
      %p191 = scmp.ne.s32.totalorder %s182, %s183
      %p192 = scmp.eq.s32.totalorder %s41, 0
      %p193 = por %p191, %p192
      %p194 = scmp.ne.s32.totalorder %s182, %s183
      %p195 = scmp.eq.s32.totalorder %s42, 1
      %p196 = por %p194, %p195
      %p198 = scmp.ne.s32.totalorder %s183, %s197
      %p199 = scmp.eq.s32.totalorder %s42, 0
      %p200 = por %p198, %p199
      %s202 = sadd.s32 %s201, 1
      %p205 = scmp.eq.s32.totalorder %s36, 1
      %p206 = scmp.ne.s32.totalorder %s201, %s203
      %p207 = scmp.eq.s32.totalorder %s36, 0
      %p208 = por %p206, %p207
      %p209 = scmp.ne.s32.totalorder %s201, %s203
      %p210 = scmp.eq.s32.totalorder %s41, 1
      %p211 = por %p209, %p210
      %p212 = scmp.ne.s32.totalorder %s203, %s204
      %p213 = scmp.eq.s32.totalorder %s41, 0
      %p214 = por %p212, %p213
      %p215 = scmp.ne.s32.totalorder %s203, %s204
      %p216 = scmp.eq.s32.totalorder %s42, 1
      %p217 = por %p215, %p216
      %p219 = scmp.ne.s32.totalorder %s204, %s218
      %p220 = scmp.eq.s32.totalorder %s42, 0
      %p221 = por %p219, %p220
      %s223 = sadd.s32 %s222, 1
      %p226 = scmp.eq.s32.totalorder %s36, 1
      %p227 = scmp.ne.s32.totalorder %s222, %s224
      %p228 = scmp.eq.s32.totalorder %s36, 0
      %p229 = por %p227, %p228
      %p230 = scmp.ne.s32.totalorder %s222, %s224
      %p231 = scmp.eq.s32.totalorder %s41, 1
      %p232 = por %p230, %p231
      %p233 = scmp.ne.s32.totalorder %s224, %s225
      %p234 = scmp.eq.s32.totalorder %s41, 0
      %p235 = por %p233, %p234
      %p236 = scmp.ne.s32.totalorder %s224, %s225
      %p237 = scmp.eq.s32.totalorder %s42, 1
      %p238 = por %p236, %p237
      %p240 = scmp.ne.s32.totalorder %s225, %s239
      %p241 = scmp.eq.s32.totalorder %s42, 0
      %p242 = por %p240, %p241
      %s244 = sadd.s32 %s243, 1
      %p247 = scmp.eq.s32.totalorder %s36, 1
      %p248 = scmp.ne.s32.totalorder %s243, %s245
      %p249 = scmp.eq.s32.totalorder %s36, 0
      %p250 = por %p248, %p249
      %p251 = scmp.ne.s32.totalorder %s243, %s245
      %p252 = scmp.eq.s32.totalorder %s41, 1
      %p253 = por %p251, %p252
      %p254 = scmp.ne.s32.totalorder %s245, %s246
      %p255 = scmp.eq.s32.totalorder %s41, 0
      %p256 = por %p254, %p255
      %p257 = scmp.ne.s32.totalorder %s245, %s246
      %p258 = scmp.eq.s32.totalorder %s42, 1
      %p259 = por %p257, %p258
      %p261 = scmp.ne.s32.totalorder %s246, %s260
      %p262 = scmp.eq.s32.totalorder %s42, 0
      %p263 = por %p261, %p262
      %s265 = sadd.s32 %s264, 1
      %p268 = scmp.eq.s32.totalorder %s36, 1
      %p269 = scmp.ne.s32.totalorder %s264, %s266
      %p270 = scmp.eq.s32.totalorder %s36, 0
      %p271 = por %p269, %p270
      %p272 = scmp.ne.s32.totalorder %s264, %s266
      %p273 = scmp.eq.s32.totalorder %s41, 1
      %p274 = por %p272, %p273
      %p275 = scmp.ne.s32.totalorder %s266, %s267
      %p276 = scmp.eq.s32.totalorder %s41, 0
      %p277 = por %p275, %p276
      %p278 = scmp.ne.s32.totalorder %s266, %s267
      %p279 = scmp.eq.s32.totalorder %s42, 1
      %p280 = por %p278, %p279
      %p282 = scmp.ne.s32.totalorder %s267, %s281
      %p283 = scmp.eq.s32.totalorder %s42, 0
      %p284 = por %p282, %p283
      %s286 = sadd.s32 %s285, 1
      %p289 = scmp.eq.s32.totalorder %s36, 1
      %p290 = scmp.ne.s32.totalorder %s285, %s287
      %p291 = scmp.eq.s32.totalorder %s36, 0
      %p292 = por %p290, %p291
      %p293 = scmp.ne.s32.totalorder %s285, %s287
      %p294 = scmp.eq.s32.totalorder %s41, 1
      %p295 = por %p293, %p294
      %p296 = scmp.ne.s32.totalorder %s287, %s288
      %p297 = scmp.eq.s32.totalorder %s41, 0
      %p298 = por %p296, %p297
      %p299 = scmp.ne.s32.totalorder %s287, %s288
      %p300 = scmp.eq.s32.totalorder %s42, 1
      %p301 = por %p299, %p300
      %p303 = scmp.ne.s32.totalorder %s288, %s302
      %p304 = scmp.eq.s32.totalorder %s42, 0
      %p305 = por %p303, %p304
      %s307 = sadd.s32 %s306, 1
      %p310 = scmp.eq.s32.totalorder %s36, 1
      %p311 = scmp.ne.s32.totalorder %s306, %s308
      %p312 = scmp.eq.s32.totalorder %s36, 0
      %p313 = por %p311, %p312
      %p314 = scmp.ne.s32.totalorder %s306, %s308
      %p315 = scmp.eq.s32.totalorder %s41, 1
      %p316 = por %p314, %p315
      %p317 = scmp.ne.s32.totalorder %s308, %s309
      %p318 = scmp.eq.s32.totalorder %s41, 0
      %p319 = por %p317, %p318
      %p320 = scmp.ne.s32.totalorder %s308, %s309
      %p321 = scmp.eq.s32.totalorder %s42, 1
      %p322 = por %p320, %p321
      %p324 = scmp.ne.s32.totalorder %s309, %s323
      %p325 = scmp.eq.s32.totalorder %s42, 0
      %p326 = por %p324, %p325
      %s328 = sadd.s32 %s327, 1
      %p331 = scmp.eq.s32.totalorder %s36, 1
      %p332 = scmp.ne.s32.totalorder %s327, %s329
      %p333 = scmp.eq.s32.totalorder %s36, 0
      %p334 = por %p332, %p333
      %p335 = scmp.ne.s32.totalorder %s327, %s329
      %p336 = scmp.eq.s32.totalorder %s41, 1
      %p337 = por %p335, %p336
      %p338 = scmp.ne.s32.totalorder %s329, %s330
      %p339 = scmp.eq.s32.totalorder %s41, 0
      %p340 = por %p338, %p339
      %p341 = scmp.ne.s32.totalorder %s329, %s330
      %p342 = scmp.eq.s32.totalorder %s42, 1
      %p343 = por %p341, %p342
      %p345 = scmp.ne.s32.totalorder %s330, %s344
      %p346 = scmp.eq.s32.totalorder %s42, 0
      %p347 = por %p345, %p346
      %s349 = sadd.s32 %s348, 1
      %p352 = scmp.eq.s32.totalorder %s36, 1
      %p353 = scmp.ne.s32.totalorder %s348, %s350
      %p354 = scmp.eq.s32.totalorder %s36, 0
      %p355 = por %p353, %p354
      %p356 = scmp.ne.s32.totalorder %s348, %s350
      %p357 = scmp.eq.s32.totalorder %s41, 1
      %p358 = por %p356, %p357
      %p359 = scmp.ne.s32.totalorder %s350, %s351
      %p360 = scmp.eq.s32.totalorder %s41, 0
      %p361 = por %p359, %p360
      %p362 = scmp.ne.s32.totalorder %s350, %s351
      %p363 = scmp.eq.s32.totalorder %s42, 1
      %p364 = por %p362, %p363
      %p366 = scmp.ne.s32.totalorder %s351, %s365
      %p367 = scmp.eq.s32.totalorder %s42, 0
      %p368 = por %p366, %p367
      %s370 = sadd.s32 %s369, 1
      %p373 = scmp.eq.s32.totalorder %s36, 1
      %p374 = scmp.ne.s32.totalorder %s369, %s371
      %p375 = scmp.eq.s32.totalorder %s36, 0
      %p376 = por %p374, %p375
      %p377 = scmp.ne.s32.totalorder %s369, %s371
      %p378 = scmp.eq.s32.totalorder %s41, 1
      %p379 = por %p377, %p378
      %p380 = scmp.ne.s32.totalorder %s371, %s372
      %p381 = scmp.eq.s32.totalorder %s41, 0
      %p382 = por %p380, %p381
      %p383 = scmp.ne.s32.totalorder %s371, %s372
      %p384 = scmp.eq.s32.totalorder %s42, 1
      %p385 = por %p383, %p384
      %p387 = scmp.ne.s32.totalorder %s372, %s386
      %p388 = scmp.eq.s32.totalorder %s42, 0
      %p389 = por %p387, %p388
      %s391 = sadd.s32 %s390, 1
      %p394 = scmp.eq.s32.totalorder %s36, 1
      %p395 = scmp.ne.s32.totalorder %s390, %s392
      %p396 = scmp.eq.s32.totalorder %s36, 0
      %p397 = por %p395, %p396
      %p398 = scmp.ne.s32.totalorder %s390, %s392
      %p399 = scmp.eq.s32.totalorder %s41, 1
      %p400 = por %p398, %p399
      %p401 = scmp.ne.s32.totalorder %s392, %s393
      %p402 = scmp.eq.s32.totalorder %s41, 0
      %p403 = por %p401, %p402
      %p404 = scmp.ne.s32.totalorder %s392, %s393
      %p405 = scmp.eq.s32.totalorder %s42, 1
      %p406 = por %p404, %p405
      %p408 = scmp.ne.s32.totalorder %s393, %s407
      %p409 = scmp.eq.s32.totalorder %s42, 0
      %p410 = por %p408, %p409
      %s412 = sadd.s32 %s411, 1
      %p415 = scmp.eq.s32.totalorder %s36, 1
      %p416 = scmp.ne.s32.totalorder %s411, %s413
      %p417 = scmp.eq.s32.totalorder %s36, 0
      %p418 = por %p416, %p417
      %p419 = scmp.ne.s32.totalorder %s411, %s413
      %p420 = scmp.eq.s32.totalorder %s41, 1
      %p421 = por %p419, %p420
      %p422 = scmp.ne.s32.totalorder %s413, %s414
      %p423 = scmp.eq.s32.totalorder %s41, 0
      %p424 = por %p422, %p423
      %p425 = scmp.ne.s32.totalorder %s413, %s414
      %p426 = scmp.eq.s32.totalorder %s42, 1
      %p427 = por %p425, %p426
      %p429 = scmp.ne.s32.totalorder %s414, %s428
      %p430 = scmp.eq.s32.totalorder %s42, 0
      %p431 = por %p429, %p430
      %s433 = sadd.s32 %s432, 1
      %p436 = scmp.eq.s32.totalorder %s36, 1
      %p437 = scmp.ne.s32.totalorder %s432, %s434
      %p438 = scmp.eq.s32.totalorder %s36, 0
      %p439 = por %p437, %p438
      %p440 = scmp.ne.s32.totalorder %s432, %s434
      %p441 = scmp.eq.s32.totalorder %s41, 1
      %p442 = por %p440, %p441
      %p443 = scmp.ne.s32.totalorder %s434, %s435
      %p444 = scmp.eq.s32.totalorder %s41, 0
      %p445 = por %p443, %p444
      %p446 = scmp.ne.s32.totalorder %s434, %s435
      %p447 = scmp.eq.s32.totalorder %s42, 1
      %p448 = por %p446, %p447
      %p450 = scmp.ne.s32.totalorder %s435, %s449
      %p451 = scmp.eq.s32.totalorder %s42, 0
      %p452 = por %p450, %p451
      %s454 = sadd.s32 %s453, 1
      %p457 = scmp.eq.s32.totalorder %s36, 1
      %p458 = scmp.ne.s32.totalorder %s453, %s455
      %p459 = scmp.eq.s32.totalorder %s36, 0
      %p460 = por %p458, %p459
      %p461 = scmp.ne.s32.totalorder %s453, %s455
      %p462 = scmp.eq.s32.totalorder %s41, 1
      %p463 = por %p461, %p462
      %p464 = scmp.ne.s32.totalorder %s455, %s456
      %p465 = scmp.eq.s32.totalorder %s41, 0
      %p466 = por %p464, %p465
      %p467 = scmp.ne.s32.totalorder %s455, %s456
      %p468 = scmp.eq.s32.totalorder %s42, 1
      %p469 = por %p467, %p468
      %p471 = scmp.ne.s32.totalorder %s456, %s470
      %p472 = scmp.eq.s32.totalorder %s42, 0
      %p473 = por %p471, %p472
      %s474 = ssub.s32 %s36, %s43
      %p475 = scmp.eq.s32.totalorder %s474, 0
      %s477 = sadd.s32 %s476, 1
      %s478 = scalar_select %p475, %s476, %s477
      %p481 = pneg %p475
      %p482 = scmp.eq.s32.totalorder %s36, 1
      %p483 = por %p481, %p482
      %p484 = scmp.ne.s32.totalorder %s476, %s479
      %p485 = scmp.eq.s32.totalorder %s36, 0
      %p486 = por %p484, %p485
      %p487 = scmp.ne.s32.totalorder %s476, %s479
      %p488 = scmp.eq.s32.totalorder %s41, 1
      %p489 = por %p487, %p488
      %p490 = scmp.ne.s32.totalorder %s479, %s480
      %p491 = scmp.eq.s32.totalorder %s41, 0
      %p492 = por %p490, %p491
      %p493 = scmp.ne.s32.totalorder %s479, %s480
      %p494 = scmp.eq.s32.totalorder %s42, 1
      %p495 = por %p493, %p494
      %p497 = scmp.ne.s32.totalorder %s480, %s496
      %p498 = scmp.eq.s32.totalorder %s42, 0
      %p499 = por %p497, %p498
      %p500 = scmp.le.s32.totalorder 1, %s36
      %p501 = scmp.lt.s32.totalorder %s36, 3
      %p502 = pnand %p500, %p501
      %p503 = pneg %p502
      // Predicated region
      $region9: #{tpu_custom_call.1} parent=5 // pred_check
        _
      $region10: #{tpu_custom_call.1} parent=5 // pred_check_branch
        %505 = sbr.rel (%p502) target = $region12
      $region11: #{tpu_custom_call.1} parent=5 // pred_region
        %s506 = ssub.s32 %s36, 1
        // Predicated region
        $region13: #{tpu_custom_call.1} parent=11 // pred_check
          %p507 = pneg %p109
        $region14: #{tpu_custom_call.1} parent=11 // pred_check_branch
          %509 = sbr.rel (%p507) target = $region16
        $region15: #{tpu_custom_call.1} parent=11 // pred_region
          _
        $region16: #{tpu_custom_call.1} parent=11 // pred_fallthru
          _
        // Predicated region
        $region17: #{tpu_custom_call.1} parent=11 // pred_check
          %p510 = pneg %p130
        $region18: #{tpu_custom_call.1} parent=11 // pred_check_branch
          %512 = sbr.rel (%p510) target = $region20
        $region19: #{tpu_custom_call.1} parent=11 // pred_region
          _
        $region20: #{tpu_custom_call.1} parent=11 // pred_fallthru
          _
        // Predicated region
        $region21: #{tpu_custom_call.1} parent=11 // pred_check
          %p513 = pneg %p151
        $region22: #{tpu_custom_call.1} parent=11 // pred_check_branch
          %515 = sbr.rel (%p513) target = $region24
        $region23: #{tpu_custom_call.1} parent=11 // pred_region
          _
        $region24: #{tpu_custom_call.1} parent=11 // pred_fallthru
          _
        // Predicated region
        $region25: #{tpu_custom_call.1} parent=11 // pred_check
          %p516 = pneg %p172
        $region26: #{tpu_custom_call.1} parent=11 // pred_check_branch
          %518 = sbr.rel (%p516) target = $region28
        $region27: #{tpu_custom_call.1} parent=11 // pred_region
          %520 = vsyncadd [#allocation5], 0
          %s521 = sshll.u32 %s5, 4
          %s522 = int_to_ptr.hbm [resolvable:$true] %s521
          %s523 = sshll.u32 [#allocation6], 4
          %s524 = int_to_ptr.vmem [resolvable:$true] %s523
          %529 = dma.hbm_to_vmem [thread:$0]  %s522, 512, %s524, [#allocation5], 128, 128, 8
        $region28: #{tpu_custom_call.1} parent=11 // pred_fallthru
          _
        // Predicated region
        $region29: #{tpu_custom_call.1} parent=11 // pred_check
          %p530 = pneg %p193
        $region30: #{tpu_custom_call.1} parent=11 // pred_check_branch
          %532 = sbr.rel (%p530) target = $region32
        $region31: #{tpu_custom_call.1} parent=11 // pred_region
          %534 = vsyncadd [#allocation8], 0
          %s535 = sshll.u32 %s6, 4
          %s536 = int_to_ptr.hbm [resolvable:$true] %s535
          %s537 = sshll.u32 [#allocation7], 4
          %s538 = int_to_ptr.vmem [resolvable:$true] %s537
          %543 = dma.hbm_to_vmem [thread:$0]  %s536, 512, %s538, [#allocation8], 128, 128, 8
        $region32: #{tpu_custom_call.1} parent=11 // pred_fallthru
          _
        // Predicated region
        $region33: #{tpu_custom_call.1} parent=11 // pred_check
          %p544 = pneg %p214
        $region34: #{tpu_custom_call.1} parent=11 // pred_check_branch
          %546 = sbr.rel (%p544) target = $region36
        $region35: #{tpu_custom_call.1} parent=11 // pred_region
          %548 = vsyncadd [#allocation8], 0
          %s549 = sshll.u32 %s7, 4
          %s550 = int_to_ptr.hbm [resolvable:$true] %s549
          %s551 = sshll.u32 [#allocation9], 4
          %s552 = int_to_ptr.vmem [resolvable:$true] %s551
          %557 = dma.hbm_to_vmem [thread:$0]  %s550, 512, %s552, [#allocation8], 128, 128, 8
        $region36: #{tpu_custom_call.1} parent=11 // pred_fallthru
          _
        // Predicated region
        $region37: #{tpu_custom_call.1} parent=11 // pred_check
          %p558 = pneg %p235
        $region38: #{tpu_custom_call.1} parent=11 // pred_check_branch
          %560 = sbr.rel (%p558) target = $region40
        $region39: #{tpu_custom_call.1} parent=11 // pred_region
          _
        $region40: #{tpu_custom_call.1} parent=11 // pred_fallthru
          _
        // Predicated region
        $region41: #{tpu_custom_call.1} parent=11 // pred_check
          %p561 = pneg %p256
        $region42: #{tpu_custom_call.1} parent=11 // pred_check_branch
          %563 = sbr.rel (%p561) target = $region44
        $region43: #{tpu_custom_call.1} parent=11 // pred_region
          _
        $region44: #{tpu_custom_call.1} parent=11 // pred_fallthru
          _
        // Predicated region
        $region45: #{tpu_custom_call.1} parent=11 // pred_check
          %p564 = pneg %p277
        $region46: #{tpu_custom_call.1} parent=11 // pred_check_branch
          %566 = sbr.rel (%p564) target = $region48
        $region47: #{tpu_custom_call.1} parent=11 // pred_region
          _
        $region48: #{tpu_custom_call.1} parent=11 // pred_fallthru
          _
        // Predicated region
        $region49: #{tpu_custom_call.1} parent=11 // pred_check
          %p567 = pneg %p298
        $region50: #{tpu_custom_call.1} parent=11 // pred_check_branch
          %569 = sbr.rel (%p567) target = $region52
        $region51: #{tpu_custom_call.1} parent=11 // pred_region
          %571 = vsyncadd [#allocation11], 0
          %s572 = sshll.u32 %s11, 4
          %s573 = int_to_ptr.hbm [resolvable:$true] %s572
          %s574 = sshll.u32 [#allocation10], 4
          %s575 = int_to_ptr.vmem [resolvable:$true] %s574
          %580 = dma.hbm_to_vmem [thread:$0]  %s573, 256, %s575, [#allocation11], 128, 128, 8
        $region52: #{tpu_custom_call.1} parent=11 // pred_fallthru
          _
        // Predicated region
        $region53: #{tpu_custom_call.1} parent=11 // pred_check
          %p581 = pneg %p319
        $region54: #{tpu_custom_call.1} parent=11 // pred_check_branch
          %583 = sbr.rel (%p581) target = $region56
        $region55: #{tpu_custom_call.1} parent=11 // pred_region
          _
        $region56: #{tpu_custom_call.1} parent=11 // pred_fallthru
          _
        // Predicated region
        $region57: #{tpu_custom_call.1} parent=11 // pred_check
          %p584 = pneg %p340
        $region58: #{tpu_custom_call.1} parent=11 // pred_check_branch
          %586 = sbr.rel (%p584) target = $region60
        $region59: #{tpu_custom_call.1} parent=11 // pred_region
          %588 = vsyncadd [#allocation11], 0
          %s590 = sshll.u32 %s13, 4
          %s591 = int_to_ptr.hbm [resolvable:$true] %s590
          %s592 = sshll.u32 [#allocation12], 4
          %s593 = int_to_ptr.vmem [resolvable:$true] %s592
          %595 = dma.hbm_to_vmem [thread:$0]  %s591, 128, %s593, [#allocation11]
        $region60: #{tpu_custom_call.1} parent=11 // pred_fallthru
          _
        // Predicated region
        $region61: #{tpu_custom_call.1} parent=11 // pred_check
          %p596 = pneg %p361
        $region62: #{tpu_custom_call.1} parent=11 // pred_check_branch
          %598 = sbr.rel (%p596) target = $region64
        $region63: #{tpu_custom_call.1} parent=11 // pred_region
          %600 = vsyncadd [#allocation14], 0
          %s602 = sshll.u32 %s14, 4
          %s603 = int_to_ptr.hbm [resolvable:$true] %s602
          %s604 = sshll.u32 [#allocation13], 4
          %s605 = int_to_ptr.vmem [resolvable:$true] %s604
          %607 = dma.hbm_to_vmem [thread:$0]  %s603, 128, %s605, [#allocation14]
        $region64: #{tpu_custom_call.1} parent=11 // pred_fallthru
          _
        // Predicated region
        $region65: #{tpu_custom_call.1} parent=11 // pred_check
          %p608 = pneg %p382
        $region66: #{tpu_custom_call.1} parent=11 // pred_check_branch
          %610 = sbr.rel (%p608) target = $region68
        $region67: #{tpu_custom_call.1} parent=11 // pred_region
          _
        $region68: #{tpu_custom_call.1} parent=11 // pred_fallthru
          _
        // Predicated region
        $region69: #{tpu_custom_call.1} parent=11 // pred_check
          %p611 = pneg %p403
        $region70: #{tpu_custom_call.1} parent=11 // pred_check_branch
          %613 = sbr.rel (%p611) target = $region72
        $region71: #{tpu_custom_call.1} parent=11 // pred_region
          _
        $region72: #{tpu_custom_call.1} parent=11 // pred_fallthru
          _
        // Predicated region
        $region73: #{tpu_custom_call.1} parent=11 // pred_check
          %p614 = pneg %p424
        $region74: #{tpu_custom_call.1} parent=11 // pred_check_branch
          %616 = sbr.rel (%p614) target = $region76
        $region75: #{tpu_custom_call.1} parent=11 // pred_region
          %618 = vsyncadd [#allocation14], 0
          %s620 = sshll.u32 %s17, 4
          %s621 = int_to_ptr.hbm [resolvable:$true] %s620
          %s622 = sshll.u32 [#allocation15], 4
          %s623 = int_to_ptr.vmem [resolvable:$true] %s622
          %625 = dma.hbm_to_vmem [thread:$0]  %s621, 64, %s623, [#allocation14]
        $region76: #{tpu_custom_call.1} parent=11 // pred_fallthru
          _
        // Predicated region
        $region77: #{tpu_custom_call.1} parent=11 // pred_check
          %p626 = pneg %p445
        $region78: #{tpu_custom_call.1} parent=11 // pred_check_branch
          %628 = sbr.rel (%p626) target = $region80
        $region79: #{tpu_custom_call.1} parent=11 // pred_region
          _
        $region80: #{tpu_custom_call.1} parent=11 // pred_fallthru
          _
        // Predicated region
        $region81: #{tpu_custom_call.1} parent=11 // pred_check
          %p629 = pneg %p466
        $region82: #{tpu_custom_call.1} parent=11 // pred_check_branch
          %631 = sbr.rel (%p629) target = $region84
        $region83: #{tpu_custom_call.1} parent=11 // pred_region
          %633 = vsyncadd [#allocation17], 0
          %s635 = sshll.u32 %s19, 4
          %s636 = int_to_ptr.hbm [resolvable:$true] %s635
          %s637 = sshll.u32 [#allocation16], 4
          %s638 = int_to_ptr.vmem [resolvable:$true] %s637
          %640 = dma.hbm_to_vmem [thread:$0]  %s636, 32, %s638, [#allocation17]
        $region84: #{tpu_custom_call.1} parent=11 // pred_fallthru
          _
      $region12: #{tpu_custom_call.1} parent=5 // pred_fallthru
        _
      %p641 = scmp.lt.s32.totalorder %s36, 2
      // Predicated region
      $region85: #{tpu_custom_call.1} parent=5 // pred_check
        %p642 = pneg %p641
      $region86: #{tpu_custom_call.1} parent=5 // pred_check_branch
        %644 = sbr.rel (%p642) target = $region88
      $region87: #{tpu_custom_call.1} parent=5 // pred_region
        // Predicated region
        $region89: #{tpu_custom_call.1} parent=87 // pred_check
          %p645 = pneg %p56
        $region90: #{tpu_custom_call.1} parent=87 // pred_check_branch
          %647 = sbr.rel (%p645) target = $region92
        $region91: #{tpu_custom_call.1} parent=87 // pred_region
          %s648 = sand.u32 %s46, 1
          %s649 = scalar_lea.sflag [#allocation3], %s648
          %s650 = sand.u32 %s46, 1
          %s651 = smul.addr %s650, 192
          %s652 = scalar_lea.vmem [#allocation2], %s651
          %s653 = smul.u32 3, %s36
          %655 = vsyncadd %s649, 0
          %s656 = smul.addr %s653, 8
          %s657 = smul.addr %s656, 8
          %s658 = scalar_lea.hbm %s0, %s657
          %s659 = sshll.u32 %s658, 4
          %s660 = int_to_ptr.hbm [resolvable:$true] %s659
          %s661 = sshll.u32 %s652, 4
          %s662 = int_to_ptr.vmem [resolvable:$true] %s661
          %667 = dma.hbm_to_vmem [thread:$0]  %s660, 3072, %s662, %s649, 128, 128, 8
        $region92: #{tpu_custom_call.1} parent=87 // pred_fallthru
          _
        // Predicated region
        $region93: #{tpu_custom_call.1} parent=87 // pred_check
          %p668 = pneg %p82
        $region94: #{tpu_custom_call.1} parent=87 // pred_check_branch
          %670 = sbr.rel (%p668) target = $region96
        $region95: #{tpu_custom_call.1} parent=87 // pred_region
          %s671 = sand.u32 %s36, 1
          %s672 = scalar_lea.sflag [#allocation5], %s671
          %s673 = sand.u32 %s72, 1
          %s674 = smul.addr %s673, 192
          %s675 = scalar_lea.vmem [#allocation4], %s674
          %s676 = smul.u32 3, %s36
          %678 = vsyncadd %s672, 0
          %s679 = smul.addr %s676, 8
          %s680 = smul.addr %s679, 8
          %s681 = scalar_lea.hbm %s1, %s680
          %s682 = sshll.u32 %s681, 4
          %s683 = int_to_ptr.hbm [resolvable:$true] %s682
          %s684 = sshll.u32 %s675, 4
          %s685 = int_to_ptr.vmem [resolvable:$true] %s684
          %690 = dma.hbm_to_vmem [thread:$0]  %s683, 3072, %s685, %s672, 128, 128, 8
        $region96: #{tpu_custom_call.1} parent=87 // pred_fallthru
          _
      $region88: #{tpu_custom_call.1} parent=5 // pred_fallthru
        _
      %p691 = scmp.le.s32.totalorder 1, %s36
      %p692 = scmp.lt.s32.totalorder %s36, 3
      %p693 = pnand %p691, %p692
      %p694 = pneg %p693
      // Predicated region
      $region97: #{tpu_custom_call.1} parent=5 // pred_check
        _
      $region98: #{tpu_custom_call.1} parent=5 // pred_check_branch
        %696 = sbr.rel (%p693) target = $region100
      $region99: #{tpu_custom_call.1} parent=5 // pred_region
        %s697 = ssub.s32 %s36, 1
        %s698 = sand.u32 %s49, 1
        %s699 = scalar_lea.sflag [#allocation3], %s698
        %s700 = sand.u32 %s49, 1
        %s701 = smul.addr %s700, 192
        %s702 = scalar_lea.vmem [#allocation2], %s701
        // Predicated region
        $region101: #{tpu_custom_call.1} parent=99 // pred_check
          %p703 = pneg %p62
        $region102: #{tpu_custom_call.1} parent=99 // pred_check_branch
          %705 = sbr.rel (%p703) target = $region104
        $region103: #{tpu_custom_call.1} parent=99 // pred_region
          %707 = dma.done %s699, 3072
        $region104: #{tpu_custom_call.1} parent=99 // pred_fallthru
          _
        %s708 = sand.u32 %s41, 1
        %s709 = scalar_lea.sflag [#allocation5], %s708
        %s710 = sand.u32 %s75, 1
        %s711 = smul.addr %s710, 192
        %s712 = scalar_lea.vmem [#allocation4], %s711
        // Predicated region
        $region105: #{tpu_custom_call.1} parent=99 // pred_check
          %p713 = pneg %p88
        $region106: #{tpu_custom_call.1} parent=99 // pred_check_branch
          %715 = sbr.rel (%p713) target = $region108
        $region107: #{tpu_custom_call.1} parent=99 // pred_region
          %717 = dma.done %s709, 3072
        $region108: #{tpu_custom_call.1} parent=99 // pred_fallthru
          _
        // Predicated region
        $region109: #{tpu_custom_call.1} parent=99 // pred_check
          %p718 = pneg %p172
        $region110: #{tpu_custom_call.1} parent=99 // pred_check_branch
          %720 = sbr.rel (%p718) target = $region112
        $region111: #{tpu_custom_call.1} parent=99 // pred_region
          %722 = dma.done [#allocation5], 512
        $region112: #{tpu_custom_call.1} parent=99 // pred_fallthru
          _
        // Predicated region
        $region113: #{tpu_custom_call.1} parent=99 // pred_check
          %p723 = pneg %p193
        $region114: #{tpu_custom_call.1} parent=99 // pred_check_branch
          %725 = sbr.rel (%p723) target = $region116
        $region115: #{tpu_custom_call.1} parent=99 // pred_region
          %727 = dma.done [#allocation8], 512
        $region116: #{tpu_custom_call.1} parent=99 // pred_fallthru
          _
        // Predicated region
        $region117: #{tpu_custom_call.1} parent=99 // pred_check
          %p728 = pneg %p214
        $region118: #{tpu_custom_call.1} parent=99 // pred_check_branch
          %730 = sbr.rel (%p728) target = $region120
        $region119: #{tpu_custom_call.1} parent=99 // pred_region
          %732 = dma.done [#allocation8], 512
        $region120: #{tpu_custom_call.1} parent=99 // pred_fallthru
          _
        // Predicated region
        $region121: #{tpu_custom_call.1} parent=99 // pred_check
          %p733 = pneg %p298
        $region122: #{tpu_custom_call.1} parent=99 // pred_check_branch
          %735 = sbr.rel (%p733) target = $region124
        $region123: #{tpu_custom_call.1} parent=99 // pred_region
          %737 = dma.done [#allocation11], 256
        $region124: #{tpu_custom_call.1} parent=99 // pred_fallthru
          _
        // Predicated region
        $region125: #{tpu_custom_call.1} parent=99 // pred_check
          %p738 = pneg %p340
        $region126: #{tpu_custom_call.1} parent=99 // pred_check_branch
          %740 = sbr.rel (%p738) target = $region128
        $region127: #{tpu_custom_call.1} parent=99 // pred_region
          %742 = dma.done [#allocation11], 128
        $region128: #{tpu_custom_call.1} parent=99 // pred_fallthru
          _
        // Predicated region
        $region129: #{tpu_custom_call.1} parent=99 // pred_check
          %p743 = pneg %p361
        $region130: #{tpu_custom_call.1} parent=99 // pred_check_branch
          %745 = sbr.rel (%p743) target = $region132
        $region131: #{tpu_custom_call.1} parent=99 // pred_region
          %747 = dma.done [#allocation14], 128
        $region132: #{tpu_custom_call.1} parent=99 // pred_fallthru
          _
        // Predicated region
        $region133: #{tpu_custom_call.1} parent=99 // pred_check
          %p748 = pneg %p424
        $region134: #{tpu_custom_call.1} parent=99 // pred_check_branch
          %750 = sbr.rel (%p748) target = $region136
        $region135: #{tpu_custom_call.1} parent=99 // pred_region
          %752 = dma.done [#allocation14], 64
        $region136: #{tpu_custom_call.1} parent=99 // pred_fallthru
          _
        // Predicated region
        $region137: #{tpu_custom_call.1} parent=99 // pred_check
          %p753 = pneg %p466
        $region138: #{tpu_custom_call.1} parent=99 // pred_check_branch
          %755 = sbr.rel (%p753) target = $region140
        $region139: #{tpu_custom_call.1} parent=99 // pred_region
          %757 = dma.done [#allocation17], 32
        $region140: #{tpu_custom_call.1} parent=99 // pred_fallthru
          _
        %s758 = sand.u32 %s49, 1
        %s759 = scalar_lea.sflag [#allocation3], %s758
        %s760 = sand.u32 %s49, 1
        %s761 = smul.addr %s760, 192
        %s762 = scalar_lea.vmem [#allocation2], %s761
        %p763 = pneg %p62
        %p764 = pneg %p59
        %s765 = sand.u32 %s41, 1
        %s766 = scalar_lea.sflag [#allocation5], %s765
        %s767 = sand.u32 %s75, 1
        %s768 = smul.addr %s767, 192
        %s769 = scalar_lea.vmem [#allocation4], %s768
        %p770 = pneg %p88
        %p771 = pneg %p85
        %p772 = pneg %p109
        %p773 = pneg %p106
        %p774 = pneg %p130
        %p775 = pneg %p127
        %p776 = pneg %p151
        %p777 = pneg %p148
        %p778 = pneg %p172
        %p779 = pneg %p169
        %p780 = pneg %p193
        %p781 = pneg %p190
        %p782 = pneg %p214
        %p783 = pneg %p211
        %p784 = pneg %p235
        %p785 = pneg %p232
        %p786 = pneg %p256
        %p787 = pneg %p253
        %p788 = pneg %p277
        %p789 = pneg %p274
        %p790 = pneg %p298
        %p791 = pneg %p295
        %p792 = pneg %p319
        %p793 = pneg %p316
        %p794 = pneg %p340
        %p795 = pneg %p337
        %p796 = pneg %p361
        %p797 = pneg %p358
        %p798 = pneg %p382
        %p799 = pneg %p379
        %p800 = pneg %p403
        %p801 = pneg %p400
        %p802 = pneg %p424
        %p803 = pneg %p421
        %p804 = pneg %p445
        %p805 = pneg %p442
        %p806 = pneg %p466
        %p807 = pneg %p463
        %p808 = pneg %p492
        %p809 = pneg %p489
        %p810 = scmp.lt.s32.totalorder %s41, 1
        %s811 = scalar_select %p810, %s41, 1
        %s812 = smul.addr %s811, 4
        %s813 = scalar_lea.vmem %s20, %s812
        %s814 = smul.u32 3, %s41
        %s815 = smul.u32 3, %s41
        %p816 = scmp.lt.s32.totalorder %s41, 1
        %s817 = scalar_select %p816, %s41, 1
        %s818 = smul.addr %s817, 4
        %s819 = scalar_lea.vmem %s20, %s818
        %v820 = vld [vmem:[%s702] sm:$0xff]
        %v821 = vld [vmem:[%s702 + $0x8] sm:$0xff]
        %v822 = vld [vmem:[%s702 + $0x10] sm:$0xff]
        %v823 = vld [vmem:[%s702 + $0x18] sm:$0xff]
        %v824 = vld [vmem:[%s702 + $0x20] sm:$0xff]
        %v825 = vld [vmem:[%s702 + $0x28] sm:$0xff]
        %v826 = vld [vmem:[%s702 + $0x30] sm:$0xff]
        %v827 = vld [vmem:[%s702 + $0x38] sm:$0xff]
        %v828 = vld [vmem:[%s702 + $0x40] sm:$0xff]
        %v829 = vld [vmem:[%s702 + $0x48] sm:$0xff]
        %v830 = vld [vmem:[%s702 + $0x50] sm:$0xff]
        %v831 = vld [vmem:[%s702 + $0x58] sm:$0xff]
        %v832 = vld [vmem:[%s702 + $0x60] sm:$0xff]
        %v833 = vld [vmem:[%s702 + $0x68] sm:$0xff]
        %v834 = vld [vmem:[%s702 + $0x70] sm:$0xff]
        %v835 = vld [vmem:[%s702 + $0x78] sm:$0xff]
        %v836 = vld [vmem:[%s702 + $0x80] sm:$0xff]
        %v837 = vld [vmem:[%s702 + $0x88] sm:$0xff]
        %v838 = vld [vmem:[%s702 + $0x90] sm:$0xff]
        %v839 = vld [vmem:[%s702 + $0x98] sm:$0xff]
        %v840 = vld [vmem:[%s702 + $0xa0] sm:$0xff]
        %v841 = vld [vmem:[%s702 + $0xa8] sm:$0xff]
        %v842 = vld [vmem:[%s702 + $0xb0] sm:$0xff]
        %v843 = vld [vmem:[%s702 + $0xb8] sm:$0xff]
        %v844 = vld [vmem:[%s712] sm:$0xff]
        %v845 = vld [vmem:[%s712 + $0x8] sm:$0xff]
        %v846 = vld [vmem:[%s712 + $0x10] sm:$0xff]
        %v847 = vld [vmem:[%s712 + $0x18] sm:$0xff]
        %v848 = vld [vmem:[%s712 + $0x20] sm:$0xff]
        %v849 = vld [vmem:[%s712 + $0x28] sm:$0xff]
        %v850 = vld [vmem:[%s712 + $0x30] sm:$0xff]
        %v851 = vld [vmem:[%s712 + $0x38] sm:$0xff]
        %v852 = vld [vmem:[%s712 + $0x40] sm:$0xff]
        %v853 = vld [vmem:[%s712 + $0x48] sm:$0xff]
        %v854 = vld [vmem:[%s712 + $0x50] sm:$0xff]
        %v855 = vld [vmem:[%s712 + $0x58] sm:$0xff]
        %v856 = vld [vmem:[%s712 + $0x60] sm:$0xff]
        %v857 = vld [vmem:[%s712 + $0x68] sm:$0xff]
        %v858 = vld [vmem:[%s712 + $0x70] sm:$0xff]
        %v859 = vld [vmem:[%s712 + $0x78] sm:$0xff]
        %v860 = vld [vmem:[%s712 + $0x80] sm:$0xff]
        %v861 = vld [vmem:[%s712 + $0x88] sm:$0xff]
        %v862 = vld [vmem:[%s712 + $0x90] sm:$0xff]
        %v863 = vld [vmem:[%s712 + $0x98] sm:$0xff]
        %v864 = vld [vmem:[%s712 + $0xa0] sm:$0xff]
        %v865 = vld [vmem:[%s712 + $0xa8] sm:$0xff]
        %v866 = vld [vmem:[%s712 + $0xb0] sm:$0xff]
        %v867 = vld [vmem:[%s712 + $0xb8] sm:$0xff]
        %v868 = vld [vmem:[%s2] sm:$0xff]
        %v869 = vld [vmem:[%s2 + $0x8] sm:$0xff]
        %v870 = vld [vmem:[%s2 + $0x10] sm:$0xff]
        %v871 = vld [vmem:[%s2 + $0x18] sm:$0xff]
        %v872 = vld [vmem:[%s2 + $0x20] sm:$0xff]
        %v873 = vld [vmem:[%s2 + $0x28] sm:$0xff]
        %v874 = vld [vmem:[%s2 + $0x30] sm:$0xff]
        %v875 = vld [vmem:[%s2 + $0x38] sm:$0xff]
        %v876 = vld [vmem:[%s3] sm:$0xff]
        %v877 = vld [vmem:[%s3 + $0x8] sm:$0xff]
        %v878 = vld [vmem:[%s3 + $0x10] sm:$0xff]
        %v879 = vld [vmem:[%s3 + $0x18] sm:$0xff]
        %v880 = vld [vmem:[%s3 + $0x20] sm:$0xff]
        %v881 = vld [vmem:[%s3 + $0x28] sm:$0xff]
        %v882 = vld [vmem:[%s3 + $0x30] sm:$0xff]
        %v883 = vld [vmem:[%s3 + $0x38] sm:$0x3f]
        %v884 = vld [vmem:[%s4] sm:$0xff]
        %v885 = vld [vmem:[%s4 + $0x8] sm:$0xff]
        %v886 = vld [vmem:[%s4 + $0x10] sm:$0xff]
        %v887 = vld [vmem:[%s4 + $0x18] sm:$0xff]
        %v888 = vld [vmem:[%s4 + $0x20] sm:$0xff]
        %v889 = vld [vmem:[%s4 + $0x28] sm:$0xff]
        %v890 = vld [vmem:[%s4 + $0x30] sm:$0xff]
        %v891 = vld [vmem:[%s4 + $0x38] sm:$0xff]
        %v892 = vld [vmem:[#allocation6] sm:$0xff]
        %v893 = vld [vmem:[#allocation6 + $0x8] sm:$0xff]
        %v894 = vld [vmem:[#allocation6 + $0x10] sm:$0xff]
        %v895 = vld [vmem:[#allocation6 + $0x18] sm:$0xff]
        %v896 = vmul.f32 %v820, %v820
        %v897 = vmul.f32 %v821, %v821
        %v898 = vmul.f32 %v822, %v822
        %v899 = vmul.f32 %v823, %v823
        %v900 = vmul.f32 %v824, %v824
        %v901 = vmul.f32 %v825, %v825
        %v902 = vmul.f32 %v826, %v826
        %v903 = vmul.f32 %v827, %v827
        %v904 = vmul.f32 %v828, %v828
        %v905 = vmul.f32 %v829, %v829
        %v906 = vmul.f32 %v830, %v830
        %v907 = vmul.f32 %v831, %v831
        %v908 = vmul.f32 %v832, %v832
        %v909 = vmul.f32 %v833, %v833
        %v910 = vmul.f32 %v834, %v834
        %v911 = vmul.f32 %v835, %v835
        %v912 = vmul.f32 %v836, %v836
        %v913 = vmul.f32 %v837, %v837
        %v914 = vmul.f32 %v838, %v838
        %v915 = vmul.f32 %v839, %v839
        %v916 = vmul.f32 %v840, %v840
        %v917 = vmul.f32 %v841, %v841
        %v918 = vmul.f32 %v842, %v842
        %v919 = vmul.f32 %v843, %v843
        %v920 = vmul.f32 %v844, %v844
        %v921 = vmul.f32 %v845, %v845
        %v922 = vmul.f32 %v846, %v846
        %v923 = vmul.f32 %v847, %v847
        %v924 = vmul.f32 %v848, %v848
        %v925 = vmul.f32 %v849, %v849
        %v926 = vmul.f32 %v850, %v850
        %v927 = vmul.f32 %v851, %v851
        %v928 = vmul.f32 %v852, %v852
        %v929 = vmul.f32 %v853, %v853
        %v930 = vmul.f32 %v854, %v854
        %v931 = vmul.f32 %v855, %v855
        %v932 = vmul.f32 %v856, %v856
        %v933 = vmul.f32 %v857, %v857
        %v934 = vmul.f32 %v858, %v858
        %v935 = vmul.f32 %v859, %v859
        %v936 = vmul.f32 %v860, %v860
        %v937 = vmul.f32 %v861, %v861
        %v938 = vmul.f32 %v862, %v862
        %v939 = vmul.f32 %v863, %v863
        %v940 = vmul.f32 %v864, %v864
        %v941 = vmul.f32 %v865, %v865
        %v942 = vmul.f32 %v866, %v866
        %v943 = vmul.f32 %v867, %v867
        %v944 = vmul.f32 %v820, %v844
        %v945 = vmul.f32 %v821, %v845
        %v946 = vmul.f32 %v822, %v846
        %v947 = vmul.f32 %v823, %v847
        %v948 = vmul.f32 %v824, %v848
        %v949 = vmul.f32 %v825, %v849
        %v950 = vmul.f32 %v826, %v850
        %v951 = vmul.f32 %v827, %v851
        %v952 = vmul.f32 %v828, %v852
        %v953 = vmul.f32 %v829, %v853
        %v954 = vmul.f32 %v830, %v854
        %v955 = vmul.f32 %v831, %v855
        %v956 = vmul.f32 %v832, %v856
        %v957 = vmul.f32 %v833, %v857
        %v958 = vmul.f32 %v834, %v858
        %v959 = vmul.f32 %v835, %v859
        %v960 = vmul.f32 %v836, %v860
        %v961 = vmul.f32 %v837, %v861
        %v962 = vmul.f32 %v838, %v862
        %v963 = vmul.f32 %v839, %v863
        %v964 = vmul.f32 %v840, %v864
        %v965 = vmul.f32 %v841, %v865
        %v966 = vmul.f32 %v842, %v866
        %v967 = vmul.f32 %v843, %v867
        %vm968 = vcmask 523264
        %v970 = vsel %vm968, %v820, 0
        %v973 = vsel %vm968, %v821, 0
        %v976 = vsel %vm968, %v822, 0
        %v979 = vsel %vm968, %v823, 0
        %v982 = vsel %vm968, %v824, 0
        %v985 = vsel %vm968, %v825, 0
        %v988 = vsel %vm968, %v826, 0
        %v991 = vsel %vm968, %v827, 0
        %v994 = vsel %vm968, %v828, 0
        %v997 = vsel %vm968, %v829, 0
        %v1000 = vsel %vm968, %v830, 0
        %v1003 = vsel %vm968, %v831, 0
        %v1006 = vsel %vm968, %v832, 0
        %v1009 = vsel %vm968, %v833, 0
        %v1012 = vsel %vm968, %v834, 0
        %v1015 = vsel %vm968, %v835, 0
        %v1018 = vsel %vm968, %v836, 0
        %v1021 = vsel %vm968, %v837, 0
        %v1024 = vsel %vm968, %v838, 0
        %v1027 = vsel %vm968, %v839, 0
        %v1030 = vsel %vm968, %v840, 0
        %v1033 = vsel %vm968, %v841, 0
        %v1036 = vsel %vm968, %v842, 0
        %v1039 = vsel %vm968, %v843, 0
        %v1042 = vsel %vm968, %v844, 0
        %v1045 = vsel %vm968, %v845, 0
        %v1048 = vsel %vm968, %v846, 0
        %v1051 = vsel %vm968, %v847, 0
        %v1054 = vsel %vm968, %v848, 0
        %v1057 = vsel %vm968, %v849, 0
        %v1060 = vsel %vm968, %v850, 0
        %v1063 = vsel %vm968, %v851, 0
        %v1066 = vsel %vm968, %v852, 0
        %v1069 = vsel %vm968, %v853, 0
        %v1072 = vsel %vm968, %v854, 0
        %v1075 = vsel %vm968, %v855, 0
        %v1078 = vsel %vm968, %v856, 0
        %v1081 = vsel %vm968, %v857, 0
        %v1084 = vsel %vm968, %v858, 0
        %v1087 = vsel %vm968, %v859, 0
        %v1090 = vsel %vm968, %v860, 0
        %v1093 = vsel %vm968, %v861, 0
        %v1096 = vsel %vm968, %v862, 0
        %v1099 = vsel %vm968, %v863, 0
        %v1102 = vsel %vm968, %v864, 0
        %v1105 = vsel %vm968, %v865, 0
        %v1108 = vsel %vm968, %v866, 0
        %v1111 = vsel %vm968, %v867, 0
        %v1114 = vsel %vm968, %v896, 0
        %v1117 = vsel %vm968, %v897, 0
        %v1120 = vsel %vm968, %v898, 0
        %v1123 = vsel %vm968, %v899, 0
        %v1126 = vsel %vm968, %v900, 0
        %v1129 = vsel %vm968, %v901, 0
        %v1132 = vsel %vm968, %v902, 0
        %v1135 = vsel %vm968, %v903, 0
        %v1138 = vsel %vm968, %v904, 0
        %v1141 = vsel %vm968, %v905, 0
        %v1144 = vsel %vm968, %v906, 0
        %v1147 = vsel %vm968, %v907, 0
        %v1150 = vsel %vm968, %v908, 0
        %v1153 = vsel %vm968, %v909, 0
        %v1156 = vsel %vm968, %v910, 0
        %v1159 = vsel %vm968, %v911, 0
        %v1162 = vsel %vm968, %v912, 0
        %v1165 = vsel %vm968, %v913, 0
        %v1168 = vsel %vm968, %v914, 0
        %v1171 = vsel %vm968, %v915, 0
        %v1174 = vsel %vm968, %v916, 0
        %v1177 = vsel %vm968, %v917, 0
        %v1180 = vsel %vm968, %v918, 0
        %v1183 = vsel %vm968, %v919, 0
        %v1186 = vsel %vm968, %v920, 0
        %v1189 = vsel %vm968, %v921, 0
        %v1192 = vsel %vm968, %v922, 0
        %v1195 = vsel %vm968, %v923, 0
        %v1198 = vsel %vm968, %v924, 0
        %v1201 = vsel %vm968, %v925, 0
        %v1204 = vsel %vm968, %v926, 0
        %v1207 = vsel %vm968, %v927, 0
        %v1210 = vsel %vm968, %v928, 0
        %v1213 = vsel %vm968, %v929, 0
        %v1216 = vsel %vm968, %v930, 0
        %v1219 = vsel %vm968, %v931, 0
        %v1222 = vsel %vm968, %v932, 0
        %v1225 = vsel %vm968, %v933, 0
        %v1228 = vsel %vm968, %v934, 0
        %v1231 = vsel %vm968, %v935, 0
        %v1234 = vsel %vm968, %v936, 0
        %v1237 = vsel %vm968, %v937, 0
        %v1240 = vsel %vm968, %v938, 0
        %v1243 = vsel %vm968, %v939, 0
        %v1246 = vsel %vm968, %v940, 0
        %v1249 = vsel %vm968, %v941, 0
        %v1252 = vsel %vm968, %v942, 0
        %v1255 = vsel %vm968, %v943, 0
        %v1258 = vsel %vm968, %v944, 0
        %v1261 = vsel %vm968, %v945, 0
        %v1264 = vsel %vm968, %v946, 0
        %v1267 = vsel %vm968, %v947, 0
        %v1270 = vsel %vm968, %v948, 0
        %v1273 = vsel %vm968, %v949, 0
        %v1276 = vsel %vm968, %v950, 0
        %v1279 = vsel %vm968, %v951, 0
        %v1282 = vsel %vm968, %v952, 0
        %v1285 = vsel %vm968, %v953, 0
        %v1288 = vsel %vm968, %v954, 0
        %v1291 = vsel %vm968, %v955, 0
        %v1294 = vsel %vm968, %v956, 0
        %v1297 = vsel %vm968, %v957, 0
        %v1300 = vsel %vm968, %v958, 0
        %v1303 = vsel %vm968, %v959, 0
        %v1306 = vsel %vm968, %v960, 0
        %v1309 = vsel %vm968, %v961, 0
        %v1312 = vsel %vm968, %v962, 0
        %v1315 = vsel %vm968, %v963, 0
        %v1318 = vsel %vm968, %v964, 0
        %v1321 = vsel %vm968, %v965, 0
        %v1324 = vsel %vm968, %v966, 0
        %v1327 = vsel %vm968, %v967, 0
        %1329 = vmatpush.msra.mxu0 0.0
        %1330 = vmatpush.msra.mxu0 0.0
        %1331 = vmatpush.msra.mxu0 0.0
        %1332 = vmatpush.msra.mxu0 0.0
        %1333 = vmatpush.msra.mxu0 0.0
        %1334 = vmatpush.msra.mxu0 0.0
        %1335 = vmatpush.msra.mxu0 0.0
        %1336 = vmatpush.msra.mxu0 0.0
        %1337 = vmatpush.msra.mxu0 %v875
        %1338 = vmatpush.msra.mxu0 %v874
        %1339 = vmatpush.msra.mxu0 %v873
        %1340 = vmatpush.msra.mxu0 %v872
        %1341 = vmatpush.msra.mxu0 %v871
        %1342 = vmatpush.msra.mxu0 %v870
        %1343 = vmatpush.msra.mxu0 %v869
        %1344 = vmatpush.msra.mxu0 %v868
        %1345 = vmatmul.f32.gmra.mxu0 %v970
        %v1346 = vpop.f32.mrf.mxu0
        %v1347 = vadd.f32 0.0, %v1346
        %1348 = vmatmul.f32.gmra.mxu0 %v973
        %v1349 = vpop.f32.mrf.mxu0
        %v1350 = vadd.f32 0.0, %v1349
        %1351 = vmatmul.f32.gmra.mxu0 %v976
        %v1352 = vpop.f32.mrf.mxu0
        %v1353 = vadd.f32 0.0, %v1352
        %1354 = vmatmul.f32.gmra.mxu0 %v979
        %v1355 = vpop.f32.mrf.mxu0
        %v1356 = vadd.f32 0.0, %v1355
        %1357 = vmatmul.f32.gmra.mxu0 %v982
        %v1358 = vpop.f32.mrf.mxu0
        %v1359 = vadd.f32 0.0, %v1358
        %1360 = vmatmul.f32.gmra.mxu0 %v985
        %v1361 = vpop.f32.mrf.mxu0
        %v1362 = vadd.f32 0.0, %v1361
        %1363 = vmatmul.f32.gmra.mxu0 %v988
        %v1364 = vpop.f32.mrf.mxu0
        %v1365 = vadd.f32 0.0, %v1364
        %1366 = vmatmul.f32.gmra.mxu0 %v991
        %v1367 = vpop.f32.mrf.mxu0
        %v1368 = vadd.f32 0.0, %v1367
        %1369 = vmatmul.f32.gmra.mxu0 %v994
        %v1370 = vpop.f32.mrf.mxu0
        %v1371 = vadd.f32 0.0, %v1370
        %1372 = vmatmul.f32.gmra.mxu0 %v997
        %v1373 = vpop.f32.mrf.mxu0
        %v1374 = vadd.f32 0.0, %v1373
        %1375 = vmatmul.f32.gmra.mxu0 %v1000
        %v1376 = vpop.f32.mrf.mxu0
        %v1377 = vadd.f32 0.0, %v1376
        %1378 = vmatmul.f32.gmra.mxu0 %v1003
        %v1379 = vpop.f32.mrf.mxu0
        %v1380 = vadd.f32 0.0, %v1379
        %1381 = vmatmul.f32.gmra.mxu0 %v1006
        %v1382 = vpop.f32.mrf.mxu0
        %v1383 = vadd.f32 0.0, %v1382
        %1384 = vmatmul.f32.gmra.mxu0 %v1009
        %v1385 = vpop.f32.mrf.mxu0
        %v1386 = vadd.f32 0.0, %v1385
        %1387 = vmatmul.f32.gmra.mxu0 %v1012
        %v1388 = vpop.f32.mrf.mxu0
        %v1389 = vadd.f32 0.0, %v1388
        %1390 = vmatmul.f32.gmra.mxu0 %v1015
        %v1391 = vpop.f32.mrf.mxu0
        %v1392 = vadd.f32 0.0, %v1391
        %1393 = vmatmul.f32.gmra.mxu0 %v1018
        %v1394 = vpop.f32.mrf.mxu0
        %v1395 = vadd.f32 0.0, %v1394
        %1396 = vmatmul.f32.gmra.mxu0 %v1021
        %v1397 = vpop.f32.mrf.mxu0
        %v1398 = vadd.f32 0.0, %v1397
        %1399 = vmatmul.f32.gmra.mxu0 %v1024
        %v1400 = vpop.f32.mrf.mxu0
        %v1401 = vadd.f32 0.0, %v1400
        %1402 = vmatmul.f32.gmra.mxu0 %v1027
        %v1403 = vpop.f32.mrf.mxu0
        %v1404 = vadd.f32 0.0, %v1403
        %1405 = vmatmul.f32.gmra.mxu0 %v1030
        %v1406 = vpop.f32.mrf.mxu0
        %v1407 = vadd.f32 0.0, %v1406
        %1408 = vmatmul.f32.gmra.mxu0 %v1033
        %v1409 = vpop.f32.mrf.mxu0
        %v1410 = vadd.f32 0.0, %v1409
        %1411 = vmatmul.f32.gmra.mxu0 %v1036
        %v1412 = vpop.f32.mrf.mxu0
        %v1413 = vadd.f32 0.0, %v1412
        %1414 = vmatmul.f32.gmra.mxu0 %v1039
        %v1415 = vpop.f32.mrf.mxu0
        %v1416 = vadd.f32 0.0, %v1415
        %1417 = vmatmul.f32.gmra.mxu0 %v1042
        %v1418 = vpop.f32.mrf.mxu0
        %v1419 = vadd.f32 0.0, %v1418
        %1420 = vmatmul.f32.gmra.mxu0 %v1045
        %v1421 = vpop.f32.mrf.mxu0
        %v1422 = vadd.f32 0.0, %v1421
        %1423 = vmatmul.f32.gmra.mxu0 %v1048
        %v1424 = vpop.f32.mrf.mxu0
        %v1425 = vadd.f32 0.0, %v1424
        %1426 = vmatmul.f32.gmra.mxu0 %v1051
        %v1427 = vpop.f32.mrf.mxu0
        %v1428 = vadd.f32 0.0, %v1427
        %1429 = vmatmul.f32.gmra.mxu0 %v1054
        %v1430 = vpop.f32.mrf.mxu0
        %v1431 = vadd.f32 0.0, %v1430
        %1432 = vmatmul.f32.gmra.mxu0 %v1057
        %v1433 = vpop.f32.mrf.mxu0
        %v1434 = vadd.f32 0.0, %v1433
        %1435 = vmatmul.f32.gmra.mxu0 %v1060
        %v1436 = vpop.f32.mrf.mxu0
        %v1437 = vadd.f32 0.0, %v1436
        %1438 = vmatmul.f32.gmra.mxu0 %v1063
        %v1439 = vpop.f32.mrf.mxu0
        %v1440 = vadd.f32 0.0, %v1439
        %1441 = vmatmul.f32.gmra.mxu0 %v1066
        %v1442 = vpop.f32.mrf.mxu0
        %v1443 = vadd.f32 0.0, %v1442
        %1444 = vmatmul.f32.gmra.mxu0 %v1069
        %v1445 = vpop.f32.mrf.mxu0
        %v1446 = vadd.f32 0.0, %v1445
        %1447 = vmatmul.f32.gmra.mxu0 %v1072
        %v1448 = vpop.f32.mrf.mxu0
        %v1449 = vadd.f32 0.0, %v1448
        %1450 = vmatmul.f32.gmra.mxu0 %v1075
        %v1451 = vpop.f32.mrf.mxu0
        %v1452 = vadd.f32 0.0, %v1451
        %1453 = vmatmul.f32.gmra.mxu0 %v1078
        %v1454 = vpop.f32.mrf.mxu0
        %v1455 = vadd.f32 0.0, %v1454
        %1456 = vmatmul.f32.gmra.mxu0 %v1081
        %v1457 = vpop.f32.mrf.mxu0
        %v1458 = vadd.f32 0.0, %v1457
        %1459 = vmatmul.f32.gmra.mxu0 %v1084
        %v1460 = vpop.f32.mrf.mxu0
        %v1461 = vadd.f32 0.0, %v1460
        %1462 = vmatmul.f32.gmra.mxu0 %v1087
        %v1463 = vpop.f32.mrf.mxu0
        %v1464 = vadd.f32 0.0, %v1463
        %1465 = vmatmul.f32.gmra.mxu0 %v1090
        %v1466 = vpop.f32.mrf.mxu0
        %v1467 = vadd.f32 0.0, %v1466
        %1468 = vmatmul.f32.gmra.mxu0 %v1093
        %v1469 = vpop.f32.mrf.mxu0
        %v1470 = vadd.f32 0.0, %v1469
        %1471 = vmatmul.f32.gmra.mxu0 %v1096
        %v1472 = vpop.f32.mrf.mxu0
        %v1473 = vadd.f32 0.0, %v1472
        %1474 = vmatmul.f32.gmra.mxu0 %v1099
        %v1475 = vpop.f32.mrf.mxu0
        %v1476 = vadd.f32 0.0, %v1475
        %1477 = vmatmul.f32.gmra.mxu0 %v1102
        %v1478 = vpop.f32.mrf.mxu0
        %v1479 = vadd.f32 0.0, %v1478
        %1480 = vmatmul.f32.gmra.mxu0 %v1105
        %v1481 = vpop.f32.mrf.mxu0
        %v1482 = vadd.f32 0.0, %v1481
        %1483 = vmatmul.f32.gmra.mxu0 %v1108
        %v1484 = vpop.f32.mrf.mxu0
        %v1485 = vadd.f32 0.0, %v1484
        %1486 = vmatmul.f32.gmra.mxu0 %v1111
        %v1487 = vpop.f32.mrf.mxu0
        %v1488 = vadd.f32 0.0, %v1487
        %1489 = vmatmul.f32.gmra.mxu0 %v1114
        %v1490 = vpop.f32.mrf.mxu0
        %v1491 = vadd.f32 0.0, %v1490
        %1492 = vmatmul.f32.gmra.mxu0 %v1117
        %v1493 = vpop.f32.mrf.mxu0
        %v1494 = vadd.f32 0.0, %v1493
        %1495 = vmatmul.f32.gmra.mxu0 %v1120
        %v1496 = vpop.f32.mrf.mxu0
        %v1497 = vadd.f32 0.0, %v1496
        %1498 = vmatmul.f32.gmra.mxu0 %v1123
        %v1499 = vpop.f32.mrf.mxu0
        %v1500 = vadd.f32 0.0, %v1499
        %1501 = vmatmul.f32.gmra.mxu0 %v1126
        %v1502 = vpop.f32.mrf.mxu0
        %v1503 = vadd.f32 0.0, %v1502
        %1504 = vmatmul.f32.gmra.mxu0 %v1129
        %v1505 = vpop.f32.mrf.mxu0
        %v1506 = vadd.f32 0.0, %v1505
        %1507 = vmatmul.f32.gmra.mxu0 %v1132
        %v1508 = vpop.f32.mrf.mxu0
        %v1509 = vadd.f32 0.0, %v1508
        %1510 = vmatmul.f32.gmra.mxu0 %v1135
        %v1511 = vpop.f32.mrf.mxu0
        %v1512 = vadd.f32 0.0, %v1511
        %1513 = vmatmul.f32.gmra.mxu0 %v1138
        %v1514 = vpop.f32.mrf.mxu0
        %v1515 = vadd.f32 0.0, %v1514
        %1516 = vmatmul.f32.gmra.mxu0 %v1141
        %v1517 = vpop.f32.mrf.mxu0
        %v1518 = vadd.f32 0.0, %v1517
        %1519 = vmatmul.f32.gmra.mxu0 %v1144
        %v1520 = vpop.f32.mrf.mxu0
        %v1521 = vadd.f32 0.0, %v1520
        %1522 = vmatmul.f32.gmra.mxu0 %v1147
        %v1523 = vpop.f32.mrf.mxu0
        %v1524 = vadd.f32 0.0, %v1523
        %1525 = vmatmul.f32.gmra.mxu0 %v1150
        %v1526 = vpop.f32.mrf.mxu0
        %v1527 = vadd.f32 0.0, %v1526
        %1528 = vmatmul.f32.gmra.mxu0 %v1153
        %v1529 = vpop.f32.mrf.mxu0
        %v1530 = vadd.f32 0.0, %v1529
        %1531 = vmatmul.f32.gmra.mxu0 %v1156
        %v1532 = vpop.f32.mrf.mxu0
        %v1533 = vadd.f32 0.0, %v1532
        %1534 = vmatmul.f32.gmra.mxu0 %v1159
        %v1535 = vpop.f32.mrf.mxu0
        %v1536 = vadd.f32 0.0, %v1535
        %1537 = vmatmul.f32.gmra.mxu0 %v1162
        %v1538 = vpop.f32.mrf.mxu0
        %v1539 = vadd.f32 0.0, %v1538
        %1540 = vmatmul.f32.gmra.mxu0 %v1165
        %v1541 = vpop.f32.mrf.mxu0
        %v1542 = vadd.f32 0.0, %v1541
        %1543 = vmatmul.f32.gmra.mxu0 %v1168
        %v1544 = vpop.f32.mrf.mxu0
        %v1545 = vadd.f32 0.0, %v1544
        %1546 = vmatmul.f32.gmra.mxu0 %v1171
        %v1547 = vpop.f32.mrf.mxu0
        %v1548 = vadd.f32 0.0, %v1547
        %1549 = vmatmul.f32.gmra.mxu0 %v1174
        %v1550 = vpop.f32.mrf.mxu0
        %v1551 = vadd.f32 0.0, %v1550
        %1552 = vmatmul.f32.gmra.mxu0 %v1177
        %v1553 = vpop.f32.mrf.mxu0
        %v1554 = vadd.f32 0.0, %v1553
        %1555 = vmatmul.f32.gmra.mxu0 %v1180
        %v1556 = vpop.f32.mrf.mxu0
        %v1557 = vadd.f32 0.0, %v1556
        %1558 = vmatmul.f32.gmra.mxu0 %v1183
        %v1559 = vpop.f32.mrf.mxu0
        %v1560 = vadd.f32 0.0, %v1559
        %1561 = vmatmul.f32.gmra.mxu0 %v1186
        %v1562 = vpop.f32.mrf.mxu0
        %v1563 = vadd.f32 0.0, %v1562
        %1564 = vmatmul.f32.gmra.mxu0 %v1189
        %v1565 = vpop.f32.mrf.mxu0
        %v1566 = vadd.f32 0.0, %v1565
        %1567 = vmatmul.f32.gmra.mxu0 %v1192
        %v1568 = vpop.f32.mrf.mxu0
        %v1569 = vadd.f32 0.0, %v1568
        %1570 = vmatmul.f32.gmra.mxu0 %v1195
        %v1571 = vpop.f32.mrf.mxu0
        %v1572 = vadd.f32 0.0, %v1571
        %1573 = vmatmul.f32.gmra.mxu0 %v1198
        %v1574 = vpop.f32.mrf.mxu0
        %v1575 = vadd.f32 0.0, %v1574
        %1576 = vmatmul.f32.gmra.mxu0 %v1201
        %v1577 = vpop.f32.mrf.mxu0
        %v1578 = vadd.f32 0.0, %v1577
        %1579 = vmatmul.f32.gmra.mxu0 %v1204
        %v1580 = vpop.f32.mrf.mxu0
        %v1581 = vadd.f32 0.0, %v1580
        %1582 = vmatmul.f32.gmra.mxu0 %v1207
        %v1583 = vpop.f32.mrf.mxu0
        %v1584 = vadd.f32 0.0, %v1583
        %1585 = vmatmul.f32.gmra.mxu0 %v1210
        %v1586 = vpop.f32.mrf.mxu0
        %v1587 = vadd.f32 0.0, %v1586
        %1588 = vmatmul.f32.gmra.mxu0 %v1213
        %v1589 = vpop.f32.mrf.mxu0
        %v1590 = vadd.f32 0.0, %v1589
        %1591 = vmatmul.f32.gmra.mxu0 %v1216
        %v1592 = vpop.f32.mrf.mxu0
        %v1593 = vadd.f32 0.0, %v1592
        %1594 = vmatmul.f32.gmra.mxu0 %v1219
        %v1595 = vpop.f32.mrf.mxu0
        %v1596 = vadd.f32 0.0, %v1595
        %1597 = vmatmul.f32.gmra.mxu0 %v1222
        %v1598 = vpop.f32.mrf.mxu0
        %v1599 = vadd.f32 0.0, %v1598
        %1600 = vmatmul.f32.gmra.mxu0 %v1225
        %v1601 = vpop.f32.mrf.mxu0
        %v1602 = vadd.f32 0.0, %v1601
        %1603 = vmatmul.f32.gmra.mxu0 %v1228
        %v1604 = vpop.f32.mrf.mxu0
        %v1605 = vadd.f32 0.0, %v1604
        %1606 = vmatmul.f32.gmra.mxu0 %v1231
        %v1607 = vpop.f32.mrf.mxu0
        %v1608 = vadd.f32 0.0, %v1607
        %1609 = vmatmul.f32.gmra.mxu0 %v1234
        %v1610 = vpop.f32.mrf.mxu0
        %v1611 = vadd.f32 0.0, %v1610
        %1612 = vmatmul.f32.gmra.mxu0 %v1237
        %v1613 = vpop.f32.mrf.mxu0
        %v1614 = vadd.f32 0.0, %v1613
        %1615 = vmatmul.f32.gmra.mxu0 %v1240
        %v1616 = vpop.f32.mrf.mxu0
        %v1617 = vadd.f32 0.0, %v1616
        %1618 = vmatmul.f32.gmra.mxu0 %v1243
        %v1619 = vpop.f32.mrf.mxu0
        %v1620 = vadd.f32 0.0, %v1619
        %1621 = vmatmul.f32.gmra.mxu0 %v1246
        %v1622 = vpop.f32.mrf.mxu0
        %v1623 = vadd.f32 0.0, %v1622
        %1624 = vmatmul.f32.gmra.mxu0 %v1249
        %v1625 = vpop.f32.mrf.mxu0
        %v1626 = vadd.f32 0.0, %v1625
        %1627 = vmatmul.f32.gmra.mxu0 %v1252
        %v1628 = vpop.f32.mrf.mxu0
        %v1629 = vadd.f32 0.0, %v1628
        %1630 = vmatmul.f32.gmra.mxu0 %v1255
        %v1631 = vpop.f32.mrf.mxu0
        %v1632 = vadd.f32 0.0, %v1631
        %1633 = vmatmul.f32.gmra.mxu0 %v1258
        %v1634 = vpop.f32.mrf.mxu0
        %v1635 = vadd.f32 0.0, %v1634
        %1636 = vmatmul.f32.gmra.mxu0 %v1261
        %v1637 = vpop.f32.mrf.mxu0
        %v1638 = vadd.f32 0.0, %v1637
        %1639 = vmatmul.f32.gmra.mxu0 %v1264
        %v1640 = vpop.f32.mrf.mxu0
        %v1641 = vadd.f32 0.0, %v1640
        %1642 = vmatmul.f32.gmra.mxu0 %v1267
        %v1643 = vpop.f32.mrf.mxu0
        %v1644 = vadd.f32 0.0, %v1643
        %1645 = vmatmul.f32.gmra.mxu0 %v1270
        %v1646 = vpop.f32.mrf.mxu0
        %v1647 = vadd.f32 0.0, %v1646
        %1648 = vmatmul.f32.gmra.mxu0 %v1273
        %v1649 = vpop.f32.mrf.mxu0
        %v1650 = vadd.f32 0.0, %v1649
        %1651 = vmatmul.f32.gmra.mxu0 %v1276
        %v1652 = vpop.f32.mrf.mxu0
        %v1653 = vadd.f32 0.0, %v1652
        %1654 = vmatmul.f32.gmra.mxu0 %v1279
        %v1655 = vpop.f32.mrf.mxu0
        %v1656 = vadd.f32 0.0, %v1655
        %1657 = vmatmul.f32.gmra.mxu0 %v1282
        %v1658 = vpop.f32.mrf.mxu0
        %v1659 = vadd.f32 0.0, %v1658
        %1660 = vmatmul.f32.gmra.mxu0 %v1285
        %v1661 = vpop.f32.mrf.mxu0
        %v1662 = vadd.f32 0.0, %v1661
        %1663 = vmatmul.f32.gmra.mxu0 %v1288
        %v1664 = vpop.f32.mrf.mxu0
        %v1665 = vadd.f32 0.0, %v1664
        %1666 = vmatmul.f32.gmra.mxu0 %v1291
        %v1667 = vpop.f32.mrf.mxu0
        %v1668 = vadd.f32 0.0, %v1667
        %1669 = vmatmul.f32.gmra.mxu0 %v1294
        %v1670 = vpop.f32.mrf.mxu0
        %v1671 = vadd.f32 0.0, %v1670
        %1672 = vmatmul.f32.gmra.mxu0 %v1297
        %v1673 = vpop.f32.mrf.mxu0
        %v1674 = vadd.f32 0.0, %v1673
        %1675 = vmatmul.f32.gmra.mxu0 %v1300
        %v1676 = vpop.f32.mrf.mxu0
        %v1677 = vadd.f32 0.0, %v1676
        %1678 = vmatmul.f32.gmra.mxu0 %v1303
        %v1679 = vpop.f32.mrf.mxu0
        %v1680 = vadd.f32 0.0, %v1679
        %1681 = vmatmul.f32.gmra.mxu0 %v1306
        %v1682 = vpop.f32.mrf.mxu0
        %v1683 = vadd.f32 0.0, %v1682
        %1684 = vmatmul.f32.gmra.mxu0 %v1309
        %v1685 = vpop.f32.mrf.mxu0
        %v1686 = vadd.f32 0.0, %v1685
        %1687 = vmatmul.f32.gmra.mxu0 %v1312
        %v1688 = vpop.f32.mrf.mxu0
        %v1689 = vadd.f32 0.0, %v1688
        %1690 = vmatmul.f32.gmra.mxu0 %v1315
        %v1691 = vpop.f32.mrf.mxu0
        %v1692 = vadd.f32 0.0, %v1691
        %1693 = vmatmul.f32.gmra.mxu0 %v1318
        %v1694 = vpop.f32.mrf.mxu0
        %v1695 = vadd.f32 0.0, %v1694
        %1696 = vmatmul.f32.gmra.mxu0 %v1321
        %v1697 = vpop.f32.mrf.mxu0
        %v1698 = vadd.f32 0.0, %v1697
        %1699 = vmatmul.f32.gmra.mxu0 %v1324
        %v1700 = vpop.f32.mrf.mxu0
        %v1701 = vadd.f32 0.0, %v1700
        %1702 = vmatmul.f32.gmra.mxu0 %v1327
        %v1703 = vpop.f32.mrf.mxu0
        %v1704 = vadd.f32 0.0, %v1703
        %1705 = vdwg.mxu0
        %v1707 = vsel %vm968, %v876, 0
        %v1710 = vsel %vm968, %v877, 0
        %v1713 = vsel %vm968, %v878, 0
        %v1716 = vsel %vm968, %v879, 0
        %v1719 = vsel %vm968, %v880, 0
        %v1722 = vsel %vm968, %v881, 0
        %v1725 = vsel %vm968, %v882, 0
        %v1728 = vsel %vm968, %v883, 0
        %1730 = vmatpush.msra.mxu0 0.0
        %1731 = vmatpush.msra.mxu0 0.0
        %1732 = vmatpush.msra.mxu0 0.0
        %1733 = vmatpush.msra.mxu0 0.0
        %1734 = vmatpush.msra.mxu0 0.0
        %1735 = vmatpush.msra.mxu0 0.0
        %1736 = vmatpush.msra.mxu0 0.0
        %1737 = vmatpush.msra.mxu0 0.0
        %1738 = vmatpush.msra.mxu0 %v1368
        %1739 = vmatpush.msra.mxu0 %v1365
        %1740 = vmatpush.msra.mxu0 %v1362
        %1741 = vmatpush.msra.mxu0 %v1359
        %1742 = vmatpush.msra.mxu0 %v1356
        %1743 = vmatpush.msra.mxu0 %v1353
        %1744 = vmatpush.msra.mxu0 %v1350
        %1745 = vmatpush.msra.mxu0 %v1347
        %1746 = vmatmul.f32.gmra.mxu0 %v1707
        %v1747 = vpop.f32.mrf.mxu0
        %v1748 = vadd.f32 0.0, %v1747
        %1749 = vmatmul.f32.gmra.mxu0 %v1710
        %v1750 = vpop.f32.mrf.mxu0
        %v1751 = vadd.f32 0.0, %v1750
        %1752 = vmatmul.f32.gmra.mxu0 %v1713
        %v1753 = vpop.f32.mrf.mxu0
        %v1754 = vadd.f32 0.0, %v1753
        %1755 = vmatmul.f32.gmra.mxu0 %v1716
        %v1756 = vpop.f32.mrf.mxu0
        %v1757 = vadd.f32 0.0, %v1756
        %1758 = vmatmul.f32.gmra.mxu0 %v1719
        %v1759 = vpop.f32.mrf.mxu0
        %v1760 = vadd.f32 0.0, %v1759
        %1761 = vmatmul.f32.gmra.mxu0 %v1722
        %v1762 = vpop.f32.mrf.mxu0
        %v1763 = vadd.f32 0.0, %v1762
        %1764 = vmatmul.f32.gmra.mxu0 %v1725
        %v1765 = vpop.f32.mrf.mxu0
        %v1766 = vadd.f32 0.0, %v1765
        %1767 = vmatmul.f32.gmra.mxu0 %v1728
        %v1768 = vpop.f32.mrf.mxu0
        %v1769 = vadd.f32 0.0, %v1768
        %1770 = vdwg.mxu0
        %1771 = vmatpush.msra.mxu0 0.0
        %1772 = vmatpush.msra.mxu0 0.0
        %1773 = vmatpush.msra.mxu0 0.0
        %1774 = vmatpush.msra.mxu0 0.0
        %1775 = vmatpush.msra.mxu0 0.0
        %1776 = vmatpush.msra.mxu0 0.0
        %1777 = vmatpush.msra.mxu0 0.0
        %1778 = vmatpush.msra.mxu0 0.0
        %1779 = vmatpush.msra.mxu0 %v1392
        %1780 = vmatpush.msra.mxu0 %v1389
        %1781 = vmatpush.msra.mxu0 %v1386
        %1782 = vmatpush.msra.mxu0 %v1383
        %1783 = vmatpush.msra.mxu0 %v1380
        %1784 = vmatpush.msra.mxu0 %v1377
        %1785 = vmatpush.msra.mxu0 %v1374
        %1786 = vmatpush.msra.mxu0 %v1371
        %1787 = vmatmul.f32.gmra.mxu0 %v1707
        %v1788 = vpop.f32.mrf.mxu0
        %v1789 = vadd.f32 0.0, %v1788
        %1790 = vmatmul.f32.gmra.mxu0 %v1710
        %v1791 = vpop.f32.mrf.mxu0
        %v1792 = vadd.f32 0.0, %v1791
        %1793 = vmatmul.f32.gmra.mxu0 %v1713
        %v1794 = vpop.f32.mrf.mxu0
        %v1795 = vadd.f32 0.0, %v1794
        %1796 = vmatmul.f32.gmra.mxu0 %v1716
        %v1797 = vpop.f32.mrf.mxu0
        %v1798 = vadd.f32 0.0, %v1797
        %1799 = vmatmul.f32.gmra.mxu0 %v1719
        %v1800 = vpop.f32.mrf.mxu0
        %v1801 = vadd.f32 0.0, %v1800
        %1802 = vmatmul.f32.gmra.mxu0 %v1722
        %v1803 = vpop.f32.mrf.mxu0
        %v1804 = vadd.f32 0.0, %v1803
        %1805 = vmatmul.f32.gmra.mxu0 %v1725
        %v1806 = vpop.f32.mrf.mxu0
        %v1807 = vadd.f32 0.0, %v1806
        %1808 = vmatmul.f32.gmra.mxu0 %v1728
        %v1809 = vpop.f32.mrf.mxu0
        %v1810 = vadd.f32 0.0, %v1809
        %1811 = vdwg.mxu0
        %1812 = vmatpush.msra.mxu0 0.0
        %1813 = vmatpush.msra.mxu0 0.0
        %1814 = vmatpush.msra.mxu0 0.0
        %1815 = vmatpush.msra.mxu0 0.0
        %1816 = vmatpush.msra.mxu0 0.0
        %1817 = vmatpush.msra.mxu0 0.0
        %1818 = vmatpush.msra.mxu0 0.0
        %1819 = vmatpush.msra.mxu0 0.0
        %1820 = vmatpush.msra.mxu0 %v1416
        %1821 = vmatpush.msra.mxu0 %v1413
        %1822 = vmatpush.msra.mxu0 %v1410
        %1823 = vmatpush.msra.mxu0 %v1407
        %1824 = vmatpush.msra.mxu0 %v1404
        %1825 = vmatpush.msra.mxu0 %v1401
        %1826 = vmatpush.msra.mxu0 %v1398
        %1827 = vmatpush.msra.mxu0 %v1395
        %1828 = vmatmul.f32.gmra.mxu0 %v1707
        %v1829 = vpop.f32.mrf.mxu0
        %v1830 = vadd.f32 0.0, %v1829
        %1831 = vmatmul.f32.gmra.mxu0 %v1710
        %v1832 = vpop.f32.mrf.mxu0
        %v1833 = vadd.f32 0.0, %v1832
        %1834 = vmatmul.f32.gmra.mxu0 %v1713
        %v1835 = vpop.f32.mrf.mxu0
        %v1836 = vadd.f32 0.0, %v1835
        %1837 = vmatmul.f32.gmra.mxu0 %v1716
        %v1838 = vpop.f32.mrf.mxu0
        %v1839 = vadd.f32 0.0, %v1838
        %1840 = vmatmul.f32.gmra.mxu0 %v1719
        %v1841 = vpop.f32.mrf.mxu0
        %v1842 = vadd.f32 0.0, %v1841
        %1843 = vmatmul.f32.gmra.mxu0 %v1722
        %v1844 = vpop.f32.mrf.mxu0
        %v1845 = vadd.f32 0.0, %v1844
        %1846 = vmatmul.f32.gmra.mxu0 %v1725
        %v1847 = vpop.f32.mrf.mxu0
        %v1848 = vadd.f32 0.0, %v1847
        %1849 = vmatmul.f32.gmra.mxu0 %v1728
        %v1850 = vpop.f32.mrf.mxu0
        %v1851 = vadd.f32 0.0, %v1850
        %1852 = vdwg.mxu0
        %1853 = vmatpush.msra.mxu0 0.0
        %1854 = vmatpush.msra.mxu0 0.0
        %1855 = vmatpush.msra.mxu0 0.0
        %1856 = vmatpush.msra.mxu0 0.0
        %1857 = vmatpush.msra.mxu0 0.0
        %1858 = vmatpush.msra.mxu0 0.0
        %1859 = vmatpush.msra.mxu0 0.0
        %1860 = vmatpush.msra.mxu0 0.0
        %1861 = vmatpush.msra.mxu0 %v1440
        %1862 = vmatpush.msra.mxu0 %v1437
        %1863 = vmatpush.msra.mxu0 %v1434
        %1864 = vmatpush.msra.mxu0 %v1431
        %1865 = vmatpush.msra.mxu0 %v1428
        %1866 = vmatpush.msra.mxu0 %v1425
        %1867 = vmatpush.msra.mxu0 %v1422
        %1868 = vmatpush.msra.mxu0 %v1419
        %1869 = vmatmul.f32.gmra.mxu0 %v1707
        %v1870 = vpop.f32.mrf.mxu0
        %v1871 = vadd.f32 0.0, %v1870
        %1872 = vmatmul.f32.gmra.mxu0 %v1710
        %v1873 = vpop.f32.mrf.mxu0
        %v1874 = vadd.f32 0.0, %v1873
        %1875 = vmatmul.f32.gmra.mxu0 %v1713
        %v1876 = vpop.f32.mrf.mxu0
        %v1877 = vadd.f32 0.0, %v1876
        %1878 = vmatmul.f32.gmra.mxu0 %v1716
        %v1879 = vpop.f32.mrf.mxu0
        %v1880 = vadd.f32 0.0, %v1879
        %1881 = vmatmul.f32.gmra.mxu0 %v1719
        %v1882 = vpop.f32.mrf.mxu0
        %v1883 = vadd.f32 0.0, %v1882
        %1884 = vmatmul.f32.gmra.mxu0 %v1722
        %v1885 = vpop.f32.mrf.mxu0
        %v1886 = vadd.f32 0.0, %v1885
        %1887 = vmatmul.f32.gmra.mxu0 %v1725
        %v1888 = vpop.f32.mrf.mxu0
        %v1889 = vadd.f32 0.0, %v1888
        %1890 = vmatmul.f32.gmra.mxu0 %v1728
        %v1891 = vpop.f32.mrf.mxu0
        %v1892 = vadd.f32 0.0, %v1891
        %1893 = vdwg.mxu0
        %1894 = vmatpush.msra.mxu0 0.0
        %1895 = vmatpush.msra.mxu0 0.0
        %1896 = vmatpush.msra.mxu0 0.0
        %1897 = vmatpush.msra.mxu0 0.0
        %1898 = vmatpush.msra.mxu0 0.0
        %1899 = vmatpush.msra.mxu0 0.0
        %1900 = vmatpush.msra.mxu0 0.0
        %1901 = vmatpush.msra.mxu0 0.0
        %1902 = vmatpush.msra.mxu0 %v1464
        %1903 = vmatpush.msra.mxu0 %v1461
        %1904 = vmatpush.msra.mxu0 %v1458
        %1905 = vmatpush.msra.mxu0 %v1455
        %1906 = vmatpush.msra.mxu0 %v1452
        %1907 = vmatpush.msra.mxu0 %v1449
        %1908 = vmatpush.msra.mxu0 %v1446
        %1909 = vmatpush.msra.mxu0 %v1443
        %1910 = vmatmul.f32.gmra.mxu0 %v1707
        %v1911 = vpop.f32.mrf.mxu0
        %v1912 = vadd.f32 0.0, %v1911
        %1913 = vmatmul.f32.gmra.mxu0 %v1710
        %v1914 = vpop.f32.mrf.mxu0
        %v1915 = vadd.f32 0.0, %v1914
        %1916 = vmatmul.f32.gmra.mxu0 %v1713
        %v1917 = vpop.f32.mrf.mxu0
        %v1918 = vadd.f32 0.0, %v1917
        %1919 = vmatmul.f32.gmra.mxu0 %v1716
        %v1920 = vpop.f32.mrf.mxu0
        %v1921 = vadd.f32 0.0, %v1920
        %1922 = vmatmul.f32.gmra.mxu0 %v1719
        %v1923 = vpop.f32.mrf.mxu0
        %v1924 = vadd.f32 0.0, %v1923
        %1925 = vmatmul.f32.gmra.mxu0 %v1722
        %v1926 = vpop.f32.mrf.mxu0
        %v1927 = vadd.f32 0.0, %v1926
        %1928 = vmatmul.f32.gmra.mxu0 %v1725
        %v1929 = vpop.f32.mrf.mxu0
        %v1930 = vadd.f32 0.0, %v1929
        %1931 = vmatmul.f32.gmra.mxu0 %v1728
        %v1932 = vpop.f32.mrf.mxu0
        %v1933 = vadd.f32 0.0, %v1932
        %1934 = vdwg.mxu0
        %1935 = vmatpush.msra.mxu0 0.0
        %1936 = vmatpush.msra.mxu0 0.0
        %1937 = vmatpush.msra.mxu0 0.0
        %1938 = vmatpush.msra.mxu0 0.0
        %1939 = vmatpush.msra.mxu0 0.0
        %1940 = vmatpush.msra.mxu0 0.0
        %1941 = vmatpush.msra.mxu0 0.0
        %1942 = vmatpush.msra.mxu0 0.0
        %1943 = vmatpush.msra.mxu0 %v1488
        %1944 = vmatpush.msra.mxu0 %v1485
        %1945 = vmatpush.msra.mxu0 %v1482
        %1946 = vmatpush.msra.mxu0 %v1479
        %1947 = vmatpush.msra.mxu0 %v1476
        %1948 = vmatpush.msra.mxu0 %v1473
        %1949 = vmatpush.msra.mxu0 %v1470
        %1950 = vmatpush.msra.mxu0 %v1467
        %1951 = vmatmul.f32.gmra.mxu0 %v1707
        %v1952 = vpop.f32.mrf.mxu0
        %v1953 = vadd.f32 0.0, %v1952
        %1954 = vmatmul.f32.gmra.mxu0 %v1710
        %v1955 = vpop.f32.mrf.mxu0
        %v1956 = vadd.f32 0.0, %v1955
        %1957 = vmatmul.f32.gmra.mxu0 %v1713
        %v1958 = vpop.f32.mrf.mxu0
        %v1959 = vadd.f32 0.0, %v1958
        %1960 = vmatmul.f32.gmra.mxu0 %v1716
        %v1961 = vpop.f32.mrf.mxu0
        %v1962 = vadd.f32 0.0, %v1961
        %1963 = vmatmul.f32.gmra.mxu0 %v1719
        %v1964 = vpop.f32.mrf.mxu0
        %v1965 = vadd.f32 0.0, %v1964
        %1966 = vmatmul.f32.gmra.mxu0 %v1722
        %v1967 = vpop.f32.mrf.mxu0
        %v1968 = vadd.f32 0.0, %v1967
        %1969 = vmatmul.f32.gmra.mxu0 %v1725
        %v1970 = vpop.f32.mrf.mxu0
        %v1971 = vadd.f32 0.0, %v1970
        %1972 = vmatmul.f32.gmra.mxu0 %v1728
        %v1973 = vpop.f32.mrf.mxu0
        %v1974 = vadd.f32 0.0, %v1973
        %1975 = vdwg.mxu0
        %1976 = vmatpush.msra.mxu0 0.0
        %1977 = vmatpush.msra.mxu0 0.0
        %1978 = vmatpush.msra.mxu0 0.0
        %1979 = vmatpush.msra.mxu0 0.0
        %1980 = vmatpush.msra.mxu0 0.0
        %1981 = vmatpush.msra.mxu0 0.0
        %1982 = vmatpush.msra.mxu0 0.0
        %1983 = vmatpush.msra.mxu0 0.0
        %1984 = vmatpush.msra.mxu0 %v1512
        %1985 = vmatpush.msra.mxu0 %v1509
        %1986 = vmatpush.msra.mxu0 %v1506
        %1987 = vmatpush.msra.mxu0 %v1503
        %1988 = vmatpush.msra.mxu0 %v1500
        %1989 = vmatpush.msra.mxu0 %v1497
        %1990 = vmatpush.msra.mxu0 %v1494
        %1991 = vmatpush.msra.mxu0 %v1491
        %1992 = vmatmul.f32.gmra.mxu0 %v1707
        %v1993 = vpop.f32.mrf.mxu0
        %v1994 = vadd.f32 0.0, %v1993
        %1995 = vmatmul.f32.gmra.mxu0 %v1710
        %v1996 = vpop.f32.mrf.mxu0
        %v1997 = vadd.f32 0.0, %v1996
        %1998 = vmatmul.f32.gmra.mxu0 %v1713
        %v1999 = vpop.f32.mrf.mxu0
        %v2000 = vadd.f32 0.0, %v1999
        %2001 = vmatmul.f32.gmra.mxu0 %v1716
        %v2002 = vpop.f32.mrf.mxu0
        %v2003 = vadd.f32 0.0, %v2002
        %2004 = vmatmul.f32.gmra.mxu0 %v1719
        %v2005 = vpop.f32.mrf.mxu0
        %v2006 = vadd.f32 0.0, %v2005
        %2007 = vmatmul.f32.gmra.mxu0 %v1722
        %v2008 = vpop.f32.mrf.mxu0
        %v2009 = vadd.f32 0.0, %v2008
        %2010 = vmatmul.f32.gmra.mxu0 %v1725
        %v2011 = vpop.f32.mrf.mxu0
        %v2012 = vadd.f32 0.0, %v2011
        %2013 = vmatmul.f32.gmra.mxu0 %v1728
        %v2014 = vpop.f32.mrf.mxu0
        %v2015 = vadd.f32 0.0, %v2014
        %2016 = vdwg.mxu0
        %2017 = vmatpush.msra.mxu0 0.0
        %2018 = vmatpush.msra.mxu0 0.0
        %2019 = vmatpush.msra.mxu0 0.0
        %2020 = vmatpush.msra.mxu0 0.0
        %2021 = vmatpush.msra.mxu0 0.0
        %2022 = vmatpush.msra.mxu0 0.0
        %2023 = vmatpush.msra.mxu0 0.0
        %2024 = vmatpush.msra.mxu0 0.0
        %2025 = vmatpush.msra.mxu0 %v1536
        %2026 = vmatpush.msra.mxu0 %v1533
        %2027 = vmatpush.msra.mxu0 %v1530
        %2028 = vmatpush.msra.mxu0 %v1527
        %2029 = vmatpush.msra.mxu0 %v1524
        %2030 = vmatpush.msra.mxu0 %v1521
        %2031 = vmatpush.msra.mxu0 %v1518
        %2032 = vmatpush.msra.mxu0 %v1515
        %2033 = vmatmul.f32.gmra.mxu0 %v1707
        %v2034 = vpop.f32.mrf.mxu0
        %v2035 = vadd.f32 0.0, %v2034
        %2036 = vmatmul.f32.gmra.mxu0 %v1710
        %v2037 = vpop.f32.mrf.mxu0
        %v2038 = vadd.f32 0.0, %v2037
        %2039 = vmatmul.f32.gmra.mxu0 %v1713
        %v2040 = vpop.f32.mrf.mxu0
        %v2041 = vadd.f32 0.0, %v2040
        %2042 = vmatmul.f32.gmra.mxu0 %v1716
        %v2043 = vpop.f32.mrf.mxu0
        %v2044 = vadd.f32 0.0, %v2043
        %2045 = vmatmul.f32.gmra.mxu0 %v1719
        %v2046 = vpop.f32.mrf.mxu0
        %v2047 = vadd.f32 0.0, %v2046
        %2048 = vmatmul.f32.gmra.mxu0 %v1722
        %v2049 = vpop.f32.mrf.mxu0
        %v2050 = vadd.f32 0.0, %v2049
        %2051 = vmatmul.f32.gmra.mxu0 %v1725
        %v2052 = vpop.f32.mrf.mxu0
        %v2053 = vadd.f32 0.0, %v2052
        %2054 = vmatmul.f32.gmra.mxu0 %v1728
        %v2055 = vpop.f32.mrf.mxu0
        %v2056 = vadd.f32 0.0, %v2055
        %2057 = vdwg.mxu0
        %2058 = vmatpush.msra.mxu0 0.0
        %2059 = vmatpush.msra.mxu0 0.0
        %2060 = vmatpush.msra.mxu0 0.0
        %2061 = vmatpush.msra.mxu0 0.0
        %2062 = vmatpush.msra.mxu0 0.0
        %2063 = vmatpush.msra.mxu0 0.0
        %2064 = vmatpush.msra.mxu0 0.0
        %2065 = vmatpush.msra.mxu0 0.0
        %2066 = vmatpush.msra.mxu0 %v1560
        %2067 = vmatpush.msra.mxu0 %v1557
        %2068 = vmatpush.msra.mxu0 %v1554
        %2069 = vmatpush.msra.mxu0 %v1551
        %2070 = vmatpush.msra.mxu0 %v1548
        %2071 = vmatpush.msra.mxu0 %v1545
        %2072 = vmatpush.msra.mxu0 %v1542
        %2073 = vmatpush.msra.mxu0 %v1539
        %2074 = vmatmul.f32.gmra.mxu0 %v1707
        %v2075 = vpop.f32.mrf.mxu0
        %v2076 = vadd.f32 0.0, %v2075
        %2077 = vmatmul.f32.gmra.mxu0 %v1710
        %v2078 = vpop.f32.mrf.mxu0
        %v2079 = vadd.f32 0.0, %v2078
        %2080 = vmatmul.f32.gmra.mxu0 %v1713
        %v2081 = vpop.f32.mrf.mxu0
        %v2082 = vadd.f32 0.0, %v2081
        %2083 = vmatmul.f32.gmra.mxu0 %v1716
        %v2084 = vpop.f32.mrf.mxu0
        %v2085 = vadd.f32 0.0, %v2084
        %2086 = vmatmul.f32.gmra.mxu0 %v1719
        %v2087 = vpop.f32.mrf.mxu0
        %v2088 = vadd.f32 0.0, %v2087
        %2089 = vmatmul.f32.gmra.mxu0 %v1722
        %v2090 = vpop.f32.mrf.mxu0
        %v2091 = vadd.f32 0.0, %v2090
        %2092 = vmatmul.f32.gmra.mxu0 %v1725
        %v2093 = vpop.f32.mrf.mxu0
        %v2094 = vadd.f32 0.0, %v2093
        %2095 = vmatmul.f32.gmra.mxu0 %v1728
        %v2096 = vpop.f32.mrf.mxu0
        %v2097 = vadd.f32 0.0, %v2096
        %2098 = vdwg.mxu0
        %2099 = vmatpush.msra.mxu0 0.0
        %2100 = vmatpush.msra.mxu0 0.0
        %2101 = vmatpush.msra.mxu0 0.0
        %2102 = vmatpush.msra.mxu0 0.0
        %2103 = vmatpush.msra.mxu0 0.0
        %2104 = vmatpush.msra.mxu0 0.0
        %2105 = vmatpush.msra.mxu0 0.0
        %2106 = vmatpush.msra.mxu0 0.0
        %2107 = vmatpush.msra.mxu0 %v1584
        %2108 = vmatpush.msra.mxu0 %v1581
        %2109 = vmatpush.msra.mxu0 %v1578
        %2110 = vmatpush.msra.mxu0 %v1575
        %2111 = vmatpush.msra.mxu0 %v1572
        %2112 = vmatpush.msra.mxu0 %v1569
        %2113 = vmatpush.msra.mxu0 %v1566
        %2114 = vmatpush.msra.mxu0 %v1563
        %2115 = vmatmul.f32.gmra.mxu0 %v1707
        %v2116 = vpop.f32.mrf.mxu0
        %v2117 = vadd.f32 0.0, %v2116
        %2118 = vmatmul.f32.gmra.mxu0 %v1710
        %v2119 = vpop.f32.mrf.mxu0
        %v2120 = vadd.f32 0.0, %v2119
        %2121 = vmatmul.f32.gmra.mxu0 %v1713
        %v2122 = vpop.f32.mrf.mxu0
        %v2123 = vadd.f32 0.0, %v2122
        %2124 = vmatmul.f32.gmra.mxu0 %v1716
        %v2125 = vpop.f32.mrf.mxu0
        %v2126 = vadd.f32 0.0, %v2125
        %2127 = vmatmul.f32.gmra.mxu0 %v1719
        %v2128 = vpop.f32.mrf.mxu0
        %v2129 = vadd.f32 0.0, %v2128
        %2130 = vmatmul.f32.gmra.mxu0 %v1722
        %v2131 = vpop.f32.mrf.mxu0
        %v2132 = vadd.f32 0.0, %v2131
        %2133 = vmatmul.f32.gmra.mxu0 %v1725
        %v2134 = vpop.f32.mrf.mxu0
        %v2135 = vadd.f32 0.0, %v2134
        %2136 = vmatmul.f32.gmra.mxu0 %v1728
        %v2137 = vpop.f32.mrf.mxu0
        %v2138 = vadd.f32 0.0, %v2137
        %2139 = vdwg.mxu0
        %2140 = vmatpush.msra.mxu0 0.0
        %2141 = vmatpush.msra.mxu0 0.0
        %2142 = vmatpush.msra.mxu0 0.0
        %2143 = vmatpush.msra.mxu0 0.0
        %2144 = vmatpush.msra.mxu0 0.0
        %2145 = vmatpush.msra.mxu0 0.0
        %2146 = vmatpush.msra.mxu0 0.0
        %2147 = vmatpush.msra.mxu0 0.0
        %2148 = vmatpush.msra.mxu0 %v1608
        %2149 = vmatpush.msra.mxu0 %v1605
        %2150 = vmatpush.msra.mxu0 %v1602
        %2151 = vmatpush.msra.mxu0 %v1599
        %2152 = vmatpush.msra.mxu0 %v1596
        %2153 = vmatpush.msra.mxu0 %v1593
        %2154 = vmatpush.msra.mxu0 %v1590
        %2155 = vmatpush.msra.mxu0 %v1587
        %2156 = vmatmul.f32.gmra.mxu0 %v1707
        %v2157 = vpop.f32.mrf.mxu0
        %v2158 = vadd.f32 0.0, %v2157
        %2159 = vmatmul.f32.gmra.mxu0 %v1710
        %v2160 = vpop.f32.mrf.mxu0
        %v2161 = vadd.f32 0.0, %v2160
        %2162 = vmatmul.f32.gmra.mxu0 %v1713
        %v2163 = vpop.f32.mrf.mxu0
        %v2164 = vadd.f32 0.0, %v2163
        %2165 = vmatmul.f32.gmra.mxu0 %v1716
        %v2166 = vpop.f32.mrf.mxu0
        %v2167 = vadd.f32 0.0, %v2166
        %2168 = vmatmul.f32.gmra.mxu0 %v1719
        %v2169 = vpop.f32.mrf.mxu0
        %v2170 = vadd.f32 0.0, %v2169
        %2171 = vmatmul.f32.gmra.mxu0 %v1722
        %v2172 = vpop.f32.mrf.mxu0
        %v2173 = vadd.f32 0.0, %v2172
        %2174 = vmatmul.f32.gmra.mxu0 %v1725
        %v2175 = vpop.f32.mrf.mxu0
        %v2176 = vadd.f32 0.0, %v2175
        %2177 = vmatmul.f32.gmra.mxu0 %v1728
        %v2178 = vpop.f32.mrf.mxu0
        %v2179 = vadd.f32 0.0, %v2178
        %2180 = vdwg.mxu0
        %2181 = vmatpush.msra.mxu0 0.0
        %2182 = vmatpush.msra.mxu0 0.0
        %2183 = vmatpush.msra.mxu0 0.0
        %2184 = vmatpush.msra.mxu0 0.0
        %2185 = vmatpush.msra.mxu0 0.0
        %2186 = vmatpush.msra.mxu0 0.0
        %2187 = vmatpush.msra.mxu0 0.0
        %2188 = vmatpush.msra.mxu0 0.0
        %2189 = vmatpush.msra.mxu0 %v1632
        %2190 = vmatpush.msra.mxu0 %v1629
        %2191 = vmatpush.msra.mxu0 %v1626
        %2192 = vmatpush.msra.mxu0 %v1623
        %2193 = vmatpush.msra.mxu0 %v1620
        %2194 = vmatpush.msra.mxu0 %v1617
        %2195 = vmatpush.msra.mxu0 %v1614
        %2196 = vmatpush.msra.mxu0 %v1611
        %2197 = vmatmul.f32.gmra.mxu0 %v1707
        %v2198 = vpop.f32.mrf.mxu0
        %v2199 = vadd.f32 0.0, %v2198
        %2200 = vmatmul.f32.gmra.mxu0 %v1710
        %v2201 = vpop.f32.mrf.mxu0
        %v2202 = vadd.f32 0.0, %v2201
        %2203 = vmatmul.f32.gmra.mxu0 %v1713
        %v2204 = vpop.f32.mrf.mxu0
        %v2205 = vadd.f32 0.0, %v2204
        %2206 = vmatmul.f32.gmra.mxu0 %v1716
        %v2207 = vpop.f32.mrf.mxu0
        %v2208 = vadd.f32 0.0, %v2207
        %2209 = vmatmul.f32.gmra.mxu0 %v1719
        %v2210 = vpop.f32.mrf.mxu0
        %v2211 = vadd.f32 0.0, %v2210
        %2212 = vmatmul.f32.gmra.mxu0 %v1722
        %v2213 = vpop.f32.mrf.mxu0
        %v2214 = vadd.f32 0.0, %v2213
        %2215 = vmatmul.f32.gmra.mxu0 %v1725
        %v2216 = vpop.f32.mrf.mxu0
        %v2217 = vadd.f32 0.0, %v2216
        %2218 = vmatmul.f32.gmra.mxu0 %v1728
        %v2219 = vpop.f32.mrf.mxu0
        %v2220 = vadd.f32 0.0, %v2219
        %2221 = vdwg.mxu0
        %2222 = vmatpush.msra.mxu0 0.0
        %2223 = vmatpush.msra.mxu0 0.0
        %2224 = vmatpush.msra.mxu0 0.0
        %2225 = vmatpush.msra.mxu0 0.0
        %2226 = vmatpush.msra.mxu0 0.0
        %2227 = vmatpush.msra.mxu0 0.0
        %2228 = vmatpush.msra.mxu0 0.0
        %2229 = vmatpush.msra.mxu0 0.0
        %2230 = vmatpush.msra.mxu0 %v1656
        %2231 = vmatpush.msra.mxu0 %v1653
        %2232 = vmatpush.msra.mxu0 %v1650
        %2233 = vmatpush.msra.mxu0 %v1647
        %2234 = vmatpush.msra.mxu0 %v1644
        %2235 = vmatpush.msra.mxu0 %v1641
        %2236 = vmatpush.msra.mxu0 %v1638
        %2237 = vmatpush.msra.mxu0 %v1635
        %2238 = vmatmul.f32.gmra.mxu0 %v1707
        %v2239 = vpop.f32.mrf.mxu0
        %v2240 = vadd.f32 0.0, %v2239
        %2241 = vmatmul.f32.gmra.mxu0 %v1710
        %v2242 = vpop.f32.mrf.mxu0
        %v2243 = vadd.f32 0.0, %v2242
        %2244 = vmatmul.f32.gmra.mxu0 %v1713
        %v2245 = vpop.f32.mrf.mxu0
        %v2246 = vadd.f32 0.0, %v2245
        %2247 = vmatmul.f32.gmra.mxu0 %v1716
        %v2248 = vpop.f32.mrf.mxu0
        %v2249 = vadd.f32 0.0, %v2248
        %2250 = vmatmul.f32.gmra.mxu0 %v1719
        %v2251 = vpop.f32.mrf.mxu0
        %v2252 = vadd.f32 0.0, %v2251
        %2253 = vmatmul.f32.gmra.mxu0 %v1722
        %v2254 = vpop.f32.mrf.mxu0
        %v2255 = vadd.f32 0.0, %v2254
        %2256 = vmatmul.f32.gmra.mxu0 %v1725
        %v2257 = vpop.f32.mrf.mxu0
        %v2258 = vadd.f32 0.0, %v2257
        %2259 = vmatmul.f32.gmra.mxu0 %v1728
        %v2260 = vpop.f32.mrf.mxu0
        %v2261 = vadd.f32 0.0, %v2260
        %2262 = vdwg.mxu0
        %2263 = vmatpush.msra.mxu0 0.0
        %2264 = vmatpush.msra.mxu0 0.0
        %2265 = vmatpush.msra.mxu0 0.0
        %2266 = vmatpush.msra.mxu0 0.0
        %2267 = vmatpush.msra.mxu0 0.0
        %2268 = vmatpush.msra.mxu0 0.0
        %2269 = vmatpush.msra.mxu0 0.0
        %2270 = vmatpush.msra.mxu0 0.0
        %2271 = vmatpush.msra.mxu0 %v1680
        %2272 = vmatpush.msra.mxu0 %v1677
        %2273 = vmatpush.msra.mxu0 %v1674
        %2274 = vmatpush.msra.mxu0 %v1671
        %2275 = vmatpush.msra.mxu0 %v1668
        %2276 = vmatpush.msra.mxu0 %v1665
        %2277 = vmatpush.msra.mxu0 %v1662
        %2278 = vmatpush.msra.mxu0 %v1659
        %2279 = vmatmul.f32.gmra.mxu0 %v1707
        %v2280 = vpop.f32.mrf.mxu0
        %v2281 = vadd.f32 0.0, %v2280
        %2282 = vmatmul.f32.gmra.mxu0 %v1710
        %v2283 = vpop.f32.mrf.mxu0
        %v2284 = vadd.f32 0.0, %v2283
        %2285 = vmatmul.f32.gmra.mxu0 %v1713
        %v2286 = vpop.f32.mrf.mxu0
        %v2287 = vadd.f32 0.0, %v2286
        %2288 = vmatmul.f32.gmra.mxu0 %v1716
        %v2289 = vpop.f32.mrf.mxu0
        %v2290 = vadd.f32 0.0, %v2289
        %2291 = vmatmul.f32.gmra.mxu0 %v1719
        %v2292 = vpop.f32.mrf.mxu0
        %v2293 = vadd.f32 0.0, %v2292
        %2294 = vmatmul.f32.gmra.mxu0 %v1722
        %v2295 = vpop.f32.mrf.mxu0
        %v2296 = vadd.f32 0.0, %v2295
        %2297 = vmatmul.f32.gmra.mxu0 %v1725
        %v2298 = vpop.f32.mrf.mxu0
        %v2299 = vadd.f32 0.0, %v2298
        %2300 = vmatmul.f32.gmra.mxu0 %v1728
        %v2301 = vpop.f32.mrf.mxu0
        %v2302 = vadd.f32 0.0, %v2301
        %2303 = vdwg.mxu0
        %2304 = vmatpush.msra.mxu0 0.0
        %2305 = vmatpush.msra.mxu0 0.0
        %2306 = vmatpush.msra.mxu0 0.0
        %2307 = vmatpush.msra.mxu0 0.0
        %2308 = vmatpush.msra.mxu0 0.0
        %2309 = vmatpush.msra.mxu0 0.0
        %2310 = vmatpush.msra.mxu0 0.0
        %2311 = vmatpush.msra.mxu0 0.0
        %2312 = vmatpush.msra.mxu0 %v1704
        %2313 = vmatpush.msra.mxu0 %v1701
        %2314 = vmatpush.msra.mxu0 %v1698
        %2315 = vmatpush.msra.mxu0 %v1695
        %2316 = vmatpush.msra.mxu0 %v1692
        %2317 = vmatpush.msra.mxu0 %v1689
        %2318 = vmatpush.msra.mxu0 %v1686
        %2319 = vmatpush.msra.mxu0 %v1683
        %2320 = vmatmul.f32.gmra.mxu0 %v1707
        %v2321 = vpop.f32.mrf.mxu0
        %v2322 = vadd.f32 0.0, %v2321
        %2323 = vmatmul.f32.gmra.mxu0 %v1710
        %v2324 = vpop.f32.mrf.mxu0
        %v2325 = vadd.f32 0.0, %v2324
        %2326 = vmatmul.f32.gmra.mxu0 %v1713
        %v2327 = vpop.f32.mrf.mxu0
        %v2328 = vadd.f32 0.0, %v2327
        %2329 = vmatmul.f32.gmra.mxu0 %v1716
        %v2330 = vpop.f32.mrf.mxu0
        %v2331 = vadd.f32 0.0, %v2330
        %2332 = vmatmul.f32.gmra.mxu0 %v1719
        %v2333 = vpop.f32.mrf.mxu0
        %v2334 = vadd.f32 0.0, %v2333
        %2335 = vmatmul.f32.gmra.mxu0 %v1722
        %v2336 = vpop.f32.mrf.mxu0
        %v2337 = vadd.f32 0.0, %v2336
        %2338 = vmatmul.f32.gmra.mxu0 %v1725
        %v2339 = vpop.f32.mrf.mxu0
        %v2340 = vadd.f32 0.0, %v2339
        %2341 = vmatmul.f32.gmra.mxu0 %v1728
        %v2342 = vpop.f32.mrf.mxu0
        %v2343 = vadd.f32 0.0, %v2342
        %2344 = vdwg.mxu0
        %v2345 = vmul.f32 %v1748, %v1748
        %v2346 = vmul.f32 %v1751, %v1751
        %v2347 = vmul.f32 %v1754, %v1754
        %v2348 = vmul.f32 %v1757, %v1757
        %v2349 = vmul.f32 %v1760, %v1760
        %v2350 = vmul.f32 %v1763, %v1763
        %v2351 = vmul.f32 %v1766, %v1766
        %v2352 = vmul.f32 %v1769, %v1769
        %v2353 = vmul.f32 %v1789, %v1789
        %v2354 = vmul.f32 %v1792, %v1792
        %v2355 = vmul.f32 %v1795, %v1795
        %v2356 = vmul.f32 %v1798, %v1798
        %v2357 = vmul.f32 %v1801, %v1801
        %v2358 = vmul.f32 %v1804, %v1804
        %v2359 = vmul.f32 %v1807, %v1807
        %v2360 = vmul.f32 %v1810, %v1810
        %v2361 = vmul.f32 %v1830, %v1830
        %v2362 = vmul.f32 %v1833, %v1833
        %v2363 = vmul.f32 %v1836, %v1836
        %v2364 = vmul.f32 %v1839, %v1839
        %v2365 = vmul.f32 %v1842, %v1842
        %v2366 = vmul.f32 %v1845, %v1845
        %v2367 = vmul.f32 %v1848, %v1848
        %v2368 = vmul.f32 %v1851, %v1851
        %v2369 = vmul.f32 %v1871, %v1871
        %v2370 = vmul.f32 %v1874, %v1874
        %v2371 = vmul.f32 %v1877, %v1877
        %v2372 = vmul.f32 %v1880, %v1880
        %v2373 = vmul.f32 %v1883, %v1883
        %v2374 = vmul.f32 %v1886, %v1886
        %v2375 = vmul.f32 %v1889, %v1889
        %v2376 = vmul.f32 %v1892, %v1892
        %v2377 = vmul.f32 %v1912, %v1912
        %v2378 = vmul.f32 %v1915, %v1915
        %v2379 = vmul.f32 %v1918, %v1918
        %v2380 = vmul.f32 %v1921, %v1921
        %v2381 = vmul.f32 %v1924, %v1924
        %v2382 = vmul.f32 %v1927, %v1927
        %v2383 = vmul.f32 %v1930, %v1930
        %v2384 = vmul.f32 %v1933, %v1933
        %v2385 = vmul.f32 %v1953, %v1953
        %v2386 = vmul.f32 %v1956, %v1956
        %v2387 = vmul.f32 %v1959, %v1959
        %v2388 = vmul.f32 %v1962, %v1962
        %v2389 = vmul.f32 %v1965, %v1965
        %v2390 = vmul.f32 %v1968, %v1968
        %v2391 = vmul.f32 %v1971, %v1971
        %v2392 = vmul.f32 %v1974, %v1974
        %v2393 = vmul.f32 %v1748, %v1871
        %v2394 = vmul.f32 %v1751, %v1874
        %v2395 = vmul.f32 %v1754, %v1877
        %v2396 = vmul.f32 %v1757, %v1880
        %v2397 = vmul.f32 %v1760, %v1883
        %v2398 = vmul.f32 %v1763, %v1886
        %v2399 = vmul.f32 %v1766, %v1889
        %v2400 = vmul.f32 %v1769, %v1892
        %v2401 = vmul.f32 %v1789, %v1912
        %v2402 = vmul.f32 %v1792, %v1915
        %v2403 = vmul.f32 %v1795, %v1918
        %v2404 = vmul.f32 %v1798, %v1921
        %v2405 = vmul.f32 %v1801, %v1924
        %v2406 = vmul.f32 %v1804, %v1927
        %v2407 = vmul.f32 %v1807, %v1930
        %v2408 = vmul.f32 %v1810, %v1933
        %v2409 = vmul.f32 %v1830, %v1953
        %v2410 = vmul.f32 %v1833, %v1956
        %v2411 = vmul.f32 %v1836, %v1959
        %v2412 = vmul.f32 %v1839, %v1962
        %v2413 = vmul.f32 %v1842, %v1965
        %v2414 = vmul.f32 %v1845, %v1968
        %v2415 = vmul.f32 %v1848, %v1971
        %v2416 = vmul.f32 %v1851, %v1974
        %v2417 = vsub.f32 %v1994, %v2345
        %v2418 = vsub.f32 %v1997, %v2346
        %v2419 = vsub.f32 %v2000, %v2347
        %v2420 = vsub.f32 %v2003, %v2348
        %v2421 = vsub.f32 %v2006, %v2349
        %v2422 = vsub.f32 %v2009, %v2350
        %v2423 = vsub.f32 %v2012, %v2351
        %v2424 = vsub.f32 %v2015, %v2352
        %v2425 = vsub.f32 %v2035, %v2353
        %v2426 = vsub.f32 %v2038, %v2354
        %v2427 = vsub.f32 %v2041, %v2355
        %v2428 = vsub.f32 %v2044, %v2356
        %v2429 = vsub.f32 %v2047, %v2357
        %v2430 = vsub.f32 %v2050, %v2358
        %v2431 = vsub.f32 %v2053, %v2359
        %v2432 = vsub.f32 %v2056, %v2360
        %v2433 = vsub.f32 %v2076, %v2361
        %v2434 = vsub.f32 %v2079, %v2362
        %v2435 = vsub.f32 %v2082, %v2363
        %v2436 = vsub.f32 %v2085, %v2364
        %v2437 = vsub.f32 %v2088, %v2365
        %v2438 = vsub.f32 %v2091, %v2366
        %v2439 = vsub.f32 %v2094, %v2367
        %v2440 = vsub.f32 %v2097, %v2368
        %v2441 = vsub.f32 %v2117, %v2369
        %v2442 = vsub.f32 %v2120, %v2370
        %v2443 = vsub.f32 %v2123, %v2371
        %v2444 = vsub.f32 %v2126, %v2372
        %v2445 = vsub.f32 %v2129, %v2373
        %v2446 = vsub.f32 %v2132, %v2374
        %v2447 = vsub.f32 %v2135, %v2375
        %v2448 = vsub.f32 %v2138, %v2376
        %v2449 = vsub.f32 %v2158, %v2377
        %v2450 = vsub.f32 %v2161, %v2378
        %v2451 = vsub.f32 %v2164, %v2379
        %v2452 = vsub.f32 %v2167, %v2380
        %v2453 = vsub.f32 %v2170, %v2381
        %v2454 = vsub.f32 %v2173, %v2382
        %v2455 = vsub.f32 %v2176, %v2383
        %v2456 = vsub.f32 %v2179, %v2384
        %v2457 = vsub.f32 %v2199, %v2385
        %v2458 = vsub.f32 %v2202, %v2386
        %v2459 = vsub.f32 %v2205, %v2387
        %v2460 = vsub.f32 %v2208, %v2388
        %v2461 = vsub.f32 %v2211, %v2389
        %v2462 = vsub.f32 %v2214, %v2390
        %v2463 = vsub.f32 %v2217, %v2391
        %v2464 = vsub.f32 %v2220, %v2392
        %v2465 = vsub.f32 %v2240, %v2393
        %v2466 = vsub.f32 %v2243, %v2394
        %v2467 = vsub.f32 %v2246, %v2395
        %v2468 = vsub.f32 %v2249, %v2396
        %v2469 = vsub.f32 %v2252, %v2397
        %v2470 = vsub.f32 %v2255, %v2398
        %v2471 = vsub.f32 %v2258, %v2399
        %v2472 = vsub.f32 %v2261, %v2400
        %v2473 = vsub.f32 %v2281, %v2401
        %v2474 = vsub.f32 %v2284, %v2402
        %v2475 = vsub.f32 %v2287, %v2403
        %v2476 = vsub.f32 %v2290, %v2404
        %v2477 = vsub.f32 %v2293, %v2405
        %v2478 = vsub.f32 %v2296, %v2406
        %v2479 = vsub.f32 %v2299, %v2407
        %v2480 = vsub.f32 %v2302, %v2408
        %v2481 = vsub.f32 %v2322, %v2409
        %v2482 = vsub.f32 %v2325, %v2410
        %v2483 = vsub.f32 %v2328, %v2411
        %v2484 = vsub.f32 %v2331, %v2412
        %v2485 = vsub.f32 %v2334, %v2413
        %v2486 = vsub.f32 %v2337, %v2414
        %v2487 = vsub.f32 %v2340, %v2415
        %v2488 = vsub.f32 %v2343, %v2416
        %v2489 = vmul.f32 %v2465, 2.0
        %v2490 = vmul.f32 %v2466, 2.0
        %v2491 = vmul.f32 %v2467, 2.0
        %v2492 = vmul.f32 %v2468, 2.0
        %v2493 = vmul.f32 %v2469, 2.0
        %v2494 = vmul.f32 %v2470, 2.0
        %v2495 = vmul.f32 %v2471, 2.0
        %v2496 = vmul.f32 %v2472, 2.0
        %v2497 = vmul.f32 %v2473, 2.0
        %v2498 = vmul.f32 %v2474, 2.0
        %v2499 = vmul.f32 %v2475, 2.0
        %v2500 = vmul.f32 %v2476, 2.0
        %v2501 = vmul.f32 %v2477, 2.0
        %v2502 = vmul.f32 %v2478, 2.0
        %v2503 = vmul.f32 %v2479, 2.0
        %v2504 = vmul.f32 %v2480, 2.0
        %v2505 = vmul.f32 %v2481, 2.0
        %v2506 = vmul.f32 %v2482, 2.0
        %v2507 = vmul.f32 %v2483, 2.0
        %v2508 = vmul.f32 %v2484, 2.0
        %v2509 = vmul.f32 %v2485, 2.0
        %v2510 = vmul.f32 %v2486, 2.0
        %v2511 = vmul.f32 %v2487, 2.0
        %v2512 = vmul.f32 %v2488, 2.0
        %v2513 = vadd.f32 %v2489, 0.0009
        %v2514 = vadd.f32 %v2490, 0.0009
        %v2515 = vadd.f32 %v2491, 0.0009
        %v2516 = vadd.f32 %v2492, 0.0009
        %v2517 = vadd.f32 %v2493, 0.0009
        %v2518 = vadd.f32 %v2494, 0.0009
        %v2519 = vadd.f32 %v2495, 0.0009
        %v2520 = vadd.f32 %v2496, 0.0009
        %v2521 = vadd.f32 %v2497, 0.0009
        %v2522 = vadd.f32 %v2498, 0.0009
        %v2523 = vadd.f32 %v2499, 0.0009
        %v2524 = vadd.f32 %v2500, 0.0009
        %v2525 = vadd.f32 %v2501, 0.0009
        %v2526 = vadd.f32 %v2502, 0.0009
        %v2527 = vadd.f32 %v2503, 0.0009
        %v2528 = vadd.f32 %v2504, 0.0009
        %v2529 = vadd.f32 %v2505, 0.0009
        %v2530 = vadd.f32 %v2506, 0.0009
        %v2531 = vadd.f32 %v2507, 0.0009
        %v2532 = vadd.f32 %v2508, 0.0009
        %v2533 = vadd.f32 %v2509, 0.0009
        %v2534 = vadd.f32 %v2510, 0.0009
        %v2535 = vadd.f32 %v2511, 0.0009
        %v2536 = vadd.f32 %v2512, 0.0009
        %v2537 = vadd.f32 %v2417, %v2441
        %v2538 = vadd.f32 %v2418, %v2442
        %v2539 = vadd.f32 %v2419, %v2443
        %v2540 = vadd.f32 %v2420, %v2444
        %v2541 = vadd.f32 %v2421, %v2445
        %v2542 = vadd.f32 %v2422, %v2446
        %v2543 = vadd.f32 %v2423, %v2447
        %v2544 = vadd.f32 %v2424, %v2448
        %v2545 = vadd.f32 %v2425, %v2449
        %v2546 = vadd.f32 %v2426, %v2450
        %v2547 = vadd.f32 %v2427, %v2451
        %v2548 = vadd.f32 %v2428, %v2452
        %v2549 = vadd.f32 %v2429, %v2453
        %v2550 = vadd.f32 %v2430, %v2454
        %v2551 = vadd.f32 %v2431, %v2455
        %v2552 = vadd.f32 %v2432, %v2456
        %v2553 = vadd.f32 %v2433, %v2457
        %v2554 = vadd.f32 %v2434, %v2458
        %v2555 = vadd.f32 %v2435, %v2459
        %v2556 = vadd.f32 %v2436, %v2460
        %v2557 = vadd.f32 %v2437, %v2461
        %v2558 = vadd.f32 %v2438, %v2462
        %v2559 = vadd.f32 %v2439, %v2463
        %v2560 = vadd.f32 %v2440, %v2464
        %v2561 = vadd.f32 %v2537, 0.0009
        %v2562 = vadd.f32 %v2538, 0.0009
        %v2563 = vadd.f32 %v2539, 0.0009
        %v2564 = vadd.f32 %v2540, 0.0009
        %v2565 = vadd.f32 %v2541, 0.0009
        %v2566 = vadd.f32 %v2542, 0.0009
        %v2567 = vadd.f32 %v2543, 0.0009
        %v2568 = vadd.f32 %v2544, 0.0009
        %v2569 = vadd.f32 %v2545, 0.0009
        %v2570 = vadd.f32 %v2546, 0.0009
        %v2571 = vadd.f32 %v2547, 0.0009
        %v2572 = vadd.f32 %v2548, 0.0009
        %v2573 = vadd.f32 %v2549, 0.0009
        %v2574 = vadd.f32 %v2550, 0.0009
        %v2575 = vadd.f32 %v2551, 0.0009
        %v2576 = vadd.f32 %v2552, 0.0009
        %v2577 = vadd.f32 %v2553, 0.0009
        %v2578 = vadd.f32 %v2554, 0.0009
        %v2579 = vadd.f32 %v2555, 0.0009
        %v2580 = vadd.f32 %v2556, 0.0009
        %v2581 = vadd.f32 %v2557, 0.0009
        %v2582 = vadd.f32 %v2558, 0.0009
        %v2583 = vadd.f32 %v2559, 0.0009
        %v2584 = vadd.f32 %v2560, 0.0009
        %v2585 = vrcp.pop %v2561
        %v2586 = vmul.f32 %v2561, %v2585
        %v2587 = vsub.f32 1.0, %v2586
        %v2588 = vmul.f32 %v2585, %v2587
        %v2589 = vadd.f32 %v2585, %v2588
        %vm2590 = vweird.f32 %v2561
        %vm2591 = vweird.f32 %v2585
        %vm2592 = vmor %vm2590, %vm2591
        %v2593 = vsel %vm2592, %v2585, %v2589
        %v2594 = vand.u32 2147483647, %v2561
        %vm2595 = vcmp.eq.f32.partialorder %v2594, 8.507059e+37
        %v2596 = vand.u32 %v2561, 2147483648
        %v2597 = vor.u32 1.1754944e-38, %v2596
        %v2598 = vsel %vm2595, %v2597, %v2593
        %v2599 = vmul.f32 %v2513, %v2598
        %v2600 = vrcp.pop %v2562
        %v2601 = vmul.f32 %v2562, %v2600
        %v2602 = vsub.f32 1.0, %v2601
        %v2603 = vmul.f32 %v2600, %v2602
        %v2604 = vadd.f32 %v2600, %v2603
        %vm2605 = vweird.f32 %v2562
        %vm2606 = vweird.f32 %v2600
        %vm2607 = vmor %vm2605, %vm2606
        %v2608 = vsel %vm2607, %v2600, %v2604
        %v2609 = vand.u32 2147483647, %v2562
        %vm2610 = vcmp.eq.f32.partialorder %v2609, 8.507059e+37
        %v2611 = vand.u32 %v2562, 2147483648
        %v2612 = vor.u32 1.1754944e-38, %v2611
        %v2613 = vsel %vm2610, %v2612, %v2608
        %v2614 = vmul.f32 %v2514, %v2613
        %v2615 = vrcp.pop %v2563
        %v2616 = vmul.f32 %v2563, %v2615
        %v2617 = vsub.f32 1.0, %v2616
        %v2618 = vmul.f32 %v2615, %v2617
        %v2619 = vadd.f32 %v2615, %v2618
        %vm2620 = vweird.f32 %v2563
        %vm2621 = vweird.f32 %v2615
        %vm2622 = vmor %vm2620, %vm2621
        %v2623 = vsel %vm2622, %v2615, %v2619
        %v2624 = vand.u32 2147483647, %v2563
        %vm2625 = vcmp.eq.f32.partialorder %v2624, 8.507059e+37
        %v2626 = vand.u32 %v2563, 2147483648
        %v2627 = vor.u32 1.1754944e-38, %v2626
        %v2628 = vsel %vm2625, %v2627, %v2623
        %v2629 = vmul.f32 %v2515, %v2628
        %v2630 = vrcp.pop %v2564
        %v2631 = vmul.f32 %v2564, %v2630
        %v2632 = vsub.f32 1.0, %v2631
        %v2633 = vmul.f32 %v2630, %v2632
        %v2634 = vadd.f32 %v2630, %v2633
        %vm2635 = vweird.f32 %v2564
        %vm2636 = vweird.f32 %v2630
        %vm2637 = vmor %vm2635, %vm2636
        %v2638 = vsel %vm2637, %v2630, %v2634
        %v2639 = vand.u32 2147483647, %v2564
        %vm2640 = vcmp.eq.f32.partialorder %v2639, 8.507059e+37
        %v2641 = vand.u32 %v2564, 2147483648
        %v2642 = vor.u32 1.1754944e-38, %v2641
        %v2643 = vsel %vm2640, %v2642, %v2638
        %v2644 = vmul.f32 %v2516, %v2643
        %v2645 = vrcp.pop %v2565
        %v2646 = vmul.f32 %v2565, %v2645
        %v2647 = vsub.f32 1.0, %v2646
        %v2648 = vmul.f32 %v2645, %v2647
        %v2649 = vadd.f32 %v2645, %v2648
        %vm2650 = vweird.f32 %v2565
        %vm2651 = vweird.f32 %v2645
        %vm2652 = vmor %vm2650, %vm2651
        %v2653 = vsel %vm2652, %v2645, %v2649
        %v2654 = vand.u32 2147483647, %v2565
        %vm2655 = vcmp.eq.f32.partialorder %v2654, 8.507059e+37
        %v2656 = vand.u32 %v2565, 2147483648
        %v2657 = vor.u32 1.1754944e-38, %v2656
        %v2658 = vsel %vm2655, %v2657, %v2653
        %v2659 = vmul.f32 %v2517, %v2658
        %v2660 = vrcp.pop %v2566
        %v2661 = vmul.f32 %v2566, %v2660
        %v2662 = vsub.f32 1.0, %v2661
        %v2663 = vmul.f32 %v2660, %v2662
        %v2664 = vadd.f32 %v2660, %v2663
        %vm2665 = vweird.f32 %v2566
        %vm2666 = vweird.f32 %v2660
        %vm2667 = vmor %vm2665, %vm2666
        %v2668 = vsel %vm2667, %v2660, %v2664
        %v2669 = vand.u32 2147483647, %v2566
        %vm2670 = vcmp.eq.f32.partialorder %v2669, 8.507059e+37
        %v2671 = vand.u32 %v2566, 2147483648
        %v2672 = vor.u32 1.1754944e-38, %v2671
        %v2673 = vsel %vm2670, %v2672, %v2668
        %v2674 = vmul.f32 %v2518, %v2673
        %v2675 = vrcp.pop %v2567
        %v2676 = vmul.f32 %v2567, %v2675
        %v2677 = vsub.f32 1.0, %v2676
        %v2678 = vmul.f32 %v2675, %v2677
        %v2679 = vadd.f32 %v2675, %v2678
        %vm2680 = vweird.f32 %v2567
        %vm2681 = vweird.f32 %v2675
        %vm2682 = vmor %vm2680, %vm2681
        %v2683 = vsel %vm2682, %v2675, %v2679
        %v2684 = vand.u32 2147483647, %v2567
        %vm2685 = vcmp.eq.f32.partialorder %v2684, 8.507059e+37
        %v2686 = vand.u32 %v2567, 2147483648
        %v2687 = vor.u32 1.1754944e-38, %v2686
        %v2688 = vsel %vm2685, %v2687, %v2683
        %v2689 = vmul.f32 %v2519, %v2688
        %v2690 = vrcp.pop %v2568
        %v2691 = vmul.f32 %v2568, %v2690
        %v2692 = vsub.f32 1.0, %v2691
        %v2693 = vmul.f32 %v2690, %v2692
        %v2694 = vadd.f32 %v2690, %v2693
        %vm2695 = vweird.f32 %v2568
        %vm2696 = vweird.f32 %v2690
        %vm2697 = vmor %vm2695, %vm2696
        %v2698 = vsel %vm2697, %v2690, %v2694
        %v2699 = vand.u32 2147483647, %v2568
        %vm2700 = vcmp.eq.f32.partialorder %v2699, 8.507059e+37
        %v2701 = vand.u32 %v2568, 2147483648
        %v2702 = vor.u32 1.1754944e-38, %v2701
        %v2703 = vsel %vm2700, %v2702, %v2698
        %v2704 = vmul.f32 %v2520, %v2703
        %v2705 = vrcp.pop %v2569
        %v2706 = vmul.f32 %v2569, %v2705
        %v2707 = vsub.f32 1.0, %v2706
        %v2708 = vmul.f32 %v2705, %v2707
        %v2709 = vadd.f32 %v2705, %v2708
        %vm2710 = vweird.f32 %v2569
        %vm2711 = vweird.f32 %v2705
        %vm2712 = vmor %vm2710, %vm2711
        %v2713 = vsel %vm2712, %v2705, %v2709
        %v2714 = vand.u32 2147483647, %v2569
        %vm2715 = vcmp.eq.f32.partialorder %v2714, 8.507059e+37
        %v2716 = vand.u32 %v2569, 2147483648
        %v2717 = vor.u32 1.1754944e-38, %v2716
        %v2718 = vsel %vm2715, %v2717, %v2713
        %v2719 = vmul.f32 %v2521, %v2718
        %v2720 = vrcp.pop %v2570
        %v2721 = vmul.f32 %v2570, %v2720
        %v2722 = vsub.f32 1.0, %v2721
        %v2723 = vmul.f32 %v2720, %v2722
        %v2724 = vadd.f32 %v2720, %v2723
        %vm2725 = vweird.f32 %v2570
        %vm2726 = vweird.f32 %v2720
        %vm2727 = vmor %vm2725, %vm2726
        %v2728 = vsel %vm2727, %v2720, %v2724
        %v2729 = vand.u32 2147483647, %v2570
        %vm2730 = vcmp.eq.f32.partialorder %v2729, 8.507059e+37
        %v2731 = vand.u32 %v2570, 2147483648
        %v2732 = vor.u32 1.1754944e-38, %v2731
        %v2733 = vsel %vm2730, %v2732, %v2728
        %v2734 = vmul.f32 %v2522, %v2733
        %v2735 = vrcp.pop %v2571
        %v2736 = vmul.f32 %v2571, %v2735
        %v2737 = vsub.f32 1.0, %v2736
        %v2738 = vmul.f32 %v2735, %v2737
        %v2739 = vadd.f32 %v2735, %v2738
        %vm2740 = vweird.f32 %v2571
        %vm2741 = vweird.f32 %v2735
        %vm2742 = vmor %vm2740, %vm2741
        %v2743 = vsel %vm2742, %v2735, %v2739
        %v2744 = vand.u32 2147483647, %v2571
        %vm2745 = vcmp.eq.f32.partialorder %v2744, 8.507059e+37
        %v2746 = vand.u32 %v2571, 2147483648
        %v2747 = vor.u32 1.1754944e-38, %v2746
        %v2748 = vsel %vm2745, %v2747, %v2743
        %v2749 = vmul.f32 %v2523, %v2748
        %v2750 = vrcp.pop %v2572
        %v2751 = vmul.f32 %v2572, %v2750
        %v2752 = vsub.f32 1.0, %v2751
        %v2753 = vmul.f32 %v2750, %v2752
        %v2754 = vadd.f32 %v2750, %v2753
        %vm2755 = vweird.f32 %v2572
        %vm2756 = vweird.f32 %v2750
        %vm2757 = vmor %vm2755, %vm2756
        %v2758 = vsel %vm2757, %v2750, %v2754
        %v2759 = vand.u32 2147483647, %v2572
        %vm2760 = vcmp.eq.f32.partialorder %v2759, 8.507059e+37
        %v2761 = vand.u32 %v2572, 2147483648
        %v2762 = vor.u32 1.1754944e-38, %v2761
        %v2763 = vsel %vm2760, %v2762, %v2758
        %v2764 = vmul.f32 %v2524, %v2763
        %v2765 = vrcp.pop %v2573
        %v2766 = vmul.f32 %v2573, %v2765
        %v2767 = vsub.f32 1.0, %v2766
        %v2768 = vmul.f32 %v2765, %v2767
        %v2769 = vadd.f32 %v2765, %v2768
        %vm2770 = vweird.f32 %v2573
        %vm2771 = vweird.f32 %v2765
        %vm2772 = vmor %vm2770, %vm2771
        %v2773 = vsel %vm2772, %v2765, %v2769
        %v2774 = vand.u32 2147483647, %v2573
        %vm2775 = vcmp.eq.f32.partialorder %v2774, 8.507059e+37
        %v2776 = vand.u32 %v2573, 2147483648
        %v2777 = vor.u32 1.1754944e-38, %v2776
        %v2778 = vsel %vm2775, %v2777, %v2773
        %v2779 = vmul.f32 %v2525, %v2778
        %v2780 = vrcp.pop %v2574
        %v2781 = vmul.f32 %v2574, %v2780
        %v2782 = vsub.f32 1.0, %v2781
        %v2783 = vmul.f32 %v2780, %v2782
        %v2784 = vadd.f32 %v2780, %v2783
        %vm2785 = vweird.f32 %v2574
        %vm2786 = vweird.f32 %v2780
        %vm2787 = vmor %vm2785, %vm2786
        %v2788 = vsel %vm2787, %v2780, %v2784
        %v2789 = vand.u32 2147483647, %v2574
        %vm2790 = vcmp.eq.f32.partialorder %v2789, 8.507059e+37
        %v2791 = vand.u32 %v2574, 2147483648
        %v2792 = vor.u32 1.1754944e-38, %v2791
        %v2793 = vsel %vm2790, %v2792, %v2788
        %v2794 = vmul.f32 %v2526, %v2793
        %v2795 = vrcp.pop %v2575
        %v2796 = vmul.f32 %v2575, %v2795
        %v2797 = vsub.f32 1.0, %v2796
        %v2798 = vmul.f32 %v2795, %v2797
        %v2799 = vadd.f32 %v2795, %v2798
        %vm2800 = vweird.f32 %v2575
        %vm2801 = vweird.f32 %v2795
        %vm2802 = vmor %vm2800, %vm2801
        %v2803 = vsel %vm2802, %v2795, %v2799
        %v2804 = vand.u32 2147483647, %v2575
        %vm2805 = vcmp.eq.f32.partialorder %v2804, 8.507059e+37
        %v2806 = vand.u32 %v2575, 2147483648
        %v2807 = vor.u32 1.1754944e-38, %v2806
        %v2808 = vsel %vm2805, %v2807, %v2803
        %v2809 = vmul.f32 %v2527, %v2808
        %v2810 = vrcp.pop %v2576
        %v2811 = vmul.f32 %v2576, %v2810
        %v2812 = vsub.f32 1.0, %v2811
        %v2813 = vmul.f32 %v2810, %v2812
        %v2814 = vadd.f32 %v2810, %v2813
        %vm2815 = vweird.f32 %v2576
        %vm2816 = vweird.f32 %v2810
        %vm2817 = vmor %vm2815, %vm2816
        %v2818 = vsel %vm2817, %v2810, %v2814
        %v2819 = vand.u32 2147483647, %v2576
        %vm2820 = vcmp.eq.f32.partialorder %v2819, 8.507059e+37
        %v2821 = vand.u32 %v2576, 2147483648
        %v2822 = vor.u32 1.1754944e-38, %v2821
        %v2823 = vsel %vm2820, %v2822, %v2818
        %v2824 = vmul.f32 %v2528, %v2823
        %v2825 = vrcp.pop %v2577
        %v2826 = vmul.f32 %v2577, %v2825
        %v2827 = vsub.f32 1.0, %v2826
        %v2828 = vmul.f32 %v2825, %v2827
        %v2829 = vadd.f32 %v2825, %v2828
        %vm2830 = vweird.f32 %v2577
        %vm2831 = vweird.f32 %v2825
        %vm2832 = vmor %vm2830, %vm2831
        %v2833 = vsel %vm2832, %v2825, %v2829
        %v2834 = vand.u32 2147483647, %v2577
        %vm2835 = vcmp.eq.f32.partialorder %v2834, 8.507059e+37
        %v2836 = vand.u32 %v2577, 2147483648
        %v2837 = vor.u32 1.1754944e-38, %v2836
        %v2838 = vsel %vm2835, %v2837, %v2833
        %v2839 = vmul.f32 %v2529, %v2838
        %v2840 = vrcp.pop %v2578
        %v2841 = vmul.f32 %v2578, %v2840
        %v2842 = vsub.f32 1.0, %v2841
        %v2843 = vmul.f32 %v2840, %v2842
        %v2844 = vadd.f32 %v2840, %v2843
        %vm2845 = vweird.f32 %v2578
        %vm2846 = vweird.f32 %v2840
        %vm2847 = vmor %vm2845, %vm2846
        %v2848 = vsel %vm2847, %v2840, %v2844
        %v2849 = vand.u32 2147483647, %v2578
        %vm2850 = vcmp.eq.f32.partialorder %v2849, 8.507059e+37
        %v2851 = vand.u32 %v2578, 2147483648
        %v2852 = vor.u32 1.1754944e-38, %v2851
        %v2853 = vsel %vm2850, %v2852, %v2848
        %v2854 = vmul.f32 %v2530, %v2853
        %v2855 = vrcp.pop %v2579
        %v2856 = vmul.f32 %v2579, %v2855
        %v2857 = vsub.f32 1.0, %v2856
        %v2858 = vmul.f32 %v2855, %v2857
        %v2859 = vadd.f32 %v2855, %v2858
        %vm2860 = vweird.f32 %v2579
        %vm2861 = vweird.f32 %v2855
        %vm2862 = vmor %vm2860, %vm2861
        %v2863 = vsel %vm2862, %v2855, %v2859
        %v2864 = vand.u32 2147483647, %v2579
        %vm2865 = vcmp.eq.f32.partialorder %v2864, 8.507059e+37
        %v2866 = vand.u32 %v2579, 2147483648
        %v2867 = vor.u32 1.1754944e-38, %v2866
        %v2868 = vsel %vm2865, %v2867, %v2863
        %v2869 = vmul.f32 %v2531, %v2868
        %v2870 = vrcp.pop %v2580
        %v2871 = vmul.f32 %v2580, %v2870
        %v2872 = vsub.f32 1.0, %v2871
        %v2873 = vmul.f32 %v2870, %v2872
        %v2874 = vadd.f32 %v2870, %v2873
        %vm2875 = vweird.f32 %v2580
        %vm2876 = vweird.f32 %v2870
        %vm2877 = vmor %vm2875, %vm2876
        %v2878 = vsel %vm2877, %v2870, %v2874
        %v2879 = vand.u32 2147483647, %v2580
        %vm2880 = vcmp.eq.f32.partialorder %v2879, 8.507059e+37
        %v2881 = vand.u32 %v2580, 2147483648
        %v2882 = vor.u32 1.1754944e-38, %v2881
        %v2883 = vsel %vm2880, %v2882, %v2878
        %v2884 = vmul.f32 %v2532, %v2883
        %v2885 = vrcp.pop %v2581
        %v2886 = vmul.f32 %v2581, %v2885
        %v2887 = vsub.f32 1.0, %v2886
        %v2888 = vmul.f32 %v2885, %v2887
        %v2889 = vadd.f32 %v2885, %v2888
        %vm2890 = vweird.f32 %v2581
        %vm2891 = vweird.f32 %v2885
        %vm2892 = vmor %vm2890, %vm2891
        %v2893 = vsel %vm2892, %v2885, %v2889
        %v2894 = vand.u32 2147483647, %v2581
        %vm2895 = vcmp.eq.f32.partialorder %v2894, 8.507059e+37
        %v2896 = vand.u32 %v2581, 2147483648
        %v2897 = vor.u32 1.1754944e-38, %v2896
        %v2898 = vsel %vm2895, %v2897, %v2893
        %v2899 = vmul.f32 %v2533, %v2898
        %v2900 = vrcp.pop %v2582
        %v2901 = vmul.f32 %v2582, %v2900
        %v2902 = vsub.f32 1.0, %v2901
        %v2903 = vmul.f32 %v2900, %v2902
        %v2904 = vadd.f32 %v2900, %v2903
        %vm2905 = vweird.f32 %v2582
        %vm2906 = vweird.f32 %v2900
        %vm2907 = vmor %vm2905, %vm2906
        %v2908 = vsel %vm2907, %v2900, %v2904
        %v2909 = vand.u32 2147483647, %v2582
        %vm2910 = vcmp.eq.f32.partialorder %v2909, 8.507059e+37
        %v2911 = vand.u32 %v2582, 2147483648
        %v2912 = vor.u32 1.1754944e-38, %v2911
        %v2913 = vsel %vm2910, %v2912, %v2908
        %v2914 = vmul.f32 %v2534, %v2913
        %v2915 = vrcp.pop %v2583
        %v2916 = vmul.f32 %v2583, %v2915
        %v2917 = vsub.f32 1.0, %v2916
        %v2918 = vmul.f32 %v2915, %v2917
        %v2919 = vadd.f32 %v2915, %v2918
        %vm2920 = vweird.f32 %v2583
        %vm2921 = vweird.f32 %v2915
        %vm2922 = vmor %vm2920, %vm2921
        %v2923 = vsel %vm2922, %v2915, %v2919
        %v2924 = vand.u32 2147483647, %v2583
        %vm2925 = vcmp.eq.f32.partialorder %v2924, 8.507059e+37
        %v2926 = vand.u32 %v2583, 2147483648
        %v2927 = vor.u32 1.1754944e-38, %v2926
        %v2928 = vsel %vm2925, %v2927, %v2923
        %v2929 = vmul.f32 %v2535, %v2928
        %v2930 = vrcp.pop %v2584
        %v2931 = vmul.f32 %v2584, %v2930
        %v2932 = vsub.f32 1.0, %v2931
        %v2933 = vmul.f32 %v2930, %v2932
        %v2934 = vadd.f32 %v2930, %v2933
        %vm2935 = vweird.f32 %v2584
        %vm2936 = vweird.f32 %v2930
        %vm2937 = vmor %vm2935, %vm2936
        %v2938 = vsel %vm2937, %v2930, %v2934
        %v2939 = vand.u32 2147483647, %v2584
        %vm2940 = vcmp.eq.f32.partialorder %v2939, 8.507059e+37
        %v2941 = vand.u32 %v2584, 2147483648
        %v2942 = vor.u32 1.1754944e-38, %v2941
        %v2943 = vsel %vm2940, %v2942, %v2938
        %v2944 = vmul.f32 %v2536, %v2943
        %vm2945 = vcmask 506880
        %v2946 = vsel %vm2945, %v2599, 0.0
        %2947 = vadd.xlane.f32.xlu0 %v2946
        %v2948 = vpop.xlane.xlu0 %2947
        %v2949 = vsel %vm2945, %v2614, 0.0
        %2950 = vadd.xlane.f32.xlu0 %v2949
        %v2951 = vpop.xlane.xlu0 %2950
        %v2952 = vsel %vm2945, %v2629, 0.0
        %2953 = vadd.xlane.f32.xlu0 %v2952
        %v2954 = vpop.xlane.xlu0 %2953
        %v2955 = vsel %vm2945, %v2644, 0.0
        %2956 = vadd.xlane.f32.xlu0 %v2955
        %v2957 = vpop.xlane.xlu0 %2956
        %v2958 = vsel %vm2945, %v2659, 0.0
        %2959 = vadd.xlane.f32.xlu0 %v2958
        %v2960 = vpop.xlane.xlu0 %2959
        %v2961 = vsel %vm2945, %v2674, 0.0
        %2962 = vadd.xlane.f32.xlu0 %v2961
        %v2963 = vpop.xlane.xlu0 %2962
        %v2964 = vsel %vm2945, %v2689, 0.0
        %2965 = vadd.xlane.f32.xlu0 %v2964
        %v2966 = vpop.xlane.xlu0 %2965
        %vm2967 = vcmask 504832
        %v2968 = vsel %vm2967, %v2704, 0.0
        %2969 = vadd.xlane.f32.xlu0 %v2968
        %v2970 = vpop.xlane.xlu0 %2969
        %v2971 = vsel %vm2945, %v2719, 0.0
        %2972 = vadd.xlane.f32.xlu0 %v2971
        %v2973 = vpop.xlane.xlu0 %2972
        %v2974 = vsel %vm2945, %v2734, 0.0
        %2975 = vadd.xlane.f32.xlu0 %v2974
        %v2976 = vpop.xlane.xlu0 %2975
        %v2977 = vsel %vm2945, %v2749, 0.0
        %2978 = vadd.xlane.f32.xlu0 %v2977
        %v2979 = vpop.xlane.xlu0 %2978
        %v2980 = vsel %vm2945, %v2764, 0.0
        %2981 = vadd.xlane.f32.xlu0 %v2980
        %v2982 = vpop.xlane.xlu0 %2981
        %v2983 = vsel %vm2945, %v2779, 0.0
        %2984 = vadd.xlane.f32.xlu0 %v2983
        %v2985 = vpop.xlane.xlu0 %2984
        %v2986 = vsel %vm2945, %v2794, 0.0
        %2987 = vadd.xlane.f32.xlu0 %v2986
        %v2988 = vpop.xlane.xlu0 %2987
        %v2989 = vsel %vm2945, %v2809, 0.0
        %2990 = vadd.xlane.f32.xlu0 %v2989
        %v2991 = vpop.xlane.xlu0 %2990
        %v2992 = vsel %vm2967, %v2824, 0.0
        %2993 = vadd.xlane.f32.xlu0 %v2992
        %v2994 = vpop.xlane.xlu0 %2993
        %v2995 = vsel %vm2945, %v2839, 0.0
        %2996 = vadd.xlane.f32.xlu0 %v2995
        %v2997 = vpop.xlane.xlu0 %2996
        %v2998 = vsel %vm2945, %v2854, 0.0
        %2999 = vadd.xlane.f32.xlu0 %v2998
        %v3000 = vpop.xlane.xlu0 %2999
        %v3001 = vsel %vm2945, %v2869, 0.0
        %3002 = vadd.xlane.f32.xlu0 %v3001
        %v3003 = vpop.xlane.xlu0 %3002
        %v3004 = vsel %vm2945, %v2884, 0.0
        %3005 = vadd.xlane.f32.xlu0 %v3004
        %v3006 = vpop.xlane.xlu0 %3005
        %v3007 = vsel %vm2945, %v2899, 0.0
        %3008 = vadd.xlane.f32.xlu0 %v3007
        %v3009 = vpop.xlane.xlu0 %3008
        %v3010 = vsel %vm2945, %v2914, 0.0
        %3011 = vadd.xlane.f32.xlu0 %v3010
        %v3012 = vpop.xlane.xlu0 %3011
        %v3013 = vsel %vm2945, %v2929, 0.0
        %3014 = vadd.xlane.f32.xlu0 %v3013
        %v3015 = vpop.xlane.xlu0 %3014
        %v3016 = vsel %vm2967, %v2944, 0.0
        %3017 = vadd.xlane.f32.xlu0 %v3016
        %v3018 = vpop.xlane.xlu0 %3017
        %v3019 = vadd.f32 %v2948, %v2951
        %v3020 = vadd.f32 %v3019, %v2954
        %v3021 = vadd.f32 %v3020, %v2957
        %v3022 = vadd.f32 %v3021, %v2960
        %v3023 = vadd.f32 %v3022, %v2963
        %v3024 = vadd.f32 %v3023, %v2966
        %vm3025 = vcmask 1045504
        %v3026 = vsel %vm3025, %v2970, 0.0
        %v3027 = vadd.f32 %v3024, %v3026
        %v3028 = vrot.slane %v3027, 4
        %v3029 = vadd.f32 %v3027, %v3028
        %v3030 = vrot.slane %v3029, 2
        %v3031 = vadd.f32 %v3029, %v3030
        %v3032 = vrot.slane %v3031, 1
        %v3033 = vadd.f32 %v3031, %v3032
        %v3034 = vadd.f32 %v2973, %v2976
        %v3035 = vadd.f32 %v3034, %v2979
        %v3036 = vadd.f32 %v3035, %v2982
        %v3037 = vadd.f32 %v3036, %v2985
        %v3038 = vadd.f32 %v3037, %v2988
        %v3039 = vadd.f32 %v3038, %v2991
        %v3040 = vsel %vm3025, %v2994, 0.0
        %v3041 = vadd.f32 %v3039, %v3040
        %v3042 = vrot.slane %v3041, 4
        %v3043 = vadd.f32 %v3041, %v3042
        %v3044 = vrot.slane %v3043, 2
        %v3045 = vadd.f32 %v3043, %v3044
        %v3046 = vrot.slane %v3045, 1
        %v3047 = vadd.f32 %v3045, %v3046
        %v3048 = vadd.f32 %v2997, %v3000
        %v3049 = vadd.f32 %v3048, %v3003
        %v3050 = vadd.f32 %v3049, %v3006
        %v3051 = vadd.f32 %v3050, %v3009
        %v3052 = vadd.f32 %v3051, %v3012
        %v3053 = vadd.f32 %v3052, %v3015
        %v3054 = vsel %vm3025, %v3018, 0.0
        %v3055 = vadd.f32 %v3053, %v3054
        %v3056 = vrot.slane %v3055, 4
        %v3057 = vadd.f32 %v3055, %v3056
        %v3058 = vrot.slane %v3057, 2
        %v3059 = vadd.f32 %v3057, %v3058
        %v3060 = vrot.slane %v3059, 1
        %v3061 = vadd.f32 %v3059, %v3060
        %v3062 = vmul.f32 %v3033, 0.0002601457
        %v3063 = vmul.f32 %v3047, 0.0002601457
        %v3064 = vmul.f32 %v3061, 0.0002601457
        %v3065 = vmax.f32 %v3062, 0.0
        %v3066 = vmax.f32 %v3063, 0.0
        %v3067 = vmax.f32 %v3064, 0.0
        %vm3068 = vcmp.gt.f32.partialorder %v3065, 0.0
        %vm3069 = vcmp.gt.f32.partialorder %v3066, 0.0
        %vm3070 = vcmp.gt.f32.partialorder %v3067, 0.0
        %v3071 = vmax.f32 %v3065, 1e-30
        %v3072 = vmax.f32 %v3066, 1e-30
        %v3073 = vmax.f32 %v3067, 1e-30
        %v3074 = vlog2.pop %v3071
        %v3075 = vmul.f32 %v3074, 0.6931472
        %v3076 = vlog2.pop %v3072
        %v3077 = vmul.f32 %v3076, 0.6931472
        %v3078 = vlog2.pop %v3073
        %v3079 = vmul.f32 %v3078, 0.6931472
        %v3080 = vmul.f32 %v3075, 0.0448
        %v3081 = vmul.f32 %v3077, 0.0448
        %v3082 = vmul.f32 %v3079, 0.0448
        %v3083 = vmul.f32 %v3080, 1.442695
        %v3084 = vpow.pop %v3083
        %v3085 = vmul.f32 %v3081, 1.442695
        %v3086 = vpow.pop %v3085
        %v3087 = vmul.f32 %v3082, 1.442695
        %v3088 = vpow.pop %v3087
        %v3089 = vsel %vm3068, %v3084, 0.0
        %v3090 = vsel %vm3069, %v3086, 0.0
        %v3091 = vsel %vm3070, %v3088, 0.0
        %3092 = vmatpush.msra.mxu0 0.0
        %3093 = vmatpush.msra.mxu0 0.0
        %3094 = vmatpush.msra.mxu0 0.0
        %3095 = vmatpush.msra.mxu0 0.0
        %3096 = vmatpush.msra.mxu0 0.0
        %3097 = vmatpush.msra.mxu0 0.0
        %3098 = vmatpush.msra.mxu0 0.0
        %3099 = vmatpush.msra.mxu0 0.0
        %3100 = vmatpush.msra.mxu0 %v891
        %3101 = vmatpush.msra.mxu0 %v890
        %3102 = vmatpush.msra.mxu0 %v889
        %3103 = vmatpush.msra.mxu0 %v888
        %3104 = vmatpush.msra.mxu0 %v887
        %3105 = vmatpush.msra.mxu0 %v886
        %3106 = vmatpush.msra.mxu0 %v885
        %3107 = vmatpush.msra.mxu0 %v884
        %3108 = vmatmul.f32.gmra.mxu0 %v970
        %v3109 = vpop.f32.mrf.mxu0
        %v3110 = vadd.f32 0.0, %v3109
        %3111 = vmatmul.f32.gmra.mxu0 %v973
        %v3112 = vpop.f32.mrf.mxu0
        %v3113 = vadd.f32 0.0, %v3112
        %3114 = vmatmul.f32.gmra.mxu0 %v976
        %v3115 = vpop.f32.mrf.mxu0
        %v3116 = vadd.f32 0.0, %v3115
        %3117 = vmatmul.f32.gmra.mxu0 %v979
        %v3118 = vpop.f32.mrf.mxu0
        %v3119 = vadd.f32 0.0, %v3118
        %3120 = vmatmul.f32.gmra.mxu0 %v982
        %v3121 = vpop.f32.mrf.mxu0
        %v3122 = vadd.f32 0.0, %v3121
        %3123 = vmatmul.f32.gmra.mxu0 %v985
        %v3124 = vpop.f32.mrf.mxu0
        %v3125 = vadd.f32 0.0, %v3124
        %3126 = vmatmul.f32.gmra.mxu0 %v988
        %v3127 = vpop.f32.mrf.mxu0
        %v3128 = vadd.f32 0.0, %v3127
        %3129 = vmatmul.f32.gmra.mxu0 %v991
        %v3130 = vpop.f32.mrf.mxu0
        %v3131 = vadd.f32 0.0, %v3130
        %3132 = vmatmul.f32.gmra.mxu0 %v994
        %v3133 = vpop.f32.mrf.mxu0
        %v3134 = vadd.f32 0.0, %v3133
        %3135 = vmatmul.f32.gmra.mxu0 %v997
        %v3136 = vpop.f32.mrf.mxu0
        %v3137 = vadd.f32 0.0, %v3136
        %3138 = vmatmul.f32.gmra.mxu0 %v1000
        %v3139 = vpop.f32.mrf.mxu0
        %v3140 = vadd.f32 0.0, %v3139
        %3141 = vmatmul.f32.gmra.mxu0 %v1003
        %v3142 = vpop.f32.mrf.mxu0
        %v3143 = vadd.f32 0.0, %v3142
        %3144 = vmatmul.f32.gmra.mxu0 %v1006
        %v3145 = vpop.f32.mrf.mxu0
        %v3146 = vadd.f32 0.0, %v3145
        %3147 = vmatmul.f32.gmra.mxu0 %v1009
        %v3148 = vpop.f32.mrf.mxu0
        %v3149 = vadd.f32 0.0, %v3148
        %3150 = vmatmul.f32.gmra.mxu0 %v1012
        %v3151 = vpop.f32.mrf.mxu0
        %v3152 = vadd.f32 0.0, %v3151
        %3153 = vmatmul.f32.gmra.mxu0 %v1015
        %v3154 = vpop.f32.mrf.mxu0
        %v3155 = vadd.f32 0.0, %v3154
        %3156 = vmatmul.f32.gmra.mxu0 %v1018
        %v3157 = vpop.f32.mrf.mxu0
        %v3158 = vadd.f32 0.0, %v3157
        %3159 = vmatmul.f32.gmra.mxu0 %v1021
        %v3160 = vpop.f32.mrf.mxu0
        %v3161 = vadd.f32 0.0, %v3160
        %3162 = vmatmul.f32.gmra.mxu0 %v1024
        %v3163 = vpop.f32.mrf.mxu0
        %v3164 = vadd.f32 0.0, %v3163
        %3165 = vmatmul.f32.gmra.mxu0 %v1027
        %v3166 = vpop.f32.mrf.mxu0
        %v3167 = vadd.f32 0.0, %v3166
        %3168 = vmatmul.f32.gmra.mxu0 %v1030
        %v3169 = vpop.f32.mrf.mxu0
        %v3170 = vadd.f32 0.0, %v3169
        %3171 = vmatmul.f32.gmra.mxu0 %v1033
        %v3172 = vpop.f32.mrf.mxu0
        %v3173 = vadd.f32 0.0, %v3172
        %3174 = vmatmul.f32.gmra.mxu0 %v1036
        %v3175 = vpop.f32.mrf.mxu0
        %v3176 = vadd.f32 0.0, %v3175
        %3177 = vmatmul.f32.gmra.mxu0 %v1039
        %v3178 = vpop.f32.mrf.mxu0
        %v3179 = vadd.f32 0.0, %v3178
        %3180 = vmatmul.f32.gmra.mxu0 %v1042
        %v3181 = vpop.f32.mrf.mxu0
        %v3182 = vadd.f32 0.0, %v3181
        %3183 = vmatmul.f32.gmra.mxu0 %v1045
        %v3184 = vpop.f32.mrf.mxu0
        %v3185 = vadd.f32 0.0, %v3184
        %3186 = vmatmul.f32.gmra.mxu0 %v1048
        %v3187 = vpop.f32.mrf.mxu0
        %v3188 = vadd.f32 0.0, %v3187
        %3189 = vmatmul.f32.gmra.mxu0 %v1051
        %v3190 = vpop.f32.mrf.mxu0
        %v3191 = vadd.f32 0.0, %v3190
        %3192 = vmatmul.f32.gmra.mxu0 %v1054
        %v3193 = vpop.f32.mrf.mxu0
        %v3194 = vadd.f32 0.0, %v3193
        %3195 = vmatmul.f32.gmra.mxu0 %v1057
        %v3196 = vpop.f32.mrf.mxu0
        %v3197 = vadd.f32 0.0, %v3196
        %3198 = vmatmul.f32.gmra.mxu0 %v1060
        %v3199 = vpop.f32.mrf.mxu0
        %v3200 = vadd.f32 0.0, %v3199
        %3201 = vmatmul.f32.gmra.mxu0 %v1063
        %v3202 = vpop.f32.mrf.mxu0
        %v3203 = vadd.f32 0.0, %v3202
        %3204 = vmatmul.f32.gmra.mxu0 %v1066
        %v3205 = vpop.f32.mrf.mxu0
        %v3206 = vadd.f32 0.0, %v3205
        %3207 = vmatmul.f32.gmra.mxu0 %v1069
        %v3208 = vpop.f32.mrf.mxu0
        %v3209 = vadd.f32 0.0, %v3208
        %3210 = vmatmul.f32.gmra.mxu0 %v1072
        %v3211 = vpop.f32.mrf.mxu0
        %v3212 = vadd.f32 0.0, %v3211
        %3213 = vmatmul.f32.gmra.mxu0 %v1075
        %v3214 = vpop.f32.mrf.mxu0
        %v3215 = vadd.f32 0.0, %v3214
        %3216 = vmatmul.f32.gmra.mxu0 %v1078
        %v3217 = vpop.f32.mrf.mxu0
        %v3218 = vadd.f32 0.0, %v3217
        %3219 = vmatmul.f32.gmra.mxu0 %v1081
        %v3220 = vpop.f32.mrf.mxu0
        %v3221 = vadd.f32 0.0, %v3220
        %3222 = vmatmul.f32.gmra.mxu0 %v1084
        %v3223 = vpop.f32.mrf.mxu0
        %v3224 = vadd.f32 0.0, %v3223
        %3225 = vmatmul.f32.gmra.mxu0 %v1087
        %v3226 = vpop.f32.mrf.mxu0
        %v3227 = vadd.f32 0.0, %v3226
        %3228 = vmatmul.f32.gmra.mxu0 %v1090
        %v3229 = vpop.f32.mrf.mxu0
        %v3230 = vadd.f32 0.0, %v3229
        %3231 = vmatmul.f32.gmra.mxu0 %v1093
        %v3232 = vpop.f32.mrf.mxu0
        %v3233 = vadd.f32 0.0, %v3232
        %3234 = vmatmul.f32.gmra.mxu0 %v1096
        %v3235 = vpop.f32.mrf.mxu0
        %v3236 = vadd.f32 0.0, %v3235
        %3237 = vmatmul.f32.gmra.mxu0 %v1099
        %v3238 = vpop.f32.mrf.mxu0
        %v3239 = vadd.f32 0.0, %v3238
        %3240 = vmatmul.f32.gmra.mxu0 %v1102
        %v3241 = vpop.f32.mrf.mxu0
        %v3242 = vadd.f32 0.0, %v3241
        %3243 = vmatmul.f32.gmra.mxu0 %v1105
        %v3244 = vpop.f32.mrf.mxu0
        %v3245 = vadd.f32 0.0, %v3244
        %3246 = vmatmul.f32.gmra.mxu0 %v1108
        %v3247 = vpop.f32.mrf.mxu0
        %v3248 = vadd.f32 0.0, %v3247
        %3249 = vmatmul.f32.gmra.mxu0 %v1111
        %v3250 = vpop.f32.mrf.mxu0
        %v3251 = vadd.f32 0.0, %v3250
        %3252 = vdwg.mxu0
        %v3254 = vsel %vm968, %v892, 0
        %v3257 = vsel %vm968, %v893, 0
        %v3260 = vsel %vm968, %v894, 0
        %v3263 = vsel %vm968, %v895, 0
        %3265 = vmatpush.msra.mxu0 0.0
        %3266 = vmatpush.msra.mxu0 0.0
        %3267 = vmatpush.msra.mxu0 0.0
        %3268 = vmatpush.msra.mxu0 0.0
        %3269 = vmatpush.msra.mxu0 0.0
        %3270 = vmatpush.msra.mxu0 0.0
        %3271 = vmatpush.msra.mxu0 0.0
        %3272 = vmatpush.msra.mxu0 0.0
        %3273 = vmatpush.msra.mxu0 %v3131
        %3274 = vmatpush.msra.mxu0 %v3128
        %3275 = vmatpush.msra.mxu0 %v3125
        %3276 = vmatpush.msra.mxu0 %v3122
        %3277 = vmatpush.msra.mxu0 %v3119
        %3278 = vmatpush.msra.mxu0 %v3116
        %3279 = vmatpush.msra.mxu0 %v3113
        %3280 = vmatpush.msra.mxu0 %v3110
        %3281 = vmatmul.f32.gmra.mxu0 %v3254
        %v3282 = vpop.f32.mrf.mxu0
        %v3283 = vadd.f32 0.0, %v3282
        %3284 = vmatmul.f32.gmra.mxu0 %v3257
        %v3285 = vpop.f32.mrf.mxu0
        %v3286 = vadd.f32 0.0, %v3285
        %3287 = vmatmul.f32.gmra.mxu0 %v3260
        %v3288 = vpop.f32.mrf.mxu0
        %v3289 = vadd.f32 0.0, %v3288
        %3290 = vmatmul.f32.gmra.mxu0 %v3263
        %v3291 = vpop.f32.mrf.mxu0
        %v3292 = vadd.f32 0.0, %v3291
        %3293 = vdwg.mxu0
        %3294 = vmatpush.msra.mxu0 0.0
        %3295 = vmatpush.msra.mxu0 0.0
        %3296 = vmatpush.msra.mxu0 0.0
        %3297 = vmatpush.msra.mxu0 0.0
        %3298 = vmatpush.msra.mxu0 0.0
        %3299 = vmatpush.msra.mxu0 0.0
        %3300 = vmatpush.msra.mxu0 0.0
        %3301 = vmatpush.msra.mxu0 0.0
        %3302 = vmatpush.msra.mxu0 %v3155
        %3303 = vmatpush.msra.mxu0 %v3152
        %3304 = vmatpush.msra.mxu0 %v3149
        %3305 = vmatpush.msra.mxu0 %v3146
        %3306 = vmatpush.msra.mxu0 %v3143
        %3307 = vmatpush.msra.mxu0 %v3140
        %3308 = vmatpush.msra.mxu0 %v3137
        %3309 = vmatpush.msra.mxu0 %v3134
        %3310 = vmatmul.f32.gmra.mxu0 %v3254
        %v3311 = vpop.f32.mrf.mxu0
        %v3312 = vadd.f32 0.0, %v3311
        %3313 = vmatmul.f32.gmra.mxu0 %v3257
        %v3314 = vpop.f32.mrf.mxu0
        %v3315 = vadd.f32 0.0, %v3314
        %3316 = vmatmul.f32.gmra.mxu0 %v3260
        %v3317 = vpop.f32.mrf.mxu0
        %v3318 = vadd.f32 0.0, %v3317
        %3319 = vmatmul.f32.gmra.mxu0 %v3263
        %v3320 = vpop.f32.mrf.mxu0
        %v3321 = vadd.f32 0.0, %v3320
        %3322 = vdwg.mxu0
        %3323 = vmatpush.msra.mxu0 0.0
        %3324 = vmatpush.msra.mxu0 0.0
        %3325 = vmatpush.msra.mxu0 0.0
        %3326 = vmatpush.msra.mxu0 0.0
        %3327 = vmatpush.msra.mxu0 0.0
        %3328 = vmatpush.msra.mxu0 0.0
        %3329 = vmatpush.msra.mxu0 0.0
        %3330 = vmatpush.msra.mxu0 0.0
        %3331 = vmatpush.msra.mxu0 %v3179
        %3332 = vmatpush.msra.mxu0 %v3176
        %3333 = vmatpush.msra.mxu0 %v3173
        %3334 = vmatpush.msra.mxu0 %v3170
        %3335 = vmatpush.msra.mxu0 %v3167
        %3336 = vmatpush.msra.mxu0 %v3164
        %3337 = vmatpush.msra.mxu0 %v3161
        %3338 = vmatpush.msra.mxu0 %v3158
        %3339 = vmatmul.f32.gmra.mxu0 %v3254
        %v3340 = vpop.f32.mrf.mxu0
        %v3341 = vadd.f32 0.0, %v3340
        %3342 = vmatmul.f32.gmra.mxu0 %v3257
        %v3343 = vpop.f32.mrf.mxu0
        %v3344 = vadd.f32 0.0, %v3343
        %3345 = vmatmul.f32.gmra.mxu0 %v3260
        %v3346 = vpop.f32.mrf.mxu0
        %v3347 = vadd.f32 0.0, %v3346
        %3348 = vmatmul.f32.gmra.mxu0 %v3263
        %v3349 = vpop.f32.mrf.mxu0
        %v3350 = vadd.f32 0.0, %v3349
        %3351 = vdwg.mxu0
        %3352 = vmatpush.msra.mxu0 0.0
        %3353 = vmatpush.msra.mxu0 0.0
        %3354 = vmatpush.msra.mxu0 0.0
        %3355 = vmatpush.msra.mxu0 0.0
        %3356 = vmatpush.msra.mxu0 0.0
        %3357 = vmatpush.msra.mxu0 0.0
        %3358 = vmatpush.msra.mxu0 0.0
        %3359 = vmatpush.msra.mxu0 0.0
        %3360 = vmatpush.msra.mxu0 %v3203
        %3361 = vmatpush.msra.mxu0 %v3200
        %3362 = vmatpush.msra.mxu0 %v3197
        %3363 = vmatpush.msra.mxu0 %v3194
        %3364 = vmatpush.msra.mxu0 %v3191
        %3365 = vmatpush.msra.mxu0 %v3188
        %3366 = vmatpush.msra.mxu0 %v3185
        %3367 = vmatpush.msra.mxu0 %v3182
        %3368 = vmatmul.f32.gmra.mxu0 %v3254
        %v3369 = vpop.f32.mrf.mxu0
        %v3370 = vadd.f32 0.0, %v3369
        %3371 = vmatmul.f32.gmra.mxu0 %v3257
        %v3372 = vpop.f32.mrf.mxu0
        %v3373 = vadd.f32 0.0, %v3372
        %3374 = vmatmul.f32.gmra.mxu0 %v3260
        %v3375 = vpop.f32.mrf.mxu0
        %v3376 = vadd.f32 0.0, %v3375
        %3377 = vmatmul.f32.gmra.mxu0 %v3263
        %v3378 = vpop.f32.mrf.mxu0
        %v3379 = vadd.f32 0.0, %v3378
        %3380 = vdwg.mxu0
        %3381 = vmatpush.msra.mxu0 0.0
        %3382 = vmatpush.msra.mxu0 0.0
        %3383 = vmatpush.msra.mxu0 0.0
        %3384 = vmatpush.msra.mxu0 0.0
        %3385 = vmatpush.msra.mxu0 0.0
        %3386 = vmatpush.msra.mxu0 0.0
        %3387 = vmatpush.msra.mxu0 0.0
        %3388 = vmatpush.msra.mxu0 0.0
        %3389 = vmatpush.msra.mxu0 %v3227
        %3390 = vmatpush.msra.mxu0 %v3224
        %3391 = vmatpush.msra.mxu0 %v3221
        %3392 = vmatpush.msra.mxu0 %v3218
        %3393 = vmatpush.msra.mxu0 %v3215
        %3394 = vmatpush.msra.mxu0 %v3212
        %3395 = vmatpush.msra.mxu0 %v3209
        %3396 = vmatpush.msra.mxu0 %v3206
        %3397 = vmatmul.f32.gmra.mxu0 %v3254
        %v3398 = vpop.f32.mrf.mxu0
        %v3399 = vadd.f32 0.0, %v3398
        %3400 = vmatmul.f32.gmra.mxu0 %v3257
        %v3401 = vpop.f32.mrf.mxu0
        %v3402 = vadd.f32 0.0, %v3401
        %3403 = vmatmul.f32.gmra.mxu0 %v3260
        %v3404 = vpop.f32.mrf.mxu0
        %v3405 = vadd.f32 0.0, %v3404
        %3406 = vmatmul.f32.gmra.mxu0 %v3263
        %v3407 = vpop.f32.mrf.mxu0
        %v3408 = vadd.f32 0.0, %v3407
        %3409 = vdwg.mxu0
        %3410 = vmatpush.msra.mxu0 0.0
        %3411 = vmatpush.msra.mxu0 0.0
        %3412 = vmatpush.msra.mxu0 0.0
        %3413 = vmatpush.msra.mxu0 0.0
        %3414 = vmatpush.msra.mxu0 0.0
        %3415 = vmatpush.msra.mxu0 0.0
        %3416 = vmatpush.msra.mxu0 0.0
        %3417 = vmatpush.msra.mxu0 0.0
        %3418 = vmatpush.msra.mxu0 %v3251
        %3419 = vmatpush.msra.mxu0 %v3248
        %3420 = vmatpush.msra.mxu0 %v3245
        %3421 = vmatpush.msra.mxu0 %v3242
        %3422 = vmatpush.msra.mxu0 %v3239
        %3423 = vmatpush.msra.mxu0 %v3236
        %3424 = vmatpush.msra.mxu0 %v3233
        %3425 = vmatpush.msra.mxu0 %v3230
        %3426 = vmatmul.f32.gmra.mxu0 %v3254
        %v3427 = vpop.f32.mrf.mxu0
        %v3428 = vadd.f32 0.0, %v3427
        %3429 = vmatmul.f32.gmra.mxu0 %v3257
        %v3430 = vpop.f32.mrf.mxu0
        %v3431 = vadd.f32 0.0, %v3430
        %3432 = vmatmul.f32.gmra.mxu0 %v3260
        %v3433 = vpop.f32.mrf.mxu0
        %v3434 = vadd.f32 0.0, %v3433
        %3435 = vmatmul.f32.gmra.mxu0 %v3263
        %v3436 = vpop.f32.mrf.mxu0
        %v3437 = vadd.f32 0.0, %v3436
        %3438 = vdwg.mxu0
        %v3439 = vld [vmem:[#allocation7] sm:$0xff]
        %v3440 = vld [vmem:[#allocation7 + $0x8] sm:$0xff]
        %v3441 = vld [vmem:[#allocation7 + $0x10] sm:$0xff]
        %v3442 = vld [vmem:[#allocation7 + $0x18] sm:$0xff]
        %v3443 = vld [vmem:[#allocation9] sm:$0xff]
        %v3444 = vld [vmem:[#allocation9 + $0x8] sm:$0xff]
        %v3445 = vld [vmem:[#allocation9 + $0x10] sm:$0xff]
        %v3446 = vld [vmem:[#allocation9 + $0x18] sm:$0x3f]
        %v3447 = vld [vmem:[%s8] sm:$0xff]
        %v3448 = vld [vmem:[%s8 + $0x8] sm:$0xff]
        %v3449 = vld [vmem:[%s8 + $0x10] sm:$0xff]
        %v3450 = vld [vmem:[%s8 + $0x18] sm:$0xff]
        %v3451 = vld [vmem:[%s9] sm:$0xff]
        %v3452 = vld [vmem:[%s9 + $0x8] sm:$0xff]
        %v3453 = vmul.f32 %v3283, %v3283
        %v3454 = vmul.f32 %v3286, %v3286
        %v3455 = vmul.f32 %v3289, %v3289
        %v3456 = vmul.f32 %v3292, %v3292
        %v3457 = vmul.f32 %v3312, %v3312
        %v3458 = vmul.f32 %v3315, %v3315
        %v3459 = vmul.f32 %v3318, %v3318
        %v3460 = vmul.f32 %v3321, %v3321
        %v3461 = vmul.f32 %v3341, %v3341
        %v3462 = vmul.f32 %v3344, %v3344
        %v3463 = vmul.f32 %v3347, %v3347
        %v3464 = vmul.f32 %v3350, %v3350
        %v3465 = vmul.f32 %v3370, %v3370
        %v3466 = vmul.f32 %v3373, %v3373
        %v3467 = vmul.f32 %v3376, %v3376
        %v3468 = vmul.f32 %v3379, %v3379
        %v3469 = vmul.f32 %v3399, %v3399
        %v3470 = vmul.f32 %v3402, %v3402
        %v3471 = vmul.f32 %v3405, %v3405
        %v3472 = vmul.f32 %v3408, %v3408
        %v3473 = vmul.f32 %v3428, %v3428
        %v3474 = vmul.f32 %v3431, %v3431
        %v3475 = vmul.f32 %v3434, %v3434
        %v3476 = vmul.f32 %v3437, %v3437
        %v3477 = vmul.f32 %v3283, %v3370
        %v3478 = vmul.f32 %v3286, %v3373
        %v3479 = vmul.f32 %v3289, %v3376
        %v3480 = vmul.f32 %v3292, %v3379
        %v3481 = vmul.f32 %v3312, %v3399
        %v3482 = vmul.f32 %v3315, %v3402
        %v3483 = vmul.f32 %v3318, %v3405
        %v3484 = vmul.f32 %v3321, %v3408
        %v3485 = vmul.f32 %v3341, %v3428
        %v3486 = vmul.f32 %v3344, %v3431
        %v3487 = vmul.f32 %v3347, %v3434
        %v3488 = vmul.f32 %v3350, %v3437
        %vm3489 = vcmask 261120
        %v3491 = vsel %vm3489, %v3283, 0
        %v3494 = vsel %vm3489, %v3286, 0
        %v3497 = vsel %vm3489, %v3289, 0
        %v3500 = vsel %vm3489, %v3292, 0
        %v3503 = vsel %vm3489, %v3312, 0
        %v3506 = vsel %vm3489, %v3315, 0
        %v3509 = vsel %vm3489, %v3318, 0
        %v3512 = vsel %vm3489, %v3321, 0
        %v3515 = vsel %vm3489, %v3341, 0
        %v3518 = vsel %vm3489, %v3344, 0
        %v3521 = vsel %vm3489, %v3347, 0
        %v3524 = vsel %vm3489, %v3350, 0
        %v3527 = vsel %vm3489, %v3370, 0
        %v3530 = vsel %vm3489, %v3373, 0
        %v3533 = vsel %vm3489, %v3376, 0
        %v3536 = vsel %vm3489, %v3379, 0
        %v3539 = vsel %vm3489, %v3399, 0
        %v3542 = vsel %vm3489, %v3402, 0
        %v3545 = vsel %vm3489, %v3405, 0
        %v3548 = vsel %vm3489, %v3408, 0
        %v3551 = vsel %vm3489, %v3428, 0
        %v3554 = vsel %vm3489, %v3431, 0
        %v3557 = vsel %vm3489, %v3434, 0
        %v3560 = vsel %vm3489, %v3437, 0
        %v3563 = vsel %vm3489, %v3453, 0
        %v3566 = vsel %vm3489, %v3454, 0
        %v3569 = vsel %vm3489, %v3455, 0
        %v3572 = vsel %vm3489, %v3456, 0
        %v3575 = vsel %vm3489, %v3457, 0
        %v3578 = vsel %vm3489, %v3458, 0
        %v3581 = vsel %vm3489, %v3459, 0
        %v3584 = vsel %vm3489, %v3460, 0
        %v3587 = vsel %vm3489, %v3461, 0
        %v3590 = vsel %vm3489, %v3462, 0
        %v3593 = vsel %vm3489, %v3463, 0
        %v3596 = vsel %vm3489, %v3464, 0
        %v3599 = vsel %vm3489, %v3465, 0
        %v3602 = vsel %vm3489, %v3466, 0
        %v3605 = vsel %vm3489, %v3467, 0
        %v3608 = vsel %vm3489, %v3468, 0
        %v3611 = vsel %vm3489, %v3469, 0
        %v3614 = vsel %vm3489, %v3470, 0
        %v3617 = vsel %vm3489, %v3471, 0
        %v3620 = vsel %vm3489, %v3472, 0
        %v3623 = vsel %vm3489, %v3473, 0
        %v3626 = vsel %vm3489, %v3474, 0
        %v3629 = vsel %vm3489, %v3475, 0
        %v3632 = vsel %vm3489, %v3476, 0
        %v3635 = vsel %vm3489, %v3477, 0
        %v3638 = vsel %vm3489, %v3478, 0
        %v3641 = vsel %vm3489, %v3479, 0
        %v3644 = vsel %vm3489, %v3480, 0
        %v3647 = vsel %vm3489, %v3481, 0
        %v3650 = vsel %vm3489, %v3482, 0
        %v3653 = vsel %vm3489, %v3483, 0
        %v3656 = vsel %vm3489, %v3484, 0
        %v3659 = vsel %vm3489, %v3485, 0
        %v3662 = vsel %vm3489, %v3486, 0
        %v3665 = vsel %vm3489, %v3487, 0
        %v3668 = vsel %vm3489, %v3488, 0
        %3670 = vmatpush.msra.mxu0 0.0
        %3671 = vmatpush.msra.mxu0 0.0
        %3672 = vmatpush.msra.mxu0 0.0
        %3673 = vmatpush.msra.mxu0 0.0
        %3674 = vmatpush.msra.mxu0 0.0
        %3675 = vmatpush.msra.mxu0 0.0
        %3676 = vmatpush.msra.mxu0 0.0
        %3677 = vmatpush.msra.mxu0 0.0
        %3678 = vmatpush.msra.mxu0 0.0
        %3679 = vmatpush.msra.mxu0 0.0
        %3680 = vmatpush.msra.mxu0 0.0
        %3681 = vmatpush.msra.mxu0 0.0
        %3682 = vmatpush.msra.mxu0 %v3442
        %3683 = vmatpush.msra.mxu0 %v3441
        %3684 = vmatpush.msra.mxu0 %v3440
        %3685 = vmatpush.msra.mxu0 %v3439
        %3686 = vmatmul.f32.gmra.mxu0 %v3491
        %v3687 = vpop.f32.mrf.mxu0
        %v3688 = vadd.f32 0.0, %v3687
        %3689 = vmatmul.f32.gmra.mxu0 %v3494
        %v3690 = vpop.f32.mrf.mxu0
        %v3691 = vadd.f32 0.0, %v3690
        %3692 = vmatmul.f32.gmra.mxu0 %v3497
        %v3693 = vpop.f32.mrf.mxu0
        %v3694 = vadd.f32 0.0, %v3693
        %3695 = vmatmul.f32.gmra.mxu0 %v3500
        %v3696 = vpop.f32.mrf.mxu0
        %v3697 = vadd.f32 0.0, %v3696
        %3698 = vmatmul.f32.gmra.mxu0 %v3503
        %v3699 = vpop.f32.mrf.mxu0
        %v3700 = vadd.f32 0.0, %v3699
        %3701 = vmatmul.f32.gmra.mxu0 %v3506
        %v3702 = vpop.f32.mrf.mxu0
        %v3703 = vadd.f32 0.0, %v3702
        %3704 = vmatmul.f32.gmra.mxu0 %v3509
        %v3705 = vpop.f32.mrf.mxu0
        %v3706 = vadd.f32 0.0, %v3705
        %3707 = vmatmul.f32.gmra.mxu0 %v3512
        %v3708 = vpop.f32.mrf.mxu0
        %v3709 = vadd.f32 0.0, %v3708
        %3710 = vmatmul.f32.gmra.mxu0 %v3515
        %v3711 = vpop.f32.mrf.mxu0
        %v3712 = vadd.f32 0.0, %v3711
        %3713 = vmatmul.f32.gmra.mxu0 %v3518
        %v3714 = vpop.f32.mrf.mxu0
        %v3715 = vadd.f32 0.0, %v3714
        %3716 = vmatmul.f32.gmra.mxu0 %v3521
        %v3717 = vpop.f32.mrf.mxu0
        %v3718 = vadd.f32 0.0, %v3717
        %3719 = vmatmul.f32.gmra.mxu0 %v3524
        %v3720 = vpop.f32.mrf.mxu0
        %v3721 = vadd.f32 0.0, %v3720
        %3722 = vmatmul.f32.gmra.mxu0 %v3527
        %v3723 = vpop.f32.mrf.mxu0
        %v3724 = vadd.f32 0.0, %v3723
        %3725 = vmatmul.f32.gmra.mxu0 %v3530
        %v3726 = vpop.f32.mrf.mxu0
        %v3727 = vadd.f32 0.0, %v3726
        %3728 = vmatmul.f32.gmra.mxu0 %v3533
        %v3729 = vpop.f32.mrf.mxu0
        %v3730 = vadd.f32 0.0, %v3729
        %3731 = vmatmul.f32.gmra.mxu0 %v3536
        %v3732 = vpop.f32.mrf.mxu0
        %v3733 = vadd.f32 0.0, %v3732
        %3734 = vmatmul.f32.gmra.mxu0 %v3539
        %v3735 = vpop.f32.mrf.mxu0
        %v3736 = vadd.f32 0.0, %v3735
        %3737 = vmatmul.f32.gmra.mxu0 %v3542
        %v3738 = vpop.f32.mrf.mxu0
        %v3739 = vadd.f32 0.0, %v3738
        %3740 = vmatmul.f32.gmra.mxu0 %v3545
        %v3741 = vpop.f32.mrf.mxu0
        %v3742 = vadd.f32 0.0, %v3741
        %3743 = vmatmul.f32.gmra.mxu0 %v3548
        %v3744 = vpop.f32.mrf.mxu0
        %v3745 = vadd.f32 0.0, %v3744
        %3746 = vmatmul.f32.gmra.mxu0 %v3551
        %v3747 = vpop.f32.mrf.mxu0
        %v3748 = vadd.f32 0.0, %v3747
        %3749 = vmatmul.f32.gmra.mxu0 %v3554
        %v3750 = vpop.f32.mrf.mxu0
        %v3751 = vadd.f32 0.0, %v3750
        %3752 = vmatmul.f32.gmra.mxu0 %v3557
        %v3753 = vpop.f32.mrf.mxu0
        %v3754 = vadd.f32 0.0, %v3753
        %3755 = vmatmul.f32.gmra.mxu0 %v3560
        %v3756 = vpop.f32.mrf.mxu0
        %v3757 = vadd.f32 0.0, %v3756
        %3758 = vmatmul.f32.gmra.mxu0 %v3563
        %v3759 = vpop.f32.mrf.mxu0
        %v3760 = vadd.f32 0.0, %v3759
        %3761 = vmatmul.f32.gmra.mxu0 %v3566
        %v3762 = vpop.f32.mrf.mxu0
        %v3763 = vadd.f32 0.0, %v3762
        %3764 = vmatmul.f32.gmra.mxu0 %v3569
        %v3765 = vpop.f32.mrf.mxu0
        %v3766 = vadd.f32 0.0, %v3765
        %3767 = vmatmul.f32.gmra.mxu0 %v3572
        %v3768 = vpop.f32.mrf.mxu0
        %v3769 = vadd.f32 0.0, %v3768
        %3770 = vmatmul.f32.gmra.mxu0 %v3575
        %v3771 = vpop.f32.mrf.mxu0
        %v3772 = vadd.f32 0.0, %v3771
        %3773 = vmatmul.f32.gmra.mxu0 %v3578
        %v3774 = vpop.f32.mrf.mxu0
        %v3775 = vadd.f32 0.0, %v3774
        %3776 = vmatmul.f32.gmra.mxu0 %v3581
        %v3777 = vpop.f32.mrf.mxu0
        %v3778 = vadd.f32 0.0, %v3777
        %3779 = vmatmul.f32.gmra.mxu0 %v3584
        %v3780 = vpop.f32.mrf.mxu0
        %v3781 = vadd.f32 0.0, %v3780
        %3782 = vmatmul.f32.gmra.mxu0 %v3587
        %v3783 = vpop.f32.mrf.mxu0
        %v3784 = vadd.f32 0.0, %v3783
        %3785 = vmatmul.f32.gmra.mxu0 %v3590
        %v3786 = vpop.f32.mrf.mxu0
        %v3787 = vadd.f32 0.0, %v3786
        %3788 = vmatmul.f32.gmra.mxu0 %v3593
        %v3789 = vpop.f32.mrf.mxu0
        %v3790 = vadd.f32 0.0, %v3789
        %3791 = vmatmul.f32.gmra.mxu0 %v3596
        %v3792 = vpop.f32.mrf.mxu0
        %v3793 = vadd.f32 0.0, %v3792
        %3794 = vmatmul.f32.gmra.mxu0 %v3599
        %v3795 = vpop.f32.mrf.mxu0
        %v3796 = vadd.f32 0.0, %v3795
        %3797 = vmatmul.f32.gmra.mxu0 %v3602
        %v3798 = vpop.f32.mrf.mxu0
        %v3799 = vadd.f32 0.0, %v3798
        %3800 = vmatmul.f32.gmra.mxu0 %v3605
        %v3801 = vpop.f32.mrf.mxu0
        %v3802 = vadd.f32 0.0, %v3801
        %3803 = vmatmul.f32.gmra.mxu0 %v3608
        %v3804 = vpop.f32.mrf.mxu0
        %v3805 = vadd.f32 0.0, %v3804
        %3806 = vmatmul.f32.gmra.mxu0 %v3611
        %v3807 = vpop.f32.mrf.mxu0
        %v3808 = vadd.f32 0.0, %v3807
        %3809 = vmatmul.f32.gmra.mxu0 %v3614
        %v3810 = vpop.f32.mrf.mxu0
        %v3811 = vadd.f32 0.0, %v3810
        %3812 = vmatmul.f32.gmra.mxu0 %v3617
        %v3813 = vpop.f32.mrf.mxu0
        %v3814 = vadd.f32 0.0, %v3813
        %3815 = vmatmul.f32.gmra.mxu0 %v3620
        %v3816 = vpop.f32.mrf.mxu0
        %v3817 = vadd.f32 0.0, %v3816
        %3818 = vmatmul.f32.gmra.mxu0 %v3623
        %v3819 = vpop.f32.mrf.mxu0
        %v3820 = vadd.f32 0.0, %v3819
        %3821 = vmatmul.f32.gmra.mxu0 %v3626
        %v3822 = vpop.f32.mrf.mxu0
        %v3823 = vadd.f32 0.0, %v3822
        %3824 = vmatmul.f32.gmra.mxu0 %v3629
        %v3825 = vpop.f32.mrf.mxu0
        %v3826 = vadd.f32 0.0, %v3825
        %3827 = vmatmul.f32.gmra.mxu0 %v3632
        %v3828 = vpop.f32.mrf.mxu0
        %v3829 = vadd.f32 0.0, %v3828
        %3830 = vmatmul.f32.gmra.mxu0 %v3635
        %v3831 = vpop.f32.mrf.mxu0
        %v3832 = vadd.f32 0.0, %v3831
        %3833 = vmatmul.f32.gmra.mxu0 %v3638
        %v3834 = vpop.f32.mrf.mxu0
        %v3835 = vadd.f32 0.0, %v3834
        %3836 = vmatmul.f32.gmra.mxu0 %v3641
        %v3837 = vpop.f32.mrf.mxu0
        %v3838 = vadd.f32 0.0, %v3837
        %3839 = vmatmul.f32.gmra.mxu0 %v3644
        %v3840 = vpop.f32.mrf.mxu0
        %v3841 = vadd.f32 0.0, %v3840
        %3842 = vmatmul.f32.gmra.mxu0 %v3647
        %v3843 = vpop.f32.mrf.mxu0
        %v3844 = vadd.f32 0.0, %v3843
        %3845 = vmatmul.f32.gmra.mxu0 %v3650
        %v3846 = vpop.f32.mrf.mxu0
        %v3847 = vadd.f32 0.0, %v3846
        %3848 = vmatmul.f32.gmra.mxu0 %v3653
        %v3849 = vpop.f32.mrf.mxu0
        %v3850 = vadd.f32 0.0, %v3849
        %3851 = vmatmul.f32.gmra.mxu0 %v3656
        %v3852 = vpop.f32.mrf.mxu0
        %v3853 = vadd.f32 0.0, %v3852
        %3854 = vmatmul.f32.gmra.mxu0 %v3659
        %v3855 = vpop.f32.mrf.mxu0
        %v3856 = vadd.f32 0.0, %v3855
        %3857 = vmatmul.f32.gmra.mxu0 %v3662
        %v3858 = vpop.f32.mrf.mxu0
        %v3859 = vadd.f32 0.0, %v3858
        %3860 = vmatmul.f32.gmra.mxu0 %v3665
        %v3861 = vpop.f32.mrf.mxu0
        %v3862 = vadd.f32 0.0, %v3861
        %3863 = vmatmul.f32.gmra.mxu0 %v3668
        %v3864 = vpop.f32.mrf.mxu0
        %v3865 = vadd.f32 0.0, %v3864
        %3866 = vdwg.mxu0
        %v3868 = vsel %vm3489, %v3443, 0
        %v3871 = vsel %vm3489, %v3444, 0
        %v3874 = vsel %vm3489, %v3445, 0
        %v3877 = vsel %vm3489, %v3446, 0
        %3879 = vmatpush.msra.mxu0 0.0
        %3880 = vmatpush.msra.mxu0 0.0
        %3881 = vmatpush.msra.mxu0 0.0
        %3882 = vmatpush.msra.mxu0 0.0
        %3883 = vmatpush.msra.mxu0 0.0
        %3884 = vmatpush.msra.mxu0 0.0
        %3885 = vmatpush.msra.mxu0 0.0
        %3886 = vmatpush.msra.mxu0 0.0
        %3887 = vmatpush.msra.mxu0 0.0
        %3888 = vmatpush.msra.mxu0 0.0
        %3889 = vmatpush.msra.mxu0 0.0
        %3890 = vmatpush.msra.mxu0 0.0
        %3891 = vmatpush.msra.mxu0 %v3697
        %3892 = vmatpush.msra.mxu0 %v3694
        %3893 = vmatpush.msra.mxu0 %v3691
        %3894 = vmatpush.msra.mxu0 %v3688
        %3895 = vmatmul.f32.gmra.mxu0 %v3868
        %v3896 = vpop.f32.mrf.mxu0
        %v3897 = vadd.f32 0.0, %v3896
        %3898 = vmatmul.f32.gmra.mxu0 %v3871
        %v3899 = vpop.f32.mrf.mxu0
        %v3900 = vadd.f32 0.0, %v3899
        %3901 = vmatmul.f32.gmra.mxu0 %v3874
        %v3902 = vpop.f32.mrf.mxu0
        %v3903 = vadd.f32 0.0, %v3902
        %3904 = vmatmul.f32.gmra.mxu0 %v3877
        %v3905 = vpop.f32.mrf.mxu0
        %v3906 = vadd.f32 0.0, %v3905
        %3907 = vdwg.mxu0
        %3908 = vmatpush.msra.mxu0 0.0
        %3909 = vmatpush.msra.mxu0 0.0
        %3910 = vmatpush.msra.mxu0 0.0
        %3911 = vmatpush.msra.mxu0 0.0
        %3912 = vmatpush.msra.mxu0 0.0
        %3913 = vmatpush.msra.mxu0 0.0
        %3914 = vmatpush.msra.mxu0 0.0
        %3915 = vmatpush.msra.mxu0 0.0
        %3916 = vmatpush.msra.mxu0 0.0
        %3917 = vmatpush.msra.mxu0 0.0
        %3918 = vmatpush.msra.mxu0 0.0
        %3919 = vmatpush.msra.mxu0 0.0
        %3920 = vmatpush.msra.mxu0 %v3709
        %3921 = vmatpush.msra.mxu0 %v3706
        %3922 = vmatpush.msra.mxu0 %v3703
        %3923 = vmatpush.msra.mxu0 %v3700
        %3924 = vmatmul.f32.gmra.mxu0 %v3868
        %v3925 = vpop.f32.mrf.mxu0
        %v3926 = vadd.f32 0.0, %v3925
        %3927 = vmatmul.f32.gmra.mxu0 %v3871
        %v3928 = vpop.f32.mrf.mxu0
        %v3929 = vadd.f32 0.0, %v3928
        %3930 = vmatmul.f32.gmra.mxu0 %v3874
        %v3931 = vpop.f32.mrf.mxu0
        %v3932 = vadd.f32 0.0, %v3931
        %3933 = vmatmul.f32.gmra.mxu0 %v3877
        %v3934 = vpop.f32.mrf.mxu0
        %v3935 = vadd.f32 0.0, %v3934
        %3936 = vdwg.mxu0
        %3937 = vmatpush.msra.mxu0 0.0
        %3938 = vmatpush.msra.mxu0 0.0
        %3939 = vmatpush.msra.mxu0 0.0
        %3940 = vmatpush.msra.mxu0 0.0
        %3941 = vmatpush.msra.mxu0 0.0
        %3942 = vmatpush.msra.mxu0 0.0
        %3943 = vmatpush.msra.mxu0 0.0
        %3944 = vmatpush.msra.mxu0 0.0
        %3945 = vmatpush.msra.mxu0 0.0
        %3946 = vmatpush.msra.mxu0 0.0
        %3947 = vmatpush.msra.mxu0 0.0
        %3948 = vmatpush.msra.mxu0 0.0
        %3949 = vmatpush.msra.mxu0 %v3721
        %3950 = vmatpush.msra.mxu0 %v3718
        %3951 = vmatpush.msra.mxu0 %v3715
        %3952 = vmatpush.msra.mxu0 %v3712
        %3953 = vmatmul.f32.gmra.mxu0 %v3868
        %v3954 = vpop.f32.mrf.mxu0
        %v3955 = vadd.f32 0.0, %v3954
        %3956 = vmatmul.f32.gmra.mxu0 %v3871
        %v3957 = vpop.f32.mrf.mxu0
        %v3958 = vadd.f32 0.0, %v3957
        %3959 = vmatmul.f32.gmra.mxu0 %v3874
        %v3960 = vpop.f32.mrf.mxu0
        %v3961 = vadd.f32 0.0, %v3960
        %3962 = vmatmul.f32.gmra.mxu0 %v3877
        %v3963 = vpop.f32.mrf.mxu0
        %v3964 = vadd.f32 0.0, %v3963
        %3965 = vdwg.mxu0
        %3966 = vmatpush.msra.mxu0 0.0
        %3967 = vmatpush.msra.mxu0 0.0
        %3968 = vmatpush.msra.mxu0 0.0
        %3969 = vmatpush.msra.mxu0 0.0
        %3970 = vmatpush.msra.mxu0 0.0
        %3971 = vmatpush.msra.mxu0 0.0
        %3972 = vmatpush.msra.mxu0 0.0
        %3973 = vmatpush.msra.mxu0 0.0
        %3974 = vmatpush.msra.mxu0 0.0
        %3975 = vmatpush.msra.mxu0 0.0
        %3976 = vmatpush.msra.mxu0 0.0
        %3977 = vmatpush.msra.mxu0 0.0
        %3978 = vmatpush.msra.mxu0 %v3733
        %3979 = vmatpush.msra.mxu0 %v3730
        %3980 = vmatpush.msra.mxu0 %v3727
        %3981 = vmatpush.msra.mxu0 %v3724
        %3982 = vmatmul.f32.gmra.mxu0 %v3868
        %v3983 = vpop.f32.mrf.mxu0
        %v3984 = vadd.f32 0.0, %v3983
        %3985 = vmatmul.f32.gmra.mxu0 %v3871
        %v3986 = vpop.f32.mrf.mxu0
        %v3987 = vadd.f32 0.0, %v3986
        %3988 = vmatmul.f32.gmra.mxu0 %v3874
        %v3989 = vpop.f32.mrf.mxu0
        %v3990 = vadd.f32 0.0, %v3989
        %3991 = vmatmul.f32.gmra.mxu0 %v3877
        %v3992 = vpop.f32.mrf.mxu0
        %v3993 = vadd.f32 0.0, %v3992
        %3994 = vdwg.mxu0
        %3995 = vmatpush.msra.mxu0 0.0
        %3996 = vmatpush.msra.mxu0 0.0
        %3997 = vmatpush.msra.mxu0 0.0
        %3998 = vmatpush.msra.mxu0 0.0
        %3999 = vmatpush.msra.mxu0 0.0
        %4000 = vmatpush.msra.mxu0 0.0
        %4001 = vmatpush.msra.mxu0 0.0
        %4002 = vmatpush.msra.mxu0 0.0
        %4003 = vmatpush.msra.mxu0 0.0
        %4004 = vmatpush.msra.mxu0 0.0
        %4005 = vmatpush.msra.mxu0 0.0
        %4006 = vmatpush.msra.mxu0 0.0
        %4007 = vmatpush.msra.mxu0 %v3745
        %4008 = vmatpush.msra.mxu0 %v3742
        %4009 = vmatpush.msra.mxu0 %v3739
        %4010 = vmatpush.msra.mxu0 %v3736
        %4011 = vmatmul.f32.gmra.mxu0 %v3868
        %v4012 = vpop.f32.mrf.mxu0
        %v4013 = vadd.f32 0.0, %v4012
        %4014 = vmatmul.f32.gmra.mxu0 %v3871
        %v4015 = vpop.f32.mrf.mxu0
        %v4016 = vadd.f32 0.0, %v4015
        %4017 = vmatmul.f32.gmra.mxu0 %v3874
        %v4018 = vpop.f32.mrf.mxu0
        %v4019 = vadd.f32 0.0, %v4018
        %4020 = vmatmul.f32.gmra.mxu0 %v3877
        %v4021 = vpop.f32.mrf.mxu0
        %v4022 = vadd.f32 0.0, %v4021
        %4023 = vdwg.mxu0
        %4024 = vmatpush.msra.mxu0 0.0
        %4025 = vmatpush.msra.mxu0 0.0
        %4026 = vmatpush.msra.mxu0 0.0
        %4027 = vmatpush.msra.mxu0 0.0
        %4028 = vmatpush.msra.mxu0 0.0
        %4029 = vmatpush.msra.mxu0 0.0
        %4030 = vmatpush.msra.mxu0 0.0
        %4031 = vmatpush.msra.mxu0 0.0
        %4032 = vmatpush.msra.mxu0 0.0
        %4033 = vmatpush.msra.mxu0 0.0
        %4034 = vmatpush.msra.mxu0 0.0
        %4035 = vmatpush.msra.mxu0 0.0
        %4036 = vmatpush.msra.mxu0 %v3757
        %4037 = vmatpush.msra.mxu0 %v3754
        %4038 = vmatpush.msra.mxu0 %v3751
        %4039 = vmatpush.msra.mxu0 %v3748
        %4040 = vmatmul.f32.gmra.mxu0 %v3868
        %v4041 = vpop.f32.mrf.mxu0
        %v4042 = vadd.f32 0.0, %v4041
        %4043 = vmatmul.f32.gmra.mxu0 %v3871
        %v4044 = vpop.f32.mrf.mxu0
        %v4045 = vadd.f32 0.0, %v4044
        %4046 = vmatmul.f32.gmra.mxu0 %v3874
        %v4047 = vpop.f32.mrf.mxu0
        %v4048 = vadd.f32 0.0, %v4047
        %4049 = vmatmul.f32.gmra.mxu0 %v3877
        %v4050 = vpop.f32.mrf.mxu0
        %v4051 = vadd.f32 0.0, %v4050
        %4052 = vdwg.mxu0
        %4053 = vmatpush.msra.mxu0 0.0
        %4054 = vmatpush.msra.mxu0 0.0
        %4055 = vmatpush.msra.mxu0 0.0
        %4056 = vmatpush.msra.mxu0 0.0
        %4057 = vmatpush.msra.mxu0 0.0
        %4058 = vmatpush.msra.mxu0 0.0
        %4059 = vmatpush.msra.mxu0 0.0
        %4060 = vmatpush.msra.mxu0 0.0
        %4061 = vmatpush.msra.mxu0 0.0
        %4062 = vmatpush.msra.mxu0 0.0
        %4063 = vmatpush.msra.mxu0 0.0
        %4064 = vmatpush.msra.mxu0 0.0
        %4065 = vmatpush.msra.mxu0 %v3769
        %4066 = vmatpush.msra.mxu0 %v3766
        %4067 = vmatpush.msra.mxu0 %v3763
        %4068 = vmatpush.msra.mxu0 %v3760
        %4069 = vmatmul.f32.gmra.mxu0 %v3868
        %v4070 = vpop.f32.mrf.mxu0
        %v4071 = vadd.f32 0.0, %v4070
        %4072 = vmatmul.f32.gmra.mxu0 %v3871
        %v4073 = vpop.f32.mrf.mxu0
        %v4074 = vadd.f32 0.0, %v4073
        %4075 = vmatmul.f32.gmra.mxu0 %v3874
        %v4076 = vpop.f32.mrf.mxu0
        %v4077 = vadd.f32 0.0, %v4076
        %4078 = vmatmul.f32.gmra.mxu0 %v3877
        %v4079 = vpop.f32.mrf.mxu0
        %v4080 = vadd.f32 0.0, %v4079
        %4081 = vdwg.mxu0
        %4082 = vmatpush.msra.mxu0 0.0
        %4083 = vmatpush.msra.mxu0 0.0
        %4084 = vmatpush.msra.mxu0 0.0
        %4085 = vmatpush.msra.mxu0 0.0
        %4086 = vmatpush.msra.mxu0 0.0
        %4087 = vmatpush.msra.mxu0 0.0
        %4088 = vmatpush.msra.mxu0 0.0
        %4089 = vmatpush.msra.mxu0 0.0
        %4090 = vmatpush.msra.mxu0 0.0
        %4091 = vmatpush.msra.mxu0 0.0
        %4092 = vmatpush.msra.mxu0 0.0
        %4093 = vmatpush.msra.mxu0 0.0
        %4094 = vmatpush.msra.mxu0 %v3781
        %4095 = vmatpush.msra.mxu0 %v3778
        %4096 = vmatpush.msra.mxu0 %v3775
        %4097 = vmatpush.msra.mxu0 %v3772
        %4098 = vmatmul.f32.gmra.mxu0 %v3868
        %v4099 = vpop.f32.mrf.mxu0
        %v4100 = vadd.f32 0.0, %v4099
        %4101 = vmatmul.f32.gmra.mxu0 %v3871
        %v4102 = vpop.f32.mrf.mxu0
        %v4103 = vadd.f32 0.0, %v4102
        %4104 = vmatmul.f32.gmra.mxu0 %v3874
        %v4105 = vpop.f32.mrf.mxu0
        %v4106 = vadd.f32 0.0, %v4105
        %4107 = vmatmul.f32.gmra.mxu0 %v3877
        %v4108 = vpop.f32.mrf.mxu0
        %v4109 = vadd.f32 0.0, %v4108
        %4110 = vdwg.mxu0
        %4111 = vmatpush.msra.mxu0 0.0
        %4112 = vmatpush.msra.mxu0 0.0
        %4113 = vmatpush.msra.mxu0 0.0
        %4114 = vmatpush.msra.mxu0 0.0
        %4115 = vmatpush.msra.mxu0 0.0
        %4116 = vmatpush.msra.mxu0 0.0
        %4117 = vmatpush.msra.mxu0 0.0
        %4118 = vmatpush.msra.mxu0 0.0
        %4119 = vmatpush.msra.mxu0 0.0
        %4120 = vmatpush.msra.mxu0 0.0
        %4121 = vmatpush.msra.mxu0 0.0
        %4122 = vmatpush.msra.mxu0 0.0
        %4123 = vmatpush.msra.mxu0 %v3793
        %4124 = vmatpush.msra.mxu0 %v3790
        %4125 = vmatpush.msra.mxu0 %v3787
        %4126 = vmatpush.msra.mxu0 %v3784
        %4127 = vmatmul.f32.gmra.mxu0 %v3868
        %v4128 = vpop.f32.mrf.mxu0
        %v4129 = vadd.f32 0.0, %v4128
        %4130 = vmatmul.f32.gmra.mxu0 %v3871
        %v4131 = vpop.f32.mrf.mxu0
        %v4132 = vadd.f32 0.0, %v4131
        %4133 = vmatmul.f32.gmra.mxu0 %v3874
        %v4134 = vpop.f32.mrf.mxu0
        %v4135 = vadd.f32 0.0, %v4134
        %4136 = vmatmul.f32.gmra.mxu0 %v3877
        %v4137 = vpop.f32.mrf.mxu0
        %v4138 = vadd.f32 0.0, %v4137
        %4139 = vdwg.mxu0
        %4140 = vmatpush.msra.mxu0 0.0
        %4141 = vmatpush.msra.mxu0 0.0
        %4142 = vmatpush.msra.mxu0 0.0
        %4143 = vmatpush.msra.mxu0 0.0
        %4144 = vmatpush.msra.mxu0 0.0
        %4145 = vmatpush.msra.mxu0 0.0
        %4146 = vmatpush.msra.mxu0 0.0
        %4147 = vmatpush.msra.mxu0 0.0
        %4148 = vmatpush.msra.mxu0 0.0
        %4149 = vmatpush.msra.mxu0 0.0
        %4150 = vmatpush.msra.mxu0 0.0
        %4151 = vmatpush.msra.mxu0 0.0
        %4152 = vmatpush.msra.mxu0 %v3805
        %4153 = vmatpush.msra.mxu0 %v3802
        %4154 = vmatpush.msra.mxu0 %v3799
        %4155 = vmatpush.msra.mxu0 %v3796
        %4156 = vmatmul.f32.gmra.mxu0 %v3868
        %v4157 = vpop.f32.mrf.mxu0
        %v4158 = vadd.f32 0.0, %v4157
        %4159 = vmatmul.f32.gmra.mxu0 %v3871
        %v4160 = vpop.f32.mrf.mxu0
        %v4161 = vadd.f32 0.0, %v4160
        %4162 = vmatmul.f32.gmra.mxu0 %v3874
        %v4163 = vpop.f32.mrf.mxu0
        %v4164 = vadd.f32 0.0, %v4163
        %4165 = vmatmul.f32.gmra.mxu0 %v3877
        %v4166 = vpop.f32.mrf.mxu0
        %v4167 = vadd.f32 0.0, %v4166
        %4168 = vdwg.mxu0
        %4169 = vmatpush.msra.mxu0 0.0
        %4170 = vmatpush.msra.mxu0 0.0
        %4171 = vmatpush.msra.mxu0 0.0
        %4172 = vmatpush.msra.mxu0 0.0
        %4173 = vmatpush.msra.mxu0 0.0
        %4174 = vmatpush.msra.mxu0 0.0
        %4175 = vmatpush.msra.mxu0 0.0
        %4176 = vmatpush.msra.mxu0 0.0
        %4177 = vmatpush.msra.mxu0 0.0
        %4178 = vmatpush.msra.mxu0 0.0
        %4179 = vmatpush.msra.mxu0 0.0
        %4180 = vmatpush.msra.mxu0 0.0
        %4181 = vmatpush.msra.mxu0 %v3817
        %4182 = vmatpush.msra.mxu0 %v3814
        %4183 = vmatpush.msra.mxu0 %v3811
        %4184 = vmatpush.msra.mxu0 %v3808
        %4185 = vmatmul.f32.gmra.mxu0 %v3868
        %v4186 = vpop.f32.mrf.mxu0
        %v4187 = vadd.f32 0.0, %v4186
        %4188 = vmatmul.f32.gmra.mxu0 %v3871
        %v4189 = vpop.f32.mrf.mxu0
        %v4190 = vadd.f32 0.0, %v4189
        %4191 = vmatmul.f32.gmra.mxu0 %v3874
        %v4192 = vpop.f32.mrf.mxu0
        %v4193 = vadd.f32 0.0, %v4192
        %4194 = vmatmul.f32.gmra.mxu0 %v3877
        %v4195 = vpop.f32.mrf.mxu0
        %v4196 = vadd.f32 0.0, %v4195
        %4197 = vdwg.mxu0
        %4198 = vmatpush.msra.mxu0 0.0
        %4199 = vmatpush.msra.mxu0 0.0
        %4200 = vmatpush.msra.mxu0 0.0
        %4201 = vmatpush.msra.mxu0 0.0
        %4202 = vmatpush.msra.mxu0 0.0
        %4203 = vmatpush.msra.mxu0 0.0
        %4204 = vmatpush.msra.mxu0 0.0
        %4205 = vmatpush.msra.mxu0 0.0
        %4206 = vmatpush.msra.mxu0 0.0
        %4207 = vmatpush.msra.mxu0 0.0
        %4208 = vmatpush.msra.mxu0 0.0
        %4209 = vmatpush.msra.mxu0 0.0
        %4210 = vmatpush.msra.mxu0 %v3829
        %4211 = vmatpush.msra.mxu0 %v3826
        %4212 = vmatpush.msra.mxu0 %v3823
        %4213 = vmatpush.msra.mxu0 %v3820
        %4214 = vmatmul.f32.gmra.mxu0 %v3868
        %v4215 = vpop.f32.mrf.mxu0
        %v4216 = vadd.f32 0.0, %v4215
        %4217 = vmatmul.f32.gmra.mxu0 %v3871
        %v4218 = vpop.f32.mrf.mxu0
        %v4219 = vadd.f32 0.0, %v4218
        %4220 = vmatmul.f32.gmra.mxu0 %v3874
        %v4221 = vpop.f32.mrf.mxu0
        %v4222 = vadd.f32 0.0, %v4221
        %4223 = vmatmul.f32.gmra.mxu0 %v3877
        %v4224 = vpop.f32.mrf.mxu0
        %v4225 = vadd.f32 0.0, %v4224
        %4226 = vdwg.mxu0
        %4227 = vmatpush.msra.mxu0 0.0
        %4228 = vmatpush.msra.mxu0 0.0
        %4229 = vmatpush.msra.mxu0 0.0
        %4230 = vmatpush.msra.mxu0 0.0
        %4231 = vmatpush.msra.mxu0 0.0
        %4232 = vmatpush.msra.mxu0 0.0
        %4233 = vmatpush.msra.mxu0 0.0
        %4234 = vmatpush.msra.mxu0 0.0
        %4235 = vmatpush.msra.mxu0 0.0
        %4236 = vmatpush.msra.mxu0 0.0
        %4237 = vmatpush.msra.mxu0 0.0
        %4238 = vmatpush.msra.mxu0 0.0
        %4239 = vmatpush.msra.mxu0 %v3841
        %4240 = vmatpush.msra.mxu0 %v3838
        %4241 = vmatpush.msra.mxu0 %v3835
        %4242 = vmatpush.msra.mxu0 %v3832
        %4243 = vmatmul.f32.gmra.mxu0 %v3868
        %v4244 = vpop.f32.mrf.mxu0
        %v4245 = vadd.f32 0.0, %v4244
        %4246 = vmatmul.f32.gmra.mxu0 %v3871
        %v4247 = vpop.f32.mrf.mxu0
        %v4248 = vadd.f32 0.0, %v4247
        %4249 = vmatmul.f32.gmra.mxu0 %v3874
        %v4250 = vpop.f32.mrf.mxu0
        %v4251 = vadd.f32 0.0, %v4250
        %4252 = vmatmul.f32.gmra.mxu0 %v3877
        %v4253 = vpop.f32.mrf.mxu0
        %v4254 = vadd.f32 0.0, %v4253
        %4255 = vdwg.mxu0
        %4256 = vmatpush.msra.mxu0 0.0
        %4257 = vmatpush.msra.mxu0 0.0
        %4258 = vmatpush.msra.mxu0 0.0
        %4259 = vmatpush.msra.mxu0 0.0
        %4260 = vmatpush.msra.mxu0 0.0
        %4261 = vmatpush.msra.mxu0 0.0
        %4262 = vmatpush.msra.mxu0 0.0
        %4263 = vmatpush.msra.mxu0 0.0
        %4264 = vmatpush.msra.mxu0 0.0
        %4265 = vmatpush.msra.mxu0 0.0
        %4266 = vmatpush.msra.mxu0 0.0
        %4267 = vmatpush.msra.mxu0 0.0
        %4268 = vmatpush.msra.mxu0 %v3853
        %4269 = vmatpush.msra.mxu0 %v3850
        %4270 = vmatpush.msra.mxu0 %v3847
        %4271 = vmatpush.msra.mxu0 %v3844
        %4272 = vmatmul.f32.gmra.mxu0 %v3868
        %v4273 = vpop.f32.mrf.mxu0
        %v4274 = vadd.f32 0.0, %v4273
        %4275 = vmatmul.f32.gmra.mxu0 %v3871
        %v4276 = vpop.f32.mrf.mxu0
        %v4277 = vadd.f32 0.0, %v4276
        %4278 = vmatmul.f32.gmra.mxu0 %v3874
        %v4279 = vpop.f32.mrf.mxu0
        %v4280 = vadd.f32 0.0, %v4279
        %4281 = vmatmul.f32.gmra.mxu0 %v3877
        %v4282 = vpop.f32.mrf.mxu0
        %v4283 = vadd.f32 0.0, %v4282
        %4284 = vdwg.mxu0
        %4285 = vmatpush.msra.mxu0 0.0
        %4286 = vmatpush.msra.mxu0 0.0
        %4287 = vmatpush.msra.mxu0 0.0
        %4288 = vmatpush.msra.mxu0 0.0
        %4289 = vmatpush.msra.mxu0 0.0
        %4290 = vmatpush.msra.mxu0 0.0
        %4291 = vmatpush.msra.mxu0 0.0
        %4292 = vmatpush.msra.mxu0 0.0
        %4293 = vmatpush.msra.mxu0 0.0
        %4294 = vmatpush.msra.mxu0 0.0
        %4295 = vmatpush.msra.mxu0 0.0
        %4296 = vmatpush.msra.mxu0 0.0
        %4297 = vmatpush.msra.mxu0 %v3865
        %4298 = vmatpush.msra.mxu0 %v3862
        %4299 = vmatpush.msra.mxu0 %v3859
        %4300 = vmatpush.msra.mxu0 %v3856
        %4301 = vmatmul.f32.gmra.mxu0 %v3868
        %v4302 = vpop.f32.mrf.mxu0
        %v4303 = vadd.f32 0.0, %v4302
        %4304 = vmatmul.f32.gmra.mxu0 %v3871
        %v4305 = vpop.f32.mrf.mxu0
        %v4306 = vadd.f32 0.0, %v4305
        %4307 = vmatmul.f32.gmra.mxu0 %v3874
        %v4308 = vpop.f32.mrf.mxu0
        %v4309 = vadd.f32 0.0, %v4308
        %4310 = vmatmul.f32.gmra.mxu0 %v3877
        %v4311 = vpop.f32.mrf.mxu0
        %v4312 = vadd.f32 0.0, %v4311
        %4313 = vdwg.mxu0
        %v4314 = vmul.f32 %v3897, %v3897
        %v4315 = vmul.f32 %v3900, %v3900
        %v4316 = vmul.f32 %v3903, %v3903
        %v4317 = vmul.f32 %v3906, %v3906
        %v4318 = vmul.f32 %v3926, %v3926
        %v4319 = vmul.f32 %v3929, %v3929
        %v4320 = vmul.f32 %v3932, %v3932
        %v4321 = vmul.f32 %v3935, %v3935
        %v4322 = vmul.f32 %v3955, %v3955
        %v4323 = vmul.f32 %v3958, %v3958
        %v4324 = vmul.f32 %v3961, %v3961
        %v4325 = vmul.f32 %v3964, %v3964
        %v4326 = vmul.f32 %v3984, %v3984
        %v4327 = vmul.f32 %v3987, %v3987
        %v4328 = vmul.f32 %v3990, %v3990
        %v4329 = vmul.f32 %v3993, %v3993
        %v4330 = vmul.f32 %v4013, %v4013
        %v4331 = vmul.f32 %v4016, %v4016
        %v4332 = vmul.f32 %v4019, %v4019
        %v4333 = vmul.f32 %v4022, %v4022
        %v4334 = vmul.f32 %v4042, %v4042
        %v4335 = vmul.f32 %v4045, %v4045
        %v4336 = vmul.f32 %v4048, %v4048
        %v4337 = vmul.f32 %v4051, %v4051
        %v4338 = vmul.f32 %v3897, %v3984
        %v4339 = vmul.f32 %v3900, %v3987
        %v4340 = vmul.f32 %v3903, %v3990
        %v4341 = vmul.f32 %v3906, %v3993
        %v4342 = vmul.f32 %v3926, %v4013
        %v4343 = vmul.f32 %v3929, %v4016
        %v4344 = vmul.f32 %v3932, %v4019
        %v4345 = vmul.f32 %v3935, %v4022
        %v4346 = vmul.f32 %v3955, %v4042
        %v4347 = vmul.f32 %v3958, %v4045
        %v4348 = vmul.f32 %v3961, %v4048
        %v4349 = vmul.f32 %v3964, %v4051
        %v4350 = vsub.f32 %v4071, %v4314
        %v4351 = vsub.f32 %v4074, %v4315
        %v4352 = vsub.f32 %v4077, %v4316
        %v4353 = vsub.f32 %v4080, %v4317
        %v4354 = vsub.f32 %v4100, %v4318
        %v4355 = vsub.f32 %v4103, %v4319
        %v4356 = vsub.f32 %v4106, %v4320
        %v4357 = vsub.f32 %v4109, %v4321
        %v4358 = vsub.f32 %v4129, %v4322
        %v4359 = vsub.f32 %v4132, %v4323
        %v4360 = vsub.f32 %v4135, %v4324
        %v4361 = vsub.f32 %v4138, %v4325
        %v4362 = vsub.f32 %v4158, %v4326
        %v4363 = vsub.f32 %v4161, %v4327
        %v4364 = vsub.f32 %v4164, %v4328
        %v4365 = vsub.f32 %v4167, %v4329
        %v4366 = vsub.f32 %v4187, %v4330
        %v4367 = vsub.f32 %v4190, %v4331
        %v4368 = vsub.f32 %v4193, %v4332
        %v4369 = vsub.f32 %v4196, %v4333
        %v4370 = vsub.f32 %v4216, %v4334
        %v4371 = vsub.f32 %v4219, %v4335
        %v4372 = vsub.f32 %v4222, %v4336
        %v4373 = vsub.f32 %v4225, %v4337
        %v4374 = vsub.f32 %v4245, %v4338
        %v4375 = vsub.f32 %v4248, %v4339
        %v4376 = vsub.f32 %v4251, %v4340
        %v4377 = vsub.f32 %v4254, %v4341
        %v4378 = vsub.f32 %v4274, %v4342
        %v4379 = vsub.f32 %v4277, %v4343
        %v4380 = vsub.f32 %v4280, %v4344
        %v4381 = vsub.f32 %v4283, %v4345
        %v4382 = vsub.f32 %v4303, %v4346
        %v4383 = vsub.f32 %v4306, %v4347
        %v4384 = vsub.f32 %v4309, %v4348
        %v4385 = vsub.f32 %v4312, %v4349
        %v4386 = vmul.f32 %v4374, 2.0
        %v4387 = vmul.f32 %v4375, 2.0
        %v4388 = vmul.f32 %v4376, 2.0
        %v4389 = vmul.f32 %v4377, 2.0
        %v4390 = vmul.f32 %v4378, 2.0
        %v4391 = vmul.f32 %v4379, 2.0
        %v4392 = vmul.f32 %v4380, 2.0
        %v4393 = vmul.f32 %v4381, 2.0
        %v4394 = vmul.f32 %v4382, 2.0
        %v4395 = vmul.f32 %v4383, 2.0
        %v4396 = vmul.f32 %v4384, 2.0
        %v4397 = vmul.f32 %v4385, 2.0
        %v4398 = vadd.f32 %v4386, 0.0009
        %v4399 = vadd.f32 %v4387, 0.0009
        %v4400 = vadd.f32 %v4388, 0.0009
        %v4401 = vadd.f32 %v4389, 0.0009
        %v4402 = vadd.f32 %v4390, 0.0009
        %v4403 = vadd.f32 %v4391, 0.0009
        %v4404 = vadd.f32 %v4392, 0.0009
        %v4405 = vadd.f32 %v4393, 0.0009
        %v4406 = vadd.f32 %v4394, 0.0009
        %v4407 = vadd.f32 %v4395, 0.0009
        %v4408 = vadd.f32 %v4396, 0.0009
        %v4409 = vadd.f32 %v4397, 0.0009
        %v4410 = vadd.f32 %v4350, %v4362
        %v4411 = vadd.f32 %v4351, %v4363
        %v4412 = vadd.f32 %v4352, %v4364
        %v4413 = vadd.f32 %v4353, %v4365
        %v4414 = vadd.f32 %v4354, %v4366
        %v4415 = vadd.f32 %v4355, %v4367
        %v4416 = vadd.f32 %v4356, %v4368
        %v4417 = vadd.f32 %v4357, %v4369
        %v4418 = vadd.f32 %v4358, %v4370
        %v4419 = vadd.f32 %v4359, %v4371
        %v4420 = vadd.f32 %v4360, %v4372
        %v4421 = vadd.f32 %v4361, %v4373
        %v4422 = vadd.f32 %v4410, 0.0009
        %v4423 = vadd.f32 %v4411, 0.0009
        %v4424 = vadd.f32 %v4412, 0.0009
        %v4425 = vadd.f32 %v4413, 0.0009
        %v4426 = vadd.f32 %v4414, 0.0009
        %v4427 = vadd.f32 %v4415, 0.0009
        %v4428 = vadd.f32 %v4416, 0.0009
        %v4429 = vadd.f32 %v4417, 0.0009
        %v4430 = vadd.f32 %v4418, 0.0009
        %v4431 = vadd.f32 %v4419, 0.0009
        %v4432 = vadd.f32 %v4420, 0.0009
        %v4433 = vadd.f32 %v4421, 0.0009
        %v4434 = vrcp.pop %v4422
        %v4435 = vmul.f32 %v4422, %v4434
        %v4436 = vsub.f32 1.0, %v4435
        %v4437 = vmul.f32 %v4434, %v4436
        %v4438 = vadd.f32 %v4434, %v4437
        %vm4439 = vweird.f32 %v4422
        %vm4440 = vweird.f32 %v4434
        %vm4441 = vmor %vm4439, %vm4440
        %v4442 = vsel %vm4441, %v4434, %v4438
        %v4443 = vand.u32 2147483647, %v4422
        %vm4444 = vcmp.eq.f32.partialorder %v4443, 8.507059e+37
        %v4445 = vand.u32 %v4422, 2147483648
        %v4446 = vor.u32 1.1754944e-38, %v4445
        %v4447 = vsel %vm4444, %v4446, %v4442
        %v4448 = vmul.f32 %v4398, %v4447
        %v4449 = vrcp.pop %v4423
        %v4450 = vmul.f32 %v4423, %v4449
        %v4451 = vsub.f32 1.0, %v4450
        %v4452 = vmul.f32 %v4449, %v4451
        %v4453 = vadd.f32 %v4449, %v4452
        %vm4454 = vweird.f32 %v4423
        %vm4455 = vweird.f32 %v4449
        %vm4456 = vmor %vm4454, %vm4455
        %v4457 = vsel %vm4456, %v4449, %v4453
        %v4458 = vand.u32 2147483647, %v4423
        %vm4459 = vcmp.eq.f32.partialorder %v4458, 8.507059e+37
        %v4460 = vand.u32 %v4423, 2147483648
        %v4461 = vor.u32 1.1754944e-38, %v4460
        %v4462 = vsel %vm4459, %v4461, %v4457
        %v4463 = vmul.f32 %v4399, %v4462
        %v4464 = vrcp.pop %v4424
        %v4465 = vmul.f32 %v4424, %v4464
        %v4466 = vsub.f32 1.0, %v4465
        %v4467 = vmul.f32 %v4464, %v4466
        %v4468 = vadd.f32 %v4464, %v4467
        %vm4469 = vweird.f32 %v4424
        %vm4470 = vweird.f32 %v4464
        %vm4471 = vmor %vm4469, %vm4470
        %v4472 = vsel %vm4471, %v4464, %v4468
        %v4473 = vand.u32 2147483647, %v4424
        %vm4474 = vcmp.eq.f32.partialorder %v4473, 8.507059e+37
        %v4475 = vand.u32 %v4424, 2147483648
        %v4476 = vor.u32 1.1754944e-38, %v4475
        %v4477 = vsel %vm4474, %v4476, %v4472
        %v4478 = vmul.f32 %v4400, %v4477
        %v4479 = vrcp.pop %v4425
        %v4480 = vmul.f32 %v4425, %v4479
        %v4481 = vsub.f32 1.0, %v4480
        %v4482 = vmul.f32 %v4479, %v4481
        %v4483 = vadd.f32 %v4479, %v4482
        %vm4484 = vweird.f32 %v4425
        %vm4485 = vweird.f32 %v4479
        %vm4486 = vmor %vm4484, %vm4485
        %v4487 = vsel %vm4486, %v4479, %v4483
        %v4488 = vand.u32 2147483647, %v4425
        %vm4489 = vcmp.eq.f32.partialorder %v4488, 8.507059e+37
        %v4490 = vand.u32 %v4425, 2147483648
        %v4491 = vor.u32 1.1754944e-38, %v4490
        %v4492 = vsel %vm4489, %v4491, %v4487
        %v4493 = vmul.f32 %v4401, %v4492
        %v4494 = vrcp.pop %v4426
        %v4495 = vmul.f32 %v4426, %v4494
        %v4496 = vsub.f32 1.0, %v4495
        %v4497 = vmul.f32 %v4494, %v4496
        %v4498 = vadd.f32 %v4494, %v4497
        %vm4499 = vweird.f32 %v4426
        %vm4500 = vweird.f32 %v4494
        %vm4501 = vmor %vm4499, %vm4500
        %v4502 = vsel %vm4501, %v4494, %v4498
        %v4503 = vand.u32 2147483647, %v4426
        %vm4504 = vcmp.eq.f32.partialorder %v4503, 8.507059e+37
        %v4505 = vand.u32 %v4426, 2147483648
        %v4506 = vor.u32 1.1754944e-38, %v4505
        %v4507 = vsel %vm4504, %v4506, %v4502
        %v4508 = vmul.f32 %v4402, %v4507
        %v4509 = vrcp.pop %v4427
        %v4510 = vmul.f32 %v4427, %v4509
        %v4511 = vsub.f32 1.0, %v4510
        %v4512 = vmul.f32 %v4509, %v4511
        %v4513 = vadd.f32 %v4509, %v4512
        %vm4514 = vweird.f32 %v4427
        %vm4515 = vweird.f32 %v4509
        %vm4516 = vmor %vm4514, %vm4515
        %v4517 = vsel %vm4516, %v4509, %v4513
        %v4518 = vand.u32 2147483647, %v4427
        %vm4519 = vcmp.eq.f32.partialorder %v4518, 8.507059e+37
        %v4520 = vand.u32 %v4427, 2147483648
        %v4521 = vor.u32 1.1754944e-38, %v4520
        %v4522 = vsel %vm4519, %v4521, %v4517
        %v4523 = vmul.f32 %v4403, %v4522
        %v4524 = vrcp.pop %v4428
        %v4525 = vmul.f32 %v4428, %v4524
        %v4526 = vsub.f32 1.0, %v4525
        %v4527 = vmul.f32 %v4524, %v4526
        %v4528 = vadd.f32 %v4524, %v4527
        %vm4529 = vweird.f32 %v4428
        %vm4530 = vweird.f32 %v4524
        %vm4531 = vmor %vm4529, %vm4530
        %v4532 = vsel %vm4531, %v4524, %v4528
        %v4533 = vand.u32 2147483647, %v4428
        %vm4534 = vcmp.eq.f32.partialorder %v4533, 8.507059e+37
        %v4535 = vand.u32 %v4428, 2147483648
        %v4536 = vor.u32 1.1754944e-38, %v4535
        %v4537 = vsel %vm4534, %v4536, %v4532
        %v4538 = vmul.f32 %v4404, %v4537
        %v4539 = vrcp.pop %v4429
        %v4540 = vmul.f32 %v4429, %v4539
        %v4541 = vsub.f32 1.0, %v4540
        %v4542 = vmul.f32 %v4539, %v4541
        %v4543 = vadd.f32 %v4539, %v4542
        %vm4544 = vweird.f32 %v4429
        %vm4545 = vweird.f32 %v4539
        %vm4546 = vmor %vm4544, %vm4545
        %v4547 = vsel %vm4546, %v4539, %v4543
        %v4548 = vand.u32 2147483647, %v4429
        %vm4549 = vcmp.eq.f32.partialorder %v4548, 8.507059e+37
        %v4550 = vand.u32 %v4429, 2147483648
        %v4551 = vor.u32 1.1754944e-38, %v4550
        %v4552 = vsel %vm4549, %v4551, %v4547
        %v4553 = vmul.f32 %v4405, %v4552
        %v4554 = vrcp.pop %v4430
        %v4555 = vmul.f32 %v4430, %v4554
        %v4556 = vsub.f32 1.0, %v4555
        %v4557 = vmul.f32 %v4554, %v4556
        %v4558 = vadd.f32 %v4554, %v4557
        %vm4559 = vweird.f32 %v4430
        %vm4560 = vweird.f32 %v4554
        %vm4561 = vmor %vm4559, %vm4560
        %v4562 = vsel %vm4561, %v4554, %v4558
        %v4563 = vand.u32 2147483647, %v4430
        %vm4564 = vcmp.eq.f32.partialorder %v4563, 8.507059e+37
        %v4565 = vand.u32 %v4430, 2147483648
        %v4566 = vor.u32 1.1754944e-38, %v4565
        %v4567 = vsel %vm4564, %v4566, %v4562
        %v4568 = vmul.f32 %v4406, %v4567
        %v4569 = vrcp.pop %v4431
        %v4570 = vmul.f32 %v4431, %v4569
        %v4571 = vsub.f32 1.0, %v4570
        %v4572 = vmul.f32 %v4569, %v4571
        %v4573 = vadd.f32 %v4569, %v4572
        %vm4574 = vweird.f32 %v4431
        %vm4575 = vweird.f32 %v4569
        %vm4576 = vmor %vm4574, %vm4575
        %v4577 = vsel %vm4576, %v4569, %v4573
        %v4578 = vand.u32 2147483647, %v4431
        %vm4579 = vcmp.eq.f32.partialorder %v4578, 8.507059e+37
        %v4580 = vand.u32 %v4431, 2147483648
        %v4581 = vor.u32 1.1754944e-38, %v4580
        %v4582 = vsel %vm4579, %v4581, %v4577
        %v4583 = vmul.f32 %v4407, %v4582
        %v4584 = vrcp.pop %v4432
        %v4585 = vmul.f32 %v4432, %v4584
        %v4586 = vsub.f32 1.0, %v4585
        %v4587 = vmul.f32 %v4584, %v4586
        %v4588 = vadd.f32 %v4584, %v4587
        %vm4589 = vweird.f32 %v4432
        %vm4590 = vweird.f32 %v4584
        %vm4591 = vmor %vm4589, %vm4590
        %v4592 = vsel %vm4591, %v4584, %v4588
        %v4593 = vand.u32 2147483647, %v4432
        %vm4594 = vcmp.eq.f32.partialorder %v4593, 8.507059e+37
        %v4595 = vand.u32 %v4432, 2147483648
        %v4596 = vor.u32 1.1754944e-38, %v4595
        %v4597 = vsel %vm4594, %v4596, %v4592
        %v4598 = vmul.f32 %v4408, %v4597
        %v4599 = vrcp.pop %v4433
        %v4600 = vmul.f32 %v4433, %v4599
        %v4601 = vsub.f32 1.0, %v4600
        %v4602 = vmul.f32 %v4599, %v4601
        %v4603 = vadd.f32 %v4599, %v4602
        %vm4604 = vweird.f32 %v4433
        %vm4605 = vweird.f32 %v4599
        %vm4606 = vmor %vm4604, %vm4605
        %v4607 = vsel %vm4606, %v4599, %v4603
        %v4608 = vand.u32 2147483647, %v4433
        %vm4609 = vcmp.eq.f32.partialorder %v4608, 8.507059e+37
        %v4610 = vand.u32 %v4433, 2147483648
        %v4611 = vor.u32 1.1754944e-38, %v4610
        %v4612 = vsel %vm4609, %v4611, %v4607
        %v4613 = vmul.f32 %v4409, %v4612
        %vm4614 = vcmask 244736
        %v4615 = vsel %vm4614, %v4448, 0.0
        %4616 = vadd.xlane.f32.xlu0 %v4615
        %v4617 = vpop.xlane.xlu0 %4616
        %v4618 = vsel %vm4614, %v4463, 0.0
        %4619 = vadd.xlane.f32.xlu0 %v4618
        %v4620 = vpop.xlane.xlu0 %4619
        %v4621 = vsel %vm4614, %v4478, 0.0
        %4622 = vadd.xlane.f32.xlu0 %v4621
        %v4623 = vpop.xlane.xlu0 %4622
        %vm4624 = vcmask 242688
        %v4625 = vsel %vm4624, %v4493, 0.0
        %4626 = vadd.xlane.f32.xlu0 %v4625
        %v4627 = vpop.xlane.xlu0 %4626
        %v4628 = vsel %vm4614, %v4508, 0.0
        %4629 = vadd.xlane.f32.xlu0 %v4628
        %v4630 = vpop.xlane.xlu0 %4629
        %v4631 = vsel %vm4614, %v4523, 0.0
        %4632 = vadd.xlane.f32.xlu0 %v4631
        %v4633 = vpop.xlane.xlu0 %4632
        %v4634 = vsel %vm4614, %v4538, 0.0
        %4635 = vadd.xlane.f32.xlu0 %v4634
        %v4636 = vpop.xlane.xlu0 %4635
        %v4637 = vsel %vm4624, %v4553, 0.0
        %4638 = vadd.xlane.f32.xlu0 %v4637
        %v4639 = vpop.xlane.xlu0 %4638
        %v4640 = vsel %vm4614, %v4568, 0.0
        %4641 = vadd.xlane.f32.xlu0 %v4640
        %v4642 = vpop.xlane.xlu0 %4641
        %v4643 = vsel %vm4614, %v4583, 0.0
        %4644 = vadd.xlane.f32.xlu0 %v4643
        %v4645 = vpop.xlane.xlu0 %4644
        %v4646 = vsel %vm4614, %v4598, 0.0
        %4647 = vadd.xlane.f32.xlu0 %v4646
        %v4648 = vpop.xlane.xlu0 %4647
        %v4649 = vsel %vm4624, %v4613, 0.0
        %4650 = vadd.xlane.f32.xlu0 %v4649
        %v4651 = vpop.xlane.xlu0 %4650
        %v4652 = vadd.f32 %v4617, %v4620
        %v4653 = vadd.f32 %v4652, %v4623
        %v4654 = vsel %vm3025, %v4627, 0.0
        %v4655 = vadd.f32 %v4653, %v4654
        %v4656 = vrot.slane %v4655, 4
        %v4657 = vadd.f32 %v4655, %v4656
        %v4658 = vrot.slane %v4657, 2
        %v4659 = vadd.f32 %v4657, %v4658
        %v4660 = vrot.slane %v4659, 1
        %v4661 = vadd.f32 %v4659, %v4660
        %v4662 = vadd.f32 %v4630, %v4633
        %v4663 = vadd.f32 %v4662, %v4636
        %v4664 = vsel %vm3025, %v4639, 0.0
        %v4665 = vadd.f32 %v4663, %v4664
        %v4666 = vrot.slane %v4665, 4
        %v4667 = vadd.f32 %v4665, %v4666
        %v4668 = vrot.slane %v4667, 2
        %v4669 = vadd.f32 %v4667, %v4668
        %v4670 = vrot.slane %v4669, 1
        %v4671 = vadd.f32 %v4669, %v4670
        %v4672 = vadd.f32 %v4642, %v4645
        %v4673 = vadd.f32 %v4672, %v4648
        %v4674 = vsel %vm3025, %v4651, 0.0
        %v4675 = vadd.f32 %v4673, %v4674
        %v4676 = vrot.slane %v4675, 4
        %v4677 = vadd.f32 %v4675, %v4676
        %v4678 = vrot.slane %v4677, 2
        %v4679 = vadd.f32 %v4677, %v4678
        %v4680 = vrot.slane %v4679, 1
        %v4681 = vadd.f32 %v4679, %v4680
        %v4682 = vmul.f32 %v4661, 0.0011111111
        %v4683 = vmul.f32 %v4671, 0.0011111111
        %v4684 = vmul.f32 %v4681, 0.0011111111
        %v4685 = vmax.f32 %v4682, 0.0
        %v4686 = vmax.f32 %v4683, 0.0
        %v4687 = vmax.f32 %v4684, 0.0
        %vm4688 = vcmp.gt.f32.partialorder %v4685, 0.0
        %vm4689 = vcmp.gt.f32.partialorder %v4686, 0.0
        %vm4690 = vcmp.gt.f32.partialorder %v4687, 0.0
        %v4691 = vmax.f32 %v4685, 1e-30
        %v4692 = vmax.f32 %v4686, 1e-30
        %v4693 = vmax.f32 %v4687, 1e-30
        %v4694 = vlog2.pop %v4691
        %v4695 = vmul.f32 %v4694, 0.6931472
        %v4696 = vlog2.pop %v4692
        %v4697 = vmul.f32 %v4696, 0.6931472
        %v4698 = vlog2.pop %v4693
        %v4699 = vmul.f32 %v4698, 0.6931472
        %v4700 = vmul.f32 %v4695, 0.2856
        %v4701 = vmul.f32 %v4697, 0.2856
        %v4702 = vmul.f32 %v4699, 0.2856
        %v4703 = vmul.f32 %v4700, 1.442695
        %v4704 = vpow.pop %v4703
        %v4705 = vmul.f32 %v4701, 1.442695
        %v4706 = vpow.pop %v4705
        %v4707 = vmul.f32 %v4702, 1.442695
        %v4708 = vpow.pop %v4707
        %v4709 = vsel %vm4688, %v4704, 0.0
        %v4710 = vsel %vm4689, %v4706, 0.0
        %v4711 = vsel %vm4690, %v4708, 0.0
        %v4712 = vmul.f32 %v3089, %v4709
        %v4713 = vmul.f32 %v3090, %v4710
        %v4714 = vmul.f32 %v3091, %v4711
        %4715 = vmatpush.msra.mxu0 0.0
        %4716 = vmatpush.msra.mxu0 0.0
        %4717 = vmatpush.msra.mxu0 0.0
        %4718 = vmatpush.msra.mxu0 0.0
        %4719 = vmatpush.msra.mxu0 0.0
        %4720 = vmatpush.msra.mxu0 0.0
        %4721 = vmatpush.msra.mxu0 0.0
        %4722 = vmatpush.msra.mxu0 0.0
        %4723 = vmatpush.msra.mxu0 0.0
        %4724 = vmatpush.msra.mxu0 0.0
        %4725 = vmatpush.msra.mxu0 0.0
        %4726 = vmatpush.msra.mxu0 0.0
        %4727 = vmatpush.msra.mxu0 %v3450
        %4728 = vmatpush.msra.mxu0 %v3449
        %4729 = vmatpush.msra.mxu0 %v3448
        %4730 = vmatpush.msra.mxu0 %v3447
        %4731 = vmatmul.f32.gmra.mxu0 %v3491
        %v4732 = vpop.f32.mrf.mxu0
        %v4733 = vadd.f32 0.0, %v4732
        %4734 = vmatmul.f32.gmra.mxu0 %v3494
        %v4735 = vpop.f32.mrf.mxu0
        %v4736 = vadd.f32 0.0, %v4735
        %4737 = vmatmul.f32.gmra.mxu0 %v3497
        %v4738 = vpop.f32.mrf.mxu0
        %v4739 = vadd.f32 0.0, %v4738
        %4740 = vmatmul.f32.gmra.mxu0 %v3500
        %v4741 = vpop.f32.mrf.mxu0
        %v4742 = vadd.f32 0.0, %v4741
        %4743 = vmatmul.f32.gmra.mxu0 %v3503
        %v4744 = vpop.f32.mrf.mxu0
        %v4745 = vadd.f32 0.0, %v4744
        %4746 = vmatmul.f32.gmra.mxu0 %v3506
        %v4747 = vpop.f32.mrf.mxu0
        %v4748 = vadd.f32 0.0, %v4747
        %4749 = vmatmul.f32.gmra.mxu0 %v3509
        %v4750 = vpop.f32.mrf.mxu0
        %v4751 = vadd.f32 0.0, %v4750
        %4752 = vmatmul.f32.gmra.mxu0 %v3512
        %v4753 = vpop.f32.mrf.mxu0
        %v4754 = vadd.f32 0.0, %v4753
        %4755 = vmatmul.f32.gmra.mxu0 %v3515
        %v4756 = vpop.f32.mrf.mxu0
        %v4757 = vadd.f32 0.0, %v4756
        %4758 = vmatmul.f32.gmra.mxu0 %v3518
        %v4759 = vpop.f32.mrf.mxu0
        %v4760 = vadd.f32 0.0, %v4759
        %4761 = vmatmul.f32.gmra.mxu0 %v3521
        %v4762 = vpop.f32.mrf.mxu0
        %v4763 = vadd.f32 0.0, %v4762
        %4764 = vmatmul.f32.gmra.mxu0 %v3524
        %v4765 = vpop.f32.mrf.mxu0
        %v4766 = vadd.f32 0.0, %v4765
        %4767 = vmatmul.f32.gmra.mxu0 %v3527
        %v4768 = vpop.f32.mrf.mxu0
        %v4769 = vadd.f32 0.0, %v4768
        %4770 = vmatmul.f32.gmra.mxu0 %v3530
        %v4771 = vpop.f32.mrf.mxu0
        %v4772 = vadd.f32 0.0, %v4771
        %4773 = vmatmul.f32.gmra.mxu0 %v3533
        %v4774 = vpop.f32.mrf.mxu0
        %v4775 = vadd.f32 0.0, %v4774
        %4776 = vmatmul.f32.gmra.mxu0 %v3536
        %v4777 = vpop.f32.mrf.mxu0
        %v4778 = vadd.f32 0.0, %v4777
        %4779 = vmatmul.f32.gmra.mxu0 %v3539
        %v4780 = vpop.f32.mrf.mxu0
        %v4781 = vadd.f32 0.0, %v4780
        %4782 = vmatmul.f32.gmra.mxu0 %v3542
        %v4783 = vpop.f32.mrf.mxu0
        %v4784 = vadd.f32 0.0, %v4783
        %4785 = vmatmul.f32.gmra.mxu0 %v3545
        %v4786 = vpop.f32.mrf.mxu0
        %v4787 = vadd.f32 0.0, %v4786
        %4788 = vmatmul.f32.gmra.mxu0 %v3548
        %v4789 = vpop.f32.mrf.mxu0
        %v4790 = vadd.f32 0.0, %v4789
        %4791 = vmatmul.f32.gmra.mxu0 %v3551
        %v4792 = vpop.f32.mrf.mxu0
        %v4793 = vadd.f32 0.0, %v4792
        %4794 = vmatmul.f32.gmra.mxu0 %v3554
        %v4795 = vpop.f32.mrf.mxu0
        %v4796 = vadd.f32 0.0, %v4795
        %4797 = vmatmul.f32.gmra.mxu0 %v3557
        %v4798 = vpop.f32.mrf.mxu0
        %v4799 = vadd.f32 0.0, %v4798
        %4800 = vmatmul.f32.gmra.mxu0 %v3560
        %v4801 = vpop.f32.mrf.mxu0
        %v4802 = vadd.f32 0.0, %v4801
        %4803 = vdwg.mxu0
        %v4805 = vsel %vm3489, %v3451, 0
        %v4808 = vsel %vm3489, %v3452, 0
        %4810 = vmatpush.msra.mxu0 0.0
        %4811 = vmatpush.msra.mxu0 0.0
        %4812 = vmatpush.msra.mxu0 0.0
        %4813 = vmatpush.msra.mxu0 0.0
        %4814 = vmatpush.msra.mxu0 0.0
        %4815 = vmatpush.msra.mxu0 0.0
        %4816 = vmatpush.msra.mxu0 0.0
        %4817 = vmatpush.msra.mxu0 0.0
        %4818 = vmatpush.msra.mxu0 0.0
        %4819 = vmatpush.msra.mxu0 0.0
        %4820 = vmatpush.msra.mxu0 0.0
        %4821 = vmatpush.msra.mxu0 0.0
        %4822 = vmatpush.msra.mxu0 %v4742
        %4823 = vmatpush.msra.mxu0 %v4739
        %4824 = vmatpush.msra.mxu0 %v4736
        %4825 = vmatpush.msra.mxu0 %v4733
        %4826 = vmatmul.f32.gmra.mxu0 %v4805
        %v4827 = vpop.f32.mrf.mxu0
        %v4828 = vadd.f32 0.0, %v4827
        %4829 = vmatmul.f32.gmra.mxu0 %v4808
        %v4830 = vpop.f32.mrf.mxu0
        %v4831 = vadd.f32 0.0, %v4830
        %4832 = vdwg.mxu0
        %4833 = vmatpush.msra.mxu0 0.0
        %4834 = vmatpush.msra.mxu0 0.0
        %4835 = vmatpush.msra.mxu0 0.0
        %4836 = vmatpush.msra.mxu0 0.0
        %4837 = vmatpush.msra.mxu0 0.0
        %4838 = vmatpush.msra.mxu0 0.0
        %4839 = vmatpush.msra.mxu0 0.0
        %4840 = vmatpush.msra.mxu0 0.0
        %4841 = vmatpush.msra.mxu0 0.0
        %4842 = vmatpush.msra.mxu0 0.0
        %4843 = vmatpush.msra.mxu0 0.0
        %4844 = vmatpush.msra.mxu0 0.0
        %4845 = vmatpush.msra.mxu0 %v4754
        %4846 = vmatpush.msra.mxu0 %v4751
        %4847 = vmatpush.msra.mxu0 %v4748
        %4848 = vmatpush.msra.mxu0 %v4745
        %4849 = vmatmul.f32.gmra.mxu0 %v4805
        %v4850 = vpop.f32.mrf.mxu0
        %v4851 = vadd.f32 0.0, %v4850
        %4852 = vmatmul.f32.gmra.mxu0 %v4808
        %v4853 = vpop.f32.mrf.mxu0
        %v4854 = vadd.f32 0.0, %v4853
        %4855 = vdwg.mxu0
        %4856 = vmatpush.msra.mxu0 0.0
        %4857 = vmatpush.msra.mxu0 0.0
        %4858 = vmatpush.msra.mxu0 0.0
        %4859 = vmatpush.msra.mxu0 0.0
        %4860 = vmatpush.msra.mxu0 0.0
        %4861 = vmatpush.msra.mxu0 0.0
        %4862 = vmatpush.msra.mxu0 0.0
        %4863 = vmatpush.msra.mxu0 0.0
        %4864 = vmatpush.msra.mxu0 0.0
        %4865 = vmatpush.msra.mxu0 0.0
        %4866 = vmatpush.msra.mxu0 0.0
        %4867 = vmatpush.msra.mxu0 0.0
        %4868 = vmatpush.msra.mxu0 %v4766
        %4869 = vmatpush.msra.mxu0 %v4763
        %4870 = vmatpush.msra.mxu0 %v4760
        %4871 = vmatpush.msra.mxu0 %v4757
        %4872 = vmatmul.f32.gmra.mxu0 %v4805
        %v4873 = vpop.f32.mrf.mxu0
        %v4874 = vadd.f32 0.0, %v4873
        %4875 = vmatmul.f32.gmra.mxu0 %v4808
        %v4876 = vpop.f32.mrf.mxu0
        %v4877 = vadd.f32 0.0, %v4876
        %4878 = vdwg.mxu0
        %4879 = vmatpush.msra.mxu0 0.0
        %4880 = vmatpush.msra.mxu0 0.0
        %4881 = vmatpush.msra.mxu0 0.0
        %4882 = vmatpush.msra.mxu0 0.0
        %4883 = vmatpush.msra.mxu0 0.0
        %4884 = vmatpush.msra.mxu0 0.0
        %4885 = vmatpush.msra.mxu0 0.0
        %4886 = vmatpush.msra.mxu0 0.0
        %4887 = vmatpush.msra.mxu0 0.0
        %4888 = vmatpush.msra.mxu0 0.0
        %4889 = vmatpush.msra.mxu0 0.0
        %4890 = vmatpush.msra.mxu0 0.0
        %4891 = vmatpush.msra.mxu0 %v4778
        %4892 = vmatpush.msra.mxu0 %v4775
        %4893 = vmatpush.msra.mxu0 %v4772
        %4894 = vmatpush.msra.mxu0 %v4769
        %4895 = vmatmul.f32.gmra.mxu0 %v4805
        %v4896 = vpop.f32.mrf.mxu0
        %v4897 = vadd.f32 0.0, %v4896
        %4898 = vmatmul.f32.gmra.mxu0 %v4808
        %v4899 = vpop.f32.mrf.mxu0
        %v4900 = vadd.f32 0.0, %v4899
        %4901 = vdwg.mxu0
        %4902 = vmatpush.msra.mxu0 0.0
        %4903 = vmatpush.msra.mxu0 0.0
        %4904 = vmatpush.msra.mxu0 0.0
        %4905 = vmatpush.msra.mxu0 0.0
        %4906 = vmatpush.msra.mxu0 0.0
        %4907 = vmatpush.msra.mxu0 0.0
        %4908 = vmatpush.msra.mxu0 0.0
        %4909 = vmatpush.msra.mxu0 0.0
        %4910 = vmatpush.msra.mxu0 0.0
        %4911 = vmatpush.msra.mxu0 0.0
        %4912 = vmatpush.msra.mxu0 0.0
        %4913 = vmatpush.msra.mxu0 0.0
        %4914 = vmatpush.msra.mxu0 %v4790
        %4915 = vmatpush.msra.mxu0 %v4787
        %4916 = vmatpush.msra.mxu0 %v4784
        %4917 = vmatpush.msra.mxu0 %v4781
        %4918 = vmatmul.f32.gmra.mxu0 %v4805
        %v4919 = vpop.f32.mrf.mxu0
        %v4920 = vadd.f32 0.0, %v4919
        %4921 = vmatmul.f32.gmra.mxu0 %v4808
        %v4922 = vpop.f32.mrf.mxu0
        %v4923 = vadd.f32 0.0, %v4922
        %4924 = vdwg.mxu0
        %4925 = vmatpush.msra.mxu0 0.0
        %4926 = vmatpush.msra.mxu0 0.0
        %4927 = vmatpush.msra.mxu0 0.0
        %4928 = vmatpush.msra.mxu0 0.0
        %4929 = vmatpush.msra.mxu0 0.0
        %4930 = vmatpush.msra.mxu0 0.0
        %4931 = vmatpush.msra.mxu0 0.0
        %4932 = vmatpush.msra.mxu0 0.0
        %4933 = vmatpush.msra.mxu0 0.0
        %4934 = vmatpush.msra.mxu0 0.0
        %4935 = vmatpush.msra.mxu0 0.0
        %4936 = vmatpush.msra.mxu0 0.0
        %4937 = vmatpush.msra.mxu0 %v4802
        %4938 = vmatpush.msra.mxu0 %v4799
        %4939 = vmatpush.msra.mxu0 %v4796
        %4940 = vmatpush.msra.mxu0 %v4793
        %4941 = vmatmul.f32.gmra.mxu0 %v4805
        %v4942 = vpop.f32.mrf.mxu0
        %v4943 = vadd.f32 0.0, %v4942
        %4944 = vmatmul.f32.gmra.mxu0 %v4808
        %v4945 = vpop.f32.mrf.mxu0
        %v4946 = vadd.f32 0.0, %v4945
        %4947 = vdwg.mxu0
        %v4948 = vld [vmem:[%s10] sm:$0xff]
        %v4949 = vld [vmem:[%s10 + $0x8] sm:$0xff]
        %v4950 = vld [vmem:[#allocation10] sm:$0xff]
        %v4951 = vld [vmem:[#allocation10 + $0x8] sm:$0x3f]
        %v4952 = vld [vmem:[%s12] sm:$0xff]
        %v4953 = vld [vmem:[%s12 + $0x8] sm:$0xff]
        %v4954 = vld [vmem:[#allocation12] sm:$0xff]
        %v4955 = vmul.f32 %v4828, %v4828
        %v4956 = vmul.f32 %v4831, %v4831
        %v4957 = vmul.f32 %v4851, %v4851
        %v4958 = vmul.f32 %v4854, %v4854
        %v4959 = vmul.f32 %v4874, %v4874
        %v4960 = vmul.f32 %v4877, %v4877
        %v4961 = vmul.f32 %v4897, %v4897
        %v4962 = vmul.f32 %v4900, %v4900
        %v4963 = vmul.f32 %v4920, %v4920
        %v4964 = vmul.f32 %v4923, %v4923
        %v4965 = vmul.f32 %v4943, %v4943
        %v4966 = vmul.f32 %v4946, %v4946
        %v4967 = vmul.f32 %v4828, %v4897
        %v4968 = vmul.f32 %v4831, %v4900
        %v4969 = vmul.f32 %v4851, %v4920
        %v4970 = vmul.f32 %v4854, %v4923
        %v4971 = vmul.f32 %v4874, %v4943
        %v4972 = vmul.f32 %v4877, %v4946
        %vm4973 = vcmask 130048
        %v4975 = vsel %vm4973, %v4828, 0
        %v4978 = vsel %vm4973, %v4831, 0
        %v4981 = vsel %vm4973, %v4851, 0
        %v4984 = vsel %vm4973, %v4854, 0
        %v4987 = vsel %vm4973, %v4874, 0
        %v4990 = vsel %vm4973, %v4877, 0
        %v4993 = vsel %vm4973, %v4897, 0
        %v4996 = vsel %vm4973, %v4900, 0
        %v4999 = vsel %vm4973, %v4920, 0
        %v5002 = vsel %vm4973, %v4923, 0
        %v5005 = vsel %vm4973, %v4943, 0
        %v5008 = vsel %vm4973, %v4946, 0
        %v5011 = vsel %vm4973, %v4955, 0
        %v5014 = vsel %vm4973, %v4956, 0
        %v5017 = vsel %vm4973, %v4957, 0
        %v5020 = vsel %vm4973, %v4958, 0
        %v5023 = vsel %vm4973, %v4959, 0
        %v5026 = vsel %vm4973, %v4960, 0
        %v5029 = vsel %vm4973, %v4961, 0
        %v5032 = vsel %vm4973, %v4962, 0
        %v5035 = vsel %vm4973, %v4963, 0
        %v5038 = vsel %vm4973, %v4964, 0
        %v5041 = vsel %vm4973, %v4965, 0
        %v5044 = vsel %vm4973, %v4966, 0
        %v5047 = vsel %vm4973, %v4967, 0
        %v5050 = vsel %vm4973, %v4968, 0
        %v5053 = vsel %vm4973, %v4969, 0
        %v5056 = vsel %vm4973, %v4970, 0
        %v5059 = vsel %vm4973, %v4971, 0
        %v5062 = vsel %vm4973, %v4972, 0
        %5064 = vmatpush.msra.mxu0 0.0
        %5065 = vmatpush.msra.mxu0 0.0
        %5066 = vmatpush.msra.mxu0 0.0
        %5067 = vmatpush.msra.mxu0 0.0
        %5068 = vmatpush.msra.mxu0 0.0
        %5069 = vmatpush.msra.mxu0 0.0
        %5070 = vmatpush.msra.mxu0 0.0
        %5071 = vmatpush.msra.mxu0 0.0
        %5072 = vmatpush.msra.mxu0 0.0
        %5073 = vmatpush.msra.mxu0 0.0
        %5074 = vmatpush.msra.mxu0 0.0
        %5075 = vmatpush.msra.mxu0 0.0
        %5076 = vmatpush.msra.mxu0 0.0
        %5077 = vmatpush.msra.mxu0 0.0
        %5078 = vmatpush.msra.mxu0 %v4949
        %5079 = vmatpush.msra.mxu0 %v4948
        %5080 = vmatmul.f32.gmra.mxu0 %v4975
        %v5081 = vpop.f32.mrf.mxu0
        %v5082 = vadd.f32 0.0, %v5081
        %5083 = vmatmul.f32.gmra.mxu0 %v4978
        %v5084 = vpop.f32.mrf.mxu0
        %v5085 = vadd.f32 0.0, %v5084
        %5086 = vmatmul.f32.gmra.mxu0 %v4981
        %v5087 = vpop.f32.mrf.mxu0
        %v5088 = vadd.f32 0.0, %v5087
        %5089 = vmatmul.f32.gmra.mxu0 %v4984
        %v5090 = vpop.f32.mrf.mxu0
        %v5091 = vadd.f32 0.0, %v5090
        %5092 = vmatmul.f32.gmra.mxu0 %v4987
        %v5093 = vpop.f32.mrf.mxu0
        %v5094 = vadd.f32 0.0, %v5093
        %5095 = vmatmul.f32.gmra.mxu0 %v4990
        %v5096 = vpop.f32.mrf.mxu0
        %v5097 = vadd.f32 0.0, %v5096
        %5098 = vmatmul.f32.gmra.mxu0 %v4993
        %v5099 = vpop.f32.mrf.mxu0
        %v5100 = vadd.f32 0.0, %v5099
        %5101 = vmatmul.f32.gmra.mxu0 %v4996
        %v5102 = vpop.f32.mrf.mxu0
        %v5103 = vadd.f32 0.0, %v5102
        %5104 = vmatmul.f32.gmra.mxu0 %v4999
        %v5105 = vpop.f32.mrf.mxu0
        %v5106 = vadd.f32 0.0, %v5105
        %5107 = vmatmul.f32.gmra.mxu0 %v5002
        %v5108 = vpop.f32.mrf.mxu0
        %v5109 = vadd.f32 0.0, %v5108
        %5110 = vmatmul.f32.gmra.mxu0 %v5005
        %v5111 = vpop.f32.mrf.mxu0
        %v5112 = vadd.f32 0.0, %v5111
        %5113 = vmatmul.f32.gmra.mxu0 %v5008
        %v5114 = vpop.f32.mrf.mxu0
        %v5115 = vadd.f32 0.0, %v5114
        %5116 = vmatmul.f32.gmra.mxu0 %v5011
        %v5117 = vpop.f32.mrf.mxu0
        %v5118 = vadd.f32 0.0, %v5117
        %5119 = vmatmul.f32.gmra.mxu0 %v5014
        %v5120 = vpop.f32.mrf.mxu0
        %v5121 = vadd.f32 0.0, %v5120
        %5122 = vmatmul.f32.gmra.mxu0 %v5017
        %v5123 = vpop.f32.mrf.mxu0
        %v5124 = vadd.f32 0.0, %v5123
        %5125 = vmatmul.f32.gmra.mxu0 %v5020
        %v5126 = vpop.f32.mrf.mxu0
        %v5127 = vadd.f32 0.0, %v5126
        %5128 = vmatmul.f32.gmra.mxu0 %v5023
        %v5129 = vpop.f32.mrf.mxu0
        %v5130 = vadd.f32 0.0, %v5129
        %5131 = vmatmul.f32.gmra.mxu0 %v5026
        %v5132 = vpop.f32.mrf.mxu0
        %v5133 = vadd.f32 0.0, %v5132
        %5134 = vmatmul.f32.gmra.mxu0 %v5029
        %v5135 = vpop.f32.mrf.mxu0
        %v5136 = vadd.f32 0.0, %v5135
        %5137 = vmatmul.f32.gmra.mxu0 %v5032
        %v5138 = vpop.f32.mrf.mxu0
        %v5139 = vadd.f32 0.0, %v5138
        %5140 = vmatmul.f32.gmra.mxu0 %v5035
        %v5141 = vpop.f32.mrf.mxu0
        %v5142 = vadd.f32 0.0, %v5141
        %5143 = vmatmul.f32.gmra.mxu0 %v5038
        %v5144 = vpop.f32.mrf.mxu0
        %v5145 = vadd.f32 0.0, %v5144
        %5146 = vmatmul.f32.gmra.mxu0 %v5041
        %v5147 = vpop.f32.mrf.mxu0
        %v5148 = vadd.f32 0.0, %v5147
        %5149 = vmatmul.f32.gmra.mxu0 %v5044
        %v5150 = vpop.f32.mrf.mxu0
        %v5151 = vadd.f32 0.0, %v5150
        %5152 = vmatmul.f32.gmra.mxu0 %v5047
        %v5153 = vpop.f32.mrf.mxu0
        %v5154 = vadd.f32 0.0, %v5153
        %5155 = vmatmul.f32.gmra.mxu0 %v5050
        %v5156 = vpop.f32.mrf.mxu0
        %v5157 = vadd.f32 0.0, %v5156
        %5158 = vmatmul.f32.gmra.mxu0 %v5053
        %v5159 = vpop.f32.mrf.mxu0
        %v5160 = vadd.f32 0.0, %v5159
        %5161 = vmatmul.f32.gmra.mxu0 %v5056
        %v5162 = vpop.f32.mrf.mxu0
        %v5163 = vadd.f32 0.0, %v5162
        %5164 = vmatmul.f32.gmra.mxu0 %v5059
        %v5165 = vpop.f32.mrf.mxu0
        %v5166 = vadd.f32 0.0, %v5165
        %5167 = vmatmul.f32.gmra.mxu0 %v5062
        %v5168 = vpop.f32.mrf.mxu0
        %v5169 = vadd.f32 0.0, %v5168
        %5170 = vdwg.mxu0
        %v5172 = vsel %vm4973, %v4950, 0
        %v5175 = vsel %vm4973, %v4951, 0
        %5177 = vmatpush.msra.mxu0 0.0
        %5178 = vmatpush.msra.mxu0 0.0
        %5179 = vmatpush.msra.mxu0 0.0
        %5180 = vmatpush.msra.mxu0 0.0
        %5181 = vmatpush.msra.mxu0 0.0
        %5182 = vmatpush.msra.mxu0 0.0
        %5183 = vmatpush.msra.mxu0 0.0
        %5184 = vmatpush.msra.mxu0 0.0
        %5185 = vmatpush.msra.mxu0 0.0
        %5186 = vmatpush.msra.mxu0 0.0
        %5187 = vmatpush.msra.mxu0 0.0
        %5188 = vmatpush.msra.mxu0 0.0
        %5189 = vmatpush.msra.mxu0 0.0
        %5190 = vmatpush.msra.mxu0 0.0
        %5191 = vmatpush.msra.mxu0 %v5085
        %5192 = vmatpush.msra.mxu0 %v5082
        %5193 = vmatmul.f32.gmra.mxu0 %v5172
        %v5194 = vpop.f32.mrf.mxu0
        %v5195 = vadd.f32 0.0, %v5194
        %5196 = vmatmul.f32.gmra.mxu0 %v5175
        %v5197 = vpop.f32.mrf.mxu0
        %v5198 = vadd.f32 0.0, %v5197
        %5199 = vdwg.mxu0
        %5200 = vmatpush.msra.mxu0 0.0
        %5201 = vmatpush.msra.mxu0 0.0
        %5202 = vmatpush.msra.mxu0 0.0
        %5203 = vmatpush.msra.mxu0 0.0
        %5204 = vmatpush.msra.mxu0 0.0
        %5205 = vmatpush.msra.mxu0 0.0
        %5206 = vmatpush.msra.mxu0 0.0
        %5207 = vmatpush.msra.mxu0 0.0
        %5208 = vmatpush.msra.mxu0 0.0
        %5209 = vmatpush.msra.mxu0 0.0
        %5210 = vmatpush.msra.mxu0 0.0
        %5211 = vmatpush.msra.mxu0 0.0
        %5212 = vmatpush.msra.mxu0 0.0
        %5213 = vmatpush.msra.mxu0 0.0
        %5214 = vmatpush.msra.mxu0 %v5091
        %5215 = vmatpush.msra.mxu0 %v5088
        %5216 = vmatmul.f32.gmra.mxu0 %v5172
        %v5217 = vpop.f32.mrf.mxu0
        %v5218 = vadd.f32 0.0, %v5217
        %5219 = vmatmul.f32.gmra.mxu0 %v5175
        %v5220 = vpop.f32.mrf.mxu0
        %v5221 = vadd.f32 0.0, %v5220
        %5222 = vdwg.mxu0
        %5223 = vmatpush.msra.mxu0 0.0
        %5224 = vmatpush.msra.mxu0 0.0
        %5225 = vmatpush.msra.mxu0 0.0
        %5226 = vmatpush.msra.mxu0 0.0
        %5227 = vmatpush.msra.mxu0 0.0
        %5228 = vmatpush.msra.mxu0 0.0
        %5229 = vmatpush.msra.mxu0 0.0
        %5230 = vmatpush.msra.mxu0 0.0
        %5231 = vmatpush.msra.mxu0 0.0
        %5232 = vmatpush.msra.mxu0 0.0
        %5233 = vmatpush.msra.mxu0 0.0
        %5234 = vmatpush.msra.mxu0 0.0
        %5235 = vmatpush.msra.mxu0 0.0
        %5236 = vmatpush.msra.mxu0 0.0
        %5237 = vmatpush.msra.mxu0 %v5097
        %5238 = vmatpush.msra.mxu0 %v5094
        %5239 = vmatmul.f32.gmra.mxu0 %v5172
        %v5240 = vpop.f32.mrf.mxu0
        %v5241 = vadd.f32 0.0, %v5240
        %5242 = vmatmul.f32.gmra.mxu0 %v5175
        %v5243 = vpop.f32.mrf.mxu0
        %v5244 = vadd.f32 0.0, %v5243
        %5245 = vdwg.mxu0
        %5246 = vmatpush.msra.mxu0 0.0
        %5247 = vmatpush.msra.mxu0 0.0
        %5248 = vmatpush.msra.mxu0 0.0
        %5249 = vmatpush.msra.mxu0 0.0
        %5250 = vmatpush.msra.mxu0 0.0
        %5251 = vmatpush.msra.mxu0 0.0
        %5252 = vmatpush.msra.mxu0 0.0
        %5253 = vmatpush.msra.mxu0 0.0
        %5254 = vmatpush.msra.mxu0 0.0
        %5255 = vmatpush.msra.mxu0 0.0
        %5256 = vmatpush.msra.mxu0 0.0
        %5257 = vmatpush.msra.mxu0 0.0
        %5258 = vmatpush.msra.mxu0 0.0
        %5259 = vmatpush.msra.mxu0 0.0
        %5260 = vmatpush.msra.mxu0 %v5103
        %5261 = vmatpush.msra.mxu0 %v5100
        %5262 = vmatmul.f32.gmra.mxu0 %v5172
        %v5263 = vpop.f32.mrf.mxu0
        %v5264 = vadd.f32 0.0, %v5263
        %5265 = vmatmul.f32.gmra.mxu0 %v5175
        %v5266 = vpop.f32.mrf.mxu0
        %v5267 = vadd.f32 0.0, %v5266
        %5268 = vdwg.mxu0
        %5269 = vmatpush.msra.mxu0 0.0
        %5270 = vmatpush.msra.mxu0 0.0
        %5271 = vmatpush.msra.mxu0 0.0
        %5272 = vmatpush.msra.mxu0 0.0
        %5273 = vmatpush.msra.mxu0 0.0
        %5274 = vmatpush.msra.mxu0 0.0
        %5275 = vmatpush.msra.mxu0 0.0
        %5276 = vmatpush.msra.mxu0 0.0
        %5277 = vmatpush.msra.mxu0 0.0
        %5278 = vmatpush.msra.mxu0 0.0
        %5279 = vmatpush.msra.mxu0 0.0
        %5280 = vmatpush.msra.mxu0 0.0
        %5281 = vmatpush.msra.mxu0 0.0
        %5282 = vmatpush.msra.mxu0 0.0
        %5283 = vmatpush.msra.mxu0 %v5109
        %5284 = vmatpush.msra.mxu0 %v5106
        %5285 = vmatmul.f32.gmra.mxu0 %v5172
        %v5286 = vpop.f32.mrf.mxu0
        %v5287 = vadd.f32 0.0, %v5286
        %5288 = vmatmul.f32.gmra.mxu0 %v5175
        %v5289 = vpop.f32.mrf.mxu0
        %v5290 = vadd.f32 0.0, %v5289
        %5291 = vdwg.mxu0
        %5292 = vmatpush.msra.mxu0 0.0
        %5293 = vmatpush.msra.mxu0 0.0
        %5294 = vmatpush.msra.mxu0 0.0
        %5295 = vmatpush.msra.mxu0 0.0
        %5296 = vmatpush.msra.mxu0 0.0
        %5297 = vmatpush.msra.mxu0 0.0
        %5298 = vmatpush.msra.mxu0 0.0
        %5299 = vmatpush.msra.mxu0 0.0
        %5300 = vmatpush.msra.mxu0 0.0
        %5301 = vmatpush.msra.mxu0 0.0
        %5302 = vmatpush.msra.mxu0 0.0
        %5303 = vmatpush.msra.mxu0 0.0
        %5304 = vmatpush.msra.mxu0 0.0
        %5305 = vmatpush.msra.mxu0 0.0
        %5306 = vmatpush.msra.mxu0 %v5115
        %5307 = vmatpush.msra.mxu0 %v5112
        %5308 = vmatmul.f32.gmra.mxu0 %v5172
        %v5309 = vpop.f32.mrf.mxu0
        %v5310 = vadd.f32 0.0, %v5309
        %5311 = vmatmul.f32.gmra.mxu0 %v5175
        %v5312 = vpop.f32.mrf.mxu0
        %v5313 = vadd.f32 0.0, %v5312
        %5314 = vdwg.mxu0
        %5315 = vmatpush.msra.mxu0 0.0
        %5316 = vmatpush.msra.mxu0 0.0
        %5317 = vmatpush.msra.mxu0 0.0
        %5318 = vmatpush.msra.mxu0 0.0
        %5319 = vmatpush.msra.mxu0 0.0
        %5320 = vmatpush.msra.mxu0 0.0
        %5321 = vmatpush.msra.mxu0 0.0
        %5322 = vmatpush.msra.mxu0 0.0
        %5323 = vmatpush.msra.mxu0 0.0
        %5324 = vmatpush.msra.mxu0 0.0
        %5325 = vmatpush.msra.mxu0 0.0
        %5326 = vmatpush.msra.mxu0 0.0
        %5327 = vmatpush.msra.mxu0 0.0
        %5328 = vmatpush.msra.mxu0 0.0
        %5329 = vmatpush.msra.mxu0 %v5121
        %5330 = vmatpush.msra.mxu0 %v5118
        %5331 = vmatmul.f32.gmra.mxu0 %v5172
        %v5332 = vpop.f32.mrf.mxu0
        %v5333 = vadd.f32 0.0, %v5332
        %5334 = vmatmul.f32.gmra.mxu0 %v5175
        %v5335 = vpop.f32.mrf.mxu0
        %v5336 = vadd.f32 0.0, %v5335
        %5337 = vdwg.mxu0
        %5338 = vmatpush.msra.mxu0 0.0
        %5339 = vmatpush.msra.mxu0 0.0
        %5340 = vmatpush.msra.mxu0 0.0
        %5341 = vmatpush.msra.mxu0 0.0
        %5342 = vmatpush.msra.mxu0 0.0
        %5343 = vmatpush.msra.mxu0 0.0
        %5344 = vmatpush.msra.mxu0 0.0
        %5345 = vmatpush.msra.mxu0 0.0
        %5346 = vmatpush.msra.mxu0 0.0
        %5347 = vmatpush.msra.mxu0 0.0
        %5348 = vmatpush.msra.mxu0 0.0
        %5349 = vmatpush.msra.mxu0 0.0
        %5350 = vmatpush.msra.mxu0 0.0
        %5351 = vmatpush.msra.mxu0 0.0
        %5352 = vmatpush.msra.mxu0 %v5127
        %5353 = vmatpush.msra.mxu0 %v5124
        %5354 = vmatmul.f32.gmra.mxu0 %v5172
        %v5355 = vpop.f32.mrf.mxu0
        %v5356 = vadd.f32 0.0, %v5355
        %5357 = vmatmul.f32.gmra.mxu0 %v5175
        %v5358 = vpop.f32.mrf.mxu0
        %v5359 = vadd.f32 0.0, %v5358
        %5360 = vdwg.mxu0
        %5361 = vmatpush.msra.mxu0 0.0
        %5362 = vmatpush.msra.mxu0 0.0
        %5363 = vmatpush.msra.mxu0 0.0
        %5364 = vmatpush.msra.mxu0 0.0
        %5365 = vmatpush.msra.mxu0 0.0
        %5366 = vmatpush.msra.mxu0 0.0
        %5367 = vmatpush.msra.mxu0 0.0
        %5368 = vmatpush.msra.mxu0 0.0
        %5369 = vmatpush.msra.mxu0 0.0
        %5370 = vmatpush.msra.mxu0 0.0
        %5371 = vmatpush.msra.mxu0 0.0
        %5372 = vmatpush.msra.mxu0 0.0
        %5373 = vmatpush.msra.mxu0 0.0
        %5374 = vmatpush.msra.mxu0 0.0
        %5375 = vmatpush.msra.mxu0 %v5133
        %5376 = vmatpush.msra.mxu0 %v5130
        %5377 = vmatmul.f32.gmra.mxu0 %v5172
        %v5378 = vpop.f32.mrf.mxu0
        %v5379 = vadd.f32 0.0, %v5378
        %5380 = vmatmul.f32.gmra.mxu0 %v5175
        %v5381 = vpop.f32.mrf.mxu0
        %v5382 = vadd.f32 0.0, %v5381
        %5383 = vdwg.mxu0
        %5384 = vmatpush.msra.mxu0 0.0
        %5385 = vmatpush.msra.mxu0 0.0
        %5386 = vmatpush.msra.mxu0 0.0
        %5387 = vmatpush.msra.mxu0 0.0
        %5388 = vmatpush.msra.mxu0 0.0
        %5389 = vmatpush.msra.mxu0 0.0
        %5390 = vmatpush.msra.mxu0 0.0
        %5391 = vmatpush.msra.mxu0 0.0
        %5392 = vmatpush.msra.mxu0 0.0
        %5393 = vmatpush.msra.mxu0 0.0
        %5394 = vmatpush.msra.mxu0 0.0
        %5395 = vmatpush.msra.mxu0 0.0
        %5396 = vmatpush.msra.mxu0 0.0
        %5397 = vmatpush.msra.mxu0 0.0
        %5398 = vmatpush.msra.mxu0 %v5139
        %5399 = vmatpush.msra.mxu0 %v5136
        %5400 = vmatmul.f32.gmra.mxu0 %v5172
        %v5401 = vpop.f32.mrf.mxu0
        %v5402 = vadd.f32 0.0, %v5401
        %5403 = vmatmul.f32.gmra.mxu0 %v5175
        %v5404 = vpop.f32.mrf.mxu0
        %v5405 = vadd.f32 0.0, %v5404
        %5406 = vdwg.mxu0
        %5407 = vmatpush.msra.mxu0 0.0
        %5408 = vmatpush.msra.mxu0 0.0
        %5409 = vmatpush.msra.mxu0 0.0
        %5410 = vmatpush.msra.mxu0 0.0
        %5411 = vmatpush.msra.mxu0 0.0
        %5412 = vmatpush.msra.mxu0 0.0
        %5413 = vmatpush.msra.mxu0 0.0
        %5414 = vmatpush.msra.mxu0 0.0
        %5415 = vmatpush.msra.mxu0 0.0
        %5416 = vmatpush.msra.mxu0 0.0
        %5417 = vmatpush.msra.mxu0 0.0
        %5418 = vmatpush.msra.mxu0 0.0
        %5419 = vmatpush.msra.mxu0 0.0
        %5420 = vmatpush.msra.mxu0 0.0
        %5421 = vmatpush.msra.mxu0 %v5145
        %5422 = vmatpush.msra.mxu0 %v5142
        %5423 = vmatmul.f32.gmra.mxu0 %v5172
        %v5424 = vpop.f32.mrf.mxu0
        %v5425 = vadd.f32 0.0, %v5424
        %5426 = vmatmul.f32.gmra.mxu0 %v5175
        %v5427 = vpop.f32.mrf.mxu0
        %v5428 = vadd.f32 0.0, %v5427
        %5429 = vdwg.mxu0
        %5430 = vmatpush.msra.mxu0 0.0
        %5431 = vmatpush.msra.mxu0 0.0
        %5432 = vmatpush.msra.mxu0 0.0
        %5433 = vmatpush.msra.mxu0 0.0
        %5434 = vmatpush.msra.mxu0 0.0
        %5435 = vmatpush.msra.mxu0 0.0
        %5436 = vmatpush.msra.mxu0 0.0
        %5437 = vmatpush.msra.mxu0 0.0
        %5438 = vmatpush.msra.mxu0 0.0
        %5439 = vmatpush.msra.mxu0 0.0
        %5440 = vmatpush.msra.mxu0 0.0
        %5441 = vmatpush.msra.mxu0 0.0
        %5442 = vmatpush.msra.mxu0 0.0
        %5443 = vmatpush.msra.mxu0 0.0
        %5444 = vmatpush.msra.mxu0 %v5151
        %5445 = vmatpush.msra.mxu0 %v5148
        %5446 = vmatmul.f32.gmra.mxu0 %v5172
        %v5447 = vpop.f32.mrf.mxu0
        %v5448 = vadd.f32 0.0, %v5447
        %5449 = vmatmul.f32.gmra.mxu0 %v5175
        %v5450 = vpop.f32.mrf.mxu0
        %v5451 = vadd.f32 0.0, %v5450
        %5452 = vdwg.mxu0
        %5453 = vmatpush.msra.mxu0 0.0
        %5454 = vmatpush.msra.mxu0 0.0
        %5455 = vmatpush.msra.mxu0 0.0
        %5456 = vmatpush.msra.mxu0 0.0
        %5457 = vmatpush.msra.mxu0 0.0
        %5458 = vmatpush.msra.mxu0 0.0
        %5459 = vmatpush.msra.mxu0 0.0
        %5460 = vmatpush.msra.mxu0 0.0
        %5461 = vmatpush.msra.mxu0 0.0
        %5462 = vmatpush.msra.mxu0 0.0
        %5463 = vmatpush.msra.mxu0 0.0
        %5464 = vmatpush.msra.mxu0 0.0
        %5465 = vmatpush.msra.mxu0 0.0
        %5466 = vmatpush.msra.mxu0 0.0
        %5467 = vmatpush.msra.mxu0 %v5157
        %5468 = vmatpush.msra.mxu0 %v5154
        %5469 = vmatmul.f32.gmra.mxu0 %v5172
        %v5470 = vpop.f32.mrf.mxu0
        %v5471 = vadd.f32 0.0, %v5470
        %5472 = vmatmul.f32.gmra.mxu0 %v5175
        %v5473 = vpop.f32.mrf.mxu0
        %v5474 = vadd.f32 0.0, %v5473
        %5475 = vdwg.mxu0
        %5476 = vmatpush.msra.mxu0 0.0
        %5477 = vmatpush.msra.mxu0 0.0
        %5478 = vmatpush.msra.mxu0 0.0
        %5479 = vmatpush.msra.mxu0 0.0
        %5480 = vmatpush.msra.mxu0 0.0
        %5481 = vmatpush.msra.mxu0 0.0
        %5482 = vmatpush.msra.mxu0 0.0
        %5483 = vmatpush.msra.mxu0 0.0
        %5484 = vmatpush.msra.mxu0 0.0
        %5485 = vmatpush.msra.mxu0 0.0
        %5486 = vmatpush.msra.mxu0 0.0
        %5487 = vmatpush.msra.mxu0 0.0
        %5488 = vmatpush.msra.mxu0 0.0
        %5489 = vmatpush.msra.mxu0 0.0
        %5490 = vmatpush.msra.mxu0 %v5163
        %5491 = vmatpush.msra.mxu0 %v5160
        %5492 = vmatmul.f32.gmra.mxu0 %v5172
        %v5493 = vpop.f32.mrf.mxu0
        %v5494 = vadd.f32 0.0, %v5493
        %5495 = vmatmul.f32.gmra.mxu0 %v5175
        %v5496 = vpop.f32.mrf.mxu0
        %v5497 = vadd.f32 0.0, %v5496
        %5498 = vdwg.mxu0
        %5499 = vmatpush.msra.mxu0 0.0
        %5500 = vmatpush.msra.mxu0 0.0
        %5501 = vmatpush.msra.mxu0 0.0
        %5502 = vmatpush.msra.mxu0 0.0
        %5503 = vmatpush.msra.mxu0 0.0
        %5504 = vmatpush.msra.mxu0 0.0
        %5505 = vmatpush.msra.mxu0 0.0
        %5506 = vmatpush.msra.mxu0 0.0
        %5507 = vmatpush.msra.mxu0 0.0
        %5508 = vmatpush.msra.mxu0 0.0
        %5509 = vmatpush.msra.mxu0 0.0
        %5510 = vmatpush.msra.mxu0 0.0
        %5511 = vmatpush.msra.mxu0 0.0
        %5512 = vmatpush.msra.mxu0 0.0
        %5513 = vmatpush.msra.mxu0 %v5169
        %5514 = vmatpush.msra.mxu0 %v5166
        %5515 = vmatmul.f32.gmra.mxu0 %v5172
        %v5516 = vpop.f32.mrf.mxu0
        %v5517 = vadd.f32 0.0, %v5516
        %5518 = vmatmul.f32.gmra.mxu0 %v5175
        %v5519 = vpop.f32.mrf.mxu0
        %v5520 = vadd.f32 0.0, %v5519
        %5521 = vdwg.mxu0
        %v5522 = vmul.f32 %v5195, %v5195
        %v5523 = vmul.f32 %v5198, %v5198
        %v5524 = vmul.f32 %v5218, %v5218
        %v5525 = vmul.f32 %v5221, %v5221
        %v5526 = vmul.f32 %v5241, %v5241
        %v5527 = vmul.f32 %v5244, %v5244
        %v5528 = vmul.f32 %v5264, %v5264
        %v5529 = vmul.f32 %v5267, %v5267
        %v5530 = vmul.f32 %v5287, %v5287
        %v5531 = vmul.f32 %v5290, %v5290
        %v5532 = vmul.f32 %v5310, %v5310
        %v5533 = vmul.f32 %v5313, %v5313
        %v5534 = vmul.f32 %v5195, %v5264
        %v5535 = vmul.f32 %v5198, %v5267
        %v5536 = vmul.f32 %v5218, %v5287
        %v5537 = vmul.f32 %v5221, %v5290
        %v5538 = vmul.f32 %v5241, %v5310
        %v5539 = vmul.f32 %v5244, %v5313
        %v5540 = vsub.f32 %v5333, %v5522
        %v5541 = vsub.f32 %v5336, %v5523
        %v5542 = vsub.f32 %v5356, %v5524
        %v5543 = vsub.f32 %v5359, %v5525
        %v5544 = vsub.f32 %v5379, %v5526
        %v5545 = vsub.f32 %v5382, %v5527
        %v5546 = vsub.f32 %v5402, %v5528
        %v5547 = vsub.f32 %v5405, %v5529
        %v5548 = vsub.f32 %v5425, %v5530
        %v5549 = vsub.f32 %v5428, %v5531
        %v5550 = vsub.f32 %v5448, %v5532
        %v5551 = vsub.f32 %v5451, %v5533
        %v5552 = vsub.f32 %v5471, %v5534
        %v5553 = vsub.f32 %v5474, %v5535
        %v5554 = vsub.f32 %v5494, %v5536
        %v5555 = vsub.f32 %v5497, %v5537
        %v5556 = vsub.f32 %v5517, %v5538
        %v5557 = vsub.f32 %v5520, %v5539
        %v5558 = vmul.f32 %v5552, 2.0
        %v5559 = vmul.f32 %v5553, 2.0
        %v5560 = vmul.f32 %v5554, 2.0
        %v5561 = vmul.f32 %v5555, 2.0
        %v5562 = vmul.f32 %v5556, 2.0
        %v5563 = vmul.f32 %v5557, 2.0
        %v5564 = vadd.f32 %v5558, 0.0009
        %v5565 = vadd.f32 %v5559, 0.0009
        %v5566 = vadd.f32 %v5560, 0.0009
        %v5567 = vadd.f32 %v5561, 0.0009
        %v5568 = vadd.f32 %v5562, 0.0009
        %v5569 = vadd.f32 %v5563, 0.0009
        %v5570 = vadd.f32 %v5540, %v5546
        %v5571 = vadd.f32 %v5541, %v5547
        %v5572 = vadd.f32 %v5542, %v5548
        %v5573 = vadd.f32 %v5543, %v5549
        %v5574 = vadd.f32 %v5544, %v5550
        %v5575 = vadd.f32 %v5545, %v5551
        %v5576 = vadd.f32 %v5570, 0.0009
        %v5577 = vadd.f32 %v5571, 0.0009
        %v5578 = vadd.f32 %v5572, 0.0009
        %v5579 = vadd.f32 %v5573, 0.0009
        %v5580 = vadd.f32 %v5574, 0.0009
        %v5581 = vadd.f32 %v5575, 0.0009
        %v5582 = vrcp.pop %v5576
        %v5583 = vmul.f32 %v5576, %v5582
        %v5584 = vsub.f32 1.0, %v5583
        %v5585 = vmul.f32 %v5582, %v5584
        %v5586 = vadd.f32 %v5582, %v5585
        %vm5587 = vweird.f32 %v5576
        %vm5588 = vweird.f32 %v5582
        %vm5589 = vmor %vm5587, %vm5588
        %v5590 = vsel %vm5589, %v5582, %v5586
        %v5591 = vand.u32 2147483647, %v5576
        %vm5592 = vcmp.eq.f32.partialorder %v5591, 8.507059e+37
        %v5593 = vand.u32 %v5576, 2147483648
        %v5594 = vor.u32 1.1754944e-38, %v5593
        %v5595 = vsel %vm5592, %v5594, %v5590
        %v5596 = vmul.f32 %v5564, %v5595
        %v5597 = vrcp.pop %v5577
        %v5598 = vmul.f32 %v5577, %v5597
        %v5599 = vsub.f32 1.0, %v5598
        %v5600 = vmul.f32 %v5597, %v5599
        %v5601 = vadd.f32 %v5597, %v5600
        %vm5602 = vweird.f32 %v5577
        %vm5603 = vweird.f32 %v5597
        %vm5604 = vmor %vm5602, %vm5603
        %v5605 = vsel %vm5604, %v5597, %v5601
        %v5606 = vand.u32 2147483647, %v5577
        %vm5607 = vcmp.eq.f32.partialorder %v5606, 8.507059e+37
        %v5608 = vand.u32 %v5577, 2147483648
        %v5609 = vor.u32 1.1754944e-38, %v5608
        %v5610 = vsel %vm5607, %v5609, %v5605
        %v5611 = vmul.f32 %v5565, %v5610
        %v5612 = vrcp.pop %v5578
        %v5613 = vmul.f32 %v5578, %v5612
        %v5614 = vsub.f32 1.0, %v5613
        %v5615 = vmul.f32 %v5612, %v5614
        %v5616 = vadd.f32 %v5612, %v5615
        %vm5617 = vweird.f32 %v5578
        %vm5618 = vweird.f32 %v5612
        %vm5619 = vmor %vm5617, %vm5618
        %v5620 = vsel %vm5619, %v5612, %v5616
        %v5621 = vand.u32 2147483647, %v5578
        %vm5622 = vcmp.eq.f32.partialorder %v5621, 8.507059e+37
        %v5623 = vand.u32 %v5578, 2147483648
        %v5624 = vor.u32 1.1754944e-38, %v5623
        %v5625 = vsel %vm5622, %v5624, %v5620
        %v5626 = vmul.f32 %v5566, %v5625
        %v5627 = vrcp.pop %v5579
        %v5628 = vmul.f32 %v5579, %v5627
        %v5629 = vsub.f32 1.0, %v5628
        %v5630 = vmul.f32 %v5627, %v5629
        %v5631 = vadd.f32 %v5627, %v5630
        %vm5632 = vweird.f32 %v5579
        %vm5633 = vweird.f32 %v5627
        %vm5634 = vmor %vm5632, %vm5633
        %v5635 = vsel %vm5634, %v5627, %v5631
        %v5636 = vand.u32 2147483647, %v5579
        %vm5637 = vcmp.eq.f32.partialorder %v5636, 8.507059e+37
        %v5638 = vand.u32 %v5579, 2147483648
        %v5639 = vor.u32 1.1754944e-38, %v5638
        %v5640 = vsel %vm5637, %v5639, %v5635
        %v5641 = vmul.f32 %v5567, %v5640
        %v5642 = vrcp.pop %v5580
        %v5643 = vmul.f32 %v5580, %v5642
        %v5644 = vsub.f32 1.0, %v5643
        %v5645 = vmul.f32 %v5642, %v5644
        %v5646 = vadd.f32 %v5642, %v5645
        %vm5647 = vweird.f32 %v5580
        %vm5648 = vweird.f32 %v5642
        %vm5649 = vmor %vm5647, %vm5648
        %v5650 = vsel %vm5649, %v5642, %v5646
        %v5651 = vand.u32 2147483647, %v5580
        %vm5652 = vcmp.eq.f32.partialorder %v5651, 8.507059e+37
        %v5653 = vand.u32 %v5580, 2147483648
        %v5654 = vor.u32 1.1754944e-38, %v5653
        %v5655 = vsel %vm5652, %v5654, %v5650
        %v5656 = vmul.f32 %v5568, %v5655
        %v5657 = vrcp.pop %v5581
        %v5658 = vmul.f32 %v5581, %v5657
        %v5659 = vsub.f32 1.0, %v5658
        %v5660 = vmul.f32 %v5657, %v5659
        %v5661 = vadd.f32 %v5657, %v5660
        %vm5662 = vweird.f32 %v5581
        %vm5663 = vweird.f32 %v5657
        %vm5664 = vmor %vm5662, %vm5663
        %v5665 = vsel %vm5664, %v5657, %v5661
        %v5666 = vand.u32 2147483647, %v5581
        %vm5667 = vcmp.eq.f32.partialorder %v5666, 8.507059e+37
        %v5668 = vand.u32 %v5581, 2147483648
        %v5669 = vor.u32 1.1754944e-38, %v5668
        %v5670 = vsel %vm5667, %v5669, %v5665
        %v5671 = vmul.f32 %v5569, %v5670
        %vm5672 = vcmask 113664
        %v5673 = vsel %vm5672, %v5596, 0.0
        %5674 = vadd.xlane.f32.xlu0 %v5673
        %v5675 = vpop.xlane.xlu0 %5674
        %vm5676 = vcmask 111616
        %v5677 = vsel %vm5676, %v5611, 0.0
        %5678 = vadd.xlane.f32.xlu0 %v5677
        %v5679 = vpop.xlane.xlu0 %5678
        %v5680 = vsel %vm5672, %v5626, 0.0
        %5681 = vadd.xlane.f32.xlu0 %v5680
        %v5682 = vpop.xlane.xlu0 %5681
        %v5683 = vsel %vm5676, %v5641, 0.0
        %5684 = vadd.xlane.f32.xlu0 %v5683
        %v5685 = vpop.xlane.xlu0 %5684
        %v5686 = vsel %vm5672, %v5656, 0.0
        %5687 = vadd.xlane.f32.xlu0 %v5686
        %v5688 = vpop.xlane.xlu0 %5687
        %v5689 = vsel %vm5676, %v5671, 0.0
        %5690 = vadd.xlane.f32.xlu0 %v5689
        %v5691 = vpop.xlane.xlu0 %5690
        %v5692 = vsel %vm3025, %v5679, 0.0
        %v5693 = vadd.f32 %v5675, %v5692
        %v5694 = vrot.slane %v5693, 4
        %v5695 = vadd.f32 %v5693, %v5694
        %v5696 = vrot.slane %v5695, 2
        %v5697 = vadd.f32 %v5695, %v5696
        %v5698 = vrot.slane %v5697, 1
        %v5699 = vadd.f32 %v5697, %v5698
        %v5700 = vsel %vm3025, %v5685, 0.0
        %v5701 = vadd.f32 %v5682, %v5700
        %v5702 = vrot.slane %v5701, 4
        %v5703 = vadd.f32 %v5701, %v5702
        %v5704 = vrot.slane %v5703, 2
        %v5705 = vadd.f32 %v5703, %v5704
        %v5706 = vrot.slane %v5705, 1
        %v5707 = vadd.f32 %v5705, %v5706
        %v5708 = vsel %vm3025, %v5691, 0.0
        %v5709 = vadd.f32 %v5688, %v5708
        %v5710 = vrot.slane %v5709, 4
        %v5711 = vadd.f32 %v5709, %v5710
        %v5712 = vrot.slane %v5711, 2
        %v5713 = vadd.f32 %v5711, %v5712
        %v5714 = vrot.slane %v5713, 1
        %v5715 = vadd.f32 %v5713, %v5714
        %v5716 = vmul.f32 %v5699, 0.0051020407
        %v5717 = vmul.f32 %v5707, 0.0051020407
        %v5718 = vmul.f32 %v5715, 0.0051020407
        %v5719 = vmax.f32 %v5716, 0.0
        %v5720 = vmax.f32 %v5717, 0.0
        %v5721 = vmax.f32 %v5718, 0.0
        %vm5722 = vcmp.gt.f32.partialorder %v5719, 0.0
        %vm5723 = vcmp.gt.f32.partialorder %v5720, 0.0
        %vm5724 = vcmp.gt.f32.partialorder %v5721, 0.0
        %v5725 = vmax.f32 %v5719, 1e-30
        %v5726 = vmax.f32 %v5720, 1e-30
        %v5727 = vmax.f32 %v5721, 1e-30
        %v5728 = vlog2.pop %v5725
        %v5729 = vmul.f32 %v5728, 0.6931472
        %v5730 = vlog2.pop %v5726
        %v5731 = vmul.f32 %v5730, 0.6931472
        %v5732 = vlog2.pop %v5727
        %v5733 = vmul.f32 %v5732, 0.6931472
        %v5734 = vmul.f32 %v5729, 0.3001
        %v5735 = vmul.f32 %v5731, 0.3001
        %v5736 = vmul.f32 %v5733, 0.3001
        %v5737 = vmul.f32 %v5734, 1.442695
        %v5738 = vpow.pop %v5737
        %v5739 = vmul.f32 %v5735, 1.442695
        %v5740 = vpow.pop %v5739
        %v5741 = vmul.f32 %v5736, 1.442695
        %v5742 = vpow.pop %v5741
        %v5743 = vsel %vm5722, %v5738, 0.0
        %v5744 = vsel %vm5723, %v5740, 0.0
        %v5745 = vsel %vm5724, %v5742, 0.0
        %v5746 = vmul.f32 %v4712, %v5743
        %v5747 = vmul.f32 %v4713, %v5744
        %v5748 = vmul.f32 %v4714, %v5745
        %5749 = vmatpush.msra.mxu0 0.0
        %5750 = vmatpush.msra.mxu0 0.0
        %5751 = vmatpush.msra.mxu0 0.0
        %5752 = vmatpush.msra.mxu0 0.0
        %5753 = vmatpush.msra.mxu0 0.0
        %5754 = vmatpush.msra.mxu0 0.0
        %5755 = vmatpush.msra.mxu0 0.0
        %5756 = vmatpush.msra.mxu0 0.0
        %5757 = vmatpush.msra.mxu0 0.0
        %5758 = vmatpush.msra.mxu0 0.0
        %5759 = vmatpush.msra.mxu0 0.0
        %5760 = vmatpush.msra.mxu0 0.0
        %5761 = vmatpush.msra.mxu0 0.0
        %5762 = vmatpush.msra.mxu0 0.0
        %5763 = vmatpush.msra.mxu0 %v4953
        %5764 = vmatpush.msra.mxu0 %v4952
        %5765 = vmatmul.f32.gmra.mxu0 %v4975
        %v5766 = vpop.f32.mrf.mxu0
        %v5767 = vadd.f32 0.0, %v5766
        %5768 = vmatmul.f32.gmra.mxu0 %v4978
        %v5769 = vpop.f32.mrf.mxu0
        %v5770 = vadd.f32 0.0, %v5769
        %5771 = vmatmul.f32.gmra.mxu0 %v4981
        %v5772 = vpop.f32.mrf.mxu0
        %v5773 = vadd.f32 0.0, %v5772
        %5774 = vmatmul.f32.gmra.mxu0 %v4984
        %v5775 = vpop.f32.mrf.mxu0
        %v5776 = vadd.f32 0.0, %v5775
        %5777 = vmatmul.f32.gmra.mxu0 %v4987
        %v5778 = vpop.f32.mrf.mxu0
        %v5779 = vadd.f32 0.0, %v5778
        %5780 = vmatmul.f32.gmra.mxu0 %v4990
        %v5781 = vpop.f32.mrf.mxu0
        %v5782 = vadd.f32 0.0, %v5781
        %5783 = vmatmul.f32.gmra.mxu0 %v4993
        %v5784 = vpop.f32.mrf.mxu0
        %v5785 = vadd.f32 0.0, %v5784
        %5786 = vmatmul.f32.gmra.mxu0 %v4996
        %v5787 = vpop.f32.mrf.mxu0
        %v5788 = vadd.f32 0.0, %v5787
        %5789 = vmatmul.f32.gmra.mxu0 %v4999
        %v5790 = vpop.f32.mrf.mxu0
        %v5791 = vadd.f32 0.0, %v5790
        %5792 = vmatmul.f32.gmra.mxu0 %v5002
        %v5793 = vpop.f32.mrf.mxu0
        %v5794 = vadd.f32 0.0, %v5793
        %5795 = vmatmul.f32.gmra.mxu0 %v5005
        %v5796 = vpop.f32.mrf.mxu0
        %v5797 = vadd.f32 0.0, %v5796
        %5798 = vmatmul.f32.gmra.mxu0 %v5008
        %v5799 = vpop.f32.mrf.mxu0
        %v5800 = vadd.f32 0.0, %v5799
        %5801 = vdwg.mxu0
        %v5803 = vsel %vm4973, %v4954, 0
        %5805 = vmatpush.msra.mxu0 0.0
        %5806 = vmatpush.msra.mxu0 0.0
        %5807 = vmatpush.msra.mxu0 0.0
        %5808 = vmatpush.msra.mxu0 0.0
        %5809 = vmatpush.msra.mxu0 0.0
        %5810 = vmatpush.msra.mxu0 0.0
        %5811 = vmatpush.msra.mxu0 0.0
        %5812 = vmatpush.msra.mxu0 0.0
        %5813 = vmatpush.msra.mxu0 0.0
        %5814 = vmatpush.msra.mxu0 0.0
        %5815 = vmatpush.msra.mxu0 0.0
        %5816 = vmatpush.msra.mxu0 0.0
        %5817 = vmatpush.msra.mxu0 0.0
        %5818 = vmatpush.msra.mxu0 0.0
        %5819 = vmatpush.msra.mxu0 %v5770
        %5820 = vmatpush.msra.mxu0 %v5767
        %5821 = vmatmul.f32.gmra.mxu0 %v5803
        %v5822 = vpop.f32.mrf.mxu0
        %v5823 = vadd.f32 0.0, %v5822
        %5824 = vdwg.mxu0
        %5825 = vmatpush.msra.mxu0 0.0
        %5826 = vmatpush.msra.mxu0 0.0
        %5827 = vmatpush.msra.mxu0 0.0
        %5828 = vmatpush.msra.mxu0 0.0
        %5829 = vmatpush.msra.mxu0 0.0
        %5830 = vmatpush.msra.mxu0 0.0
        %5831 = vmatpush.msra.mxu0 0.0
        %5832 = vmatpush.msra.mxu0 0.0
        %5833 = vmatpush.msra.mxu0 0.0
        %5834 = vmatpush.msra.mxu0 0.0
        %5835 = vmatpush.msra.mxu0 0.0
        %5836 = vmatpush.msra.mxu0 0.0
        %5837 = vmatpush.msra.mxu0 0.0
        %5838 = vmatpush.msra.mxu0 0.0
        %5839 = vmatpush.msra.mxu0 %v5776
        %5840 = vmatpush.msra.mxu0 %v5773
        %5841 = vmatmul.f32.gmra.mxu0 %v5803
        %v5842 = vpop.f32.mrf.mxu0
        %v5843 = vadd.f32 0.0, %v5842
        %5844 = vdwg.mxu0
        %5845 = vmatpush.msra.mxu0 0.0
        %5846 = vmatpush.msra.mxu0 0.0
        %5847 = vmatpush.msra.mxu0 0.0
        %5848 = vmatpush.msra.mxu0 0.0
        %5849 = vmatpush.msra.mxu0 0.0
        %5850 = vmatpush.msra.mxu0 0.0
        %5851 = vmatpush.msra.mxu0 0.0
        %5852 = vmatpush.msra.mxu0 0.0
        %5853 = vmatpush.msra.mxu0 0.0
        %5854 = vmatpush.msra.mxu0 0.0
        %5855 = vmatpush.msra.mxu0 0.0
        %5856 = vmatpush.msra.mxu0 0.0
        %5857 = vmatpush.msra.mxu0 0.0
        %5858 = vmatpush.msra.mxu0 0.0
        %5859 = vmatpush.msra.mxu0 %v5782
        %5860 = vmatpush.msra.mxu0 %v5779
        %5861 = vmatmul.f32.gmra.mxu0 %v5803
        %v5862 = vpop.f32.mrf.mxu0
        %v5863 = vadd.f32 0.0, %v5862
        %5864 = vdwg.mxu0
        %5865 = vmatpush.msra.mxu0 0.0
        %5866 = vmatpush.msra.mxu0 0.0
        %5867 = vmatpush.msra.mxu0 0.0
        %5868 = vmatpush.msra.mxu0 0.0
        %5869 = vmatpush.msra.mxu0 0.0
        %5870 = vmatpush.msra.mxu0 0.0
        %5871 = vmatpush.msra.mxu0 0.0
        %5872 = vmatpush.msra.mxu0 0.0
        %5873 = vmatpush.msra.mxu0 0.0
        %5874 = vmatpush.msra.mxu0 0.0
        %5875 = vmatpush.msra.mxu0 0.0
        %5876 = vmatpush.msra.mxu0 0.0
        %5877 = vmatpush.msra.mxu0 0.0
        %5878 = vmatpush.msra.mxu0 0.0
        %5879 = vmatpush.msra.mxu0 %v5788
        %5880 = vmatpush.msra.mxu0 %v5785
        %5881 = vmatmul.f32.gmra.mxu0 %v5803
        %v5882 = vpop.f32.mrf.mxu0
        %v5883 = vadd.f32 0.0, %v5882
        %5884 = vdwg.mxu0
        %5885 = vmatpush.msra.mxu0 0.0
        %5886 = vmatpush.msra.mxu0 0.0
        %5887 = vmatpush.msra.mxu0 0.0
        %5888 = vmatpush.msra.mxu0 0.0
        %5889 = vmatpush.msra.mxu0 0.0
        %5890 = vmatpush.msra.mxu0 0.0
        %5891 = vmatpush.msra.mxu0 0.0
        %5892 = vmatpush.msra.mxu0 0.0
        %5893 = vmatpush.msra.mxu0 0.0
        %5894 = vmatpush.msra.mxu0 0.0
        %5895 = vmatpush.msra.mxu0 0.0
        %5896 = vmatpush.msra.mxu0 0.0
        %5897 = vmatpush.msra.mxu0 0.0
        %5898 = vmatpush.msra.mxu0 0.0
        %5899 = vmatpush.msra.mxu0 %v5794
        %5900 = vmatpush.msra.mxu0 %v5791
        %5901 = vmatmul.f32.gmra.mxu0 %v5803
        %v5902 = vpop.f32.mrf.mxu0
        %v5903 = vadd.f32 0.0, %v5902
        %5904 = vdwg.mxu0
        %5905 = vmatpush.msra.mxu0 0.0
        %5906 = vmatpush.msra.mxu0 0.0
        %5907 = vmatpush.msra.mxu0 0.0
        %5908 = vmatpush.msra.mxu0 0.0
        %5909 = vmatpush.msra.mxu0 0.0
        %5910 = vmatpush.msra.mxu0 0.0
        %5911 = vmatpush.msra.mxu0 0.0
        %5912 = vmatpush.msra.mxu0 0.0
        %5913 = vmatpush.msra.mxu0 0.0
        %5914 = vmatpush.msra.mxu0 0.0
        %5915 = vmatpush.msra.mxu0 0.0
        %5916 = vmatpush.msra.mxu0 0.0
        %5917 = vmatpush.msra.mxu0 0.0
        %5918 = vmatpush.msra.mxu0 0.0
        %5919 = vmatpush.msra.mxu0 %v5800
        %5920 = vmatpush.msra.mxu0 %v5797
        %5921 = vmatmul.f32.gmra.mxu0 %v5803
        %v5922 = vpop.f32.mrf.mxu0
        %v5923 = vadd.f32 0.0, %v5922
        %5924 = vdwg.mxu0
        %v5925 = vld [vmem:[#allocation13] sm:$0xff]
        %v5926 = vld [vmem:[%s15] sm:$0x3f]
        %v5927 = vld [vmem:[%s16] sm:$0xff]
        %v5928 = vld [vmem:[#allocation15] sm:$0xf]
        %v5929 = vmul.f32 %v5823, %v5823
        %v5930 = vmul.f32 %v5843, %v5843
        %v5931 = vmul.f32 %v5863, %v5863
        %v5932 = vmul.f32 %v5883, %v5883
        %v5933 = vmul.f32 %v5903, %v5903
        %v5934 = vmul.f32 %v5923, %v5923
        %v5935 = vmul.f32 %v5823, %v5883
        %v5936 = vmul.f32 %v5843, %v5903
        %v5937 = vmul.f32 %v5863, %v5923
        %vm5938 = vcmask 64512
        %v5940 = vsel %vm5938, %v5823, 0
        %v5943 = vsel %vm5938, %v5843, 0
        %v5946 = vsel %vm5938, %v5863, 0
        %v5949 = vsel %vm5938, %v5883, 0
        %v5952 = vsel %vm5938, %v5903, 0
        %v5955 = vsel %vm5938, %v5923, 0
        %v5958 = vsel %vm5938, %v5929, 0
        %v5961 = vsel %vm5938, %v5930, 0
        %v5964 = vsel %vm5938, %v5931, 0
        %v5967 = vsel %vm5938, %v5932, 0
        %v5970 = vsel %vm5938, %v5933, 0
        %v5973 = vsel %vm5938, %v5934, 0
        %v5976 = vsel %vm5938, %v5935, 0
        %v5979 = vsel %vm5938, %v5936, 0
        %v5982 = vsel %vm5938, %v5937, 0
        %5984 = vmatpush.msra.mxu0 0.0
        %5985 = vmatpush.msra.mxu0 0.0
        %5986 = vmatpush.msra.mxu0 0.0
        %5987 = vmatpush.msra.mxu0 0.0
        %5988 = vmatpush.msra.mxu0 0.0
        %5989 = vmatpush.msra.mxu0 0.0
        %5990 = vmatpush.msra.mxu0 0.0
        %5991 = vmatpush.msra.mxu0 0.0
        %5992 = vmatpush.msra.mxu0 0.0
        %5993 = vmatpush.msra.mxu0 0.0
        %5994 = vmatpush.msra.mxu0 0.0
        %5995 = vmatpush.msra.mxu0 0.0
        %5996 = vmatpush.msra.mxu0 0.0
        %5997 = vmatpush.msra.mxu0 0.0
        %5998 = vmatpush.msra.mxu0 0.0
        %5999 = vmatpush.msra.mxu0 %v5925
        %6000 = vmatmul.f32.gmra.mxu0 %v5940
        %v6001 = vpop.f32.mrf.mxu0
        %v6002 = vadd.f32 0.0, %v6001
        %6003 = vmatmul.f32.gmra.mxu0 %v5943
        %v6004 = vpop.f32.mrf.mxu0
        %v6005 = vadd.f32 0.0, %v6004
        %6006 = vmatmul.f32.gmra.mxu0 %v5946
        %v6007 = vpop.f32.mrf.mxu0
        %v6008 = vadd.f32 0.0, %v6007
        %6009 = vmatmul.f32.gmra.mxu0 %v5949
        %v6010 = vpop.f32.mrf.mxu0
        %v6011 = vadd.f32 0.0, %v6010
        %6012 = vmatmul.f32.gmra.mxu0 %v5952
        %v6013 = vpop.f32.mrf.mxu0
        %v6014 = vadd.f32 0.0, %v6013
        %6015 = vmatmul.f32.gmra.mxu0 %v5955
        %v6016 = vpop.f32.mrf.mxu0
        %v6017 = vadd.f32 0.0, %v6016
        %6018 = vmatmul.f32.gmra.mxu0 %v5958
        %v6019 = vpop.f32.mrf.mxu0
        %v6020 = vadd.f32 0.0, %v6019
        %6021 = vmatmul.f32.gmra.mxu0 %v5961
        %v6022 = vpop.f32.mrf.mxu0
        %v6023 = vadd.f32 0.0, %v6022
        %6024 = vmatmul.f32.gmra.mxu0 %v5964
        %v6025 = vpop.f32.mrf.mxu0
        %v6026 = vadd.f32 0.0, %v6025
        %6027 = vmatmul.f32.gmra.mxu0 %v5967
        %v6028 = vpop.f32.mrf.mxu0
        %v6029 = vadd.f32 0.0, %v6028
        %6030 = vmatmul.f32.gmra.mxu0 %v5970
        %v6031 = vpop.f32.mrf.mxu0
        %v6032 = vadd.f32 0.0, %v6031
        %6033 = vmatmul.f32.gmra.mxu0 %v5973
        %v6034 = vpop.f32.mrf.mxu0
        %v6035 = vadd.f32 0.0, %v6034
        %6036 = vmatmul.f32.gmra.mxu0 %v5976
        %v6037 = vpop.f32.mrf.mxu0
        %v6038 = vadd.f32 0.0, %v6037
        %6039 = vmatmul.f32.gmra.mxu0 %v5979
        %v6040 = vpop.f32.mrf.mxu0
        %v6041 = vadd.f32 0.0, %v6040
        %6042 = vmatmul.f32.gmra.mxu0 %v5982
        %v6043 = vpop.f32.mrf.mxu0
        %v6044 = vadd.f32 0.0, %v6043
        %6045 = vdwg.mxu0
        %v6047 = vsel %vm5938, %v5926, 0
        %6049 = vmatpush.msra.mxu0 0.0
        %6050 = vmatpush.msra.mxu0 0.0
        %6051 = vmatpush.msra.mxu0 0.0
        %6052 = vmatpush.msra.mxu0 0.0
        %6053 = vmatpush.msra.mxu0 0.0
        %6054 = vmatpush.msra.mxu0 0.0
        %6055 = vmatpush.msra.mxu0 0.0
        %6056 = vmatpush.msra.mxu0 0.0
        %6057 = vmatpush.msra.mxu0 0.0
        %6058 = vmatpush.msra.mxu0 0.0
        %6059 = vmatpush.msra.mxu0 0.0
        %6060 = vmatpush.msra.mxu0 0.0
        %6061 = vmatpush.msra.mxu0 0.0
        %6062 = vmatpush.msra.mxu0 0.0
        %6063 = vmatpush.msra.mxu0 0.0
        %6064 = vmatpush.msra.mxu0 %v6002
        %6065 = vmatmul.f32.gmra.mxu0 %v6047
        %v6066 = vpop.f32.mrf.mxu0
        %v6067 = vadd.f32 0.0, %v6066
        %6068 = vdwg.mxu0
        %6069 = vmatpush.msra.mxu0 0.0
        %6070 = vmatpush.msra.mxu0 0.0
        %6071 = vmatpush.msra.mxu0 0.0
        %6072 = vmatpush.msra.mxu0 0.0
        %6073 = vmatpush.msra.mxu0 0.0
        %6074 = vmatpush.msra.mxu0 0.0
        %6075 = vmatpush.msra.mxu0 0.0
        %6076 = vmatpush.msra.mxu0 0.0
        %6077 = vmatpush.msra.mxu0 0.0
        %6078 = vmatpush.msra.mxu0 0.0
        %6079 = vmatpush.msra.mxu0 0.0
        %6080 = vmatpush.msra.mxu0 0.0
        %6081 = vmatpush.msra.mxu0 0.0
        %6082 = vmatpush.msra.mxu0 0.0
        %6083 = vmatpush.msra.mxu0 0.0
        %6084 = vmatpush.msra.mxu0 %v6005
        %6085 = vmatmul.f32.gmra.mxu0 %v6047
        %v6086 = vpop.f32.mrf.mxu0
        %v6087 = vadd.f32 0.0, %v6086
        %6088 = vdwg.mxu0
        %6089 = vmatpush.msra.mxu0 0.0
        %6090 = vmatpush.msra.mxu0 0.0
        %6091 = vmatpush.msra.mxu0 0.0
        %6092 = vmatpush.msra.mxu0 0.0
        %6093 = vmatpush.msra.mxu0 0.0
        %6094 = vmatpush.msra.mxu0 0.0
        %6095 = vmatpush.msra.mxu0 0.0
        %6096 = vmatpush.msra.mxu0 0.0
        %6097 = vmatpush.msra.mxu0 0.0
        %6098 = vmatpush.msra.mxu0 0.0
        %6099 = vmatpush.msra.mxu0 0.0
        %6100 = vmatpush.msra.mxu0 0.0
        %6101 = vmatpush.msra.mxu0 0.0
        %6102 = vmatpush.msra.mxu0 0.0
        %6103 = vmatpush.msra.mxu0 0.0
        %6104 = vmatpush.msra.mxu0 %v6008
        %6105 = vmatmul.f32.gmra.mxu0 %v6047
        %v6106 = vpop.f32.mrf.mxu0
        %v6107 = vadd.f32 0.0, %v6106
        %6108 = vdwg.mxu0
        %6109 = vmatpush.msra.mxu0 0.0
        %6110 = vmatpush.msra.mxu0 0.0
        %6111 = vmatpush.msra.mxu0 0.0
        %6112 = vmatpush.msra.mxu0 0.0
        %6113 = vmatpush.msra.mxu0 0.0
        %6114 = vmatpush.msra.mxu0 0.0
        %6115 = vmatpush.msra.mxu0 0.0
        %6116 = vmatpush.msra.mxu0 0.0
        %6117 = vmatpush.msra.mxu0 0.0
        %6118 = vmatpush.msra.mxu0 0.0
        %6119 = vmatpush.msra.mxu0 0.0
        %6120 = vmatpush.msra.mxu0 0.0
        %6121 = vmatpush.msra.mxu0 0.0
        %6122 = vmatpush.msra.mxu0 0.0
        %6123 = vmatpush.msra.mxu0 0.0
        %6124 = vmatpush.msra.mxu0 %v6011
        %6125 = vmatmul.f32.gmra.mxu0 %v6047
        %v6126 = vpop.f32.mrf.mxu0
        %v6127 = vadd.f32 0.0, %v6126
        %6128 = vdwg.mxu0
        %6129 = vmatpush.msra.mxu0 0.0
        %6130 = vmatpush.msra.mxu0 0.0
        %6131 = vmatpush.msra.mxu0 0.0
        %6132 = vmatpush.msra.mxu0 0.0
        %6133 = vmatpush.msra.mxu0 0.0
        %6134 = vmatpush.msra.mxu0 0.0
        %6135 = vmatpush.msra.mxu0 0.0
        %6136 = vmatpush.msra.mxu0 0.0
        %6137 = vmatpush.msra.mxu0 0.0
        %6138 = vmatpush.msra.mxu0 0.0
        %6139 = vmatpush.msra.mxu0 0.0
        %6140 = vmatpush.msra.mxu0 0.0
        %6141 = vmatpush.msra.mxu0 0.0
        %6142 = vmatpush.msra.mxu0 0.0
        %6143 = vmatpush.msra.mxu0 0.0
        %6144 = vmatpush.msra.mxu0 %v6014
        %6145 = vmatmul.f32.gmra.mxu0 %v6047
        %v6146 = vpop.f32.mrf.mxu0
        %v6147 = vadd.f32 0.0, %v6146
        %6148 = vdwg.mxu0
        %6149 = vmatpush.msra.mxu0 0.0
        %6150 = vmatpush.msra.mxu0 0.0
        %6151 = vmatpush.msra.mxu0 0.0
        %6152 = vmatpush.msra.mxu0 0.0
        %6153 = vmatpush.msra.mxu0 0.0
        %6154 = vmatpush.msra.mxu0 0.0
        %6155 = vmatpush.msra.mxu0 0.0
        %6156 = vmatpush.msra.mxu0 0.0
        %6157 = vmatpush.msra.mxu0 0.0
        %6158 = vmatpush.msra.mxu0 0.0
        %6159 = vmatpush.msra.mxu0 0.0
        %6160 = vmatpush.msra.mxu0 0.0
        %6161 = vmatpush.msra.mxu0 0.0
        %6162 = vmatpush.msra.mxu0 0.0
        %6163 = vmatpush.msra.mxu0 0.0
        %6164 = vmatpush.msra.mxu0 %v6017
        %6165 = vmatmul.f32.gmra.mxu0 %v6047
        %v6166 = vpop.f32.mrf.mxu0
        %v6167 = vadd.f32 0.0, %v6166
        %6168 = vdwg.mxu0
        %6169 = vmatpush.msra.mxu0 0.0
        %6170 = vmatpush.msra.mxu0 0.0
        %6171 = vmatpush.msra.mxu0 0.0
        %6172 = vmatpush.msra.mxu0 0.0
        %6173 = vmatpush.msra.mxu0 0.0
        %6174 = vmatpush.msra.mxu0 0.0
        %6175 = vmatpush.msra.mxu0 0.0
        %6176 = vmatpush.msra.mxu0 0.0
        %6177 = vmatpush.msra.mxu0 0.0
        %6178 = vmatpush.msra.mxu0 0.0
        %6179 = vmatpush.msra.mxu0 0.0
        %6180 = vmatpush.msra.mxu0 0.0
        %6181 = vmatpush.msra.mxu0 0.0
        %6182 = vmatpush.msra.mxu0 0.0
        %6183 = vmatpush.msra.mxu0 0.0
        %6184 = vmatpush.msra.mxu0 %v6020
        %6185 = vmatmul.f32.gmra.mxu0 %v6047
        %v6186 = vpop.f32.mrf.mxu0
        %v6187 = vadd.f32 0.0, %v6186
        %6188 = vdwg.mxu0
        %6189 = vmatpush.msra.mxu0 0.0
        %6190 = vmatpush.msra.mxu0 0.0
        %6191 = vmatpush.msra.mxu0 0.0
        %6192 = vmatpush.msra.mxu0 0.0
        %6193 = vmatpush.msra.mxu0 0.0
        %6194 = vmatpush.msra.mxu0 0.0
        %6195 = vmatpush.msra.mxu0 0.0
        %6196 = vmatpush.msra.mxu0 0.0
        %6197 = vmatpush.msra.mxu0 0.0
        %6198 = vmatpush.msra.mxu0 0.0
        %6199 = vmatpush.msra.mxu0 0.0
        %6200 = vmatpush.msra.mxu0 0.0
        %6201 = vmatpush.msra.mxu0 0.0
        %6202 = vmatpush.msra.mxu0 0.0
        %6203 = vmatpush.msra.mxu0 0.0
        %6204 = vmatpush.msra.mxu0 %v6023
        %6205 = vmatmul.f32.gmra.mxu0 %v6047
        %v6206 = vpop.f32.mrf.mxu0
        %v6207 = vadd.f32 0.0, %v6206
        %6208 = vdwg.mxu0
        %6209 = vmatpush.msra.mxu0 0.0
        %6210 = vmatpush.msra.mxu0 0.0
        %6211 = vmatpush.msra.mxu0 0.0
        %6212 = vmatpush.msra.mxu0 0.0
        %6213 = vmatpush.msra.mxu0 0.0
        %6214 = vmatpush.msra.mxu0 0.0
        %6215 = vmatpush.msra.mxu0 0.0
        %6216 = vmatpush.msra.mxu0 0.0
        %6217 = vmatpush.msra.mxu0 0.0
        %6218 = vmatpush.msra.mxu0 0.0
        %6219 = vmatpush.msra.mxu0 0.0
        %6220 = vmatpush.msra.mxu0 0.0
        %6221 = vmatpush.msra.mxu0 0.0
        %6222 = vmatpush.msra.mxu0 0.0
        %6223 = vmatpush.msra.mxu0 0.0
        %6224 = vmatpush.msra.mxu0 %v6026
        %6225 = vmatmul.f32.gmra.mxu0 %v6047
        %v6226 = vpop.f32.mrf.mxu0
        %v6227 = vadd.f32 0.0, %v6226
        %6228 = vdwg.mxu0
        %6229 = vmatpush.msra.mxu0 0.0
        %6230 = vmatpush.msra.mxu0 0.0
        %6231 = vmatpush.msra.mxu0 0.0
        %6232 = vmatpush.msra.mxu0 0.0
        %6233 = vmatpush.msra.mxu0 0.0
        %6234 = vmatpush.msra.mxu0 0.0
        %6235 = vmatpush.msra.mxu0 0.0
        %6236 = vmatpush.msra.mxu0 0.0
        %6237 = vmatpush.msra.mxu0 0.0
        %6238 = vmatpush.msra.mxu0 0.0
        %6239 = vmatpush.msra.mxu0 0.0
        %6240 = vmatpush.msra.mxu0 0.0
        %6241 = vmatpush.msra.mxu0 0.0
        %6242 = vmatpush.msra.mxu0 0.0
        %6243 = vmatpush.msra.mxu0 0.0
        %6244 = vmatpush.msra.mxu0 %v6029
        %6245 = vmatmul.f32.gmra.mxu0 %v6047
        %v6246 = vpop.f32.mrf.mxu0
        %v6247 = vadd.f32 0.0, %v6246
        %6248 = vdwg.mxu0
        %6249 = vmatpush.msra.mxu0 0.0
        %6250 = vmatpush.msra.mxu0 0.0
        %6251 = vmatpush.msra.mxu0 0.0
        %6252 = vmatpush.msra.mxu0 0.0
        %6253 = vmatpush.msra.mxu0 0.0
        %6254 = vmatpush.msra.mxu0 0.0
        %6255 = vmatpush.msra.mxu0 0.0
        %6256 = vmatpush.msra.mxu0 0.0
        %6257 = vmatpush.msra.mxu0 0.0
        %6258 = vmatpush.msra.mxu0 0.0
        %6259 = vmatpush.msra.mxu0 0.0
        %6260 = vmatpush.msra.mxu0 0.0
        %6261 = vmatpush.msra.mxu0 0.0
        %6262 = vmatpush.msra.mxu0 0.0
        %6263 = vmatpush.msra.mxu0 0.0
        %6264 = vmatpush.msra.mxu0 %v6032
        %6265 = vmatmul.f32.gmra.mxu0 %v6047
        %v6266 = vpop.f32.mrf.mxu0
        %v6267 = vadd.f32 0.0, %v6266
        %6268 = vdwg.mxu0
        %6269 = vmatpush.msra.mxu0 0.0
        %6270 = vmatpush.msra.mxu0 0.0
        %6271 = vmatpush.msra.mxu0 0.0
        %6272 = vmatpush.msra.mxu0 0.0
        %6273 = vmatpush.msra.mxu0 0.0
        %6274 = vmatpush.msra.mxu0 0.0
        %6275 = vmatpush.msra.mxu0 0.0
        %6276 = vmatpush.msra.mxu0 0.0
        %6277 = vmatpush.msra.mxu0 0.0
        %6278 = vmatpush.msra.mxu0 0.0
        %6279 = vmatpush.msra.mxu0 0.0
        %6280 = vmatpush.msra.mxu0 0.0
        %6281 = vmatpush.msra.mxu0 0.0
        %6282 = vmatpush.msra.mxu0 0.0
        %6283 = vmatpush.msra.mxu0 0.0
        %6284 = vmatpush.msra.mxu0 %v6035
        %6285 = vmatmul.f32.gmra.mxu0 %v6047
        %v6286 = vpop.f32.mrf.mxu0
        %v6287 = vadd.f32 0.0, %v6286
        %6288 = vdwg.mxu0
        %6289 = vmatpush.msra.mxu0 0.0
        %6290 = vmatpush.msra.mxu0 0.0
        %6291 = vmatpush.msra.mxu0 0.0
        %6292 = vmatpush.msra.mxu0 0.0
        %6293 = vmatpush.msra.mxu0 0.0
        %6294 = vmatpush.msra.mxu0 0.0
        %6295 = vmatpush.msra.mxu0 0.0
        %6296 = vmatpush.msra.mxu0 0.0
        %6297 = vmatpush.msra.mxu0 0.0
        %6298 = vmatpush.msra.mxu0 0.0
        %6299 = vmatpush.msra.mxu0 0.0
        %6300 = vmatpush.msra.mxu0 0.0
        %6301 = vmatpush.msra.mxu0 0.0
        %6302 = vmatpush.msra.mxu0 0.0
        %6303 = vmatpush.msra.mxu0 0.0
        %6304 = vmatpush.msra.mxu0 %v6038
        %6305 = vmatmul.f32.gmra.mxu0 %v6047
        %v6306 = vpop.f32.mrf.mxu0
        %v6307 = vadd.f32 0.0, %v6306
        %6308 = vdwg.mxu0
        %6309 = vmatpush.msra.mxu0 0.0
        %6310 = vmatpush.msra.mxu0 0.0
        %6311 = vmatpush.msra.mxu0 0.0
        %6312 = vmatpush.msra.mxu0 0.0
        %6313 = vmatpush.msra.mxu0 0.0
        %6314 = vmatpush.msra.mxu0 0.0
        %6315 = vmatpush.msra.mxu0 0.0
        %6316 = vmatpush.msra.mxu0 0.0
        %6317 = vmatpush.msra.mxu0 0.0
        %6318 = vmatpush.msra.mxu0 0.0
        %6319 = vmatpush.msra.mxu0 0.0
        %6320 = vmatpush.msra.mxu0 0.0
        %6321 = vmatpush.msra.mxu0 0.0
        %6322 = vmatpush.msra.mxu0 0.0
        %6323 = vmatpush.msra.mxu0 0.0
        %6324 = vmatpush.msra.mxu0 %v6041
        %6325 = vmatmul.f32.gmra.mxu0 %v6047
        %v6326 = vpop.f32.mrf.mxu0
        %v6327 = vadd.f32 0.0, %v6326
        %6328 = vdwg.mxu0
        %6329 = vmatpush.msra.mxu0 0.0
        %6330 = vmatpush.msra.mxu0 0.0
        %6331 = vmatpush.msra.mxu0 0.0
        %6332 = vmatpush.msra.mxu0 0.0
        %6333 = vmatpush.msra.mxu0 0.0
        %6334 = vmatpush.msra.mxu0 0.0
        %6335 = vmatpush.msra.mxu0 0.0
        %6336 = vmatpush.msra.mxu0 0.0
        %6337 = vmatpush.msra.mxu0 0.0
        %6338 = vmatpush.msra.mxu0 0.0
        %6339 = vmatpush.msra.mxu0 0.0
        %6340 = vmatpush.msra.mxu0 0.0
        %6341 = vmatpush.msra.mxu0 0.0
        %6342 = vmatpush.msra.mxu0 0.0
        %6343 = vmatpush.msra.mxu0 0.0
        %6344 = vmatpush.msra.mxu0 %v6044
        %6345 = vmatmul.f32.gmra.mxu0 %v6047
        %v6346 = vpop.f32.mrf.mxu0
        %v6347 = vadd.f32 0.0, %v6346
        %6348 = vdwg.mxu0
        %v6349 = vmul.f32 %v6067, %v6067
        %v6350 = vmul.f32 %v6087, %v6087
        %v6351 = vmul.f32 %v6107, %v6107
        %v6352 = vmul.f32 %v6127, %v6127
        %v6353 = vmul.f32 %v6147, %v6147
        %v6354 = vmul.f32 %v6167, %v6167
        %v6355 = vmul.f32 %v6067, %v6127
        %v6356 = vmul.f32 %v6087, %v6147
        %v6357 = vmul.f32 %v6107, %v6167
        %v6358 = vsub.f32 %v6187, %v6349
        %v6359 = vsub.f32 %v6207, %v6350
        %v6360 = vsub.f32 %v6227, %v6351
        %v6361 = vsub.f32 %v6247, %v6352
        %v6362 = vsub.f32 %v6267, %v6353
        %v6363 = vsub.f32 %v6287, %v6354
        %v6364 = vsub.f32 %v6307, %v6355
        %v6365 = vsub.f32 %v6327, %v6356
        %v6366 = vsub.f32 %v6347, %v6357
        %v6367 = vmul.f32 %v6364, 2.0
        %v6368 = vmul.f32 %v6365, 2.0
        %v6369 = vmul.f32 %v6366, 2.0
        %v6370 = vadd.f32 %v6367, 0.0009
        %v6371 = vadd.f32 %v6368, 0.0009
        %v6372 = vadd.f32 %v6369, 0.0009
        %v6373 = vadd.f32 %v6358, %v6361
        %v6374 = vadd.f32 %v6359, %v6362
        %v6375 = vadd.f32 %v6360, %v6363
        %v6376 = vadd.f32 %v6373, 0.0009
        %v6377 = vadd.f32 %v6374, 0.0009
        %v6378 = vadd.f32 %v6375, 0.0009
        %v6379 = vrcp.pop %v6376
        %v6380 = vmul.f32 %v6376, %v6379
        %v6381 = vsub.f32 1.0, %v6380
        %v6382 = vmul.f32 %v6379, %v6381
        %v6383 = vadd.f32 %v6379, %v6382
        %vm6384 = vweird.f32 %v6376
        %vm6385 = vweird.f32 %v6379
        %vm6386 = vmor %vm6384, %vm6385
        %v6387 = vsel %vm6386, %v6379, %v6383
        %v6388 = vand.u32 2147483647, %v6376
        %vm6389 = vcmp.eq.f32.partialorder %v6388, 8.507059e+37
        %v6390 = vand.u32 %v6376, 2147483648
        %v6391 = vor.u32 1.1754944e-38, %v6390
        %v6392 = vsel %vm6389, %v6391, %v6387
        %v6393 = vmul.f32 %v6370, %v6392
        %v6394 = vrcp.pop %v6377
        %v6395 = vmul.f32 %v6377, %v6394
        %v6396 = vsub.f32 1.0, %v6395
        %v6397 = vmul.f32 %v6394, %v6396
        %v6398 = vadd.f32 %v6394, %v6397
        %vm6399 = vweird.f32 %v6377
        %vm6400 = vweird.f32 %v6394
        %vm6401 = vmor %vm6399, %vm6400
        %v6402 = vsel %vm6401, %v6394, %v6398
        %v6403 = vand.u32 2147483647, %v6377
        %vm6404 = vcmp.eq.f32.partialorder %v6403, 8.507059e+37
        %v6405 = vand.u32 %v6377, 2147483648
        %v6406 = vor.u32 1.1754944e-38, %v6405
        %v6407 = vsel %vm6404, %v6406, %v6402
        %v6408 = vmul.f32 %v6371, %v6407
        %v6409 = vrcp.pop %v6378
        %v6410 = vmul.f32 %v6378, %v6409
        %v6411 = vsub.f32 1.0, %v6410
        %v6412 = vmul.f32 %v6409, %v6411
        %v6413 = vadd.f32 %v6409, %v6412
        %vm6414 = vweird.f32 %v6378
        %vm6415 = vweird.f32 %v6409
        %vm6416 = vmor %vm6414, %vm6415
        %v6417 = vsel %vm6416, %v6409, %v6413
        %v6418 = vand.u32 2147483647, %v6378
        %vm6419 = vcmp.eq.f32.partialorder %v6418, 8.507059e+37
        %v6420 = vand.u32 %v6378, 2147483648
        %v6421 = vor.u32 1.1754944e-38, %v6420
        %v6422 = vsel %vm6419, %v6421, %v6417
        %v6423 = vmul.f32 %v6372, %v6422
        %vm6424 = vcmask 46080
        %v6425 = vsel %vm6424, %v6393, 0.0
        %6426 = vadd.xlane.f32.xlu0 %v6425
        %v6427 = vpop.xlane.xlu0 %6426
        %v6428 = vsel %vm6424, %v6408, 0.0
        %6429 = vadd.xlane.f32.xlu0 %v6428
        %v6430 = vpop.xlane.xlu0 %6429
        %v6431 = vsel %vm6424, %v6423, 0.0
        %6432 = vadd.xlane.f32.xlu0 %v6431
        %v6433 = vpop.xlane.xlu0 %6432
        %v6434 = vsel %vm3025, %v6427, 0.0
        %v6435 = vrot.slane %v6434, 4
        %v6436 = vadd.f32 %v6434, %v6435
        %v6437 = vrot.slane %v6436, 2
        %v6438 = vadd.f32 %v6436, %v6437
        %v6439 = vrot.slane %v6438, 1
        %v6440 = vadd.f32 %v6438, %v6439
        %v6441 = vsel %vm3025, %v6430, 0.0
        %v6442 = vrot.slane %v6441, 4
        %v6443 = vadd.f32 %v6441, %v6442
        %v6444 = vrot.slane %v6443, 2
        %v6445 = vadd.f32 %v6443, %v6444
        %v6446 = vrot.slane %v6445, 1
        %v6447 = vadd.f32 %v6445, %v6446
        %v6448 = vsel %vm3025, %v6433, 0.0
        %v6449 = vrot.slane %v6448, 4
        %v6450 = vadd.f32 %v6448, %v6449
        %v6451 = vrot.slane %v6450, 2
        %v6452 = vadd.f32 %v6450, %v6451
        %v6453 = vrot.slane %v6452, 1
        %v6454 = vadd.f32 %v6452, %v6453
        %v6455 = vmul.f32 %v6440, 0.027777778
        %v6456 = vmul.f32 %v6447, 0.027777778
        %v6457 = vmul.f32 %v6454, 0.027777778
        %v6458 = vmax.f32 %v6455, 0.0
        %v6459 = vmax.f32 %v6456, 0.0
        %v6460 = vmax.f32 %v6457, 0.0
        %vm6461 = vcmp.gt.f32.partialorder %v6458, 0.0
        %vm6462 = vcmp.gt.f32.partialorder %v6459, 0.0
        %vm6463 = vcmp.gt.f32.partialorder %v6460, 0.0
        %v6464 = vmax.f32 %v6458, 1e-30
        %v6465 = vmax.f32 %v6459, 1e-30
        %v6466 = vmax.f32 %v6460, 1e-30
        %v6467 = vlog2.pop %v6464
        %v6468 = vmul.f32 %v6467, 0.6931472
        %v6469 = vlog2.pop %v6465
        %v6470 = vmul.f32 %v6469, 0.6931472
        %v6471 = vlog2.pop %v6466
        %v6472 = vmul.f32 %v6471, 0.6931472
        %v6473 = vmul.f32 %v6468, 0.2363
        %v6474 = vmul.f32 %v6470, 0.2363
        %v6475 = vmul.f32 %v6472, 0.2363
        %v6476 = vmul.f32 %v6473, 1.442695
        %v6477 = vpow.pop %v6476
        %v6478 = vmul.f32 %v6474, 1.442695
        %v6479 = vpow.pop %v6478
        %v6480 = vmul.f32 %v6475, 1.442695
        %v6481 = vpow.pop %v6480
        %v6482 = vsel %vm6461, %v6477, 0.0
        %v6483 = vsel %vm6462, %v6479, 0.0
        %v6484 = vsel %vm6463, %v6481, 0.0
        %v6485 = vmul.f32 %v5746, %v6482
        %v6486 = vmul.f32 %v5747, %v6483
        %v6487 = vmul.f32 %v5748, %v6484
        %6488 = vmatpush.msra.mxu0 0.0
        %6489 = vmatpush.msra.mxu0 0.0
        %6490 = vmatpush.msra.mxu0 0.0
        %6491 = vmatpush.msra.mxu0 0.0
        %6492 = vmatpush.msra.mxu0 0.0
        %6493 = vmatpush.msra.mxu0 0.0
        %6494 = vmatpush.msra.mxu0 0.0
        %6495 = vmatpush.msra.mxu0 0.0
        %6496 = vmatpush.msra.mxu0 0.0
        %6497 = vmatpush.msra.mxu0 0.0
        %6498 = vmatpush.msra.mxu0 0.0
        %6499 = vmatpush.msra.mxu0 0.0
        %6500 = vmatpush.msra.mxu0 0.0
        %6501 = vmatpush.msra.mxu0 0.0
        %6502 = vmatpush.msra.mxu0 0.0
        %6503 = vmatpush.msra.mxu0 %v5927
        %6504 = vmatmul.f32.gmra.mxu0 %v5940
        %v6505 = vpop.f32.mrf.mxu0
        %v6506 = vadd.f32 0.0, %v6505
        %6507 = vmatmul.f32.gmra.mxu0 %v5943
        %v6508 = vpop.f32.mrf.mxu0
        %v6509 = vadd.f32 0.0, %v6508
        %6510 = vmatmul.f32.gmra.mxu0 %v5946
        %v6511 = vpop.f32.mrf.mxu0
        %v6512 = vadd.f32 0.0, %v6511
        %6513 = vmatmul.f32.gmra.mxu0 %v5949
        %v6514 = vpop.f32.mrf.mxu0
        %v6515 = vadd.f32 0.0, %v6514
        %6516 = vmatmul.f32.gmra.mxu0 %v5952
        %v6517 = vpop.f32.mrf.mxu0
        %v6518 = vadd.f32 0.0, %v6517
        %6519 = vmatmul.f32.gmra.mxu0 %v5955
        %v6520 = vpop.f32.mrf.mxu0
        %v6521 = vadd.f32 0.0, %v6520
        %6522 = vdwg.mxu0
        %v6524 = vsel %vm5938, %v5928, 0
        %6526 = vmatpush.msra.mxu0 0.0
        %6527 = vmatpush.msra.mxu0 0.0
        %6528 = vmatpush.msra.mxu0 0.0
        %6529 = vmatpush.msra.mxu0 0.0
        %6530 = vmatpush.msra.mxu0 0.0
        %6531 = vmatpush.msra.mxu0 0.0
        %6532 = vmatpush.msra.mxu0 0.0
        %6533 = vmatpush.msra.mxu0 0.0
        %6534 = vmatpush.msra.mxu0 0.0
        %6535 = vmatpush.msra.mxu0 0.0
        %6536 = vmatpush.msra.mxu0 0.0
        %6537 = vmatpush.msra.mxu0 0.0
        %6538 = vmatpush.msra.mxu0 0.0
        %6539 = vmatpush.msra.mxu0 0.0
        %6540 = vmatpush.msra.mxu0 0.0
        %6541 = vmatpush.msra.mxu0 %v6506
        %6542 = vmatmul.f32.gmra.mxu0 %v6524
        %v6543 = vpop.f32.mrf.mxu0
        %v6544 = vadd.f32 0.0, %v6543
        %6545 = vdwg.mxu0
        %6546 = vmatpush.msra.mxu0 0.0
        %6547 = vmatpush.msra.mxu0 0.0
        %6548 = vmatpush.msra.mxu0 0.0
        %6549 = vmatpush.msra.mxu0 0.0
        %6550 = vmatpush.msra.mxu0 0.0
        %6551 = vmatpush.msra.mxu0 0.0
        %6552 = vmatpush.msra.mxu0 0.0
        %6553 = vmatpush.msra.mxu0 0.0
        %6554 = vmatpush.msra.mxu0 0.0
        %6555 = vmatpush.msra.mxu0 0.0
        %6556 = vmatpush.msra.mxu0 0.0
        %6557 = vmatpush.msra.mxu0 0.0
        %6558 = vmatpush.msra.mxu0 0.0
        %6559 = vmatpush.msra.mxu0 0.0
        %6560 = vmatpush.msra.mxu0 0.0
        %6561 = vmatpush.msra.mxu0 %v6509
        %6562 = vmatmul.f32.gmra.mxu0 %v6524
        %v6563 = vpop.f32.mrf.mxu0
        %v6564 = vadd.f32 0.0, %v6563
        %6565 = vdwg.mxu0
        %6566 = vmatpush.msra.mxu0 0.0
        %6567 = vmatpush.msra.mxu0 0.0
        %6568 = vmatpush.msra.mxu0 0.0
        %6569 = vmatpush.msra.mxu0 0.0
        %6570 = vmatpush.msra.mxu0 0.0
        %6571 = vmatpush.msra.mxu0 0.0
        %6572 = vmatpush.msra.mxu0 0.0
        %6573 = vmatpush.msra.mxu0 0.0
        %6574 = vmatpush.msra.mxu0 0.0
        %6575 = vmatpush.msra.mxu0 0.0
        %6576 = vmatpush.msra.mxu0 0.0
        %6577 = vmatpush.msra.mxu0 0.0
        %6578 = vmatpush.msra.mxu0 0.0
        %6579 = vmatpush.msra.mxu0 0.0
        %6580 = vmatpush.msra.mxu0 0.0
        %6581 = vmatpush.msra.mxu0 %v6512
        %6582 = vmatmul.f32.gmra.mxu0 %v6524
        %v6583 = vpop.f32.mrf.mxu0
        %v6584 = vadd.f32 0.0, %v6583
        %6585 = vdwg.mxu0
        %6586 = vmatpush.msra.mxu0 0.0
        %6587 = vmatpush.msra.mxu0 0.0
        %6588 = vmatpush.msra.mxu0 0.0
        %6589 = vmatpush.msra.mxu0 0.0
        %6590 = vmatpush.msra.mxu0 0.0
        %6591 = vmatpush.msra.mxu0 0.0
        %6592 = vmatpush.msra.mxu0 0.0
        %6593 = vmatpush.msra.mxu0 0.0
        %6594 = vmatpush.msra.mxu0 0.0
        %6595 = vmatpush.msra.mxu0 0.0
        %6596 = vmatpush.msra.mxu0 0.0
        %6597 = vmatpush.msra.mxu0 0.0
        %6598 = vmatpush.msra.mxu0 0.0
        %6599 = vmatpush.msra.mxu0 0.0
        %6600 = vmatpush.msra.mxu0 0.0
        %6601 = vmatpush.msra.mxu0 %v6515
        %6602 = vmatmul.f32.gmra.mxu0 %v6524
        %v6603 = vpop.f32.mrf.mxu0
        %v6604 = vadd.f32 0.0, %v6603
        %6605 = vdwg.mxu0
        %6606 = vmatpush.msra.mxu0 0.0
        %6607 = vmatpush.msra.mxu0 0.0
        %6608 = vmatpush.msra.mxu0 0.0
        %6609 = vmatpush.msra.mxu0 0.0
        %6610 = vmatpush.msra.mxu0 0.0
        %6611 = vmatpush.msra.mxu0 0.0
        %6612 = vmatpush.msra.mxu0 0.0
        %6613 = vmatpush.msra.mxu0 0.0
        %6614 = vmatpush.msra.mxu0 0.0
        %6615 = vmatpush.msra.mxu0 0.0
        %6616 = vmatpush.msra.mxu0 0.0
        %6617 = vmatpush.msra.mxu0 0.0
        %6618 = vmatpush.msra.mxu0 0.0
        %6619 = vmatpush.msra.mxu0 0.0
        %6620 = vmatpush.msra.mxu0 0.0
        %6621 = vmatpush.msra.mxu0 %v6518
        %6622 = vmatmul.f32.gmra.mxu0 %v6524
        %v6623 = vpop.f32.mrf.mxu0
        %v6624 = vadd.f32 0.0, %v6623
        %6625 = vdwg.mxu0
        %6626 = vmatpush.msra.mxu0 0.0
        %6627 = vmatpush.msra.mxu0 0.0
        %6628 = vmatpush.msra.mxu0 0.0
        %6629 = vmatpush.msra.mxu0 0.0
        %6630 = vmatpush.msra.mxu0 0.0
        %6631 = vmatpush.msra.mxu0 0.0
        %6632 = vmatpush.msra.mxu0 0.0
        %6633 = vmatpush.msra.mxu0 0.0
        %6634 = vmatpush.msra.mxu0 0.0
        %6635 = vmatpush.msra.mxu0 0.0
        %6636 = vmatpush.msra.mxu0 0.0
        %6637 = vmatpush.msra.mxu0 0.0
        %6638 = vmatpush.msra.mxu0 0.0
        %6639 = vmatpush.msra.mxu0 0.0
        %6640 = vmatpush.msra.mxu0 0.0
        %6641 = vmatpush.msra.mxu0 %v6521
        %6642 = vmatmul.f32.gmra.mxu0 %v6524
        %v6643 = vpop.f32.mrf.mxu0
        %v6644 = vadd.f32 0.0, %v6643
        %6645 = vdwg.mxu0
        %v6646 = vld [vmem:[%s18] sm:$0xf]
        %v6647 = vld [vmem:[#allocation16] sm:$0x3]
        %v6648 = vmul.f32 %v6544, %v6544
        %v6649 = vmul.f32 %v6564, %v6564
        %v6650 = vmul.f32 %v6584, %v6584
        %v6651 = vmul.f32 %v6604, %v6604
        %v6652 = vmul.f32 %v6624, %v6624
        %v6653 = vmul.f32 %v6644, %v6644
        %v6654 = vmul.f32 %v6544, %v6604
        %v6655 = vmul.f32 %v6564, %v6624
        %v6656 = vmul.f32 %v6584, %v6644
        %vm6657 = vcmask 31744
        %v6659 = vsel %vm6657, %v6544, 0
        %vm6661 = vcmask 1043456
        %v6663 = vsel %vm6661, %v6646, 0
        %6665 = vmatpush.msra.mxu0 0.0
        %6666 = vmatpush.msra.mxu0 0.0
        %6667 = vmatpush.msra.mxu0 0.0
        %6668 = vmatpush.msra.mxu0 0.0
        %6669 = vmatpush.msra.mxu0 0.0
        %6670 = vmatpush.msra.mxu0 0.0
        %6671 = vmatpush.msra.mxu0 0.0
        %6672 = vmatpush.msra.mxu0 0.0
        %6673 = vmatpush.msra.mxu0 0.0
        %6674 = vmatpush.msra.mxu0 0.0
        %6675 = vmatpush.msra.mxu0 0.0
        %6676 = vmatpush.msra.mxu0 0.0
        %6677 = vmatpush.msra.mxu0 0.0
        %6678 = vmatpush.msra.mxu0 0.0
        %6679 = vmatpush.msra.mxu0 0.0
        %6680 = vmatpush.msra.mxu0 %v6663
        %6681 = vmatmul.f32.gmra.mxu0 %v6659
        %v6682 = vpop.f32.mrf.mxu0
        %v6683 = vadd.f32 0.0, %v6682
        %6684 = vdwg.mxu0
        %v6686 = vsel %vm6657, %v6564, 0
        %6688 = vmatpush.msra.mxu0 0.0
        %6689 = vmatpush.msra.mxu0 0.0
        %6690 = vmatpush.msra.mxu0 0.0
        %6691 = vmatpush.msra.mxu0 0.0
        %6692 = vmatpush.msra.mxu0 0.0
        %6693 = vmatpush.msra.mxu0 0.0
        %6694 = vmatpush.msra.mxu0 0.0
        %6695 = vmatpush.msra.mxu0 0.0
        %6696 = vmatpush.msra.mxu0 0.0
        %6697 = vmatpush.msra.mxu0 0.0
        %6698 = vmatpush.msra.mxu0 0.0
        %6699 = vmatpush.msra.mxu0 0.0
        %6700 = vmatpush.msra.mxu0 0.0
        %6701 = vmatpush.msra.mxu0 0.0
        %6702 = vmatpush.msra.mxu0 0.0
        %6703 = vmatpush.msra.mxu0 %v6663
        %6704 = vmatmul.f32.gmra.mxu0 %v6686
        %v6705 = vpop.f32.mrf.mxu0
        %v6706 = vadd.f32 0.0, %v6705
        %6707 = vdwg.mxu0
        %v6709 = vsel %vm6657, %v6584, 0
        %6711 = vmatpush.msra.mxu0 0.0
        %6712 = vmatpush.msra.mxu0 0.0
        %6713 = vmatpush.msra.mxu0 0.0
        %6714 = vmatpush.msra.mxu0 0.0
        %6715 = vmatpush.msra.mxu0 0.0
        %6716 = vmatpush.msra.mxu0 0.0
        %6717 = vmatpush.msra.mxu0 0.0
        %6718 = vmatpush.msra.mxu0 0.0
        %6719 = vmatpush.msra.mxu0 0.0
        %6720 = vmatpush.msra.mxu0 0.0
        %6721 = vmatpush.msra.mxu0 0.0
        %6722 = vmatpush.msra.mxu0 0.0
        %6723 = vmatpush.msra.mxu0 0.0
        %6724 = vmatpush.msra.mxu0 0.0
        %6725 = vmatpush.msra.mxu0 0.0
        %6726 = vmatpush.msra.mxu0 %v6663
        %6727 = vmatmul.f32.gmra.mxu0 %v6709
        %v6728 = vpop.f32.mrf.mxu0
        %v6729 = vadd.f32 0.0, %v6728
        %6730 = vdwg.mxu0
        %v6732 = vsel %vm6657, %v6604, 0
        %6734 = vmatpush.msra.mxu0 0.0
        %6735 = vmatpush.msra.mxu0 0.0
        %6736 = vmatpush.msra.mxu0 0.0
        %6737 = vmatpush.msra.mxu0 0.0
        %6738 = vmatpush.msra.mxu0 0.0
        %6739 = vmatpush.msra.mxu0 0.0
        %6740 = vmatpush.msra.mxu0 0.0
        %6741 = vmatpush.msra.mxu0 0.0
        %6742 = vmatpush.msra.mxu0 0.0
        %6743 = vmatpush.msra.mxu0 0.0
        %6744 = vmatpush.msra.mxu0 0.0
        %6745 = vmatpush.msra.mxu0 0.0
        %6746 = vmatpush.msra.mxu0 0.0
        %6747 = vmatpush.msra.mxu0 0.0
        %6748 = vmatpush.msra.mxu0 0.0
        %6749 = vmatpush.msra.mxu0 %v6663
        %6750 = vmatmul.f32.gmra.mxu0 %v6732
        %v6751 = vpop.f32.mrf.mxu0
        %v6752 = vadd.f32 0.0, %v6751
        %6753 = vdwg.mxu0
        %v6755 = vsel %vm6657, %v6624, 0
        %6757 = vmatpush.msra.mxu0 0.0
        %6758 = vmatpush.msra.mxu0 0.0
        %6759 = vmatpush.msra.mxu0 0.0
        %6760 = vmatpush.msra.mxu0 0.0
        %6761 = vmatpush.msra.mxu0 0.0
        %6762 = vmatpush.msra.mxu0 0.0
        %6763 = vmatpush.msra.mxu0 0.0
        %6764 = vmatpush.msra.mxu0 0.0
        %6765 = vmatpush.msra.mxu0 0.0
        %6766 = vmatpush.msra.mxu0 0.0
        %6767 = vmatpush.msra.mxu0 0.0
        %6768 = vmatpush.msra.mxu0 0.0
        %6769 = vmatpush.msra.mxu0 0.0
        %6770 = vmatpush.msra.mxu0 0.0
        %6771 = vmatpush.msra.mxu0 0.0
        %6772 = vmatpush.msra.mxu0 %v6663
        %6773 = vmatmul.f32.gmra.mxu0 %v6755
        %v6774 = vpop.f32.mrf.mxu0
        %v6775 = vadd.f32 0.0, %v6774
        %6776 = vdwg.mxu0
        %v6778 = vsel %vm6657, %v6644, 0
        %6780 = vmatpush.msra.mxu0 0.0
        %6781 = vmatpush.msra.mxu0 0.0
        %6782 = vmatpush.msra.mxu0 0.0
        %6783 = vmatpush.msra.mxu0 0.0
        %6784 = vmatpush.msra.mxu0 0.0
        %6785 = vmatpush.msra.mxu0 0.0
        %6786 = vmatpush.msra.mxu0 0.0
        %6787 = vmatpush.msra.mxu0 0.0
        %6788 = vmatpush.msra.mxu0 0.0
        %6789 = vmatpush.msra.mxu0 0.0
        %6790 = vmatpush.msra.mxu0 0.0
        %6791 = vmatpush.msra.mxu0 0.0
        %6792 = vmatpush.msra.mxu0 0.0
        %6793 = vmatpush.msra.mxu0 0.0
        %6794 = vmatpush.msra.mxu0 0.0
        %6795 = vmatpush.msra.mxu0 %v6663
        %6796 = vmatmul.f32.gmra.mxu0 %v6778
        %v6797 = vpop.f32.mrf.mxu0
        %v6798 = vadd.f32 0.0, %v6797
        %6799 = vdwg.mxu0
        %v6801 = vsel %vm6657, %v6648, 0
        %6803 = vmatpush.msra.mxu0 0.0
        %6804 = vmatpush.msra.mxu0 0.0
        %6805 = vmatpush.msra.mxu0 0.0
        %6806 = vmatpush.msra.mxu0 0.0
        %6807 = vmatpush.msra.mxu0 0.0
        %6808 = vmatpush.msra.mxu0 0.0
        %6809 = vmatpush.msra.mxu0 0.0
        %6810 = vmatpush.msra.mxu0 0.0
        %6811 = vmatpush.msra.mxu0 0.0
        %6812 = vmatpush.msra.mxu0 0.0
        %6813 = vmatpush.msra.mxu0 0.0
        %6814 = vmatpush.msra.mxu0 0.0
        %6815 = vmatpush.msra.mxu0 0.0
        %6816 = vmatpush.msra.mxu0 0.0
        %6817 = vmatpush.msra.mxu0 0.0
        %6818 = vmatpush.msra.mxu0 %v6663
        %6819 = vmatmul.f32.gmra.mxu0 %v6801
        %v6820 = vpop.f32.mrf.mxu0
        %v6821 = vadd.f32 0.0, %v6820
        %6822 = vdwg.mxu0
        %v6824 = vsel %vm6657, %v6649, 0
        %6826 = vmatpush.msra.mxu0 0.0
        %6827 = vmatpush.msra.mxu0 0.0
        %6828 = vmatpush.msra.mxu0 0.0
        %6829 = vmatpush.msra.mxu0 0.0
        %6830 = vmatpush.msra.mxu0 0.0
        %6831 = vmatpush.msra.mxu0 0.0
        %6832 = vmatpush.msra.mxu0 0.0
        %6833 = vmatpush.msra.mxu0 0.0
        %6834 = vmatpush.msra.mxu0 0.0
        %6835 = vmatpush.msra.mxu0 0.0
        %6836 = vmatpush.msra.mxu0 0.0
        %6837 = vmatpush.msra.mxu0 0.0
        %6838 = vmatpush.msra.mxu0 0.0
        %6839 = vmatpush.msra.mxu0 0.0
        %6840 = vmatpush.msra.mxu0 0.0
        %6841 = vmatpush.msra.mxu0 %v6663
        %6842 = vmatmul.f32.gmra.mxu0 %v6824
        %v6843 = vpop.f32.mrf.mxu0
        %v6844 = vadd.f32 0.0, %v6843
        %6845 = vdwg.mxu0
        %v6847 = vsel %vm6657, %v6650, 0
        %6849 = vmatpush.msra.mxu0 0.0
        %6850 = vmatpush.msra.mxu0 0.0
        %6851 = vmatpush.msra.mxu0 0.0
        %6852 = vmatpush.msra.mxu0 0.0
        %6853 = vmatpush.msra.mxu0 0.0
        %6854 = vmatpush.msra.mxu0 0.0
        %6855 = vmatpush.msra.mxu0 0.0
        %6856 = vmatpush.msra.mxu0 0.0
        %6857 = vmatpush.msra.mxu0 0.0
        %6858 = vmatpush.msra.mxu0 0.0
        %6859 = vmatpush.msra.mxu0 0.0
        %6860 = vmatpush.msra.mxu0 0.0
        %6861 = vmatpush.msra.mxu0 0.0
        %6862 = vmatpush.msra.mxu0 0.0
        %6863 = vmatpush.msra.mxu0 0.0
        %6864 = vmatpush.msra.mxu0 %v6663
        %6865 = vmatmul.f32.gmra.mxu0 %v6847
        %v6866 = vpop.f32.mrf.mxu0
        %v6867 = vadd.f32 0.0, %v6866
        %6868 = vdwg.mxu0
        %v6870 = vsel %vm6657, %v6651, 0
        %6872 = vmatpush.msra.mxu0 0.0
        %6873 = vmatpush.msra.mxu0 0.0
        %6874 = vmatpush.msra.mxu0 0.0
        %6875 = vmatpush.msra.mxu0 0.0
        %6876 = vmatpush.msra.mxu0 0.0
        %6877 = vmatpush.msra.mxu0 0.0
        %6878 = vmatpush.msra.mxu0 0.0
        %6879 = vmatpush.msra.mxu0 0.0
        %6880 = vmatpush.msra.mxu0 0.0
        %6881 = vmatpush.msra.mxu0 0.0
        %6882 = vmatpush.msra.mxu0 0.0
        %6883 = vmatpush.msra.mxu0 0.0
        %6884 = vmatpush.msra.mxu0 0.0
        %6885 = vmatpush.msra.mxu0 0.0
        %6886 = vmatpush.msra.mxu0 0.0
        %6887 = vmatpush.msra.mxu0 %v6663
        %6888 = vmatmul.f32.gmra.mxu0 %v6870
        %v6889 = vpop.f32.mrf.mxu0
        %v6890 = vadd.f32 0.0, %v6889
        %6891 = vdwg.mxu0
        %v6893 = vsel %vm6657, %v6652, 0
        %6895 = vmatpush.msra.mxu0 0.0
        %6896 = vmatpush.msra.mxu0 0.0
        %6897 = vmatpush.msra.mxu0 0.0
        %6898 = vmatpush.msra.mxu0 0.0
        %6899 = vmatpush.msra.mxu0 0.0
        %6900 = vmatpush.msra.mxu0 0.0
        %6901 = vmatpush.msra.mxu0 0.0
        %6902 = vmatpush.msra.mxu0 0.0
        %6903 = vmatpush.msra.mxu0 0.0
        %6904 = vmatpush.msra.mxu0 0.0
        %6905 = vmatpush.msra.mxu0 0.0
        %6906 = vmatpush.msra.mxu0 0.0
        %6907 = vmatpush.msra.mxu0 0.0
        %6908 = vmatpush.msra.mxu0 0.0
        %6909 = vmatpush.msra.mxu0 0.0
        %6910 = vmatpush.msra.mxu0 %v6663
        %6911 = vmatmul.f32.gmra.mxu0 %v6893
        %v6912 = vpop.f32.mrf.mxu0
        %v6913 = vadd.f32 0.0, %v6912
        %6914 = vdwg.mxu0
        %v6916 = vsel %vm6657, %v6653, 0
        %6918 = vmatpush.msra.mxu0 0.0
        %6919 = vmatpush.msra.mxu0 0.0
        %6920 = vmatpush.msra.mxu0 0.0
        %6921 = vmatpush.msra.mxu0 0.0
        %6922 = vmatpush.msra.mxu0 0.0
        %6923 = vmatpush.msra.mxu0 0.0
        %6924 = vmatpush.msra.mxu0 0.0
        %6925 = vmatpush.msra.mxu0 0.0
        %6926 = vmatpush.msra.mxu0 0.0
        %6927 = vmatpush.msra.mxu0 0.0
        %6928 = vmatpush.msra.mxu0 0.0
        %6929 = vmatpush.msra.mxu0 0.0
        %6930 = vmatpush.msra.mxu0 0.0
        %6931 = vmatpush.msra.mxu0 0.0
        %6932 = vmatpush.msra.mxu0 0.0
        %6933 = vmatpush.msra.mxu0 %v6663
        %6934 = vmatmul.f32.gmra.mxu0 %v6916
        %v6935 = vpop.f32.mrf.mxu0
        %v6936 = vadd.f32 0.0, %v6935
        %6937 = vdwg.mxu0
        %v6939 = vsel %vm6657, %v6654, 0
        %6941 = vmatpush.msra.mxu0 0.0
        %6942 = vmatpush.msra.mxu0 0.0
        %6943 = vmatpush.msra.mxu0 0.0
        %6944 = vmatpush.msra.mxu0 0.0
        %6945 = vmatpush.msra.mxu0 0.0
        %6946 = vmatpush.msra.mxu0 0.0
        %6947 = vmatpush.msra.mxu0 0.0
        %6948 = vmatpush.msra.mxu0 0.0
        %6949 = vmatpush.msra.mxu0 0.0
        %6950 = vmatpush.msra.mxu0 0.0
        %6951 = vmatpush.msra.mxu0 0.0
        %6952 = vmatpush.msra.mxu0 0.0
        %6953 = vmatpush.msra.mxu0 0.0
        %6954 = vmatpush.msra.mxu0 0.0
        %6955 = vmatpush.msra.mxu0 0.0
        %6956 = vmatpush.msra.mxu0 %v6663
        %6957 = vmatmul.f32.gmra.mxu0 %v6939
        %v6958 = vpop.f32.mrf.mxu0
        %v6959 = vadd.f32 0.0, %v6958
        %6960 = vdwg.mxu0
        %v6962 = vsel %vm6657, %v6655, 0
        %6964 = vmatpush.msra.mxu0 0.0
        %6965 = vmatpush.msra.mxu0 0.0
        %6966 = vmatpush.msra.mxu0 0.0
        %6967 = vmatpush.msra.mxu0 0.0
        %6968 = vmatpush.msra.mxu0 0.0
        %6969 = vmatpush.msra.mxu0 0.0
        %6970 = vmatpush.msra.mxu0 0.0
        %6971 = vmatpush.msra.mxu0 0.0
        %6972 = vmatpush.msra.mxu0 0.0
        %6973 = vmatpush.msra.mxu0 0.0
        %6974 = vmatpush.msra.mxu0 0.0
        %6975 = vmatpush.msra.mxu0 0.0
        %6976 = vmatpush.msra.mxu0 0.0
        %6977 = vmatpush.msra.mxu0 0.0
        %6978 = vmatpush.msra.mxu0 0.0
        %6979 = vmatpush.msra.mxu0 %v6663
        %6980 = vmatmul.f32.gmra.mxu0 %v6962
        %v6981 = vpop.f32.mrf.mxu0
        %v6982 = vadd.f32 0.0, %v6981
        %6983 = vdwg.mxu0
        %v6985 = vsel %vm6657, %v6656, 0
        %6987 = vmatpush.msra.mxu0 0.0
        %6988 = vmatpush.msra.mxu0 0.0
        %6989 = vmatpush.msra.mxu0 0.0
        %6990 = vmatpush.msra.mxu0 0.0
        %6991 = vmatpush.msra.mxu0 0.0
        %6992 = vmatpush.msra.mxu0 0.0
        %6993 = vmatpush.msra.mxu0 0.0
        %6994 = vmatpush.msra.mxu0 0.0
        %6995 = vmatpush.msra.mxu0 0.0
        %6996 = vmatpush.msra.mxu0 0.0
        %6997 = vmatpush.msra.mxu0 0.0
        %6998 = vmatpush.msra.mxu0 0.0
        %6999 = vmatpush.msra.mxu0 0.0
        %7000 = vmatpush.msra.mxu0 0.0
        %7001 = vmatpush.msra.mxu0 0.0
        %7002 = vmatpush.msra.mxu0 %v6663
        %7003 = vmatmul.f32.gmra.mxu0 %v6985
        %v7004 = vpop.f32.mrf.mxu0
        %v7005 = vadd.f32 0.0, %v7004
        %7006 = vdwg.mxu0
        %v7008 = vsel %vm6657, %v6647, 0
        %v7011 = vsel %vm6661, %v6683, 0
        %7013 = vmatpush.msra.mxu0 0.0
        %7014 = vmatpush.msra.mxu0 0.0
        %7015 = vmatpush.msra.mxu0 0.0
        %7016 = vmatpush.msra.mxu0 0.0
        %7017 = vmatpush.msra.mxu0 0.0
        %7018 = vmatpush.msra.mxu0 0.0
        %7019 = vmatpush.msra.mxu0 0.0
        %7020 = vmatpush.msra.mxu0 0.0
        %7021 = vmatpush.msra.mxu0 0.0
        %7022 = vmatpush.msra.mxu0 0.0
        %7023 = vmatpush.msra.mxu0 0.0
        %7024 = vmatpush.msra.mxu0 0.0
        %7025 = vmatpush.msra.mxu0 0.0
        %7026 = vmatpush.msra.mxu0 0.0
        %7027 = vmatpush.msra.mxu0 0.0
        %7028 = vmatpush.msra.mxu0 %v7011
        %7029 = vmatmul.f32.gmra.mxu0 %v7008
        %v7030 = vpop.f32.mrf.mxu0
        %v7031 = vadd.f32 0.0, %v7030
        %7032 = vdwg.mxu0
        %v7034 = vsel %vm6661, %v6706, 0
        %7036 = vmatpush.msra.mxu0 0.0
        %7037 = vmatpush.msra.mxu0 0.0
        %7038 = vmatpush.msra.mxu0 0.0
        %7039 = vmatpush.msra.mxu0 0.0
        %7040 = vmatpush.msra.mxu0 0.0
        %7041 = vmatpush.msra.mxu0 0.0
        %7042 = vmatpush.msra.mxu0 0.0
        %7043 = vmatpush.msra.mxu0 0.0
        %7044 = vmatpush.msra.mxu0 0.0
        %7045 = vmatpush.msra.mxu0 0.0
        %7046 = vmatpush.msra.mxu0 0.0
        %7047 = vmatpush.msra.mxu0 0.0
        %7048 = vmatpush.msra.mxu0 0.0
        %7049 = vmatpush.msra.mxu0 0.0
        %7050 = vmatpush.msra.mxu0 0.0
        %7051 = vmatpush.msra.mxu0 %v7034
        %7052 = vmatmul.f32.gmra.mxu0 %v7008
        %v7053 = vpop.f32.mrf.mxu0
        %v7054 = vadd.f32 0.0, %v7053
        %7055 = vdwg.mxu0
        %v7057 = vsel %vm6661, %v6729, 0
        %7059 = vmatpush.msra.mxu0 0.0
        %7060 = vmatpush.msra.mxu0 0.0
        %7061 = vmatpush.msra.mxu0 0.0
        %7062 = vmatpush.msra.mxu0 0.0
        %7063 = vmatpush.msra.mxu0 0.0
        %7064 = vmatpush.msra.mxu0 0.0
        %7065 = vmatpush.msra.mxu0 0.0
        %7066 = vmatpush.msra.mxu0 0.0
        %7067 = vmatpush.msra.mxu0 0.0
        %7068 = vmatpush.msra.mxu0 0.0
        %7069 = vmatpush.msra.mxu0 0.0
        %7070 = vmatpush.msra.mxu0 0.0
        %7071 = vmatpush.msra.mxu0 0.0
        %7072 = vmatpush.msra.mxu0 0.0
        %7073 = vmatpush.msra.mxu0 0.0
        %7074 = vmatpush.msra.mxu0 %v7057
        %7075 = vmatmul.f32.gmra.mxu0 %v7008
        %v7076 = vpop.f32.mrf.mxu0
        %v7077 = vadd.f32 0.0, %v7076
        %7078 = vdwg.mxu0
        %v7080 = vsel %vm6661, %v6752, 0
        %7082 = vmatpush.msra.mxu0 0.0
        %7083 = vmatpush.msra.mxu0 0.0
        %7084 = vmatpush.msra.mxu0 0.0
        %7085 = vmatpush.msra.mxu0 0.0
        %7086 = vmatpush.msra.mxu0 0.0
        %7087 = vmatpush.msra.mxu0 0.0
        %7088 = vmatpush.msra.mxu0 0.0
        %7089 = vmatpush.msra.mxu0 0.0
        %7090 = vmatpush.msra.mxu0 0.0
        %7091 = vmatpush.msra.mxu0 0.0
        %7092 = vmatpush.msra.mxu0 0.0
        %7093 = vmatpush.msra.mxu0 0.0
        %7094 = vmatpush.msra.mxu0 0.0
        %7095 = vmatpush.msra.mxu0 0.0
        %7096 = vmatpush.msra.mxu0 0.0
        %7097 = vmatpush.msra.mxu0 %v7080
        %7098 = vmatmul.f32.gmra.mxu0 %v7008
        %v7099 = vpop.f32.mrf.mxu0
        %v7100 = vadd.f32 0.0, %v7099
        %7101 = vdwg.mxu0
        %v7103 = vsel %vm6661, %v6775, 0
        %7105 = vmatpush.msra.mxu0 0.0
        %7106 = vmatpush.msra.mxu0 0.0
        %7107 = vmatpush.msra.mxu0 0.0
        %7108 = vmatpush.msra.mxu0 0.0
        %7109 = vmatpush.msra.mxu0 0.0
        %7110 = vmatpush.msra.mxu0 0.0
        %7111 = vmatpush.msra.mxu0 0.0
        %7112 = vmatpush.msra.mxu0 0.0
        %7113 = vmatpush.msra.mxu0 0.0
        %7114 = vmatpush.msra.mxu0 0.0
        %7115 = vmatpush.msra.mxu0 0.0
        %7116 = vmatpush.msra.mxu0 0.0
        %7117 = vmatpush.msra.mxu0 0.0
        %7118 = vmatpush.msra.mxu0 0.0
        %7119 = vmatpush.msra.mxu0 0.0
        %7120 = vmatpush.msra.mxu0 %v7103
        %7121 = vmatmul.f32.gmra.mxu0 %v7008
        %v7122 = vpop.f32.mrf.mxu0
        %v7123 = vadd.f32 0.0, %v7122
        %7124 = vdwg.mxu0
        %v7126 = vsel %vm6661, %v6798, 0
        %7128 = vmatpush.msra.mxu0 0.0
        %7129 = vmatpush.msra.mxu0 0.0
        %7130 = vmatpush.msra.mxu0 0.0
        %7131 = vmatpush.msra.mxu0 0.0
        %7132 = vmatpush.msra.mxu0 0.0
        %7133 = vmatpush.msra.mxu0 0.0
        %7134 = vmatpush.msra.mxu0 0.0
        %7135 = vmatpush.msra.mxu0 0.0
        %7136 = vmatpush.msra.mxu0 0.0
        %7137 = vmatpush.msra.mxu0 0.0
        %7138 = vmatpush.msra.mxu0 0.0
        %7139 = vmatpush.msra.mxu0 0.0
        %7140 = vmatpush.msra.mxu0 0.0
        %7141 = vmatpush.msra.mxu0 0.0
        %7142 = vmatpush.msra.mxu0 0.0
        %7143 = vmatpush.msra.mxu0 %v7126
        %7144 = vmatmul.f32.gmra.mxu0 %v7008
        %v7145 = vpop.f32.mrf.mxu0
        %v7146 = vadd.f32 0.0, %v7145
        %7147 = vdwg.mxu0
        %v7149 = vsel %vm6661, %v6821, 0
        %7151 = vmatpush.msra.mxu0 0.0
        %7152 = vmatpush.msra.mxu0 0.0
        %7153 = vmatpush.msra.mxu0 0.0
        %7154 = vmatpush.msra.mxu0 0.0
        %7155 = vmatpush.msra.mxu0 0.0
        %7156 = vmatpush.msra.mxu0 0.0
        %7157 = vmatpush.msra.mxu0 0.0
        %7158 = vmatpush.msra.mxu0 0.0
        %7159 = vmatpush.msra.mxu0 0.0
        %7160 = vmatpush.msra.mxu0 0.0
        %7161 = vmatpush.msra.mxu0 0.0
        %7162 = vmatpush.msra.mxu0 0.0
        %7163 = vmatpush.msra.mxu0 0.0
        %7164 = vmatpush.msra.mxu0 0.0
        %7165 = vmatpush.msra.mxu0 0.0
        %7166 = vmatpush.msra.mxu0 %v7149
        %7167 = vmatmul.f32.gmra.mxu0 %v7008
        %v7168 = vpop.f32.mrf.mxu0
        %v7169 = vadd.f32 0.0, %v7168
        %7170 = vdwg.mxu0
        %v7172 = vsel %vm6661, %v6844, 0
        %7174 = vmatpush.msra.mxu0 0.0
        %7175 = vmatpush.msra.mxu0 0.0
        %7176 = vmatpush.msra.mxu0 0.0
        %7177 = vmatpush.msra.mxu0 0.0
        %7178 = vmatpush.msra.mxu0 0.0
        %7179 = vmatpush.msra.mxu0 0.0
        %7180 = vmatpush.msra.mxu0 0.0
        %7181 = vmatpush.msra.mxu0 0.0
        %7182 = vmatpush.msra.mxu0 0.0
        %7183 = vmatpush.msra.mxu0 0.0
        %7184 = vmatpush.msra.mxu0 0.0
        %7185 = vmatpush.msra.mxu0 0.0
        %7186 = vmatpush.msra.mxu0 0.0
        %7187 = vmatpush.msra.mxu0 0.0
        %7188 = vmatpush.msra.mxu0 0.0
        %7189 = vmatpush.msra.mxu0 %v7172
        %7190 = vmatmul.f32.gmra.mxu0 %v7008
        %v7191 = vpop.f32.mrf.mxu0
        %v7192 = vadd.f32 0.0, %v7191
        %7193 = vdwg.mxu0
        %v7195 = vsel %vm6661, %v6867, 0
        %7197 = vmatpush.msra.mxu0 0.0
        %7198 = vmatpush.msra.mxu0 0.0
        %7199 = vmatpush.msra.mxu0 0.0
        %7200 = vmatpush.msra.mxu0 0.0
        %7201 = vmatpush.msra.mxu0 0.0
        %7202 = vmatpush.msra.mxu0 0.0
        %7203 = vmatpush.msra.mxu0 0.0
        %7204 = vmatpush.msra.mxu0 0.0
        %7205 = vmatpush.msra.mxu0 0.0
        %7206 = vmatpush.msra.mxu0 0.0
        %7207 = vmatpush.msra.mxu0 0.0
        %7208 = vmatpush.msra.mxu0 0.0
        %7209 = vmatpush.msra.mxu0 0.0
        %7210 = vmatpush.msra.mxu0 0.0
        %7211 = vmatpush.msra.mxu0 0.0
        %7212 = vmatpush.msra.mxu0 %v7195
        %7213 = vmatmul.f32.gmra.mxu0 %v7008
        %v7214 = vpop.f32.mrf.mxu0
        %v7215 = vadd.f32 0.0, %v7214
        %7216 = vdwg.mxu0
        %v7218 = vsel %vm6661, %v6890, 0
        %7220 = vmatpush.msra.mxu0 0.0
        %7221 = vmatpush.msra.mxu0 0.0
        %7222 = vmatpush.msra.mxu0 0.0
        %7223 = vmatpush.msra.mxu0 0.0
        %7224 = vmatpush.msra.mxu0 0.0
        %7225 = vmatpush.msra.mxu0 0.0
        %7226 = vmatpush.msra.mxu0 0.0
        %7227 = vmatpush.msra.mxu0 0.0
        %7228 = vmatpush.msra.mxu0 0.0
        %7229 = vmatpush.msra.mxu0 0.0
        %7230 = vmatpush.msra.mxu0 0.0
        %7231 = vmatpush.msra.mxu0 0.0
        %7232 = vmatpush.msra.mxu0 0.0
        %7233 = vmatpush.msra.mxu0 0.0
        %7234 = vmatpush.msra.mxu0 0.0
        %7235 = vmatpush.msra.mxu0 %v7218
        %7236 = vmatmul.f32.gmra.mxu0 %v7008
        %v7237 = vpop.f32.mrf.mxu0
        %v7238 = vadd.f32 0.0, %v7237
        %7239 = vdwg.mxu0
        %v7241 = vsel %vm6661, %v6913, 0
        %7243 = vmatpush.msra.mxu0 0.0
        %7244 = vmatpush.msra.mxu0 0.0
        %7245 = vmatpush.msra.mxu0 0.0
        %7246 = vmatpush.msra.mxu0 0.0
        %7247 = vmatpush.msra.mxu0 0.0
        %7248 = vmatpush.msra.mxu0 0.0
        %7249 = vmatpush.msra.mxu0 0.0
        %7250 = vmatpush.msra.mxu0 0.0
        %7251 = vmatpush.msra.mxu0 0.0
        %7252 = vmatpush.msra.mxu0 0.0
        %7253 = vmatpush.msra.mxu0 0.0
        %7254 = vmatpush.msra.mxu0 0.0
        %7255 = vmatpush.msra.mxu0 0.0
        %7256 = vmatpush.msra.mxu0 0.0
        %7257 = vmatpush.msra.mxu0 0.0
        %7258 = vmatpush.msra.mxu0 %v7241
        %7259 = vmatmul.f32.gmra.mxu0 %v7008
        %v7260 = vpop.f32.mrf.mxu0
        %v7261 = vadd.f32 0.0, %v7260
        %7262 = vdwg.mxu0
        %v7264 = vsel %vm6661, %v6936, 0
        %7266 = vmatpush.msra.mxu0 0.0
        %7267 = vmatpush.msra.mxu0 0.0
        %7268 = vmatpush.msra.mxu0 0.0
        %7269 = vmatpush.msra.mxu0 0.0
        %7270 = vmatpush.msra.mxu0 0.0
        %7271 = vmatpush.msra.mxu0 0.0
        %7272 = vmatpush.msra.mxu0 0.0
        %7273 = vmatpush.msra.mxu0 0.0
        %7274 = vmatpush.msra.mxu0 0.0
        %7275 = vmatpush.msra.mxu0 0.0
        %7276 = vmatpush.msra.mxu0 0.0
        %7277 = vmatpush.msra.mxu0 0.0
        %7278 = vmatpush.msra.mxu0 0.0
        %7279 = vmatpush.msra.mxu0 0.0
        %7280 = vmatpush.msra.mxu0 0.0
        %7281 = vmatpush.msra.mxu0 %v7264
        %7282 = vmatmul.f32.gmra.mxu0 %v7008
        %v7283 = vpop.f32.mrf.mxu0
        %v7284 = vadd.f32 0.0, %v7283
        %7285 = vdwg.mxu0
        %v7287 = vsel %vm6661, %v6959, 0
        %7289 = vmatpush.msra.mxu0 0.0
        %7290 = vmatpush.msra.mxu0 0.0
        %7291 = vmatpush.msra.mxu0 0.0
        %7292 = vmatpush.msra.mxu0 0.0
        %7293 = vmatpush.msra.mxu0 0.0
        %7294 = vmatpush.msra.mxu0 0.0
        %7295 = vmatpush.msra.mxu0 0.0
        %7296 = vmatpush.msra.mxu0 0.0
        %7297 = vmatpush.msra.mxu0 0.0
        %7298 = vmatpush.msra.mxu0 0.0
        %7299 = vmatpush.msra.mxu0 0.0
        %7300 = vmatpush.msra.mxu0 0.0
        %7301 = vmatpush.msra.mxu0 0.0
        %7302 = vmatpush.msra.mxu0 0.0
        %7303 = vmatpush.msra.mxu0 0.0
        %7304 = vmatpush.msra.mxu0 %v7287
        %7305 = vmatmul.f32.gmra.mxu0 %v7008
        %v7306 = vpop.f32.mrf.mxu0
        %v7307 = vadd.f32 0.0, %v7306
        %7308 = vdwg.mxu0
        %v7310 = vsel %vm6661, %v6982, 0
        %7312 = vmatpush.msra.mxu0 0.0
        %7313 = vmatpush.msra.mxu0 0.0
        %7314 = vmatpush.msra.mxu0 0.0
        %7315 = vmatpush.msra.mxu0 0.0
        %7316 = vmatpush.msra.mxu0 0.0
        %7317 = vmatpush.msra.mxu0 0.0
        %7318 = vmatpush.msra.mxu0 0.0
        %7319 = vmatpush.msra.mxu0 0.0
        %7320 = vmatpush.msra.mxu0 0.0
        %7321 = vmatpush.msra.mxu0 0.0
        %7322 = vmatpush.msra.mxu0 0.0
        %7323 = vmatpush.msra.mxu0 0.0
        %7324 = vmatpush.msra.mxu0 0.0
        %7325 = vmatpush.msra.mxu0 0.0
        %7326 = vmatpush.msra.mxu0 0.0
        %7327 = vmatpush.msra.mxu0 %v7310
        %7328 = vmatmul.f32.gmra.mxu0 %v7008
        %v7329 = vpop.f32.mrf.mxu0
        %v7330 = vadd.f32 0.0, %v7329
        %7331 = vdwg.mxu0
        %v7333 = vsel %vm6661, %v7005, 0
        %7335 = vmatpush.msra.mxu0 0.0
        %7336 = vmatpush.msra.mxu0 0.0
        %7337 = vmatpush.msra.mxu0 0.0
        %7338 = vmatpush.msra.mxu0 0.0
        %7339 = vmatpush.msra.mxu0 0.0
        %7340 = vmatpush.msra.mxu0 0.0
        %7341 = vmatpush.msra.mxu0 0.0
        %7342 = vmatpush.msra.mxu0 0.0
        %7343 = vmatpush.msra.mxu0 0.0
        %7344 = vmatpush.msra.mxu0 0.0
        %7345 = vmatpush.msra.mxu0 0.0
        %7346 = vmatpush.msra.mxu0 0.0
        %7347 = vmatpush.msra.mxu0 0.0
        %7348 = vmatpush.msra.mxu0 0.0
        %7349 = vmatpush.msra.mxu0 0.0
        %7350 = vmatpush.msra.mxu0 %v7333
        %7351 = vmatmul.f32.gmra.mxu0 %v7008
        %v7352 = vpop.f32.mrf.mxu0
        %v7353 = vadd.f32 0.0, %v7352
        %7354 = vdwg.mxu0
        %v7355 = vmul.f32 %v7031, %v7031
        %v7356 = vmul.f32 %v7054, %v7054
        %v7357 = vmul.f32 %v7077, %v7077
        %v7358 = vmul.f32 %v7100, %v7100
        %v7359 = vmul.f32 %v7123, %v7123
        %v7360 = vmul.f32 %v7146, %v7146
        %v7361 = vmul.f32 %v7031, %v7100
        %v7362 = vmul.f32 %v7054, %v7123
        %v7363 = vmul.f32 %v7077, %v7146
        %v7364 = vsub.f32 %v7169, %v7355
        %v7365 = vsub.f32 %v7192, %v7356
        %v7366 = vsub.f32 %v7215, %v7357
        %v7367 = vsub.f32 %v7238, %v7358
        %v7368 = vsub.f32 %v7261, %v7359
        %v7369 = vsub.f32 %v7284, %v7360
        %v7370 = vsub.f32 %v7307, %v7361
        %v7371 = vsub.f32 %v7330, %v7362
        %v7372 = vsub.f32 %v7353, %v7363
        %v7373 = vmul.f32 %v7370, 2.0
        %v7374 = vmul.f32 %v7371, 2.0
        %v7375 = vmul.f32 %v7372, 2.0
        %v7376 = vadd.f32 %v7373, 0.0009
        %v7377 = vadd.f32 %v7374, 0.0009
        %v7378 = vadd.f32 %v7375, 0.0009
        %v7379 = vadd.f32 %v7364, %v7367
        %v7380 = vadd.f32 %v7365, %v7368
        %v7381 = vadd.f32 %v7366, %v7369
        %v7382 = vadd.f32 %v7379, 0.0009
        %v7383 = vadd.f32 %v7380, 0.0009
        %v7384 = vadd.f32 %v7381, 0.0009
        %v7385 = vrcp.pop %v7382
        %v7386 = vmul.f32 %v7382, %v7385
        %v7387 = vsub.f32 1.0, %v7386
        %v7388 = vmul.f32 %v7385, %v7387
        %v7389 = vadd.f32 %v7385, %v7388
        %vm7390 = vweird.f32 %v7382
        %vm7391 = vweird.f32 %v7385
        %vm7392 = vmor %vm7390, %vm7391
        %v7393 = vsel %vm7392, %v7385, %v7389
        %v7394 = vand.u32 2147483647, %v7382
        %vm7395 = vcmp.eq.f32.partialorder %v7394, 8.507059e+37
        %v7396 = vand.u32 %v7382, 2147483648
        %v7397 = vor.u32 1.1754944e-38, %v7396
        %v7398 = vsel %vm7395, %v7397, %v7393
        %v7399 = vmul.f32 %v7376, %v7398
        %v7400 = vrcp.pop %v7383
        %v7401 = vmul.f32 %v7383, %v7400
        %v7402 = vsub.f32 1.0, %v7401
        %v7403 = vmul.f32 %v7400, %v7402
        %v7404 = vadd.f32 %v7400, %v7403
        %vm7405 = vweird.f32 %v7383
        %vm7406 = vweird.f32 %v7400
        %vm7407 = vmor %vm7405, %vm7406
        %v7408 = vsel %vm7407, %v7400, %v7404
        %v7409 = vand.u32 2147483647, %v7383
        %vm7410 = vcmp.eq.f32.partialorder %v7409, 8.507059e+37
        %v7411 = vand.u32 %v7383, 2147483648
        %v7412 = vor.u32 1.1754944e-38, %v7411
        %v7413 = vsel %vm7410, %v7412, %v7408
        %v7414 = vmul.f32 %v7377, %v7413
        %v7415 = vrcp.pop %v7384
        %v7416 = vmul.f32 %v7384, %v7415
        %v7417 = vsub.f32 1.0, %v7416
        %v7418 = vmul.f32 %v7415, %v7417
        %v7419 = vadd.f32 %v7415, %v7418
        %vm7420 = vweird.f32 %v7384
        %vm7421 = vweird.f32 %v7415
        %vm7422 = vmor %vm7420, %vm7421
        %v7423 = vsel %vm7422, %v7415, %v7419
        %v7424 = vand.u32 2147483647, %v7384
        %vm7425 = vcmp.eq.f32.partialorder %v7424, 8.507059e+37
        %v7426 = vand.u32 %v7384, 2147483648
        %v7427 = vor.u32 1.1754944e-38, %v7426
        %v7428 = vsel %vm7425, %v7427, %v7423
        %v7429 = vmul.f32 %v7378, %v7428
        %v7430 = vmul.f32 %v7361, 2.0
        %v7431 = vmul.f32 %v7362, 2.0
        %v7432 = vmul.f32 %v7363, 2.0
        %v7433 = vadd.f32 %v7430, 0.0001
        %v7434 = vadd.f32 %v7431, 0.0001
        %v7435 = vadd.f32 %v7432, 0.0001
        %v7436 = vadd.f32 %v7355, %v7358
        %v7437 = vadd.f32 %v7356, %v7359
        %v7438 = vadd.f32 %v7357, %v7360
        %v7439 = vadd.f32 %v7436, 0.0001
        %v7440 = vadd.f32 %v7437, 0.0001
        %v7441 = vadd.f32 %v7438, 0.0001
        %v7442 = vrcp.pop %v7439
        %v7443 = vmul.f32 %v7439, %v7442
        %v7444 = vsub.f32 1.0, %v7443
        %v7445 = vmul.f32 %v7442, %v7444
        %v7446 = vadd.f32 %v7442, %v7445
        %vm7447 = vweird.f32 %v7439
        %vm7448 = vweird.f32 %v7442
        %vm7449 = vmor %vm7447, %vm7448
        %v7450 = vsel %vm7449, %v7442, %v7446
        %v7451 = vand.u32 2147483647, %v7439
        %vm7452 = vcmp.eq.f32.partialorder %v7451, 8.507059e+37
        %v7453 = vand.u32 %v7439, 2147483648
        %v7454 = vor.u32 1.1754944e-38, %v7453
        %v7455 = vsel %vm7452, %v7454, %v7450
        %v7456 = vmul.f32 %v7433, %v7455
        %v7457 = vrcp.pop %v7440
        %v7458 = vmul.f32 %v7440, %v7457
        %v7459 = vsub.f32 1.0, %v7458
        %v7460 = vmul.f32 %v7457, %v7459
        %v7461 = vadd.f32 %v7457, %v7460
        %vm7462 = vweird.f32 %v7440
        %vm7463 = vweird.f32 %v7457
        %vm7464 = vmor %vm7462, %vm7463
        %v7465 = vsel %vm7464, %v7457, %v7461
        %v7466 = vand.u32 2147483647, %v7440
        %vm7467 = vcmp.eq.f32.partialorder %v7466, 8.507059e+37
        %v7468 = vand.u32 %v7440, 2147483648
        %v7469 = vor.u32 1.1754944e-38, %v7468
        %v7470 = vsel %vm7467, %v7469, %v7465
        %v7471 = vmul.f32 %v7434, %v7470
        %v7472 = vrcp.pop %v7441
        %v7473 = vmul.f32 %v7441, %v7472
        %v7474 = vsub.f32 1.0, %v7473
        %v7475 = vmul.f32 %v7472, %v7474
        %v7476 = vadd.f32 %v7472, %v7475
        %vm7477 = vweird.f32 %v7441
        %vm7478 = vweird.f32 %v7472
        %vm7479 = vmor %vm7477, %vm7478
        %v7480 = vsel %vm7479, %v7472, %v7476
        %v7481 = vand.u32 2147483647, %v7441
        %vm7482 = vcmp.eq.f32.partialorder %v7481, 8.507059e+37
        %v7483 = vand.u32 %v7441, 2147483648
        %v7484 = vor.u32 1.1754944e-38, %v7483
        %v7485 = vsel %vm7482, %v7484, %v7480
        %v7486 = vmul.f32 %v7435, %v7485
        %v7487 = vmul.f32 %v7456, %v7399
        %v7488 = vmul.f32 %v7471, %v7414
        %v7489 = vmul.f32 %v7486, %v7429
        %vm7490 = vcmask 9216
        %v7491 = vsel %vm7490, %v7487, 0.0
        %7492 = vadd.xlane.f32.xlu0 %v7491
        %v7493 = vpop.xlane.xlu0 %7492
        %v7494 = vsel %vm7490, %v7488, 0.0
        %7495 = vadd.xlane.f32.xlu0 %v7494
        %v7496 = vpop.xlane.xlu0 %7495
        %v7497 = vsel %vm7490, %v7489, 0.0
        %7498 = vadd.xlane.f32.xlu0 %v7497
        %v7499 = vpop.xlane.xlu0 %7498
        %vm7500 = vcmask 1041408
        %v7501 = vsel %vm7500, %v7493, 0.0
        %v7502 = vrot.slane %v7501, 4
        %v7503 = vadd.f32 %v7501, %v7502
        %v7504 = vrot.slane %v7503, 2
        %v7505 = vadd.f32 %v7503, %v7504
        %v7506 = vrot.slane %v7505, 1
        %v7507 = vadd.f32 %v7505, %v7506
        %v7508 = vsel %vm7500, %v7496, 0.0
        %v7509 = vrot.slane %v7508, 4
        %v7510 = vadd.f32 %v7508, %v7509
        %v7511 = vrot.slane %v7510, 2
        %v7512 = vadd.f32 %v7510, %v7511
        %v7513 = vrot.slane %v7512, 1
        %v7514 = vadd.f32 %v7512, %v7513
        %v7515 = vsel %vm7500, %v7499, 0.0
        %v7516 = vrot.slane %v7515, 4
        %v7517 = vadd.f32 %v7515, %v7516
        %v7518 = vrot.slane %v7517, 2
        %v7519 = vadd.f32 %v7517, %v7518
        %v7520 = vrot.slane %v7519, 1
        %v7521 = vadd.f32 %v7519, %v7520
        %v7522 = vmul.f32 %v7507, 0.25
        %v7523 = vmul.f32 %v7514, 0.25
        %v7524 = vmul.f32 %v7521, 0.25
        %v7525 = vmax.f32 %v7522, 0.0
        %v7526 = vmax.f32 %v7523, 0.0
        %v7527 = vmax.f32 %v7524, 0.0
        %vm7528 = vcmp.gt.f32.partialorder %v7525, 0.0
        %vm7529 = vcmp.gt.f32.partialorder %v7526, 0.0
        %vm7530 = vcmp.gt.f32.partialorder %v7527, 0.0
        %v7531 = vmax.f32 %v7525, 1e-30
        %v7532 = vmax.f32 %v7526, 1e-30
        %v7533 = vmax.f32 %v7527, 1e-30
        %v7534 = vlog2.pop %v7531
        %v7535 = vmul.f32 %v7534, 0.6931472
        %v7536 = vlog2.pop %v7532
        %v7537 = vmul.f32 %v7536, 0.6931472
        %v7538 = vlog2.pop %v7533
        %v7539 = vmul.f32 %v7538, 0.6931472
        %v7540 = vmul.f32 %v7535, 0.1333
        %v7541 = vmul.f32 %v7537, 0.1333
        %v7542 = vmul.f32 %v7539, 0.1333
        %v7543 = vmul.f32 %v7540, 1.442695
        %v7544 = vpow.pop %v7543
        %v7545 = vmul.f32 %v7541, 1.442695
        %v7546 = vpow.pop %v7545
        %v7547 = vmul.f32 %v7542, 1.442695
        %v7548 = vpow.pop %v7547
        %v7549 = vsel %vm7528, %v7544, 0.0
        %v7550 = vsel %vm7529, %v7546, 0.0
        %v7551 = vsel %vm7530, %v7548, 0.0
        %v7552 = vmul.f32 %v6485, %v7549
        %v7553 = vmul.f32 %v6486, %v7550
        %v7554 = vmul.f32 %v6487, %v7551
        %vm7555 = vcmask 1040384
        %v7556 = vsel %vm7555, %v7552, %v7553
        %v7557 = vsel %vm7500, %v7556, %v7554
        %7558 = vst [vmem:[%s819] sm:$0x7] %v7557
        %p7559 = scmp.lt.s32.totalorder %s41, 1
        %s7560 = scalar_select %p7559, %s41, 1
        %s7561 = smul.addr %s7560, 4
        %s7562 = scalar_lea.vmem %s20, %s7561
        // Predicated region
        $region141: #{tpu_custom_call.1} parent=99 // pred_check
          %p7563 = pneg %p489
        $region142: #{tpu_custom_call.1} parent=99 // pred_check_branch
          %7565 = sbr.rel (%p7563) target = $region144
        $region143: #{tpu_custom_call.1} parent=99 // pred_region
          _
        $region144: #{tpu_custom_call.1} parent=99 // pred_fallthru
          _
      $region100: #{tpu_custom_call.1} parent=5 // pred_fallthru
        _
      %p7566 = scmp.le.s32.totalorder 2, %s36
      // Predicated region
      $region145: #{tpu_custom_call.1} parent=5 // pred_check
        %p7567 = pneg %p7566
      $region146: #{tpu_custom_call.1} parent=5 // pred_check_branch
        %7569 = sbr.rel (%p7567) target = $region148
      $region147: #{tpu_custom_call.1} parent=5 // pred_region
        %s7570 = ssub.s32 %s36, 2
        // Predicated region
        $region149: #{tpu_custom_call.1} parent=147 // pred_check
          %p7571 = pneg %p495
        $region150: #{tpu_custom_call.1} parent=147 // pred_check_branch
          %7573 = sbr.rel (%p7571) target = $region152
        $region151: #{tpu_custom_call.1} parent=147 // pred_region
          %p7574 = scmp.lt.s32.totalorder %s42, 1
          %s7575 = scalar_select %p7574, %s42, 1
          %s7576 = smul.addr %s7575, 4
          %s7577 = scalar_lea.vmem %s20, %s7576
        $region152: #{tpu_custom_call.1} parent=147 // pred_fallthru
          _
      $region148: #{tpu_custom_call.1} parent=5 // pred_fallthru
        _
    $region6: #{tpu_custom_call.1} parent=1 // loop_footer
      %s40 = sadd.s32 1, %s36
    $region7: #{tpu_custom_call.1} parent=1 // loop_footer_branch
      %35 = sbr.rel target = $region3
    $region8: #{tpu_custom_call.1} parent=1 // loop_exit
      _
    %7578 = vsyncpa [#allocation3], 1
    %s7579 = scalar_lea.sflag [#allocation3], 1
    %7580 = vsyncpa %s7579, 1
    %7581 = vsyncpa [#allocation5], 1
    %s7582 = scalar_lea.sflag [#allocation5], 1
    %7583 = vsyncpa %s7582, 1
    %7584 = vsyncpa [#allocation8], 1
    %7585 = vsyncpa [#allocation11], 1
    %7586 = vsyncpa [#allocation14], 1
    %7587 = vsyncpa [#allocation17], 1

</llo_original>
